<compile_context>
chip_gen: v5e
topology: v5e:2x2
jax: 0.10.0
libtpu: 0.0.40
codegen_flags: <defaults>
</compile_context>

<pallas_src>
import functools
import math

import jax
import jax.numpy as jnp
from jax.experimental import pallas as pl
from jax.experimental.pallas import tpu as pltpu


# ----------------------------------------------------------------------------
# Tile-size helper (token dims are always padded to multiples of 128 by the
# wrapper, so a 128-aligned candidate always divides them).
# ----------------------------------------------------------------------------
def _pick_tile(dim, candidates):
    for c in candidates:
        if c <= dim and dim % c == 0:
            return c
    return dim


# ----------------------------------------------------------------------------
# Linear (matmul + bias [+ gelu]) kernel: full-K reduction, weight resident.
# ----------------------------------------------------------------------------
def _linear_kernel(x_ref, w_ref, b_ref, o_ref, *, activation):
    # x: [tm, K] bf16, w: [K, tn] bf16, b: [1, tn] f32, o: [tm, tn]
    y = jnp.dot(x_ref[...], w_ref[...], preferred_element_type=jnp.float32)
    y = y + b_ref[...].astype(jnp.float32)
    if activation == "gelu":
        # tanh-approx GELU.  TODO(synk): HF hidden_act='gelu' is erf-based.
        y = 0.5 * y * (1.0 + jnp.tanh(
            0.7978845608028654 * (y + 0.044715 * y * y * y)))
    o_ref[...] = y.astype(o_ref.dtype)


def linear(x, w, b, activation=None):
    M, K = x.shape
    _, N = w.shape
    # Full-K reduction; modest M tile + wide N tile keeps double-buffered
    # windows < ~13 MiB even for K=4096, tn=512 (fits v5e default scoped VMEM).
    tm = _pick_tile(M, (256, 128))
    tn = _pick_tile(N, (512, 256, 128))
    # Grid (N-tiles, M-tiles): weight block depends only on the slow axis j,
    # so it stays resident in VMEM while activation tiles stream.
    grid = (N // tn, M // tm)
    return pl.pallas_call(
        functools.partial(_linear_kernel, activation=activation),
        out_shape=jax.ShapeDtypeStruct((M, N), x.dtype),
        grid=grid,
        in_specs=[
            pl.BlockSpec((tm, K), lambda j, i: (i, 0)),
            pl.BlockSpec((K, tn), lambda j, i: (0, j)),
            pl.BlockSpec((1, tn), lambda j, i: (0, j)),
        ],
        out_specs=pl.BlockSpec((tm, tn), lambda j, i: (i, j)),
        compiler_params=pltpu.CompilerParams(
            dimension_semantics=("parallel", "parallel")),
    )(x, w, b.reshape(1, N))


# ----------------------------------------------------------------------------
# Row-tiled layernorm (with optional fused residual add), f32 internally.
# ----------------------------------------------------------------------------
def _layernorm_kernel(*refs, eps, has_residual):
    if has_residual:
        x_ref, r_ref, g_ref, b_ref, o_ref = refs
        x = x_ref[...].astype(jnp.float32) + r_ref[...].astype(jnp.float32)
    else:
        x_ref, g_ref, b_ref, o_ref = refs
        x = x_ref[...].astype(jnp.float32)
    mu = jnp.mean(x, axis=-1, keepdims=True)
    xc = x - mu
    var = jnp.mean(xc * xc, axis=-1, keepdims=True)
    y = xc * jax.lax.rsqrt(var + eps) * g_ref[...].astype(jnp.float32) \
        + b_ref[...].astype(jnp.float32)
    o_ref[...] = y.astype(o_ref.dtype)


def layernorm(x, gamma, beta, residual=None, eps=1e-12):
    M, H = x.shape
    # Cap at 512 rows: layernorm is HBM-bound; larger tiles only risk the
    # v5e 16 MiB scoped-VMEM default with a fused residual.
    tm = _pick_tile(M, (512, 256, 128))
    grid = (M // tm,)
    row_spec = pl.BlockSpec((tm, H), lambda i: (i, 0))
    vec_spec = pl.BlockSpec((1, H), lambda i: (0, 0))

    inputs = [x]
    in_specs = [row_spec]
    if residual is not None:
        inputs.append(residual)
        in_specs.append(row_spec)
    inputs += [gamma.reshape(1, H), beta.reshape(1, H)]
    in_specs += [vec_spec, vec_spec]

    return pl.pallas_call(
        functools.partial(_layernorm_kernel, eps=eps,
                          has_residual=residual is not None),
        out_shape=jax.ShapeDtypeStruct((M, H), x.dtype),
        grid=grid,
        in_specs=in_specs,
        out_specs=row_spec,
        compiler_params=pltpu.CompilerParams(
            dimension_semantics=("parallel",)),
    )(*inputs)


# ----------------------------------------------------------------------------
# Self-attention directly on the fused qkv [B, S, 3H].
#   grid = (B, head_chunks); each step handles `heads_per_chunk` heads whose
#   combined width (hc * dh) is a multiple of 128, so every q/k/v/output
#   block is 128-lane aligned (unmasked stores) and no XLA-side head
#   transposes are needed.  Mask bias is built in-kernel from [B, 1, S].
# ----------------------------------------------------------------------------
def _attention_kernel(q_ref, k_ref, v_ref, m_ref, o_ref, *,
                      scale, heads_per_chunk, head_dim):
    hc, dh = heads_per_chunk, head_dim
    key_bias = (1.0 - m_ref[0].astype(jnp.float32)) * -1e9      # [1, S]
    q2 = q_ref[0]                                               # [S, hc*dh] bf16
    k2 = k_ref[0]
    v2 = v_ref[0]

    outs = []
    for h in range(hc):                                         # unrolled, hc small
        sl = slice(h * dh, (h + 1) * dh)
        s = jnp.einsum("qd,kd->qk", q2[:, sl], k2[:, sl],
                       preferred_element_type=jnp.float32)      # [S, S] f32
        s = s * scale + key_bias
        s = s - jnp.max(s, axis=-1, keepdims=True)
        p = jnp.exp(s)
        p = p * pl.reciprocal(jnp.sum(p, axis=-1, keepdims=True), approx=True)
        outs.append(jnp.einsum("qk,kd->qd", p.astype(v2.dtype), v2[:, sl],
                               preferred_element_type=jnp.float32))
    o = outs[0] if hc == 1 else jnp.concatenate(outs, axis=-1)  # [S, hc*dh]
    o_ref[0] = o.astype(o_ref.dtype)


def _heads_per_chunk(num_heads, head_dim):
    if head_dim % 128 == 0:
        return 1
    if 128 % head_dim == 0:
        hc = 128 // head_dim
        if num_heads % hc == 0:
            return hc
    return num_heads            # fall back to all heads (H is 128-aligned)


def attention(qkv, mask, *, num_heads, head_dim, scale):
    # qkv: [B, S, 3H] (columns laid out [q | k | v]); mask: [B, 1, S]
    # TODO(synk): for very long sequences (S >= ~1-2K) switch to a flash-style
    # KV-tiled online-softmax so only a [tq, tk] score tile lives in VMEM.
    B, S, _ = qkv.shape
    H = num_heads * head_dim
    hc = _heads_per_chunk(num_heads, head_dim)
    C = hc * head_dim                    # chunk width, multiple of 128 (or = H)
    n_chunks = num_heads // hc

    def qkv_spec(part):                  # part: 0=q, 1=k, 2=v
        off = part * n_chunks
        return pl.BlockSpec((1, S, C), lambda b, c, off=off: (b, 0, off + c))

    return pl.pallas_call(
        functools.partial(_attention_kernel, scale=scale,
                          heads_per_chunk=hc, head_dim=head_dim),
        out_shape=jax.ShapeDtypeStruct((B, S, H), qkv.dtype),
        grid=(B, n_chunks),
        in_specs=[
            qkv_spec(0), qkv_spec(1), qkv_spec(2),
            pl.BlockSpec((1, 1, S), lambda b, c: (b, 0, 0)),
        ],
        out_specs=pl.BlockSpec((1, S, C), lambda b, c: (b, 0, c)),
        compiler_params=pltpu.CompilerParams(
            dimension_semantics=("parallel", "parallel")),
    )(qkv, qkv, qkv, mask)


# ----------------------------------------------------------------------------
# Model: parameters + forward pass (glue in plain JAX, hot paths in Pallas)
# ----------------------------------------------------------------------------
def init_params(key, *, vocab, max_pos, hidden, ffn, num_layers,
                dtype=jnp.bfloat16):
    keys = jax.random.split(key, 4 + num_layers)
    std = 0.02

    def norm(k, shape):
        return (std * jax.random.normal(k, shape)).astype(dtype)

    params = {
        "word_emb": norm(keys[0], (vocab, hidden)),
        "pos_emb": norm(keys[1], (max_pos, hidden)),
        "type_emb": norm(keys[2], (1, hidden)),          # token type 0 only
        "emb_ln_g": jnp.ones((hidden,), jnp.float32),
        "emb_ln_b": jnp.zeros((hidden,), jnp.float32),
        "layers": [],
    }
    for l in range(num_layers):
        lk = jax.random.split(keys[4 + l], 4)
        layer = {
            # fused Q/K/V projection: columns laid out as [q | k | v]
            "w_qkv": norm(lk[0], (hidden, 3 * hidden)),
            "b_qkv": jnp.zeros((3 * hidden,), jnp.float32),
            "wo": norm(lk[1], (hidden, hidden)),
            "bo": jnp.zeros((hidden,), jnp.float32),
            "ln1_g": jnp.ones((hidden,), jnp.float32),
            "ln1_b": jnp.zeros((hidden,), jnp.float32),
            "w1": norm(lk[2], (hidden, ffn)),
            "b1": jnp.zeros((ffn,), jnp.float32),
            "w2": norm(lk[3], (ffn, hidden)),
            "b2": jnp.zeros((hidden,), jnp.float32),
            "ln2_g": jnp.ones((hidden,), jnp.float32),
            "ln2_b": jnp.zeros((hidden,), jnp.float32),
        }
        params["layers"].append(layer)
    return params


def plm_token_encoder_forward(params, X, masks, *, num_heads):
    """Equivalent of PLMTokenEncoder.forward (AutoModel branch, eval mode).

    X:     [B, S] int32 token ids
    masks: [B, S] attention mask (1 = keep, 0 = pad)
    returns last_hidden_state after (identity) dropout: [B, S, H] float32
    """
    B, S = X.shape
    H = params["word_emb"].shape[1]
    assert H % num_heads == 0
    dh = H // num_heads
    scale = 1.0 / math.sqrt(dh)

    # Pad the sequence so S_pad (and hence B*S_pad) is a multiple of 128.
    # Padded keys carry mask=0, padded query rows are sliced off at the end.
    S_pad = ((S + 127) // 128) * 128
    if S_pad != S:
        X = jnp.pad(X, ((0, 0), (0, S_pad - S)))
        masks = jnp.pad(masks.astype(jnp.float32), ((0, 0), (0, S_pad - S)))
    assert params["pos_emb"].shape[0] >= S_pad, "max_pos must cover padded S"

    # --- embeddings (lookup is glue; layernorm is a Pallas kernel) ---
    h = params["word_emb"][X] + params["pos_emb"][:S_pad][None, :, :] \
        + params["type_emb"][0]
    h = h.reshape(B * S_pad, H)                                  # bf16
    h = layernorm(h, params["emb_ln_g"], params["emb_ln_b"])

    mask3 = masks.astype(jnp.float32).reshape(B, 1, S_pad)

    for layer in params["layers"]:
        # --- self-attention: fused QKV, no XLA-side head transposes ---
        qkv = linear(h, layer["w_qkv"], layer["b_qkv"])          # [B*S, 3H]
        qkv = qkv.reshape(B, S_pad, 3 * H)                       # free reshape
        ctx = attention(qkv, mask3, num_heads=num_heads,
                        head_dim=dh, scale=float(scale))         # [B, S, H]
        ctx = ctx.reshape(B * S_pad, H)                          # free reshape

        proj = linear(ctx, layer["wo"], layer["bo"])
        h = layernorm(proj, layer["ln1_g"], layer["ln1_b"], residual=h)

        # --- feed-forward ---
        inter = linear(h, layer["w1"], layer["b1"], activation="gelu")
        out = linear(inter, layer["w2"], layer["b2"])
        h = layernorm(out, layer["ln2_g"], layer["ln2_b"], residual=h)

    # dropout in eval mode == identity
    # TODO(synk): longformer global_attention_mask branch not modeled
    # (AutoModel path only).
    return h.reshape(B, S_pad, H)[:, :S, :].astype(jnp.float32)


# ----------------------------------------------------------------------------
if __name__ == "__main__":
    B, S, H = 2, 60, 128                 # S deliberately not 128-aligned
    NUM_HEADS, FFN, LAYERS = 2, 256, 2   # head_dim = 64 -> 2 heads per chunk
    VOCAB, MAX_POS = 100, 128

    key = jax.random.PRNGKey(0)
    k_param, k_tok = jax.random.split(key)

    params = init_params(k_param, vocab=VOCAB, max_pos=MAX_POS,
                         hidden=H, ffn=FFN, num_layers=LAYERS)

    X = jax.random.randint(k_tok, (B, S), 0, VOCAB, dtype=jnp.int32)
    masks = jnp.ones((B, S), jnp.float32).at[1, S - 5:].set(0.0)  # pad tail

    fwd = jax.jit(functools.partial(plm_token_encoder_forward,
                                    num_heads=NUM_HEADS))
    out = jax.block_until_ready(fwd(params, X, masks))

    assert out.shape == (B, S, H) and out.dtype == jnp.float32
    assert bool(jnp.all(jnp.isfinite(out)))
    print("KERNEL_OK")
</pallas_src>

<mosaic_0001>
module attributes {stable_mosaic.version = 11 : i64} {
  func.func @_linear_kernel(%arg0: i32, %arg1: i32, %arg2: memref<256x128xbf16, #tpu.memory_space<vmem>>, %arg3: memref<128x128xbf16, #tpu.memory_space<vmem>>, %arg4: memref<1x128xf32, #tpu.memory_space<vmem>>, %arg5: memref<256x128xbf16, #tpu.memory_space<vmem>>) attributes {dimension_semantics = [#tpu.dimension_semantics<parallel>, #tpu.dimension_semantics<parallel>], iteration_bounds = array<i64: 3, 1>, scalar_prefetch = 0 : i64, scratch_operands = 0 : i64, tpu.core_type = #tpu.core_type<tc>, window_params = [{transform_indices = @transform_0, window_bounds = array<i64: 256, 128>}, {transform_indices = @transform_1, window_bounds = array<i64: 128, 128>}, {transform_indices = @transform_2, window_bounds = array<i64: 1, 128>}, {transform_indices = @transform_3, window_bounds = array<i64: 256, 128>}]} {
    %c0 = arith.constant 0 : index
    %c0_0 = arith.constant 0 : index
    %0 = vector.load %arg2[%c0, %c0_0] : memref<256x128xbf16, #tpu.memory_space<vmem>>, vector<256x128xbf16>
    %c0_1 = arith.constant 0 : index
    %c0_2 = arith.constant 0 : index
    %1 = vector.load %arg3[%c0_1, %c0_2] : memref<128x128xbf16, #tpu.memory_space<vmem>>, vector<128x128xbf16>
    %cst = arith.constant dense<0.000000e+00> : vector<256x128xf32>
    %2 = tpu.matmul %0, %1, %cst {dimension_numbers = #tpu.dot_dimension_numbers<[1], [0], [0], [1], [0, 0, 1, 1], [], []>} : vector<256x128xbf16>, vector<128x128xbf16>, vector<256x128xf32> -> vector<256x128xf32>
    %c0_3 = arith.constant 0 : index
    %c0_4 = arith.constant 0 : index
    %3 = vector.load %arg4[%c0_3, %c0_4] : memref<1x128xf32, #tpu.memory_space<vmem>>, vector<1x128xf32>
    %4 = vector.broadcast %3 : vector<1x128xf32> to vector<256x128xf32>
    %5 = arith.addf %2, %4 : vector<256x128xf32>
    %6 = arith.truncf %5 : vector<256x128xf32> to vector<256x128xbf16>
    %c0_5 = arith.constant 0 : index
    %c0_6 = arith.constant 0 : index
    %7 = vector.load %arg5[%c0_5, %c0_6] : memref<256x128xbf16, #tpu.memory_space<vmem>>, vector<256x128xbf16>
    tpu.vector_store %arg5[%c0_5, %c0_6], %6 {strides = array<i32>} : memref<256x128xbf16, #tpu.memory_space<vmem>>, vector<256x128xbf16>,
    return
  }
  func.func @transform_0(%arg0: i32, %arg1: i32) -> (i32, i32) {
    %c0_i32 = arith.constant 0 : i32
    %c0_i32_0 = arith.constant 0 : i32
    return %arg1, %c0_i32 : i32, i32
  }
  func.func @transform_1(%arg0: i32, %arg1: i32) -> (i32, i32) {
    %c0_i32 = arith.constant 0 : i32
    %c0_i32_0 = arith.constant 0 : i32
    return %c0_i32, %arg0 : i32, i32
  }
  func.func @transform_2(%arg0: i32, %arg1: i32) -> (i32, i32) {
    %c0_i32 = arith.constant 0 : i32
    %c0_i32_0 = arith.constant 0 : i32
    return %c0_i32, %arg0 : i32, i32
  }
  func.func @transform_3(%arg0: i32, %arg1: i32) -> (i32, i32) {
    %c0_i32 = arith.constant 0 : i32
    return %arg1, %arg0 : i32, i32
  }
}

module attributes {stable_mosaic.version = 11 : i64} {
  func.func @_layernorm_kernel(%arg0: i32, %arg1: memref<256x128xbf16, #tpu.memory_space<vmem>>, %arg2: memref<1x128xf32, #tpu.memory_space<vmem>>, %arg3: memref<1x128xf32, #tpu.memory_space<vmem>>, %arg4: memref<256x128xbf16, #tpu.memory_space<vmem>>) attributes {dimension_semantics = [#tpu.dimension_semantics<parallel>], iteration_bounds = array<i64: 1>, scalar_prefetch = 0 : i64, scratch_operands = 0 : i64, tpu.core_type = #tpu.core_type<tc>, window_params = [{transform_indices = @transform_0, window_bounds = array<i64: 256, 128>}, {pipeline_mode = #tpu.pipeline_mode<synchronous>, transform_indices = @transform_1, window_bounds = array<i64: 1, 128>}, {pipeline_mode = #tpu.pipeline_mode<synchronous>, transform_indices = @transform_2, window_bounds = array<i64: 1, 128>}, {transform_indices = @transform_3, window_bounds = array<i64: 256, 128>}]} {
    %c0 = arith.constant 0 : index
    %c0_0 = arith.constant 0 : index
    %0 = vector.load %arg1[%c0, %c0_0] : memref<256x128xbf16, #tpu.memory_space<vmem>>, vector<256x128xbf16>
    %1 = arith.extf %0 : vector<256x128xbf16> to vector<256x128xf32>
    %cst = arith.constant dense<0.000000e+00> : vector<256xf32>
    %2 = vector.multi_reduction <add>, %1, %cst [1] : vector<256x128xf32> to vector<256xf32>
    %3 = vector.shape_cast %2 : vector<256xf32> to vector<256x1xf32>
    %cst_1 = arith.constant 1.280000e+02 : f32
    %4 = vector.broadcast %cst_1 : f32 to vector<256x1xf32>
    %5 = arith.divf %3, %4 : vector<256x1xf32>
    %6 = vector.broadcast %5 : vector<256x1xf32> to vector<256x128xf32>
    %7 = arith.subf %1, %6 : vector<256x128xf32>
    %8 = arith.mulf %7, %7 : vector<256x128xf32>
    %cst_2 = arith.constant dense<0.000000e+00> : vector<256xf32>
    %9 = vector.multi_reduction <add>, %8, %cst_2 [1] : vector<256x128xf32> to vector<256xf32>
    %10 = vector.shape_cast %9 : vector<256xf32> to vector<256x1xf32>
    %cst_3 = arith.constant 1.280000e+02 : f32
    %11 = vector.broadcast %cst_3 : f32 to vector<256x1xf32>
    %12 = arith.divf %10, %11 : vector<256x1xf32>
    %cst_4 = arith.constant 9.99999996E-13 : f32
    %13 = vector.broadcast %cst_4 : f32 to vector<256x1xf32>
    %14 = arith.addf %12, %13 : vector<256x1xf32>
    %15 = math.rsqrt %14 : vector<256x1xf32>
    %16 = vector.broadcast %15 : vector<256x1xf32> to vector<256x128xf32>
    %17 = arith.mulf %7, %16 : vector<256x128xf32>
    %c0_5 = arith.constant 0 : index
    %c0_6 = arith.constant 0 : index
    %18 = vector.load %arg2[%c0_5, %c0_6] : memref<1x128xf32, #tpu.memory_space<vmem>>, vector<1x128xf32>
    %19 = vector.broadcast %18 : vector<1x128xf32> to vector<256x128xf32>
    %20 = arith.mulf %17, %19 : vector<256x128xf32>
    %c0_7 = arith.constant 0 : index
    %c0_8 = arith.constant 0 : index
    %21 = vector.load %arg3[%c0_7, %c0_8] : memref<1x128xf32, #tpu.memory_space<vmem>>, vector<1x128xf32>
    %22 = vector.broadcast %21 : vector<1x128xf32> to vector<256x128xf32>
    %23 = arith.addf %20, %22 : vector<256x128xf32>
    %24 = arith.truncf %23 : vector<256x128xf32> to vector<256x128xbf16>
    %c0_9 = arith.constant 0 : index
    %c0_10 = arith.constant 0 : index
    %25 = vector.load %arg4[%c0_9, %c0_10] : memref<256x128xbf16, #tpu.memory_space<vmem>>, vector<256x128xbf16>
    tpu.vector_store %arg4[%c0_9, %c0_10], %24 {strides = array<i32>} : memref<256x128xbf16, #tpu.memory_space<vmem>>, vector<256x128xbf16>,
    return
  }
  func.func @transform_0(%arg0: i32) -> (i32, i32) {
    %c0_i32 = arith.constant 0 : i32
    %c0_i32_0 = arith.constant 0 : i32
    return %arg0, %c0_i32 : i32, i32
  }
  func.func @transform_1(%arg0: i32) -> (i32, i32) {
    %c0_i32 = arith.constant 0 : i32
    %c0_i32_0 = arith.constant 0 : i32
    %c0_i32_1 = arith.constant 0 : i32
    return %c0_i32, %c0_i32_0 : i32, i32
  }
  func.func @transform_2(%arg0: i32) -> (i32, i32) {
    %c0_i32 = arith.constant 0 : i32
    %c0_i32_0 = arith.constant 0 : i32
    %c0_i32_1 = arith.constant 0 : i32
    return %c0_i32, %c0_i32_0 : i32, i32
  }
  func.func @transform_3(%arg0: i32) -> (i32, i32) {
    %c0_i32 = arith.constant 0 : i32
    %c0_i32_0 = arith.constant 0 : i32
    return %arg0, %c0_i32 : i32, i32
  }
}

module attributes {stable_mosaic.version = 11 : i64} {
  func.func @_attention_kernel(%arg0: i32, %arg1: i32, %arg2: memref<1x128x128xbf16, #tpu.memory_space<vmem>>, %arg3: memref<1x128x128xbf16, #tpu.memory_space<vmem>>, %arg4: memref<1x128x128xbf16, #tpu.memory_space<vmem>>, %arg5: memref<1x1x128xf32, #tpu.memory_space<vmem>>, %arg6: memref<1x128x128xbf16, #tpu.memory_space<vmem>>) attributes {dimension_semantics = [#tpu.dimension_semantics<parallel>, #tpu.dimension_semantics<parallel>], iteration_bounds = array<i64: 2, 1>, scalar_prefetch = 0 : i64, scratch_operands = 0 : i64, tpu.core_type = #tpu.core_type<tc>, window_params = [{transform_indices = @transform_0, window_bounds = array<i64: 1, 128, 128>}, {transform_indices = @transform_1, window_bounds = array<i64: 1, 128, 128>}, {transform_indices = @transform_2, window_bounds = array<i64: 1, 128, 128>}, {transform_indices = @transform_3, window_bounds = array<i64: 1, 1, 128>}, {transform_indices = @transform_4, window_bounds = array<i64: 1, 128, 128>}]} {
    %c0 = arith.constant 0 : index
    %c0_0 = arith.constant 0 : index
    %c0_1 = arith.constant 0 : index
    %0 = vector.load %arg5[%c0, %c0_0, %c0_1] : memref<1x1x128xf32, #tpu.memory_space<vmem>>, vector<1x1x128xf32>
    %1 = vector.shape_cast %0 : vector<1x1x128xf32> to vector<1x128xf32>
    %cst = arith.constant 1.000000e+00 : f32
    %2 = vector.broadcast %cst : f32 to vector<1x128xf32>
    %3 = arith.subf %2, %1 : vector<1x128xf32>
    %cst_2 = arith.constant -1.000000e+09 : f32
    %4 = vector.broadcast %cst_2 : f32 to vector<1x128xf32>
    %5 = arith.mulf %3, %4 : vector<1x128xf32>
    %c0_3 = arith.constant 0 : index
    %c0_4 = arith.constant 0 : index
    %c0_5 = arith.constant 0 : index
    %6 = vector.load %arg2[%c0_3, %c0_4, %c0_5] : memref<1x128x128xbf16, #tpu.memory_space<vmem>>, vector<1x128x128xbf16>
    %7 = vector.shape_cast %6 : vector<1x128x128xbf16> to vector<128x128xbf16>
    %c0_6 = arith.constant 0 : index
    %c0_7 = arith.constant 0 : index
    %c0_8 = arith.constant 0 : index
    %8 = vector.load %arg3[%c0_6, %c0_7, %c0_8] : memref<1x128x128xbf16, #tpu.memory_space<vmem>>, vector<1x128x128xbf16>
    %9 = vector.shape_cast %8 : vector<1x128x128xbf16> to vector<128x128xbf16>
    %c0_9 = arith.constant 0 : index
    %c0_10 = arith.constant 0 : index
    %c0_11 = arith.constant 0 : index
    %10 = vector.load %arg4[%c0_9, %c0_10, %c0_11] : memref<1x128x128xbf16, #tpu.memory_space<vmem>>, vector<1x128x128xbf16>
    %11 = vector.shape_cast %10 : vector<1x128x128xbf16> to vector<128x128xbf16>
    %12 = vector.extract_strided_slice %7 {offsets = [0, 0], sizes = [128, 64], strides = [1, 1]} : vector<128x128xbf16> to vector<128x64xbf16>
    %13 = vector.extract_strided_slice %9 {offsets = [0, 0], sizes = [128, 64], strides = [1, 1]} : vector<128x128xbf16> to vector<128x64xbf16>
    "tpu.trace_start"() <{level = 10 : i32, message = "qd,kd->qk"}> : () -> ()
    %cst_12 = arith.constant dense<0.000000e+00> : vector<128x128xf32>
    %14 = tpu.matmul %12, %13, %cst_12 {dimension_numbers = #tpu.dot_dimension_numbers<[1], [1], [0], [0], [0, 0, 1, 0], [], []>} : vector<128x64xbf16>, vector<128x64xbf16>, vector<128x128xf32> -> vector<128x128xf32>
    "tpu.trace_stop"() : () -> ()
    %cst_13 = arith.constant 1.250000e-01 : f32
    %15 = vector.broadcast %cst_13 : f32 to vector<128x128xf32>
    %16 = arith.mulf %14, %15 : vector<128x128xf32>
    %17 = vector.broadcast %5 : vector<1x128xf32> to vector<128x128xf32>
    %18 = arith.addf %16, %17 : vector<128x128xf32>
    %cst_14 = arith.constant dense<0xFF800000> : vector<128xf32>
    %19 = vector.multi_reduction <maximumf>, %18, %cst_14 [1] : vector<128x128xf32> to vector<128xf32>
    %20 = vector.shape_cast %19 : vector<128xf32> to vector<128x1xf32>
    %21 = vector.broadcast %20 : vector<128x1xf32> to vector<128x128xf32>
    %22 = arith.subf %18, %21 : vector<128x128xf32>
    %23 = math.exp %22 : vector<128x128xf32>
    %cst_15 = arith.constant dense<0.000000e+00> : vector<128xf32>
    %24 = vector.multi_reduction <add>, %23, %cst_15 [1] : vector<128x128xf32> to vector<128xf32>
    %25 = vector.shape_cast %24 : vector<128xf32> to vector<128x1xf32>
    %26 = tpu.reciprocal %25 {approx = true} : vector<128x1xf32> -> vector<128x1xf32>
    %27 = vector.broadcast %26 : vector<128x1xf32> to vector<128x128xf32>
    %28 = arith.mulf %23, %27 : vector<128x128xf32>
    %29 = arith.truncf %28 : vector<128x128xf32> to vector<128x128xbf16>
    %30 = vector.extract_strided_slice %11 {offsets = [0, 0], sizes = [128, 64], strides = [1, 1]} : vector<128x128xbf16> to vector<128x64xbf16>
    "tpu.trace_start"() <{level = 10 : i32, message = "qk,kd->qd"}> : () -> ()
    %cst_16 = arith.constant dense<0.000000e+00> : vector<128x64xf32>
    %31 = tpu.matmul %29, %30, %cst_16 {dimension_numbers = #tpu.dot_dimension_numbers<[1], [0], [0], [1], [0, 0, 1, 1], [], []>} : vector<128x128xbf16>, vector<128x64xbf16>, vector<128x64xf32> -> vector<128x64xf32>
    "tpu.trace_stop"() : () -> ()
    %32 = vector.extract_strided_slice %7 {offsets = [0, 64], sizes = [128, 64], strides = [1, 1]} : vector<128x128xbf16> to vector<128x64xbf16>
    %33 = vector.extract_strided_slice %9 {offsets = [0, 64], sizes = [128, 64], strides = [1, 1]} : vector<128x128xbf16> to vector<128x64xbf16>
    "tpu.trace_start"() <{level = 10 : i32, message = "qd,kd->qk"}> : () -> ()
    %cst_17 = arith.constant dense<0.000000e+00> : vector<128x128xf32>
    %34 = tpu.matmul %32, %33, %cst_17 {dimension_numbers = #tpu.dot_dimension_numbers<[1], [1], [0], [0], [0, 0, 1, 0], [], []>} : vector<128x64xbf16>, vector<128x64xbf16>, vector<128x128xf32> -> vector<128x128xf32>
    "tpu.trace_stop"() : () -> ()
    %cst_18 = arith.constant 1.250000e-01 : f32
    %35 = vector.broadcast %cst_18 : f32 to vector<128x128xf32>
    %36 = arith.mulf %34, %35 : vector<128x128xf32>
    %37 = vector.broadcast %5 : vector<1x128xf32> to vector<128x128xf32>
    %38 = arith.addf %36, %37 : vector<128x128xf32>
    %cst_19 = arith.constant dense<0xFF800000> : vector<128xf32>
    %39 = vector.multi_reduction <maximumf>, %38, %cst_19 [1] : vector<128x128xf32> to vector<128xf32>
    %40 = vector.shape_cast %39 : vector<128xf32> to vector<128x1xf32>
    %41 = vector.broadcast %40 : vector<128x1xf32> to vector<128x128xf32>
    %42 = arith.subf %38, %41 : vector<128x128xf32>
    %43 = math.exp %42 : vector<128x128xf32>
    %cst_20 = arith.constant dense<0.000000e+00> : vector<128xf32>
    %44 = vector.multi_reduction <add>, %43, %cst_20 [1] : vector<128x128xf32> to vector<128xf32>
    %45 = vector.shape_cast %44 : vector<128xf32> to vector<128x1xf32>
    %46 = tpu.reciprocal %45 {approx = true} : vector<128x1xf32> -> vector<128x1xf32>
    %47 = vector.broadcast %46 : vector<128x1xf32> to vector<128x128xf32>
    %48 = arith.mulf %43, %47 : vector<128x128xf32>
    %49 = arith.truncf %48 : vector<128x128xf32> to vector<128x128xbf16>
    %50 = vector.extract_strided_slice %11 {offsets = [0, 64], sizes = [128, 64], strides = [1, 1]} : vector<128x128xbf16> to vector<128x64xbf16>
    "tpu.trace_start"() <{level = 10 : i32, message = "qk,kd->qd"}> : () -> ()
    %cst_21 = arith.constant dense<0.000000e+00> : vector<128x64xf32>
    %51 = tpu.matmul %49, %50, %cst_21 {dimension_numbers = #tpu.dot_dimension_numbers<[1], [0], [0], [1], [0, 0, 1, 1], [], []>} : vector<128x128xbf16>, vector<128x64xbf16>, vector<128x64xf32> -> vector<128x64xf32>
    "tpu.trace_stop"() : () -> ()
    %52 = tpu.concatenate %31, %51 in 1 : vector<128x64xf32>, vector<128x64xf32> -> vector<128x128xf32>
    %53 = arith.truncf %52 : vector<128x128xf32> to vector<128x128xbf16>
    %c0_22 = arith.constant 0 : index
    %c0_23 = arith.constant 0 : index
    %c0_24 = arith.constant 0 : index
    %54 = vector.load %arg6[%c0_22, %c0_23, %c0_24] : memref<1x128x128xbf16, #tpu.memory_space<vmem>>, vector<1x128x128xbf16>
    %55 = vector.shape_cast %54 : vector<1x128x128xbf16> to vector<128x128xbf16>
    %56 = vector.shape_cast %53 : vector<128x128xbf16> to vector<1x128x128xbf16>
    tpu.vector_store %arg6[%c0_22, %c0_23, %c0_24], %56 {strides = array<i32>} : memref<1x128x128xbf16, #tpu.memory_space<vmem>>, vector<1x128x128xbf16>,
    return
  }
  func.func @transform_0(%arg0: i32, %arg1: i32) -> (i32, i32, i32) {
    %c0_i32 = arith.constant 0 : i32
    %0 = arith.addi %c0_i32, %arg1 : i32
    %c0_i32_0 = arith.constant 0 : i32
    %c0_i32_1 = arith.constant 0 : i32
    return %arg0, %c0_i32_0, %0 : i32, i32, i32
  }
  func.func @transform_1(%arg0: i32, %arg1: i32) -> (i32, i32, i32) {
    %c1_i32 = arith.constant 1 : i32
    %0 = arith.addi %c1_i32, %arg1 : i32
    %c0_i32 = arith.constant 0 : i32
    %c0_i32_0 = arith.constant 0 : i32
    return %arg0, %c0_i32, %0 : i32, i32, i32
  }
  func.func @transform_2(%arg0: i32, %arg1: i32) -> (i32, i32, i32) {
    %c2_i32 = arith.constant 2 : i32
    %0 = arith.addi %c2_i32, %arg1 : i32
    %c0_i32 = arith.constant 0 : i32
    %c0_i32_0 = arith.constant 0 : i32
    return %arg0, %c0_i32, %0 : i32, i32, i32
  }
  func.func @transform_3(%arg0: i32, %arg1: i32) -> (i32, i32, i32) {
    %c0_i32 = arith.constant 0 : i32
    %c0_i32_0 = arith.constant 0 : i32
    %c0_i32_1 = arith.constant 0 : i32
    return %arg0, %c0_i32, %c0_i32_0 : i32, i32, i32
  }
  func.func @transform_4(%arg0: i32, %arg1: i32) -> (i32, i32, i32) {
    %c0_i32 = arith.constant 0 : i32
    %c0_i32_0 = arith.constant 0 : i32
    return %arg0, %c0_i32, %arg1 : i32, i32, i32
  }
}

module attributes {stable_mosaic.version = 11 : i64} {
  func.func @_linear_kernel(%arg0: i32, %arg1: i32, %arg2: memref<256x128xbf16, #tpu.memory_space<vmem>>, %arg3: memref<128x128xbf16, #tpu.memory_space<vmem>>, %arg4: memref<1x128xf32, #tpu.memory_space<vmem>>, %arg5: memref<256x128xbf16, #tpu.memory_space<vmem>>) attributes {dimension_semantics = [#tpu.dimension_semantics<parallel>, #tpu.dimension_semantics<parallel>], iteration_bounds = array<i64: 1, 1>, scalar_prefetch = 0 : i64, scratch_operands = 0 : i64, tpu.core_type = #tpu.core_type<tc>, window_params = [{transform_indices = @transform_0, window_bounds = array<i64: 256, 128>}, {transform_indices = @transform_1, window_bounds = array<i64: 128, 128>}, {transform_indices = @transform_2, window_bounds = array<i64: 1, 128>}, {transform_indices = @transform_3, window_bounds = array<i64: 256, 128>}]} {
    %c0 = arith.constant 0 : index
    %c0_0 = arith.constant 0 : index
    %0 = vector.load %arg2[%c0, %c0_0] : memref<256x128xbf16, #tpu.memory_space<vmem>>, vector<256x128xbf16>
    %c0_1 = arith.constant 0 : index
    %c0_2 = arith.constant 0 : index
    %1 = vector.load %arg3[%c0_1, %c0_2] : memref<128x128xbf16, #tpu.memory_space<vmem>>, vector<128x128xbf16>
    %cst = arith.constant dense<0.000000e+00> : vector<256x128xf32>
    %2 = tpu.matmul %0, %1, %cst {dimension_numbers = #tpu.dot_dimension_numbers<[1], [0], [0], [1], [0, 0, 1, 1], [], []>} : vector<256x128xbf16>, vector<128x128xbf16>, vector<256x128xf32> -> vector<256x128xf32>
    %c0_3 = arith.constant 0 : index
    %c0_4 = arith.constant 0 : index
    %3 = vector.load %arg4[%c0_3, %c0_4] : memref<1x128xf32, #tpu.memory_space<vmem>>, vector<1x128xf32>
    %4 = vector.broadcast %3 : vector<1x128xf32> to vector<256x128xf32>
    %5 = arith.addf %2, %4 : vector<256x128xf32>
    %6 = arith.truncf %5 : vector<256x128xf32> to vector<256x128xbf16>
    %c0_5 = arith.constant 0 : index
    %c0_6 = arith.constant 0 : index
    %7 = vector.load %arg5[%c0_5, %c0_6] : memref<256x128xbf16, #tpu.memory_space<vmem>>, vector<256x128xbf16>
    tpu.vector_store %arg5[%c0_5, %c0_6], %6 {strides = array<i32>} : memref<256x128xbf16, #tpu.memory_space<vmem>>, vector<256x128xbf16>,
    return
  }
  func.func @transform_0(%arg0: i32, %arg1: i32) -> (i32, i32) {
    %c0_i32 = arith.constant 0 : i32
    %c0_i32_0 = arith.constant 0 : i32
    return %arg1, %c0_i32 : i32, i32
  }
  func.func @transform_1(%arg0: i32, %arg1: i32) -> (i32, i32) {
    %c0_i32 = arith.constant 0 : i32
    %c0_i32_0 = arith.constant 0 : i32
    return %c0_i32, %arg0 : i32, i32
  }
  func.func @transform_2(%arg0: i32, %arg1: i32) -> (i32, i32) {
    %c0_i32 = arith.constant 0 : i32
    %c0_i32_0 = arith.constant 0 : i32
    return %c0_i32, %arg0 : i32, i32
  }
  func.func @transform_3(%arg0: i32, %arg1: i32) -> (i32, i32) {
    %c0_i32 = arith.constant 0 : i32
    return %arg1, %arg0 : i32, i32
  }
}

module attributes {stable_mosaic.version = 11 : i64} {
  func.func @_layernorm_kernel(%arg0: i32, %arg1: memref<256x128xbf16, #tpu.memory_space<vmem>>, %arg2: memref<256x128xbf16, #tpu.memory_space<vmem>>, %arg3: memref<1x128xf32, #tpu.memory_space<vmem>>, %arg4: memref<1x128xf32, #tpu.memory_space<vmem>>, %arg5: memref<256x128xbf16, #tpu.memory_space<vmem>>) attributes {dimension_semantics = [#tpu.dimension_semantics<parallel>], iteration_bounds = array<i64: 1>, scalar_prefetch = 0 : i64, scratch_operands = 0 : i64, tpu.core_type = #tpu.core_type<tc>, window_params = [{transform_indices = @transform_0, window_bounds = array<i64: 256, 128>}, {transform_indices = @transform_1, window_bounds = array<i64: 256, 128>}, {pipeline_mode = #tpu.pipeline_mode<synchronous>, transform_indices = @transform_2, window_bounds = array<i64: 1, 128>}, {pipeline_mode = #tpu.pipeline_mode<synchronous>, transform_indices = @transform_3, window_bounds = array<i64: 1, 128>}, {transform_indices = @transform_4, window_bounds = array<i64: 256, 128>}]} {
    %c0 = arith.constant 0 : index
    %c0_0 = arith.constant 0 : index
    %0 = vector.load %arg1[%c0, %c0_0] : memref<256x128xbf16, #tpu.memory_space<vmem>>, vector<256x128xbf16>
    %1 = arith.extf %0 : vector<256x128xbf16> to vector<256x128xf32>
    %c0_1 = arith.constant 0 : index
    %c0_2 = arith.constant 0 : index
    %2 = vector.load %arg2[%c0_1, %c0_2] : memref<256x128xbf16, #tpu.memory_space<vmem>>, vector<256x128xbf16>
    %3 = arith.extf %2 : vector<256x128xbf16> to vector<256x128xf32>
    %4 = arith.addf %1, %3 : vector<256x128xf32>
    %cst = arith.constant dense<0.000000e+00> : vector<256xf32>
    %5 = vector.multi_reduction <add>, %4, %cst [1] : vector<256x128xf32> to vector<256xf32>
    %6 = vector.shape_cast %5 : vector<256xf32> to vector<256x1xf32>
    %cst_3 = arith.constant 1.280000e+02 : f32
    %7 = vector.broadcast %cst_3 : f32 to vector<256x1xf32>
    %8 = arith.divf %6, %7 : vector<256x1xf32>
    %9 = vector.broadcast %8 : vector<256x1xf32> to vector<256x128xf32>
    %10 = arith.subf %4, %9 : vector<256x128xf32>
    %11 = arith.mulf %10, %10 : vector<256x128xf32>
    %cst_4 = arith.constant dense<0.000000e+00> : vector<256xf32>
    %12 = vector.multi_reduction <add>, %11, %cst_4 [1] : vector<256x128xf32> to vector<256xf32>
    %13 = vector.shape_cast %12 : vector<256xf32> to vector<256x1xf32>
    %cst_5 = arith.constant 1.280000e+02 : f32
    %14 = vector.broadcast %cst_5 : f32 to vector<256x1xf32>
    %15 = arith.divf %13, %14 : vector<256x1xf32>
    %cst_6 = arith.constant 9.99999996E-13 : f32
    %16 = vector.broadcast %cst_6 : f32 to vector<256x1xf32>
    %17 = arith.addf %15, %16 : vector<256x1xf32>
    %18 = math.rsqrt %17 : vector<256x1xf32>
    %19 = vector.broadcast %18 : vector<256x1xf32> to vector<256x128xf32>
    %20 = arith.mulf %10, %19 : vector<256x128xf32>
    %c0_7 = arith.constant 0 : index
    %c0_8 = arith.constant 0 : index
    %21 = vector.load %arg3[%c0_7, %c0_8] : memref<1x128xf32, #tpu.memory_space<vmem>>, vector<1x128xf32>
    %22 = vector.broadcast %21 : vector<1x128xf32> to vector<256x128xf32>
    %23 = arith.mulf %20, %22 : vector<256x128xf32>
    %c0_9 = arith.constant 0 : index
    %c0_10 = arith.constant 0 : index
    %24 = vector.load %arg4[%c0_9, %c0_10] : memref<1x128xf32, #tpu.memory_space<vmem>>, vector<1x128xf32>
    %25 = vector.broadcast %24 : vector<1x128xf32> to vector<256x128xf32>
    %26 = arith.addf %23, %25 : vector<256x128xf32>
    %27 = arith.truncf %26 : vector<256x128xf32> to vector<256x128xbf16>
    %c0_11 = arith.constant 0 : index
    %c0_12 = arith.constant 0 : index
    %28 = vector.load %arg5[%c0_11, %c0_12] : memref<256x128xbf16, #tpu.memory_space<vmem>>, vector<256x128xbf16>
    tpu.vector_store %arg5[%c0_11, %c0_12], %27 {strides = array<i32>} : memref<256x128xbf16, #tpu.memory_space<vmem>>, vector<256x128xbf16>,
    return
  }
  func.func @transform_0(%arg0: i32) -> (i32, i32) {
    %c0_i32 = arith.constant 0 : i32
    %c0_i32_0 = arith.constant 0 : i32
    return %arg0, %c0_i32 : i32, i32
  }
  func.func @transform_1(%arg0: i32) -> (i32, i32) {
    %c0_i32 = arith.constant 0 : i32
    %c0_i32_0 = arith.constant 0 : i32
    return %arg0, %c0_i32 : i32, i32
  }
  func.func @transform_2(%arg0: i32) -> (i32, i32) {
    %c0_i32 = arith.constant 0 : i32
    %c0_i32_0 = arith.constant 0 : i32
    %c0_i32_1 = arith.constant 0 : i32
    return %c0_i32, %c0_i32_0 : i32, i32
  }
  func.func @transform_3(%arg0: i32) -> (i32, i32) {
    %c0_i32 = arith.constant 0 : i32
    %c0_i32_0 = arith.constant 0 : i32
    %c0_i32_1 = arith.constant 0 : i32
    return %c0_i32, %c0_i32_0 : i32, i32
  }
  func.func @transform_4(%arg0: i32) -> (i32, i32) {
    %c0_i32 = arith.constant 0 : i32
    %c0_i32_0 = arith.constant 0 : i32
    return %arg0, %c0_i32 : i32, i32
  }
}

module attributes {stable_mosaic.version = 11 : i64} {
  func.func @_linear_kernel(%arg0: i32, %arg1: i32, %arg2: memref<256x128xbf16, #tpu.memory_space<vmem>>, %arg3: memref<128x256xbf16, #tpu.memory_space<vmem>>, %arg4: memref<1x256xf32, #tpu.memory_space<vmem>>, %arg5: memref<256x256xbf16, #tpu.memory_space<vmem>>) attributes {dimension_semantics = [#tpu.dimension_semantics<parallel>, #tpu.dimension_semantics<parallel>], iteration_bounds = array<i64: 1, 1>, scalar_prefetch = 0 : i64, scratch_operands = 0 : i64, tpu.core_type = #tpu.core_type<tc>, window_params = [{transform_indices = @transform_0, window_bounds = array<i64: 256, 128>}, {transform_indices = @transform_1, window_bounds = array<i64: 128, 256>}, {transform_indices = @transform_2, window_bounds = array<i64: 1, 256>}, {transform_indices = @transform_3, window_bounds = array<i64: 256, 256>}]} {
    %c0 = arith.constant 0 : index
    %c0_0 = arith.constant 0 : index
    %0 = vector.load %arg2[%c0, %c0_0] : memref<256x128xbf16, #tpu.memory_space<vmem>>, vector<256x128xbf16>
    %c0_1 = arith.constant 0 : index
    %c0_2 = arith.constant 0 : index
    %1 = vector.load %arg3[%c0_1, %c0_2] : memref<128x256xbf16, #tpu.memory_space<vmem>>, vector<128x256xbf16>
    %cst = arith.constant dense<0.000000e+00> : vector<256x256xf32>
    %2 = tpu.matmul %0, %1, %cst {dimension_numbers = #tpu.dot_dimension_numbers<[1], [0], [0], [1], [0, 0, 1, 1], [], []>} : vector<256x128xbf16>, vector<128x256xbf16>, vector<256x256xf32> -> vector<256x256xf32>
    %c0_3 = arith.constant 0 : index
    %c0_4 = arith.constant 0 : index
    %3 = vector.load %arg4[%c0_3, %c0_4] : memref<1x256xf32, #tpu.memory_space<vmem>>, vector<1x256xf32>
    %4 = vector.broadcast %3 : vector<1x256xf32> to vector<256x256xf32>
    %5 = arith.addf %2, %4 : vector<256x256xf32>
    %cst_5 = arith.constant 5.000000e-01 : f32
    %6 = vector.broadcast %cst_5 : f32 to vector<256x256xf32>
    %7 = arith.mulf %6, %5 : vector<256x256xf32>
    %cst_6 = arith.constant 4.471500e-02 : f32
    %8 = vector.broadcast %cst_6 : f32 to vector<256x256xf32>
    %9 = arith.mulf %8, %5 : vector<256x256xf32>
    %10 = arith.mulf %9, %5 : vector<256x256xf32>
    %11 = arith.mulf %10, %5 : vector<256x256xf32>
    %12 = arith.addf %5, %11 : vector<256x256xf32>
    %cst_7 = arith.constant 0.797884583 : f32
    %13 = vector.broadcast %cst_7 : f32 to vector<256x256xf32>
    %14 = arith.mulf %13, %12 : vector<256x256xf32>
    %15 = math.tanh %14 : vector<256x256xf32>
    %cst_8 = arith.constant 1.000000e+00 : f32
    %16 = vector.broadcast %cst_8 : f32 to vector<256x256xf32>
    %17 = arith.addf %16, %15 : vector<256x256xf32>
    %18 = arith.mulf %7, %17 : vector<256x256xf32>
    %19 = arith.truncf %18 : vector<256x256xf32> to vector<256x256xbf16>
    %c0_9 = arith.constant 0 : index
    %c0_10 = arith.constant 0 : index
    %20 = vector.load %arg5[%c0_9, %c0_10] : memref<256x256xbf16, #tpu.memory_space<vmem>>, vector<256x256xbf16>
    tpu.vector_store %arg5[%c0_9, %c0_10], %19 {strides = array<i32>} : memref<256x256xbf16, #tpu.memory_space<vmem>>, vector<256x256xbf16>,
    return
  }
  func.func @transform_0(%arg0: i32, %arg1: i32) -> (i32, i32) {
    %c0_i32 = arith.constant 0 : i32
    %c0_i32_0 = arith.constant 0 : i32
    return %arg1, %c0_i32 : i32, i32
  }
  func.func @transform_1(%arg0: i32, %arg1: i32) -> (i32, i32) {
    %c0_i32 = arith.constant 0 : i32
    %c0_i32_0 = arith.constant 0 : i32
    return %c0_i32, %arg0 : i32, i32
  }
  func.func @transform_2(%arg0: i32, %arg1: i32) -> (i32, i32) {
    %c0_i32 = arith.constant 0 : i32
    %c0_i32_0 = arith.constant 0 : i32
    return %c0_i32, %arg0 : i32, i32
  }
  func.func @transform_3(%arg0: i32, %arg1: i32) -> (i32, i32) {
    %c0_i32 = arith.constant 0 : i32
    return %arg1, %arg0 : i32, i32
  }
}

module attributes {stable_mosaic.version = 11 : i64} {
  func.func @_linear_kernel(%arg0: i32, %arg1: i32, %arg2: memref<256x256xbf16, #tpu.memory_space<vmem>>, %arg3: memref<256x128xbf16, #tpu.memory_space<vmem>>, %arg4: memref<1x128xf32, #tpu.memory_space<vmem>>, %arg5: memref<256x128xbf16, #tpu.memory_space<vmem>>) attributes {dimension_semantics = [#tpu.dimension_semantics<parallel>, #tpu.dimension_semantics<parallel>], iteration_bounds = array<i64: 1, 1>, scalar_prefetch = 0 : i64, scratch_operands = 0 : i64, tpu.core_type = #tpu.core_type<tc>, window_params = [{transform_indices = @transform_0, window_bounds = array<i64: 256, 256>}, {transform_indices = @transform_1, window_bounds = array<i64: 256, 128>}, {transform_indices = @transform_2, window_bounds = array<i64: 1, 128>}, {transform_indices = @transform_3, window_bounds = array<i64: 256, 128>}]} {
    %c0 = arith.constant 0 : index
    %c0_0 = arith.constant 0 : index
    %0 = vector.load %arg2[%c0, %c0_0] : memref<256x256xbf16, #tpu.memory_space<vmem>>, vector<256x256xbf16>
    %c0_1 = arith.constant 0 : index
    %c0_2 = arith.constant 0 : index
    %1 = vector.load %arg3[%c0_1, %c0_2] : memref<256x128xbf16, #tpu.memory_space<vmem>>, vector<256x128xbf16>
    %cst = arith.constant dense<0.000000e+00> : vector<256x128xf32>
    %2 = tpu.matmul %0, %1, %cst {dimension_numbers = #tpu.dot_dimension_numbers<[1], [0], [0], [1], [0, 0, 1, 1], [], []>} : vector<256x256xbf16>, vector<256x128xbf16>, vector<256x128xf32> -> vector<256x128xf32>
    %c0_3 = arith.constant 0 : index
    %c0_4 = arith.constant 0 : index
    %3 = vector.load %arg4[%c0_3, %c0_4] : memref<1x128xf32, #tpu.memory_space<vmem>>, vector<1x128xf32>
    %4 = vector.broadcast %3 : vector<1x128xf32> to vector<256x128xf32>
    %5 = arith.addf %2, %4 : vector<256x128xf32>
    %6 = arith.truncf %5 : vector<256x128xf32> to vector<256x128xbf16>
    %c0_5 = arith.constant 0 : index
    %c0_6 = arith.constant 0 : index
    %7 = vector.load %arg5[%c0_5, %c0_6] : memref<256x128xbf16, #tpu.memory_space<vmem>>, vector<256x128xbf16>
    tpu.vector_store %arg5[%c0_5, %c0_6], %6 {strides = array<i32>} : memref<256x128xbf16, #tpu.memory_space<vmem>>, vector<256x128xbf16>,
    return
  }
  func.func @transform_0(%arg0: i32, %arg1: i32) -> (i32, i32) {
    %c0_i32 = arith.constant 0 : i32
    %c0_i32_0 = arith.constant 0 : i32
    return %arg1, %c0_i32 : i32, i32
  }
  func.func @transform_1(%arg0: i32, %arg1: i32) -> (i32, i32) {
    %c0_i32 = arith.constant 0 : i32
    %c0_i32_0 = arith.constant 0 : i32
    return %c0_i32, %arg0 : i32, i32
  }
  func.func @transform_2(%arg0: i32, %arg1: i32) -> (i32, i32) {
    %c0_i32 = arith.constant 0 : i32
    %c0_i32_0 = arith.constant 0 : i32
    return %c0_i32, %arg0 : i32, i32
  }
  func.func @transform_3(%arg0: i32, %arg1: i32) -> (i32, i32) {
    %c0_i32 = arith.constant 0 : i32
    return %arg1, %arg0 : i32, i32
  }
}

</mosaic_0001>

<llo_original>
// kernel: plm_token_encoder_forward.16
$region0: #{plm_token_encoder_forward.16}
  #allocation0 [shape = 'u32[]', space=smem, size = 0x4, offset = 0x4, fixed_abs, tag = 'smem constant byte address 0x4 - core index']
  #allocation1 [shape = 'u32[72,128]{1,0:T(1,128)}', space=vmem, size = 0x9000, scoped, tag = 'internal scratch']
  %s0 = inlined_call_operand.vmem [shape: bf16[256,128], index: 0, kind: input, shape index: {}]
  %s1 = inlined_call_operand.vmem [shape: bf16[128,384], index: 1, kind: input, shape index: {}]
  %s2 = inlined_call_operand.vmem [shape: f32[1,384], index: 2, kind: input, shape index: {}]
  %s3 = inlined_call_operand.vmem [shape: bf16[256,384], index: 3, kind: output, shape index: {}]
  %s4 = sld [smem:[#allocation0]]
  $region123: #{plm_token_encoder_forward.16} parent=0
    _
  %s6 = ssub.s32 1, %s4
  %s7 = scalar_select 0, %s6, %s4
  $region1: #{plm_token_encoder_forward.16} parent=0
    #allocation2 [shape = 'u8[65536]{0}', space=vmem, size = 0x10000, scoped, tag = 'input window, operand 1']
    #allocation3 [shape = 'u8[131072]{0}', space=vmem, size = 0x20000, scoped, tag = 'output window, operand 0']
    loop: start=0, step=1, limit=5
    $region2: #{plm_token_encoder_forward.16} parent=1 // loop_pre_header
      _
    $region3: #{plm_token_encoder_forward.16} parent=1 // loop_header
      %s9 = sphi 0, %s13
      %p10 = scmp.ge.s32.totalorder %s9, 5
      %s16 = sphi 0, %s28
      %s17 = sphi 0, %s24
      %s18 = sphi 0, %s16
      %s19 = sphi 0, %s17
      %s20 = sphi 0, %s18
      %s21 = sphi 0, %s19
      %s31 = sphi 0, %s33
      %s34 = sphi 0, %s31
      %s35 = sphi 0, %s34
      %s51 = sphi 0, %s35
      %s57 = sphi 0, %s59
      %s60 = sphi 0, %s57
      %s61 = sphi 0, %s60
      %s77 = sphi 0, %s61
      %s83 = sphi 0, %s85
      %s86 = sphi 0, %s83
      %s87 = sphi 0, %s86
      %s103 = sphi 0, %s87
      %s111 = sphi 0, %s113
      %s114 = sphi 0, %s111
      %s115 = sphi 0, %s114
      %s131 = sphi 0, %s115
    $region4: #{plm_token_encoder_forward.16} parent=1 // loop_header_branch
      %12 = sbr.rel (%p10) target = $region8
    $region5: #{plm_token_encoder_forward.16} parent=1 // loop_body
      %s14 = ssub.s32 %s9, 1
      %s15 = ssub.s32 %s9, 2
      %s22 = sadd.s32 1, %s17
      %p23 = scmp.ge.s32.totalorder %s22, 1
      %s24 = scalar_select %p23, 0, %s22
      %s25 = sadd.s32 1, %s16
      %s26 = scalar_select %p23, %s25, %s16
      %p27 = scmp.ge.s32.totalorder %s26, 3
      %s28 = scalar_select %p27, 0, %s26
      %s29 = ssub.s32 %s17, %s24
      %p30 = scmp.eq.s32.totalorder %s29, 0
      %s32 = sadd.s32 %s31, 1
      %s33 = scalar_select %p30, %s31, %s32
      %p36 = pneg %p30
      %p37 = scmp.eq.s32.totalorder %s9, 2
      %p38 = por %p36, %p37
      %p39 = scmp.ne.s32.totalorder %s31, %s34
      %p40 = scmp.eq.s32.totalorder %s9, 0
      %p41 = por %p39, %p40
      %p42 = scmp.ne.s32.totalorder %s31, %s34
      %p43 = scmp.eq.s32.totalorder %s14, 2
      %p44 = por %p42, %p43
      %p45 = scmp.ne.s32.totalorder %s34, %s35
      %p46 = scmp.eq.s32.totalorder %s14, 0
      %p47 = por %p45, %p46
      %p48 = scmp.ne.s32.totalorder %s34, %s35
      %p49 = scmp.eq.s32.totalorder %s15, 2
      %p50 = por %p48, %p49
      %p52 = scmp.ne.s32.totalorder %s35, %s51
      %p53 = scmp.eq.s32.totalorder %s15, 0
      %p54 = por %p52, %p53
      %s55 = ssub.s32 %s16, %s28
      %p56 = scmp.eq.s32.totalorder %s55, 0
      %s58 = sadd.s32 %s57, 1
      %s59 = scalar_select %p56, %s57, %s58
      %p62 = pneg %p56
      %p63 = scmp.eq.s32.totalorder %s9, 2
      %p64 = por %p62, %p63
      %p65 = scmp.ne.s32.totalorder %s57, %s60
      %p66 = scmp.eq.s32.totalorder %s9, 0
      %p67 = por %p65, %p66
      %p68 = scmp.ne.s32.totalorder %s57, %s60
      %p69 = scmp.eq.s32.totalorder %s14, 2
      %p70 = por %p68, %p69
      %p71 = scmp.ne.s32.totalorder %s60, %s61
      %p72 = scmp.eq.s32.totalorder %s14, 0
      %p73 = por %p71, %p72
      %p74 = scmp.ne.s32.totalorder %s60, %s61
      %p75 = scmp.eq.s32.totalorder %s15, 2
      %p76 = por %p74, %p75
      %p78 = scmp.ne.s32.totalorder %s61, %s77
      %p79 = scmp.eq.s32.totalorder %s15, 0
      %p80 = por %p78, %p79
      %s81 = ssub.s32 %s16, %s28
      %p82 = scmp.eq.s32.totalorder %s81, 0
      %s84 = sadd.s32 %s83, 1
      %s85 = scalar_select %p82, %s83, %s84
      %p88 = pneg %p82
      %p89 = scmp.eq.s32.totalorder %s9, 2
      %p90 = por %p88, %p89
      %p91 = scmp.ne.s32.totalorder %s83, %s86
      %p92 = scmp.eq.s32.totalorder %s9, 0
      %p93 = por %p91, %p92
      %p94 = scmp.ne.s32.totalorder %s83, %s86
      %p95 = scmp.eq.s32.totalorder %s14, 2
      %p96 = por %p94, %p95
      %p97 = scmp.ne.s32.totalorder %s86, %s87
      %p98 = scmp.eq.s32.totalorder %s14, 0
      %p99 = por %p97, %p98
      %p100 = scmp.ne.s32.totalorder %s86, %s87
      %p101 = scmp.eq.s32.totalorder %s15, 2
      %p102 = por %p100, %p101
      %p104 = scmp.ne.s32.totalorder %s87, %s103
      %p105 = scmp.eq.s32.totalorder %s15, 0
      %p106 = por %p104, %p105
      %s107 = ssub.s32 %s17, %s24
      %s108 = ssub.s32 %s16, %s28
      %s109 = sor.u32 %s107, %s108
      %p110 = scmp.eq.s32.totalorder %s109, 0
      %s112 = sadd.s32 %s111, 1
      %s113 = scalar_select %p110, %s111, %s112
      %p116 = pneg %p110
      %p117 = scmp.eq.s32.totalorder %s9, 2
      %p118 = por %p116, %p117
      %p119 = scmp.ne.s32.totalorder %s111, %s114
      %p120 = scmp.eq.s32.totalorder %s9, 0
      %p121 = por %p119, %p120
      %p122 = scmp.ne.s32.totalorder %s111, %s114
      %p123 = scmp.eq.s32.totalorder %s14, 2
      %p124 = por %p122, %p123
      %p125 = scmp.ne.s32.totalorder %s114, %s115
      %p126 = scmp.eq.s32.totalorder %s14, 0
      %p127 = por %p125, %p126
      %p128 = scmp.ne.s32.totalorder %s114, %s115
      %p129 = scmp.eq.s32.totalorder %s15, 2
      %p130 = por %p128, %p129
      %p132 = scmp.ne.s32.totalorder %s115, %s131
      %p133 = scmp.eq.s32.totalorder %s15, 0
      %p134 = por %p132, %p133
      %p135 = scmp.le.s32.totalorder 1, %s9
      %p136 = scmp.lt.s32.totalorder %s9, 4
      %p137 = pnand %p135, %p136
      %p138 = pneg %p137
      // Predicated region
      $region9: #{plm_token_encoder_forward.16} parent=5 // pred_check
        _
      $region10: #{plm_token_encoder_forward.16} parent=5 // pred_check_branch
        %140 = sbr.rel (%p137) target = $region12
      $region11: #{plm_token_encoder_forward.16} parent=5 // pred_region
        %s141 = ssub.s32 %s9, 1
        // Predicated region
        $region13: #{plm_token_encoder_forward.16} parent=11 // pred_check
          %p142 = pneg %p47
        $region14: #{plm_token_encoder_forward.16} parent=11 // pred_check_branch
          %144 = sbr.rel (%p142) target = $region16
        $region15: #{plm_token_encoder_forward.16} parent=11 // pred_region
          %s145 = smul.u32 32, %s19
          %p146 = scmp.lt.s32.totalorder %s145, 31
          %s147 = scalar_select %p146, %s145, 31
          %s148 = smul.addr %s147, 4
          %s149 = scalar_lea.vmem %s0, %s148
          %s150 = smul.u32 32, %s19
        $region16: #{plm_token_encoder_forward.16} parent=11 // pred_fallthru
          _
      $region12: #{plm_token_encoder_forward.16} parent=5 // pred_fallthru
        _
      %p151 = scmp.lt.s32.totalorder %s9, 3
      // Predicated region
      $region17: #{plm_token_encoder_forward.16} parent=5 // pred_check
        %p152 = pneg %p151
      $region18: #{plm_token_encoder_forward.16} parent=5 // pred_check_branch
        %154 = sbr.rel (%p152) target = $region20
      $region19: #{plm_token_encoder_forward.16} parent=5 // pred_region
        // Predicated region
        $region21: #{plm_token_encoder_forward.16} parent=19 // pred_check
          %p155 = pneg %p67
        $region22: #{plm_token_encoder_forward.16} parent=19 // pred_check_branch
          %157 = sbr.rel (%p155) target = $region24
        $region23: #{plm_token_encoder_forward.16} parent=19 // pred_region
          %s158 = sand.u32 %s57, 1
          %s159 = sand.u32 %s57, 1
          %s160 = smul.addr %s159, 64
          %s161 = scalar_lea.vmem [#allocation2], %s160
          %s162 = smul.addr %s16, 4
          %s163 = scalar_lea.vmem %s1, %s162
          // Predicated region
          $region25: #{plm_token_encoder_forward.16} parent=23 // pred_check
            _
          $region26: #{plm_token_encoder_forward.16} parent=23 // pred_check_branch
            %165 = sbr.rel (0) target = $region28
          $region27: #{plm_token_encoder_forward.16} parent=23 // pred_region
            // Predicated region
            $region29: #{plm_token_encoder_forward.16} parent=27 // pred_check
              _
            $region30: #{plm_token_encoder_forward.16} parent=27 // pred_check_branch
              %167 = sbr.rel target = $region32
            $region31: #{plm_token_encoder_forward.16} parent=27 // pred_region
              // Predicated region
              $region44: #{plm_token_encoder_forward.16} parent=31 // pred_check
                _
              $region45: #{plm_token_encoder_forward.16} parent=31 // pred_check_branch
                %213 = sbr.rel (0) target = $region47
              $region46: #{plm_token_encoder_forward.16} parent=31 // pred_region
                loop: start=0, step=1, limit=1
                $region48: #{plm_token_encoder_forward.16} parent=46 // loop_pre_header
                  _
                $region49: #{plm_token_encoder_forward.16} parent=46 // loop_header
                  %s215 = sphi 0, %s219
                  %p216 = scmp.ge.s32.totalorder %s215, 1
                  %s220 = sphi %s163, %s163
                  %s221 = sphi %s161, %s161
                $region50: #{plm_token_encoder_forward.16} parent=46 // loop_header_branch
                  %218 = sbr.rel (%p216) target = $region54
                $region51: #{plm_token_encoder_forward.16} parent=46 // loop_body
                  _
                $region52: #{plm_token_encoder_forward.16} parent=46 // loop_footer
                  %s219 = sadd.s32 1, %s215
                $region53: #{plm_token_encoder_forward.16} parent=46 // loop_footer_branch
                  %214 = sbr.rel target = $region49
                $region54: #{plm_token_encoder_forward.16} parent=46 // loop_exit
                  _
                %s223 = ssub.s32 16, 1
                loop: start=0, step=1, limit=1
                $region55: #{plm_token_encoder_forward.16} parent=46 // loop_pre_header
                  _
                $region56: #{plm_token_encoder_forward.16} parent=46 // loop_header
                  %s225 = sphi 0, %s229
                  %p226 = scmp.ge.s32.totalorder %s225, 1
                  %s230 = sphi %s163, %s163
                  %s231 = sphi %s161, %s161
                $region57: #{plm_token_encoder_forward.16} parent=46 // loop_header_branch
                  %228 = sbr.rel (%p226) target = $region61
                $region58: #{plm_token_encoder_forward.16} parent=46 // loop_body
                  %v232 = vld [vmem:[%s230] sm:%s223]
                  %233 = vst [vmem:[%s231] sm:%s223] %v232
                  %v234 = vld [vmem:[%s230 + $0xc] sm:%s223]
                  %235 = vst [vmem:[%s231 + $0x4] sm:%s223] %v234
                  %v236 = vld [vmem:[%s230 + $0x18] sm:%s223]
                  %237 = vst [vmem:[%s231 + $0x8] sm:%s223] %v236
                  %v238 = vld [vmem:[%s230 + $0x24] sm:%s223]
                  %239 = vst [vmem:[%s231 + $0xc] sm:%s223] %v238
                  %v240 = vld [vmem:[%s230 + $0x30] sm:%s223]
                  %241 = vst [vmem:[%s231 + $0x10] sm:%s223] %v240
                  %v242 = vld [vmem:[%s230 + $0x3c] sm:%s223]
                  %243 = vst [vmem:[%s231 + $0x14] sm:%s223] %v242
                  %v244 = vld [vmem:[%s230 + $0x48] sm:%s223]
                  %245 = vst [vmem:[%s231 + $0x18] sm:%s223] %v244
                  %v246 = vld [vmem:[%s230 + $0x54] sm:%s223]
                  %247 = vst [vmem:[%s231 + $0x1c] sm:%s223] %v246
                  %v248 = vld [vmem:[%s230 + $0x60] sm:%s223]
                  %249 = vst [vmem:[%s231 + $0x20] sm:%s223] %v248
                  %v250 = vld [vmem:[%s230 + $0x6c] sm:%s223]
                  %251 = vst [vmem:[%s231 + $0x24] sm:%s223] %v250
                  %v252 = vld [vmem:[%s230 + $0x78] sm:%s223]
                  %253 = vst [vmem:[%s231 + $0x28] sm:%s223] %v252
                  %v254 = vld [vmem:[%s230 + $0x84] sm:%s223]
                  %255 = vst [vmem:[%s231 + $0x2c] sm:%s223] %v254
                  %v256 = vld [vmem:[%s230 + $0x90] sm:%s223]
                  %257 = vst [vmem:[%s231 + $0x30] sm:%s223] %v256
                  %v258 = vld [vmem:[%s230 + $0x9c] sm:%s223]
                  %259 = vst [vmem:[%s231 + $0x34] sm:%s223] %v258
                  %v260 = vld [vmem:[%s230 + $0xa8] sm:%s223]
                  %261 = vst [vmem:[%s231 + $0x38] sm:%s223] %v260
                  %v262 = vld [vmem:[%s230 + $0xb4] sm:%s223]
                  %263 = vst [vmem:[%s231 + $0x3c] sm:%s223] %v262
                $region59: #{plm_token_encoder_forward.16} parent=46 // loop_footer
                  %s229 = sadd.s32 1, %s225
                $region60: #{plm_token_encoder_forward.16} parent=46 // loop_footer_branch
                  %224 = sbr.rel target = $region56
                $region61: #{plm_token_encoder_forward.16} parent=46 // loop_exit
                  _
              $region47: #{plm_token_encoder_forward.16} parent=31 // pred_fallthru
                _
            $region32: #{plm_token_encoder_forward.16} parent=27 // pred_fallthru
              _
            // Predicated region
            $region33: #{plm_token_encoder_forward.16} parent=27 // pred_check
              _
            $region34: #{plm_token_encoder_forward.16} parent=27 // pred_check_branch
              %169 = sbr.rel (0) target = $region36
            $region35: #{plm_token_encoder_forward.16} parent=27 // pred_region
              %s171 = ssub.s32 16, 1
              loop: start=0, step=1, limit=1
              $region37: #{plm_token_encoder_forward.16} parent=35 // loop_pre_header
                _
              $region38: #{plm_token_encoder_forward.16} parent=35 // loop_header
                %s173 = sphi 0, %s177
                %p174 = scmp.ge.s32.totalorder %s173, 1
                %s178 = sphi %s163, %s163
                %s179 = sphi %s161, %s161
              $region39: #{plm_token_encoder_forward.16} parent=35 // loop_header_branch
                %176 = sbr.rel (%p174) target = $region43
              $region40: #{plm_token_encoder_forward.16} parent=35 // loop_body
                %v180 = vld [vmem:[%s178] sm:%s171]
                %181 = vst [vmem:[%s179] sm:%s171] %v180
                %v182 = vld [vmem:[%s178 + $0xc] sm:%s171]
                %183 = vst [vmem:[%s179 + $0x4] sm:%s171] %v182
                %v184 = vld [vmem:[%s178 + $0x18] sm:%s171]
                %185 = vst [vmem:[%s179 + $0x8] sm:%s171] %v184
                %v186 = vld [vmem:[%s178 + $0x24] sm:%s171]
                %187 = vst [vmem:[%s179 + $0xc] sm:%s171] %v186
                %v188 = vld [vmem:[%s178 + $0x30] sm:%s171]
                %189 = vst [vmem:[%s179 + $0x10] sm:%s171] %v188
                %v190 = vld [vmem:[%s178 + $0x3c] sm:%s171]
                %191 = vst [vmem:[%s179 + $0x14] sm:%s171] %v190
                %v192 = vld [vmem:[%s178 + $0x48] sm:%s171]
                %193 = vst [vmem:[%s179 + $0x18] sm:%s171] %v192
                %v194 = vld [vmem:[%s178 + $0x54] sm:%s171]
                %195 = vst [vmem:[%s179 + $0x1c] sm:%s171] %v194
                %v196 = vld [vmem:[%s178 + $0x60] sm:%s171]
                %197 = vst [vmem:[%s179 + $0x20] sm:%s171] %v196
                %v198 = vld [vmem:[%s178 + $0x6c] sm:%s171]
                %199 = vst [vmem:[%s179 + $0x24] sm:%s171] %v198
                %v200 = vld [vmem:[%s178 + $0x78] sm:%s171]
                %201 = vst [vmem:[%s179 + $0x28] sm:%s171] %v200
                %v202 = vld [vmem:[%s178 + $0x84] sm:%s171]
                %203 = vst [vmem:[%s179 + $0x2c] sm:%s171] %v202
                %v204 = vld [vmem:[%s178 + $0x90] sm:%s171]
                %205 = vst [vmem:[%s179 + $0x30] sm:%s171] %v204
                %v206 = vld [vmem:[%s178 + $0x9c] sm:%s171]
                %207 = vst [vmem:[%s179 + $0x34] sm:%s171] %v206
                %v208 = vld [vmem:[%s178 + $0xa8] sm:%s171]
                %209 = vst [vmem:[%s179 + $0x38] sm:%s171] %v208
                %v210 = vld [vmem:[%s178 + $0xb4] sm:%s171]
                %211 = vst [vmem:[%s179 + $0x3c] sm:%s171] %v210
              $region41: #{plm_token_encoder_forward.16} parent=35 // loop_footer
                %s177 = sadd.s32 1, %s173
              $region42: #{plm_token_encoder_forward.16} parent=35 // loop_footer_branch
                %172 = sbr.rel target = $region38
              $region43: #{plm_token_encoder_forward.16} parent=35 // loop_exit
                _
            $region36: #{plm_token_encoder_forward.16} parent=27 // pred_fallthru
              _
          $region28: #{plm_token_encoder_forward.16} parent=23 // pred_fallthru
            _
          %264 = vnop
        $region24: #{plm_token_encoder_forward.16} parent=19 // pred_fallthru
          _
        // Predicated region
        $region62: #{plm_token_encoder_forward.16} parent=19 // pred_check
          %p265 = pneg %p93
        $region63: #{plm_token_encoder_forward.16} parent=19 // pred_check_branch
          %267 = sbr.rel (%p265) target = $region65
        $region64: #{plm_token_encoder_forward.16} parent=19 // pred_region
          %p268 = scmp.lt.s32.totalorder %s16, 2
          %s269 = scalar_select %p268, %s16, 2
          %s270 = scalar_lea.vmem %s2, %s269
        $region65: #{plm_token_encoder_forward.16} parent=19 // pred_fallthru
          _
      $region20: #{plm_token_encoder_forward.16} parent=5 // pred_fallthru
        _
      %p271 = scmp.le.s32.totalorder 1, %s9
      %p272 = scmp.lt.s32.totalorder %s9, 4
      %p273 = pnand %p271, %p272
      %p274 = pneg %p273
      // Predicated region
      $region66: #{plm_token_encoder_forward.16} parent=5 // pred_check
        _
      $region67: #{plm_token_encoder_forward.16} parent=5 // pred_check_branch
        %276 = sbr.rel (%p273) target = $region69
      $region68: #{plm_token_encoder_forward.16} parent=5 // pred_region
        %s277 = ssub.s32 %s9, 1
        %s278 = sand.u32 %s60, 1
        %s279 = sand.u32 %s60, 1
        %s280 = smul.addr %s279, 64
        %s281 = scalar_lea.vmem [#allocation2], %s280
        // Predicated region
        $region70: #{plm_token_encoder_forward.16} parent=68 // pred_check
          %p282 = pneg %p73
        $region71: #{plm_token_encoder_forward.16} parent=68 // pred_check_branch
          %284 = sbr.rel (%p282) target = $region73
        $region72: #{plm_token_encoder_forward.16} parent=68 // pred_region
          _
        $region73: #{plm_token_encoder_forward.16} parent=68 // pred_fallthru
          _
        %s285 = smul.u32 32, %s19
        %p286 = scmp.lt.s32.totalorder %s285, 31
        %s287 = scalar_select %p286, %s285, 31
        %s288 = smul.addr %s287, 4
        %s289 = scalar_lea.vmem %s0, %s288
        %p290 = pneg %p47
        %p291 = pneg %p44
        %s292 = sand.u32 %s60, 1
        %s293 = sand.u32 %s60, 1
        %s294 = smul.addr %s293, 64
        %s295 = scalar_lea.vmem [#allocation2], %s294
        %p296 = pneg %p73
        %p297 = pneg %p70
        %p298 = scmp.lt.s32.totalorder %s18, 2
        %s299 = scalar_select %p298, %s18, 2
        %s300 = scalar_lea.vmem %s2, %s299
        %p301 = pneg %p99
        %p302 = pneg %p96
        %p303 = pneg %p127
        %p304 = pneg %p124
        %s305 = sand.u32 %s114, 1
        %s306 = sand.u32 %s114, 1
        %s307 = smul.addr %s306, 128
        %s308 = scalar_lea.vmem [#allocation3], %s307
        %s309 = smul.u32 32, %s19
        %p310 = scmp.lt.s32.totalorder %s309, 31
        %s311 = scalar_select %p310, %s309, 31
        %s312 = smul.addr %s311, 4
        %s313 = scalar_lea.vmem %s0, %s312
        %s314 = smul.u32 32, %s19
        %p315 = scmp.lt.s32.totalorder %s18, 2
        %s316 = scalar_select %p315, %s18, 2
        %s317 = scalar_lea.vmem %s2, %s316
        %s318 = smul.u32 32, %s19
        %v319 = vld [vmem:[%s313] sm:$0xf]
        %v320 = vld [vmem:[%s313 + $0x4] sm:$0xf]
        %v321 = vld [vmem:[%s313 + $0x8] sm:$0xf]
        %v322 = vld [vmem:[%s313 + $0xc] sm:$0xf]
        %v323 = vld [vmem:[%s313 + $0x10] sm:$0xf]
        %v324 = vld [vmem:[%s313 + $0x14] sm:$0xf]
        %v325 = vld [vmem:[%s313 + $0x18] sm:$0xf]
        %v326 = vld [vmem:[%s313 + $0x1c] sm:$0xf]
        %v327 = vld [vmem:[%s313 + $0x20] sm:$0xf]
        %v328 = vld [vmem:[%s313 + $0x24] sm:$0xf]
        %v329 = vld [vmem:[%s313 + $0x28] sm:$0xf]
        %v330 = vld [vmem:[%s313 + $0x2c] sm:$0xf]
        %v331 = vld [vmem:[%s313 + $0x30] sm:$0xf]
        %v332 = vld [vmem:[%s313 + $0x34] sm:$0xf]
        %v333 = vld [vmem:[%s313 + $0x38] sm:$0xf]
        %v334 = vld [vmem:[%s313 + $0x3c] sm:$0xf]
        %v335 = vld [vmem:[%s313 + $0x40] sm:$0xf]
        %v336 = vld [vmem:[%s313 + $0x44] sm:$0xf]
        %v337 = vld [vmem:[%s313 + $0x48] sm:$0xf]
        %v338 = vld [vmem:[%s313 + $0x4c] sm:$0xf]
        %v339 = vld [vmem:[%s313 + $0x50] sm:$0xf]
        %v340 = vld [vmem:[%s313 + $0x54] sm:$0xf]
        %v341 = vld [vmem:[%s313 + $0x58] sm:$0xf]
        %v342 = vld [vmem:[%s313 + $0x5c] sm:$0xf]
        %v343 = vld [vmem:[%s313 + $0x60] sm:$0xf]
        %v344 = vld [vmem:[%s313 + $0x64] sm:$0xf]
        %v345 = vld [vmem:[%s313 + $0x68] sm:$0xf]
        %v346 = vld [vmem:[%s313 + $0x6c] sm:$0xf]
        %v347 = vld [vmem:[%s313 + $0x70] sm:$0xf]
        %v348 = vld [vmem:[%s313 + $0x74] sm:$0xf]
        %v349 = vld [vmem:[%s313 + $0x78] sm:$0xf]
        %v350 = vld [vmem:[%s313 + $0x7c] sm:$0xf]
        %v351 = vld [vmem:[%s281] sm:$0xf]
        %v352 = vld [vmem:[%s281 + $0x4] sm:$0xf]
        %v353 = vld [vmem:[%s281 + $0x8] sm:$0xf]
        %v354 = vld [vmem:[%s281 + $0xc] sm:$0xf]
        %v355 = vld [vmem:[%s281 + $0x10] sm:$0xf]
        %v356 = vld [vmem:[%s281 + $0x14] sm:$0xf]
        %v357 = vld [vmem:[%s281 + $0x18] sm:$0xf]
        %v358 = vld [vmem:[%s281 + $0x1c] sm:$0xf]
        %v359 = vld [vmem:[%s281 + $0x20] sm:$0xf]
        %v360 = vld [vmem:[%s281 + $0x24] sm:$0xf]
        %v361 = vld [vmem:[%s281 + $0x28] sm:$0xf]
        %v362 = vld [vmem:[%s281 + $0x2c] sm:$0xf]
        %v363 = vld [vmem:[%s281 + $0x30] sm:$0xf]
        %v364 = vld [vmem:[%s281 + $0x34] sm:$0xf]
        %v365 = vld [vmem:[%s281 + $0x38] sm:$0xf]
        %v366 = vld [vmem:[%s281 + $0x3c] sm:$0xf]
        %v367 = vld [vmem:[%s317] sm:$0x1]
        %v369 = vperm.slane %v367, 0
        %v403 = vunpack.c.l.b16 %v319
        %v404 = vunpack.c.l.b16 %v320
        %v405 = vunpack.c.l.b16 %v321
        %v406 = vunpack.c.l.b16 %v322
        %v407 = vunpack.c.l.b16 %v323
        %v408 = vunpack.c.l.b16 %v324
        %v409 = vunpack.c.l.b16 %v325
        %v410 = vunpack.c.l.b16 %v326
        %v411 = vunpack.c.l.b16 %v327
        %v412 = vunpack.c.l.b16 %v328
        %v413 = vunpack.c.l.b16 %v329
        %v414 = vunpack.c.l.b16 %v330
        %v415 = vunpack.c.l.b16 %v331
        %v416 = vunpack.c.l.b16 %v332
        %v417 = vunpack.c.l.b16 %v333
        %v418 = vunpack.c.l.b16 %v334
        %v419 = vunpack.c.l.b16 %v335
        %v420 = vunpack.c.l.b16 %v336
        %v421 = vunpack.c.l.b16 %v337
        %v422 = vunpack.c.l.b16 %v338
        %v423 = vunpack.c.l.b16 %v339
        %v424 = vunpack.c.l.b16 %v340
        %v425 = vunpack.c.l.b16 %v341
        %v426 = vunpack.c.l.b16 %v342
        %v427 = vunpack.c.l.b16 %v343
        %v428 = vunpack.c.l.b16 %v344
        %v429 = vunpack.c.l.b16 %v345
        %v430 = vunpack.c.l.b16 %v346
        %v431 = vunpack.c.l.b16 %v347
        %v432 = vunpack.c.l.b16 %v348
        %v433 = vunpack.c.l.b16 %v349
        %v434 = vunpack.c.l.b16 %v350
        %v435 = vpack.c.b16 %v404, %v403
        %v436 = vpack.c.b16 %v406, %v405
        %v437 = vpack.c.b16 %v408, %v407
        %v438 = vpack.c.b16 %v410, %v409
        %v439 = vpack.c.b16 %v412, %v411
        %v440 = vpack.c.b16 %v414, %v413
        %v441 = vpack.c.b16 %v416, %v415
        %v442 = vpack.c.b16 %v418, %v417
        %v443 = vpack.c.b16 %v420, %v419
        %v444 = vpack.c.b16 %v422, %v421
        %v445 = vpack.c.b16 %v424, %v423
        %v446 = vpack.c.b16 %v426, %v425
        %v447 = vpack.c.b16 %v428, %v427
        %v448 = vpack.c.b16 %v430, %v429
        %v449 = vpack.c.b16 %v432, %v431
        %v450 = vpack.c.b16 %v434, %v433
        %v483 = vunpack.c.l.b16 %v351
        %v484 = vunpack.c.l.b16 %v352
        %v485 = vunpack.c.l.b16 %v353
        %v486 = vunpack.c.l.b16 %v354
        %v487 = vunpack.c.l.b16 %v355
        %v488 = vunpack.c.l.b16 %v356
        %v489 = vunpack.c.l.b16 %v357
        %v490 = vunpack.c.l.b16 %v358
        %v491 = vunpack.c.l.b16 %v359
        %v492 = vunpack.c.l.b16 %v360
        %v493 = vunpack.c.l.b16 %v361
        %v494 = vunpack.c.l.b16 %v362
        %v495 = vunpack.c.l.b16 %v363
        %v496 = vunpack.c.l.b16 %v364
        %v497 = vunpack.c.l.b16 %v365
        %v498 = vunpack.c.l.b16 %v366
        %v499 = vpack.c.b16 %v484, %v483
        %v500 = vpack.c.b16 %v486, %v485
        %v501 = vpack.c.b16 %v488, %v487
        %v502 = vpack.c.b16 %v490, %v489
        %v503 = vpack.c.b16 %v492, %v491
        %v504 = vpack.c.b16 %v494, %v493
        %v505 = vpack.c.b16 %v496, %v495
        %v506 = vpack.c.b16 %v498, %v497
        %515 = vmatpush.bf16.msra.mxu0 %v506
        %516 = vmatpush.bf16.msra.mxu0 %v505
        %517 = vmatpush.bf16.msra.mxu0 %v504
        %518 = vmatpush.bf16.msra.mxu0 %v503
        %519 = vmatpush.bf16.msra.mxu0 %v502
        %520 = vmatpush.bf16.msra.mxu0 %v501
        %521 = vmatpush.bf16.msra.mxu0 %v500
        %522 = vmatpush.bf16.msra.mxu0 %v499
        %523 = vmatmul.bf16.gmra.mxu0 %v435
        %v524 = vpop.f32.mrf.mxu0
        %v525 = vadd.f32 %v369, %v524
        %v526 = vpop.f32.mrf.mxu0
        %v527 = vadd.f32 %v369, %v526
        %528 = vmatmul.bf16.gmra.mxu0 %v436
        %v529 = vpop.f32.mrf.mxu0
        %v530 = vadd.f32 %v369, %v529
        %v531 = vpop.f32.mrf.mxu0
        %v532 = vadd.f32 %v369, %v531
        %533 = vmatmul.bf16.gmra.mxu0 %v437
        %v534 = vpop.f32.mrf.mxu0
        %v535 = vadd.f32 %v369, %v534
        %v536 = vpop.f32.mrf.mxu0
        %v537 = vadd.f32 %v369, %v536
        %538 = vmatmul.bf16.gmra.mxu0 %v438
        %v539 = vpop.f32.mrf.mxu0
        %v540 = vadd.f32 %v369, %v539
        %v541 = vpop.f32.mrf.mxu0
        %v542 = vadd.f32 %v369, %v541
        %543 = vmatmul.bf16.gmra.mxu0 %v439
        %v544 = vpop.f32.mrf.mxu0
        %v545 = vadd.f32 %v369, %v544
        %v546 = vpop.f32.mrf.mxu0
        %v547 = vadd.f32 %v369, %v546
        %548 = vmatmul.bf16.gmra.mxu0 %v440
        %v549 = vpop.f32.mrf.mxu0
        %v550 = vadd.f32 %v369, %v549
        %v551 = vpop.f32.mrf.mxu0
        %v552 = vadd.f32 %v369, %v551
        %553 = vmatmul.bf16.gmra.mxu0 %v441
        %v554 = vpop.f32.mrf.mxu0
        %v555 = vadd.f32 %v369, %v554
        %v556 = vpop.f32.mrf.mxu0
        %v557 = vadd.f32 %v369, %v556
        %558 = vmatmul.bf16.gmra.mxu0 %v442
        %v559 = vpop.f32.mrf.mxu0
        %v560 = vadd.f32 %v369, %v559
        %v561 = vpop.f32.mrf.mxu0
        %v562 = vadd.f32 %v369, %v561
        %563 = vmatmul.bf16.gmra.mxu0 %v443
        %v564 = vpop.f32.mrf.mxu0
        %v565 = vadd.f32 %v369, %v564
        %v566 = vpop.f32.mrf.mxu0
        %v567 = vadd.f32 %v369, %v566
        %568 = vmatmul.bf16.gmra.mxu0 %v444
        %v569 = vpop.f32.mrf.mxu0
        %v570 = vadd.f32 %v369, %v569
        %v571 = vpop.f32.mrf.mxu0
        %v572 = vadd.f32 %v369, %v571
        %573 = vmatmul.bf16.gmra.mxu0 %v445
        %v574 = vpop.f32.mrf.mxu0
        %v575 = vadd.f32 %v369, %v574
        %v576 = vpop.f32.mrf.mxu0
        %v577 = vadd.f32 %v369, %v576
        %578 = vmatmul.bf16.gmra.mxu0 %v446
        %v579 = vpop.f32.mrf.mxu0
        %v580 = vadd.f32 %v369, %v579
        %v581 = vpop.f32.mrf.mxu0
        %v582 = vadd.f32 %v369, %v581
        %583 = vmatmul.bf16.gmra.mxu0 %v447
        %v584 = vpop.f32.mrf.mxu0
        %v585 = vadd.f32 %v369, %v584
        %v586 = vpop.f32.mrf.mxu0
        %v587 = vadd.f32 %v369, %v586
        %588 = vmatmul.bf16.gmra.mxu0 %v448
        %v589 = vpop.f32.mrf.mxu0
        %v590 = vadd.f32 %v369, %v589
        %v591 = vpop.f32.mrf.mxu0
        %v592 = vadd.f32 %v369, %v591
        %593 = vmatmul.bf16.gmra.mxu0 %v449
        %v594 = vpop.f32.mrf.mxu0
        %v595 = vadd.f32 %v369, %v594
        %v596 = vpop.f32.mrf.mxu0
        %v597 = vadd.f32 %v369, %v596
        %598 = vmatmul.bf16.gmra.mxu0 %v450
        %v599 = vpop.f32.mrf.mxu0
        %v600 = vadd.f32 %v369, %v599
        %v601 = vpop.f32.mrf.mxu0
        %v602 = vadd.f32 %v369, %v601
        %603 = vdwg.mxu0
        %v604 = vpack.c.bf16 %v525, %v525
        %v605 = vpack.c.bf16 %v527, %v527
        %v606 = vpack.c.bf16 %v530, %v530
        %v607 = vpack.c.bf16 %v532, %v532
        %v608 = vpack.c.bf16 %v535, %v535
        %v609 = vpack.c.bf16 %v537, %v537
        %v610 = vpack.c.bf16 %v540, %v540
        %v611 = vpack.c.bf16 %v542, %v542
        %v612 = vpack.c.bf16 %v545, %v545
        %v613 = vpack.c.bf16 %v547, %v547
        %v614 = vpack.c.bf16 %v550, %v550
        %v615 = vpack.c.bf16 %v552, %v552
        %v616 = vpack.c.bf16 %v555, %v555
        %v617 = vpack.c.bf16 %v557, %v557
        %v618 = vpack.c.bf16 %v560, %v560
        %v619 = vpack.c.bf16 %v562, %v562
        %v620 = vpack.c.bf16 %v565, %v565
        %v621 = vpack.c.bf16 %v567, %v567
        %v622 = vpack.c.bf16 %v570, %v570
        %v623 = vpack.c.bf16 %v572, %v572
        %v624 = vpack.c.bf16 %v575, %v575
        %v625 = vpack.c.bf16 %v577, %v577
        %v626 = vpack.c.bf16 %v580, %v580
        %v627 = vpack.c.bf16 %v582, %v582
        %v628 = vpack.c.bf16 %v585, %v585
        %v629 = vpack.c.bf16 %v587, %v587
        %v630 = vpack.c.bf16 %v590, %v590
        %v631 = vpack.c.bf16 %v592, %v592
        %v632 = vpack.c.bf16 %v595, %v595
        %v633 = vpack.c.bf16 %v597, %v597
        %v634 = vpack.c.bf16 %v600, %v600
        %v635 = vpack.c.bf16 %v602, %v602
        %636 = vst [vmem:[%s308] sm:$0xf] %v604
        %637 = vst [vmem:[%s308 + $0x4] sm:$0xf] %v605
        %638 = vst [vmem:[%s308 + $0x8] sm:$0xf] %v606
        %639 = vst [vmem:[%s308 + $0xc] sm:$0xf] %v607
        %640 = vst [vmem:[%s308 + $0x10] sm:$0xf] %v608
        %641 = vst [vmem:[%s308 + $0x14] sm:$0xf] %v609
        %642 = vst [vmem:[%s308 + $0x18] sm:$0xf] %v610
        %643 = vst [vmem:[%s308 + $0x1c] sm:$0xf] %v611
        %644 = vst [vmem:[%s308 + $0x20] sm:$0xf] %v612
        %645 = vst [vmem:[%s308 + $0x24] sm:$0xf] %v613
        %646 = vst [vmem:[%s308 + $0x28] sm:$0xf] %v614
        %647 = vst [vmem:[%s308 + $0x2c] sm:$0xf] %v615
        %648 = vst [vmem:[%s308 + $0x30] sm:$0xf] %v616
        %649 = vst [vmem:[%s308 + $0x34] sm:$0xf] %v617
        %650 = vst [vmem:[%s308 + $0x38] sm:$0xf] %v618
        %651 = vst [vmem:[%s308 + $0x3c] sm:$0xf] %v619
        %652 = vst [vmem:[%s308 + $0x40] sm:$0xf] %v620
        %653 = vst [vmem:[%s308 + $0x44] sm:$0xf] %v621
        %654 = vst [vmem:[%s308 + $0x48] sm:$0xf] %v622
        %655 = vst [vmem:[%s308 + $0x4c] sm:$0xf] %v623
        %656 = vst [vmem:[%s308 + $0x50] sm:$0xf] %v624
        %657 = vst [vmem:[%s308 + $0x54] sm:$0xf] %v625
        %658 = vst [vmem:[%s308 + $0x58] sm:$0xf] %v626
        %659 = vst [vmem:[%s308 + $0x5c] sm:$0xf] %v627
        %660 = vst [vmem:[%s308 + $0x60] sm:$0xf] %v628
        %661 = vst [vmem:[%s308 + $0x64] sm:$0xf] %v629
        %662 = vst [vmem:[%s308 + $0x68] sm:$0xf] %v630
        %663 = vst [vmem:[%s308 + $0x6c] sm:$0xf] %v631
        %664 = vst [vmem:[%s308 + $0x70] sm:$0xf] %v632
        %665 = vst [vmem:[%s308 + $0x74] sm:$0xf] %v633
        %666 = vst [vmem:[%s308 + $0x78] sm:$0xf] %v634
        %667 = vst [vmem:[%s308 + $0x7c] sm:$0xf] %v635
        %s668 = sand.u32 %s114, 1
        %s669 = sand.u32 %s114, 1
        %s670 = smul.addr %s669, 128
        %s671 = scalar_lea.vmem [#allocation3], %s670
        // Predicated region
        $region74: #{plm_token_encoder_forward.16} parent=68 // pred_check
          %p672 = pneg %p124
        $region75: #{plm_token_encoder_forward.16} parent=68 // pred_check_branch
          %674 = sbr.rel (%p672) target = $region77
        $region76: #{plm_token_encoder_forward.16} parent=68 // pred_region
          %s675 = smul.u32 32, %s19
          %s676 = smul.addr %s675, 3
          %s677 = sadd.s32 %s18, %s676
          %s678 = smul.addr %s677, 4
          %s679 = scalar_lea.vmem %s3, %s678
          // Predicated region
          $region78: #{plm_token_encoder_forward.16} parent=76 // pred_check
            _
          $region79: #{plm_token_encoder_forward.16} parent=76 // pred_check_branch
            %681 = sbr.rel (0) target = $region81
          $region80: #{plm_token_encoder_forward.16} parent=76 // pred_region
            // Predicated region
            $region82: #{plm_token_encoder_forward.16} parent=80 // pred_check
              _
            $region83: #{plm_token_encoder_forward.16} parent=80 // pred_check_branch
              %683 = sbr.rel target = $region85
            $region84: #{plm_token_encoder_forward.16} parent=80 // pred_region
              // Predicated region
              $region97: #{plm_token_encoder_forward.16} parent=84 // pred_check
                _
              $region98: #{plm_token_encoder_forward.16} parent=84 // pred_check_branch
                %761 = sbr.rel (0) target = $region100
              $region99: #{plm_token_encoder_forward.16} parent=84 // pred_region
                loop: start=0, step=1, limit=1
                $region101: #{plm_token_encoder_forward.16} parent=99 // loop_pre_header
                  _
                $region102: #{plm_token_encoder_forward.16} parent=99 // loop_header
                  %s763 = sphi 0, %s767
                  %p764 = scmp.ge.s32.totalorder %s763, 1
                  %s768 = sphi %s671, %s671
                  %s769 = sphi %s679, %s679
                $region103: #{plm_token_encoder_forward.16} parent=99 // loop_header_branch
                  %766 = sbr.rel (%p764) target = $region107
                $region104: #{plm_token_encoder_forward.16} parent=99 // loop_body
                  _
                $region105: #{plm_token_encoder_forward.16} parent=99 // loop_footer
                  %s767 = sadd.s32 1, %s763
                $region106: #{plm_token_encoder_forward.16} parent=99 // loop_footer_branch
                  %762 = sbr.rel target = $region102
                $region107: #{plm_token_encoder_forward.16} parent=99 // loop_exit
                  _
                %s771 = ssub.s32 16, 1
                loop: start=0, step=1, limit=1
                $region108: #{plm_token_encoder_forward.16} parent=99 // loop_pre_header
                  _
                $region109: #{plm_token_encoder_forward.16} parent=99 // loop_header
                  %s773 = sphi 0, %s777
                  %p774 = scmp.ge.s32.totalorder %s773, 1
                  %s778 = sphi %s671, %s671
                  %s779 = sphi %s679, %s679
                $region110: #{plm_token_encoder_forward.16} parent=99 // loop_header_branch
                  %776 = sbr.rel (%p774) target = $region114
                $region111: #{plm_token_encoder_forward.16} parent=99 // loop_body
                  %v780 = vld [vmem:[%s778] sm:%s771]
                  %781 = vst [vmem:[%s779] sm:%s771] %v780
                  %v782 = vld [vmem:[%s778 + $0x4] sm:%s771]
                  %783 = vst [vmem:[%s779 + $0xc] sm:%s771] %v782
                  %v784 = vld [vmem:[%s778 + $0x8] sm:%s771]
                  %785 = vst [vmem:[%s779 + $0x18] sm:%s771] %v784
                  %v786 = vld [vmem:[%s778 + $0xc] sm:%s771]
                  %787 = vst [vmem:[%s779 + $0x24] sm:%s771] %v786
                  %v788 = vld [vmem:[%s778 + $0x10] sm:%s771]
                  %789 = vst [vmem:[%s779 + $0x30] sm:%s771] %v788
                  %v790 = vld [vmem:[%s778 + $0x14] sm:%s771]
                  %791 = vst [vmem:[%s779 + $0x3c] sm:%s771] %v790
                  %v792 = vld [vmem:[%s778 + $0x18] sm:%s771]
                  %793 = vst [vmem:[%s779 + $0x48] sm:%s771] %v792
                  %v794 = vld [vmem:[%s778 + $0x1c] sm:%s771]
                  %795 = vst [vmem:[%s779 + $0x54] sm:%s771] %v794
                  %v796 = vld [vmem:[%s778 + $0x20] sm:%s771]
                  %797 = vst [vmem:[%s779 + $0x60] sm:%s771] %v796
                  %v798 = vld [vmem:[%s778 + $0x24] sm:%s771]
                  %799 = vst [vmem:[%s779 + $0x6c] sm:%s771] %v798
                  %v800 = vld [vmem:[%s778 + $0x28] sm:%s771]
                  %801 = vst [vmem:[%s779 + $0x78] sm:%s771] %v800
                  %v802 = vld [vmem:[%s778 + $0x2c] sm:%s771]
                  %803 = vst [vmem:[%s779 + $0x84] sm:%s771] %v802
                  %v804 = vld [vmem:[%s778 + $0x30] sm:%s771]
                  %805 = vst [vmem:[%s779 + $0x90] sm:%s771] %v804
                  %v806 = vld [vmem:[%s778 + $0x34] sm:%s771]
                  %807 = vst [vmem:[%s779 + $0x9c] sm:%s771] %v806
                  %v808 = vld [vmem:[%s778 + $0x38] sm:%s771]
                  %809 = vst [vmem:[%s779 + $0xa8] sm:%s771] %v808
                  %v810 = vld [vmem:[%s778 + $0x3c] sm:%s771]
                  %811 = vst [vmem:[%s779 + $0xb4] sm:%s771] %v810
                  %v812 = vld [vmem:[%s778 + $0x40] sm:%s771]
                  %813 = vst [vmem:[%s779 + $0xc0] sm:%s771] %v812
                  %v814 = vld [vmem:[%s778 + $0x44] sm:%s771]
                  %815 = vst [vmem:[%s779 + $0xcc] sm:%s771] %v814
                  %v816 = vld [vmem:[%s778 + $0x48] sm:%s771]
                  %817 = vst [vmem:[%s779 + $0xd8] sm:%s771] %v816
                  %v818 = vld [vmem:[%s778 + $0x4c] sm:%s771]
                  %819 = vst [vmem:[%s779 + $0xe4] sm:%s771] %v818
                  %v820 = vld [vmem:[%s778 + $0x50] sm:%s771]
                  %821 = vst [vmem:[%s779 + $0xf0] sm:%s771] %v820
                  %v822 = vld [vmem:[%s778 + $0x54] sm:%s771]
                  %823 = vst [vmem:[%s779 + $0xfc] sm:%s771] %v822
                  %v824 = vld [vmem:[%s778 + $0x58] sm:%s771]
                  %825 = vst [vmem:[%s779 + $0x108] sm:%s771] %v824
                  %v826 = vld [vmem:[%s778 + $0x5c] sm:%s771]
                  %827 = vst [vmem:[%s779 + $0x114] sm:%s771] %v826
                  %v828 = vld [vmem:[%s778 + $0x60] sm:%s771]
                  %829 = vst [vmem:[%s779 + $0x120] sm:%s771] %v828
                  %v830 = vld [vmem:[%s778 + $0x64] sm:%s771]
                  %831 = vst [vmem:[%s779 + $0x12c] sm:%s771] %v830
                  %v832 = vld [vmem:[%s778 + $0x68] sm:%s771]
                  %833 = vst [vmem:[%s779 + $0x138] sm:%s771] %v832
                  %v834 = vld [vmem:[%s778 + $0x6c] sm:%s771]
                  %835 = vst [vmem:[%s779 + $0x144] sm:%s771] %v834
                  %v836 = vld [vmem:[%s778 + $0x70] sm:%s771]
                  %837 = vst [vmem:[%s779 + $0x150] sm:%s771] %v836
                  %v838 = vld [vmem:[%s778 + $0x74] sm:%s771]
                  %839 = vst [vmem:[%s779 + $0x15c] sm:%s771] %v838
                  %v840 = vld [vmem:[%s778 + $0x78] sm:%s771]
                  %841 = vst [vmem:[%s779 + $0x168] sm:%s771] %v840
                  %v842 = vld [vmem:[%s778 + $0x7c] sm:%s771]
                  %843 = vst [vmem:[%s779 + $0x174] sm:%s771] %v842
                $region112: #{plm_token_encoder_forward.16} parent=99 // loop_footer
                  %s777 = sadd.s32 1, %s773
                $region113: #{plm_token_encoder_forward.16} parent=99 // loop_footer_branch
                  %772 = sbr.rel target = $region109
                $region114: #{plm_token_encoder_forward.16} parent=99 // loop_exit
                  _
              $region100: #{plm_token_encoder_forward.16} parent=84 // pred_fallthru
                _
            $region85: #{plm_token_encoder_forward.16} parent=80 // pred_fallthru
              _
            // Predicated region
            $region86: #{plm_token_encoder_forward.16} parent=80 // pred_check
              _
            $region87: #{plm_token_encoder_forward.16} parent=80 // pred_check_branch
              %685 = sbr.rel (0) target = $region89
            $region88: #{plm_token_encoder_forward.16} parent=80 // pred_region
              %s687 = ssub.s32 16, 1
              loop: start=0, step=1, limit=1
              $region90: #{plm_token_encoder_forward.16} parent=88 // loop_pre_header
                _
              $region91: #{plm_token_encoder_forward.16} parent=88 // loop_header
                %s689 = sphi 0, %s693
                %p690 = scmp.ge.s32.totalorder %s689, 1
                %s694 = sphi %s671, %s671
                %s695 = sphi %s679, %s679
              $region92: #{plm_token_encoder_forward.16} parent=88 // loop_header_branch
                %692 = sbr.rel (%p690) target = $region96
              $region93: #{plm_token_encoder_forward.16} parent=88 // loop_body
                %v696 = vld [vmem:[%s694] sm:%s687]
                %697 = vst [vmem:[%s695] sm:%s687] %v696
                %v698 = vld [vmem:[%s694 + $0x4] sm:%s687]
                %699 = vst [vmem:[%s695 + $0xc] sm:%s687] %v698
                %v700 = vld [vmem:[%s694 + $0x8] sm:%s687]
                %701 = vst [vmem:[%s695 + $0x18] sm:%s687] %v700
                %v702 = vld [vmem:[%s694 + $0xc] sm:%s687]
                %703 = vst [vmem:[%s695 + $0x24] sm:%s687] %v702
                %v704 = vld [vmem:[%s694 + $0x10] sm:%s687]
                %705 = vst [vmem:[%s695 + $0x30] sm:%s687] %v704
                %v706 = vld [vmem:[%s694 + $0x14] sm:%s687]
                %707 = vst [vmem:[%s695 + $0x3c] sm:%s687] %v706
                %v708 = vld [vmem:[%s694 + $0x18] sm:%s687]
                %709 = vst [vmem:[%s695 + $0x48] sm:%s687] %v708
                %v710 = vld [vmem:[%s694 + $0x1c] sm:%s687]
                %711 = vst [vmem:[%s695 + $0x54] sm:%s687] %v710
                %v712 = vld [vmem:[%s694 + $0x20] sm:%s687]
                %713 = vst [vmem:[%s695 + $0x60] sm:%s687] %v712
                %v714 = vld [vmem:[%s694 + $0x24] sm:%s687]
                %715 = vst [vmem:[%s695 + $0x6c] sm:%s687] %v714
                %v716 = vld [vmem:[%s694 + $0x28] sm:%s687]
                %717 = vst [vmem:[%s695 + $0x78] sm:%s687] %v716
                %v718 = vld [vmem:[%s694 + $0x2c] sm:%s687]
                %719 = vst [vmem:[%s695 + $0x84] sm:%s687] %v718
                %v720 = vld [vmem:[%s694 + $0x30] sm:%s687]
                %721 = vst [vmem:[%s695 + $0x90] sm:%s687] %v720
                %v722 = vld [vmem:[%s694 + $0x34] sm:%s687]
                %723 = vst [vmem:[%s695 + $0x9c] sm:%s687] %v722
                %v724 = vld [vmem:[%s694 + $0x38] sm:%s687]
                %725 = vst [vmem:[%s695 + $0xa8] sm:%s687] %v724
                %v726 = vld [vmem:[%s694 + $0x3c] sm:%s687]
                %727 = vst [vmem:[%s695 + $0xb4] sm:%s687] %v726
                %v728 = vld [vmem:[%s694 + $0x40] sm:%s687]
                %729 = vst [vmem:[%s695 + $0xc0] sm:%s687] %v728
                %v730 = vld [vmem:[%s694 + $0x44] sm:%s687]
                %731 = vst [vmem:[%s695 + $0xcc] sm:%s687] %v730
                %v732 = vld [vmem:[%s694 + $0x48] sm:%s687]
                %733 = vst [vmem:[%s695 + $0xd8] sm:%s687] %v732
                %v734 = vld [vmem:[%s694 + $0x4c] sm:%s687]
                %735 = vst [vmem:[%s695 + $0xe4] sm:%s687] %v734
                %v736 = vld [vmem:[%s694 + $0x50] sm:%s687]
                %737 = vst [vmem:[%s695 + $0xf0] sm:%s687] %v736
                %v738 = vld [vmem:[%s694 + $0x54] sm:%s687]
                %739 = vst [vmem:[%s695 + $0xfc] sm:%s687] %v738
                %v740 = vld [vmem:[%s694 + $0x58] sm:%s687]
                %741 = vst [vmem:[%s695 + $0x108] sm:%s687] %v740
                %v742 = vld [vmem:[%s694 + $0x5c] sm:%s687]
                %743 = vst [vmem:[%s695 + $0x114] sm:%s687] %v742
                %v744 = vld [vmem:[%s694 + $0x60] sm:%s687]
                %745 = vst [vmem:[%s695 + $0x120] sm:%s687] %v744
                %v746 = vld [vmem:[%s694 + $0x64] sm:%s687]
                %747 = vst [vmem:[%s695 + $0x12c] sm:%s687] %v746
                %v748 = vld [vmem:[%s694 + $0x68] sm:%s687]
                %749 = vst [vmem:[%s695 + $0x138] sm:%s687] %v748
                %v750 = vld [vmem:[%s694 + $0x6c] sm:%s687]
                %751 = vst [vmem:[%s695 + $0x144] sm:%s687] %v750
                %v752 = vld [vmem:[%s694 + $0x70] sm:%s687]
                %753 = vst [vmem:[%s695 + $0x150] sm:%s687] %v752
                %v754 = vld [vmem:[%s694 + $0x74] sm:%s687]
                %755 = vst [vmem:[%s695 + $0x15c] sm:%s687] %v754
                %v756 = vld [vmem:[%s694 + $0x78] sm:%s687]
                %757 = vst [vmem:[%s695 + $0x168] sm:%s687] %v756
                %v758 = vld [vmem:[%s694 + $0x7c] sm:%s687]
                %759 = vst [vmem:[%s695 + $0x174] sm:%s687] %v758
              $region94: #{plm_token_encoder_forward.16} parent=88 // loop_footer
                %s693 = sadd.s32 1, %s689
              $region95: #{plm_token_encoder_forward.16} parent=88 // loop_footer_branch
                %688 = sbr.rel target = $region91
              $region96: #{plm_token_encoder_forward.16} parent=88 // loop_exit
                _
            $region89: #{plm_token_encoder_forward.16} parent=80 // pred_fallthru
              _
          $region81: #{plm_token_encoder_forward.16} parent=76 // pred_fallthru
            _
          %844 = vnop
        $region77: #{plm_token_encoder_forward.16} parent=68 // pred_fallthru
          _
      $region69: #{plm_token_encoder_forward.16} parent=5 // pred_fallthru
        _
      %p845 = scmp.le.s32.totalorder 2, %s9
      // Predicated region
      $region115: #{plm_token_encoder_forward.16} parent=5 // pred_check
        %p846 = pneg %p845
      $region116: #{plm_token_encoder_forward.16} parent=5 // pred_check_branch
        %848 = sbr.rel (%p846) target = $region118
      $region117: #{plm_token_encoder_forward.16} parent=5 // pred_region
        %s849 = ssub.s32 %s9, 2
        // Predicated region
        $region119: #{plm_token_encoder_forward.16} parent=117 // pred_check
          %p850 = pneg %p130
        $region120: #{plm_token_encoder_forward.16} parent=117 // pred_check_branch
          %852 = sbr.rel (%p850) target = $region122
        $region121: #{plm_token_encoder_forward.16} parent=117 // pred_region
          %s853 = sand.u32 %s115, 1
          %s854 = sand.u32 %s115, 1
          %s855 = smul.addr %s854, 128
          %s856 = scalar_lea.vmem [#allocation3], %s855
        $region122: #{plm_token_encoder_forward.16} parent=117 // pred_fallthru
          _
      $region118: #{plm_token_encoder_forward.16} parent=5 // pred_fallthru
        _
    $region6: #{plm_token_encoder_forward.16} parent=1 // loop_footer
      %s13 = sadd.s32 1, %s9
    $region7: #{plm_token_encoder_forward.16} parent=1 // loop_footer_branch
      %8 = sbr.rel target = $region3
    $region8: #{plm_token_encoder_forward.16} parent=1 // loop_exit
      _

// kernel: plm_token_encoder_forward.15
$region0: #{plm_token_encoder_forward.15}
  #allocation0 [shape = 'u32[]', space=smem, size = 0x4, offset = 0x4, fixed_abs, tag = 'smem constant byte address 0x4 - core index']
  #allocation1 [shape = 'u32[72,128]{1,0:T(1,128)}', space=vmem, size = 0x9000, scoped, tag = 'internal scratch']
  %s0 = inlined_call_operand.vmem [shape: bf16[256,128], index: 0, kind: input, shape index: {}]
  %s1 = inlined_call_operand.vmem [shape: f32[1,128], index: 1, kind: input, shape index: {}]
  %s2 = inlined_call_operand.vmem [shape: f32[1,128], index: 2, kind: input, shape index: {}]
  %s3 = inlined_call_operand.vmem [shape: bf16[256,128], index: 3, kind: output, shape index: {}]
  %s4 = sld [smem:[#allocation0]]
  $region22: #{plm_token_encoder_forward.15} parent=0
    _
  %s6 = ssub.s32 1, %s4
  %s7 = scalar_select 0, %s6, %s4
  // Predicated region
  $region2: #{plm_token_encoder_forward.15} parent=0 // pred_check
    _
  $region3: #{plm_token_encoder_forward.15} parent=0 // pred_check_branch
    %9 = sbr.rel (0) target = $region5
  $region4: #{plm_token_encoder_forward.15} parent=0 // pred_region
    _
  $region5: #{plm_token_encoder_forward.15} parent=0 // pred_fallthru
    _
  // Predicated region
  $region6: #{plm_token_encoder_forward.15} parent=0 // pred_check
    _
  $region7: #{plm_token_encoder_forward.15} parent=0 // pred_check_branch
    %11 = sbr.rel (0) target = $region9
  $region8: #{plm_token_encoder_forward.15} parent=0 // pred_region
    _
  $region9: #{plm_token_encoder_forward.15} parent=0 // pred_fallthru
    _
  // Predicated region
  $region10: #{plm_token_encoder_forward.15} parent=0 // pred_check
    _
  $region11: #{plm_token_encoder_forward.15} parent=0 // pred_check_branch
    %13 = sbr.rel (0) target = $region13
  $region12: #{plm_token_encoder_forward.15} parent=0 // pred_region
    _
  $region13: #{plm_token_encoder_forward.15} parent=0 // pred_fallthru
    _
  %v14 = vld [vmem:[%s0] sm:$0xf]
  %v15 = vld [vmem:[%s0 + $0x4] sm:$0xf]
  %v16 = vld [vmem:[%s0 + $0x8] sm:$0xf]
  %v17 = vld [vmem:[%s0 + $0xc] sm:$0xf]
  %v18 = vld [vmem:[%s0 + $0x10] sm:$0xf]
  %v19 = vld [vmem:[%s0 + $0x14] sm:$0xf]
  %v20 = vld [vmem:[%s0 + $0x18] sm:$0xf]
  %v21 = vld [vmem:[%s0 + $0x1c] sm:$0xf]
  %v22 = vld [vmem:[%s0 + $0x20] sm:$0xf]
  %v23 = vld [vmem:[%s0 + $0x24] sm:$0xf]
  %v24 = vld [vmem:[%s0 + $0x28] sm:$0xf]
  %v25 = vld [vmem:[%s0 + $0x2c] sm:$0xf]
  %v26 = vld [vmem:[%s0 + $0x30] sm:$0xf]
  %v27 = vld [vmem:[%s0 + $0x34] sm:$0xf]
  %v28 = vld [vmem:[%s0 + $0x38] sm:$0xf]
  %v29 = vld [vmem:[%s0 + $0x3c] sm:$0xf]
  %v30 = vld [vmem:[%s0 + $0x40] sm:$0xf]
  %v31 = vld [vmem:[%s0 + $0x44] sm:$0xf]
  %v32 = vld [vmem:[%s0 + $0x48] sm:$0xf]
  %v33 = vld [vmem:[%s0 + $0x4c] sm:$0xf]
  %v34 = vld [vmem:[%s0 + $0x50] sm:$0xf]
  %v35 = vld [vmem:[%s0 + $0x54] sm:$0xf]
  %v36 = vld [vmem:[%s0 + $0x58] sm:$0xf]
  %v37 = vld [vmem:[%s0 + $0x5c] sm:$0xf]
  %v38 = vld [vmem:[%s0 + $0x60] sm:$0xf]
  %v39 = vld [vmem:[%s0 + $0x64] sm:$0xf]
  %v40 = vld [vmem:[%s0 + $0x68] sm:$0xf]
  %v41 = vld [vmem:[%s0 + $0x6c] sm:$0xf]
  %v42 = vld [vmem:[%s0 + $0x70] sm:$0xf]
  %v43 = vld [vmem:[%s0 + $0x74] sm:$0xf]
  %v44 = vld [vmem:[%s0 + $0x78] sm:$0xf]
  %v45 = vld [vmem:[%s0 + $0x7c] sm:$0xf]
  %v46 = vunpack.c.l.bf16 %v14
  %v47 = vunpack.c.l.bf16 %v15
  %v48 = vunpack.c.l.bf16 %v16
  %v49 = vunpack.c.l.bf16 %v17
  %v50 = vunpack.c.l.bf16 %v18
  %v51 = vunpack.c.l.bf16 %v19
  %v52 = vunpack.c.l.bf16 %v20
  %v53 = vunpack.c.l.bf16 %v21
  %v54 = vunpack.c.l.bf16 %v22
  %v55 = vunpack.c.l.bf16 %v23
  %v56 = vunpack.c.l.bf16 %v24
  %v57 = vunpack.c.l.bf16 %v25
  %v58 = vunpack.c.l.bf16 %v26
  %v59 = vunpack.c.l.bf16 %v27
  %v60 = vunpack.c.l.bf16 %v28
  %v61 = vunpack.c.l.bf16 %v29
  %v62 = vunpack.c.l.bf16 %v30
  %v63 = vunpack.c.l.bf16 %v31
  %v64 = vunpack.c.l.bf16 %v32
  %v65 = vunpack.c.l.bf16 %v33
  %v66 = vunpack.c.l.bf16 %v34
  %v67 = vunpack.c.l.bf16 %v35
  %v68 = vunpack.c.l.bf16 %v36
  %v69 = vunpack.c.l.bf16 %v37
  %v70 = vunpack.c.l.bf16 %v38
  %v71 = vunpack.c.l.bf16 %v39
  %v72 = vunpack.c.l.bf16 %v40
  %v73 = vunpack.c.l.bf16 %v41
  %v74 = vunpack.c.l.bf16 %v42
  %v75 = vunpack.c.l.bf16 %v43
  %v76 = vunpack.c.l.bf16 %v44
  %v77 = vunpack.c.l.bf16 %v45
  %78 = vadd.xlane.f32.xlu0 %v46
  %v79 = vpop.xlane.xlu0 %78
  %80 = vadd.xlane.f32.xlu0 %v47
  %v81 = vpop.xlane.xlu0 %80
  %82 = vadd.xlane.f32.xlu0 %v48
  %v83 = vpop.xlane.xlu0 %82
  %84 = vadd.xlane.f32.xlu0 %v49
  %v85 = vpop.xlane.xlu0 %84
  %86 = vadd.xlane.f32.xlu0 %v50
  %v87 = vpop.xlane.xlu0 %86
  %88 = vadd.xlane.f32.xlu0 %v51
  %v89 = vpop.xlane.xlu0 %88
  %90 = vadd.xlane.f32.xlu0 %v52
  %v91 = vpop.xlane.xlu0 %90
  %92 = vadd.xlane.f32.xlu0 %v53
  %v93 = vpop.xlane.xlu0 %92
  %94 = vadd.xlane.f32.xlu0 %v54
  %v95 = vpop.xlane.xlu0 %94
  %96 = vadd.xlane.f32.xlu0 %v55
  %v97 = vpop.xlane.xlu0 %96
  %98 = vadd.xlane.f32.xlu0 %v56
  %v99 = vpop.xlane.xlu0 %98
  %100 = vadd.xlane.f32.xlu0 %v57
  %v101 = vpop.xlane.xlu0 %100
  %102 = vadd.xlane.f32.xlu0 %v58
  %v103 = vpop.xlane.xlu0 %102
  %104 = vadd.xlane.f32.xlu0 %v59
  %v105 = vpop.xlane.xlu0 %104
  %106 = vadd.xlane.f32.xlu0 %v60
  %v107 = vpop.xlane.xlu0 %106
  %108 = vadd.xlane.f32.xlu0 %v61
  %v109 = vpop.xlane.xlu0 %108
  %110 = vadd.xlane.f32.xlu0 %v62
  %v111 = vpop.xlane.xlu0 %110
  %112 = vadd.xlane.f32.xlu0 %v63
  %v113 = vpop.xlane.xlu0 %112
  %114 = vadd.xlane.f32.xlu0 %v64
  %v115 = vpop.xlane.xlu0 %114
  %116 = vadd.xlane.f32.xlu0 %v65
  %v117 = vpop.xlane.xlu0 %116
  %118 = vadd.xlane.f32.xlu0 %v66
  %v119 = vpop.xlane.xlu0 %118
  %120 = vadd.xlane.f32.xlu0 %v67
  %v121 = vpop.xlane.xlu0 %120
  %122 = vadd.xlane.f32.xlu0 %v68
  %v123 = vpop.xlane.xlu0 %122
  %124 = vadd.xlane.f32.xlu0 %v69
  %v125 = vpop.xlane.xlu0 %124
  %126 = vadd.xlane.f32.xlu0 %v70
  %v127 = vpop.xlane.xlu0 %126
  %128 = vadd.xlane.f32.xlu0 %v71
  %v129 = vpop.xlane.xlu0 %128
  %130 = vadd.xlane.f32.xlu0 %v72
  %v131 = vpop.xlane.xlu0 %130
  %132 = vadd.xlane.f32.xlu0 %v73
  %v133 = vpop.xlane.xlu0 %132
  %134 = vadd.xlane.f32.xlu0 %v74
  %v135 = vpop.xlane.xlu0 %134
  %136 = vadd.xlane.f32.xlu0 %v75
  %v137 = vpop.xlane.xlu0 %136
  %138 = vadd.xlane.f32.xlu0 %v76
  %v139 = vpop.xlane.xlu0 %138
  %140 = vadd.xlane.f32.xlu0 %v77
  %v141 = vpop.xlane.xlu0 %140
  %v142 = vrcp.pop 128.0
  %v143 = vmul.f32 128.0, %v142
  %v144 = vsub.f32 1.0, %v143
  %v145 = vmul.f32 %v142, %v144
  %v146 = vadd.f32 %v142, %v145
  %vm147 = vweird.f32 %v142
  %v148 = vsel %vm147, %v142, %v146
  %v149 = vmul.f32 %v79, %v148
  %v150 = vmul.f32 %v81, %v148
  %v151 = vmul.f32 %v83, %v148
  %v152 = vmul.f32 %v85, %v148
  %v153 = vmul.f32 %v87, %v148
  %v154 = vmul.f32 %v89, %v148
  %v155 = vmul.f32 %v91, %v148
  %v156 = vmul.f32 %v93, %v148
  %v157 = vmul.f32 %v95, %v148
  %v158 = vmul.f32 %v97, %v148
  %v159 = vmul.f32 %v99, %v148
  %v160 = vmul.f32 %v101, %v148
  %v161 = vmul.f32 %v103, %v148
  %v162 = vmul.f32 %v105, %v148
  %v163 = vmul.f32 %v107, %v148
  %v164 = vmul.f32 %v109, %v148
  %v165 = vmul.f32 %v111, %v148
  %v166 = vmul.f32 %v113, %v148
  %v167 = vmul.f32 %v115, %v148
  %v168 = vmul.f32 %v117, %v148
  %v169 = vmul.f32 %v119, %v148
  %v170 = vmul.f32 %v121, %v148
  %v171 = vmul.f32 %v123, %v148
  %v172 = vmul.f32 %v125, %v148
  %v173 = vmul.f32 %v127, %v148
  %v174 = vmul.f32 %v129, %v148
  %v175 = vmul.f32 %v131, %v148
  %v176 = vmul.f32 %v133, %v148
  %v177 = vmul.f32 %v135, %v148
  %v178 = vmul.f32 %v137, %v148
  %v179 = vmul.f32 %v139, %v148
  %v180 = vmul.f32 %v141, %v148
  %v181 = vsub.f32 %v46, %v149
  %v182 = vsub.f32 %v47, %v150
  %v183 = vsub.f32 %v48, %v151
  %v184 = vsub.f32 %v49, %v152
  %v185 = vsub.f32 %v50, %v153
  %v186 = vsub.f32 %v51, %v154
  %v187 = vsub.f32 %v52, %v155
  %v188 = vsub.f32 %v53, %v156
  %v189 = vsub.f32 %v54, %v157
  %v190 = vsub.f32 %v55, %v158
  %v191 = vsub.f32 %v56, %v159
  %v192 = vsub.f32 %v57, %v160
  %v193 = vsub.f32 %v58, %v161
  %v194 = vsub.f32 %v59, %v162
  %v195 = vsub.f32 %v60, %v163
  %v196 = vsub.f32 %v61, %v164
  %v197 = vsub.f32 %v62, %v165
  %v198 = vsub.f32 %v63, %v166
  %v199 = vsub.f32 %v64, %v167
  %v200 = vsub.f32 %v65, %v168
  %v201 = vsub.f32 %v66, %v169
  %v202 = vsub.f32 %v67, %v170
  %v203 = vsub.f32 %v68, %v171
  %v204 = vsub.f32 %v69, %v172
  %v205 = vsub.f32 %v70, %v173
  %v206 = vsub.f32 %v71, %v174
  %v207 = vsub.f32 %v72, %v175
  %v208 = vsub.f32 %v73, %v176
  %v209 = vsub.f32 %v74, %v177
  %v210 = vsub.f32 %v75, %v178
  %v211 = vsub.f32 %v76, %v179
  %v212 = vsub.f32 %v77, %v180
  %v213 = vmul.f32 %v181, %v181
  %v214 = vmul.f32 %v182, %v182
  %v215 = vmul.f32 %v183, %v183
  %v216 = vmul.f32 %v184, %v184
  %v217 = vmul.f32 %v185, %v185
  %v218 = vmul.f32 %v186, %v186
  %v219 = vmul.f32 %v187, %v187
  %v220 = vmul.f32 %v188, %v188
  %v221 = vmul.f32 %v189, %v189
  %v222 = vmul.f32 %v190, %v190
  %v223 = vmul.f32 %v191, %v191
  %v224 = vmul.f32 %v192, %v192
  %v225 = vmul.f32 %v193, %v193
  %v226 = vmul.f32 %v194, %v194
  %v227 = vmul.f32 %v195, %v195
  %v228 = vmul.f32 %v196, %v196
  %v229 = vmul.f32 %v197, %v197
  %v230 = vmul.f32 %v198, %v198
  %v231 = vmul.f32 %v199, %v199
  %v232 = vmul.f32 %v200, %v200
  %v233 = vmul.f32 %v201, %v201
  %v234 = vmul.f32 %v202, %v202
  %v235 = vmul.f32 %v203, %v203
  %v236 = vmul.f32 %v204, %v204
  %v237 = vmul.f32 %v205, %v205
  %v238 = vmul.f32 %v206, %v206
  %v239 = vmul.f32 %v207, %v207
  %v240 = vmul.f32 %v208, %v208
  %v241 = vmul.f32 %v209, %v209
  %v242 = vmul.f32 %v210, %v210
  %v243 = vmul.f32 %v211, %v211
  %v244 = vmul.f32 %v212, %v212
  %245 = vadd.xlane.f32.xlu0 %v213
  %v246 = vpop.xlane.xlu0 %245
  %247 = vadd.xlane.f32.xlu0 %v214
  %v248 = vpop.xlane.xlu0 %247
  %249 = vadd.xlane.f32.xlu0 %v215
  %v250 = vpop.xlane.xlu0 %249
  %251 = vadd.xlane.f32.xlu0 %v216
  %v252 = vpop.xlane.xlu0 %251
  %253 = vadd.xlane.f32.xlu0 %v217
  %v254 = vpop.xlane.xlu0 %253
  %255 = vadd.xlane.f32.xlu0 %v218
  %v256 = vpop.xlane.xlu0 %255
  %257 = vadd.xlane.f32.xlu0 %v219
  %v258 = vpop.xlane.xlu0 %257
  %259 = vadd.xlane.f32.xlu0 %v220
  %v260 = vpop.xlane.xlu0 %259
  %261 = vadd.xlane.f32.xlu0 %v221
  %v262 = vpop.xlane.xlu0 %261
  %263 = vadd.xlane.f32.xlu0 %v222
  %v264 = vpop.xlane.xlu0 %263
  %265 = vadd.xlane.f32.xlu0 %v223
  %v266 = vpop.xlane.xlu0 %265
  %267 = vadd.xlane.f32.xlu0 %v224
  %v268 = vpop.xlane.xlu0 %267
  %269 = vadd.xlane.f32.xlu0 %v225
  %v270 = vpop.xlane.xlu0 %269
  %271 = vadd.xlane.f32.xlu0 %v226
  %v272 = vpop.xlane.xlu0 %271
  %273 = vadd.xlane.f32.xlu0 %v227
  %v274 = vpop.xlane.xlu0 %273
  %275 = vadd.xlane.f32.xlu0 %v228
  %v276 = vpop.xlane.xlu0 %275
  %277 = vadd.xlane.f32.xlu0 %v229
  %v278 = vpop.xlane.xlu0 %277
  %279 = vadd.xlane.f32.xlu0 %v230
  %v280 = vpop.xlane.xlu0 %279
  %281 = vadd.xlane.f32.xlu0 %v231
  %v282 = vpop.xlane.xlu0 %281
  %283 = vadd.xlane.f32.xlu0 %v232
  %v284 = vpop.xlane.xlu0 %283
  %285 = vadd.xlane.f32.xlu0 %v233
  %v286 = vpop.xlane.xlu0 %285
  %287 = vadd.xlane.f32.xlu0 %v234
  %v288 = vpop.xlane.xlu0 %287
  %289 = vadd.xlane.f32.xlu0 %v235
  %v290 = vpop.xlane.xlu0 %289
  %291 = vadd.xlane.f32.xlu0 %v236
  %v292 = vpop.xlane.xlu0 %291
  %293 = vadd.xlane.f32.xlu0 %v237
  %v294 = vpop.xlane.xlu0 %293
  %295 = vadd.xlane.f32.xlu0 %v238
  %v296 = vpop.xlane.xlu0 %295
  %297 = vadd.xlane.f32.xlu0 %v239
  %v298 = vpop.xlane.xlu0 %297
  %299 = vadd.xlane.f32.xlu0 %v240
  %v300 = vpop.xlane.xlu0 %299
  %301 = vadd.xlane.f32.xlu0 %v241
  %v302 = vpop.xlane.xlu0 %301
  %303 = vadd.xlane.f32.xlu0 %v242
  %v304 = vpop.xlane.xlu0 %303
  %305 = vadd.xlane.f32.xlu0 %v243
  %v306 = vpop.xlane.xlu0 %305
  %307 = vadd.xlane.f32.xlu0 %v244
  %v308 = vpop.xlane.xlu0 %307
  %v309 = vmul.f32 %v246, %v148
  %v310 = vmul.f32 %v248, %v148
  %v311 = vmul.f32 %v250, %v148
  %v312 = vmul.f32 %v252, %v148
  %v313 = vmul.f32 %v254, %v148
  %v314 = vmul.f32 %v256, %v148
  %v315 = vmul.f32 %v258, %v148
  %v316 = vmul.f32 %v260, %v148
  %v317 = vmul.f32 %v262, %v148
  %v318 = vmul.f32 %v264, %v148
  %v319 = vmul.f32 %v266, %v148
  %v320 = vmul.f32 %v268, %v148
  %v321 = vmul.f32 %v270, %v148
  %v322 = vmul.f32 %v272, %v148
  %v323 = vmul.f32 %v274, %v148
  %v324 = vmul.f32 %v276, %v148
  %v325 = vmul.f32 %v278, %v148
  %v326 = vmul.f32 %v280, %v148
  %v327 = vmul.f32 %v282, %v148
  %v328 = vmul.f32 %v284, %v148
  %v329 = vmul.f32 %v286, %v148
  %v330 = vmul.f32 %v288, %v148
  %v331 = vmul.f32 %v290, %v148
  %v332 = vmul.f32 %v292, %v148
  %v333 = vmul.f32 %v294, %v148
  %v334 = vmul.f32 %v296, %v148
  %v335 = vmul.f32 %v298, %v148
  %v336 = vmul.f32 %v300, %v148
  %v337 = vmul.f32 %v302, %v148
  %v338 = vmul.f32 %v304, %v148
  %v339 = vmul.f32 %v306, %v148
  %v340 = vmul.f32 %v308, %v148
  %v341 = vadd.f32 %v309, 1e-12
  %v342 = vadd.f32 %v310, 1e-12
  %v343 = vadd.f32 %v311, 1e-12
  %v344 = vadd.f32 %v312, 1e-12
  %v345 = vadd.f32 %v313, 1e-12
  %v346 = vadd.f32 %v314, 1e-12
  %v347 = vadd.f32 %v315, 1e-12
  %v348 = vadd.f32 %v316, 1e-12
  %v349 = vadd.f32 %v317, 1e-12
  %v350 = vadd.f32 %v318, 1e-12
  %v351 = vadd.f32 %v319, 1e-12
  %v352 = vadd.f32 %v320, 1e-12
  %v353 = vadd.f32 %v321, 1e-12
  %v354 = vadd.f32 %v322, 1e-12
  %v355 = vadd.f32 %v323, 1e-12
  %v356 = vadd.f32 %v324, 1e-12
  %v357 = vadd.f32 %v325, 1e-12
  %v358 = vadd.f32 %v326, 1e-12
  %v359 = vadd.f32 %v327, 1e-12
  %v360 = vadd.f32 %v328, 1e-12
  %v361 = vadd.f32 %v329, 1e-12
  %v362 = vadd.f32 %v330, 1e-12
  %v363 = vadd.f32 %v331, 1e-12
  %v364 = vadd.f32 %v332, 1e-12
  %v365 = vadd.f32 %v333, 1e-12
  %v366 = vadd.f32 %v334, 1e-12
  %v367 = vadd.f32 %v335, 1e-12
  %v368 = vadd.f32 %v336, 1e-12
  %v369 = vadd.f32 %v337, 1e-12
  %v370 = vadd.f32 %v338, 1e-12
  %v371 = vadd.f32 %v339, 1e-12
  %v372 = vadd.f32 %v340, 1e-12
  %v373 = vrsqrt.pop %v341
  %v374 = vmul.f32 %v373, %v341
  %v375 = vmul.f32 %v374, %v373
  %v376 = vmul.f32 0.5, %v375
  %v377 = vsub.f32 1.5, %v376
  %v378 = vmul.f32 %v373, %v377
  %vm379 = vweird.f32 %v341
  %vm380 = vweird.f32 %v373
  %vm381 = vmor %vm379, %vm380
  %v382 = vsel %vm381, %v373, %v378
  %v383 = vrsqrt.pop %v342
  %v384 = vmul.f32 %v383, %v342
  %v385 = vmul.f32 %v384, %v383
  %v386 = vmul.f32 0.5, %v385
  %v387 = vsub.f32 1.5, %v386
  %v388 = vmul.f32 %v383, %v387
  %vm389 = vweird.f32 %v342
  %vm390 = vweird.f32 %v383
  %vm391 = vmor %vm389, %vm390
  %v392 = vsel %vm391, %v383, %v388
  %v393 = vrsqrt.pop %v343
  %v394 = vmul.f32 %v393, %v343
  %v395 = vmul.f32 %v394, %v393
  %v396 = vmul.f32 0.5, %v395
  %v397 = vsub.f32 1.5, %v396
  %v398 = vmul.f32 %v393, %v397
  %vm399 = vweird.f32 %v343
  %vm400 = vweird.f32 %v393
  %vm401 = vmor %vm399, %vm400
  %v402 = vsel %vm401, %v393, %v398
  %v403 = vrsqrt.pop %v344
  %v404 = vmul.f32 %v403, %v344
  %v405 = vmul.f32 %v404, %v403
  %v406 = vmul.f32 0.5, %v405
  %v407 = vsub.f32 1.5, %v406
  %v408 = vmul.f32 %v403, %v407
  %vm409 = vweird.f32 %v344
  %vm410 = vweird.f32 %v403
  %vm411 = vmor %vm409, %vm410
  %v412 = vsel %vm411, %v403, %v408
  %v413 = vrsqrt.pop %v345
  %v414 = vmul.f32 %v413, %v345
  %v415 = vmul.f32 %v414, %v413
  %v416 = vmul.f32 0.5, %v415
  %v417 = vsub.f32 1.5, %v416
  %v418 = vmul.f32 %v413, %v417
  %vm419 = vweird.f32 %v345
  %vm420 = vweird.f32 %v413
  %vm421 = vmor %vm419, %vm420
  %v422 = vsel %vm421, %v413, %v418
  %v423 = vrsqrt.pop %v346
  %v424 = vmul.f32 %v423, %v346
  %v425 = vmul.f32 %v424, %v423
  %v426 = vmul.f32 0.5, %v425
  %v427 = vsub.f32 1.5, %v426
  %v428 = vmul.f32 %v423, %v427
  %vm429 = vweird.f32 %v346
  %vm430 = vweird.f32 %v423
  %vm431 = vmor %vm429, %vm430
  %v432 = vsel %vm431, %v423, %v428
  %v433 = vrsqrt.pop %v347
  %v434 = vmul.f32 %v433, %v347
  %v435 = vmul.f32 %v434, %v433
  %v436 = vmul.f32 0.5, %v435
  %v437 = vsub.f32 1.5, %v436
  %v438 = vmul.f32 %v433, %v437
  %vm439 = vweird.f32 %v347
  %vm440 = vweird.f32 %v433
  %vm441 = vmor %vm439, %vm440
  %v442 = vsel %vm441, %v433, %v438
  %v443 = vrsqrt.pop %v348
  %v444 = vmul.f32 %v443, %v348
  %v445 = vmul.f32 %v444, %v443
  %v446 = vmul.f32 0.5, %v445
  %v447 = vsub.f32 1.5, %v446
  %v448 = vmul.f32 %v443, %v447
  %vm449 = vweird.f32 %v348
  %vm450 = vweird.f32 %v443
  %vm451 = vmor %vm449, %vm450
  %v452 = vsel %vm451, %v443, %v448
  %v453 = vrsqrt.pop %v349
  %v454 = vmul.f32 %v453, %v349
  %v455 = vmul.f32 %v454, %v453
  %v456 = vmul.f32 0.5, %v455
  %v457 = vsub.f32 1.5, %v456
  %v458 = vmul.f32 %v453, %v457
  %vm459 = vweird.f32 %v349
  %vm460 = vweird.f32 %v453
  %vm461 = vmor %vm459, %vm460
  %v462 = vsel %vm461, %v453, %v458
  %v463 = vrsqrt.pop %v350
  %v464 = vmul.f32 %v463, %v350
  %v465 = vmul.f32 %v464, %v463
  %v466 = vmul.f32 0.5, %v465
  %v467 = vsub.f32 1.5, %v466
  %v468 = vmul.f32 %v463, %v467
  %vm469 = vweird.f32 %v350
  %vm470 = vweird.f32 %v463
  %vm471 = vmor %vm469, %vm470
  %v472 = vsel %vm471, %v463, %v468
  %v473 = vrsqrt.pop %v351
  %v474 = vmul.f32 %v473, %v351
  %v475 = vmul.f32 %v474, %v473
  %v476 = vmul.f32 0.5, %v475
  %v477 = vsub.f32 1.5, %v476
  %v478 = vmul.f32 %v473, %v477
  %vm479 = vweird.f32 %v351
  %vm480 = vweird.f32 %v473
  %vm481 = vmor %vm479, %vm480
  %v482 = vsel %vm481, %v473, %v478
  %v483 = vrsqrt.pop %v352
  %v484 = vmul.f32 %v483, %v352
  %v485 = vmul.f32 %v484, %v483
  %v486 = vmul.f32 0.5, %v485
  %v487 = vsub.f32 1.5, %v486
  %v488 = vmul.f32 %v483, %v487
  %vm489 = vweird.f32 %v352
  %vm490 = vweird.f32 %v483
  %vm491 = vmor %vm489, %vm490
  %v492 = vsel %vm491, %v483, %v488
  %v493 = vrsqrt.pop %v353
  %v494 = vmul.f32 %v493, %v353
  %v495 = vmul.f32 %v494, %v493
  %v496 = vmul.f32 0.5, %v495
  %v497 = vsub.f32 1.5, %v496
  %v498 = vmul.f32 %v493, %v497
  %vm499 = vweird.f32 %v353
  %vm500 = vweird.f32 %v493
  %vm501 = vmor %vm499, %vm500
  %v502 = vsel %vm501, %v493, %v498
  %v503 = vrsqrt.pop %v354
  %v504 = vmul.f32 %v503, %v354
  %v505 = vmul.f32 %v504, %v503
  %v506 = vmul.f32 0.5, %v505
  %v507 = vsub.f32 1.5, %v506
  %v508 = vmul.f32 %v503, %v507
  %vm509 = vweird.f32 %v354
  %vm510 = vweird.f32 %v503
  %vm511 = vmor %vm509, %vm510
  %v512 = vsel %vm511, %v503, %v508
  %v513 = vrsqrt.pop %v355
  %v514 = vmul.f32 %v513, %v355
  %v515 = vmul.f32 %v514, %v513
  %v516 = vmul.f32 0.5, %v515
  %v517 = vsub.f32 1.5, %v516
  %v518 = vmul.f32 %v513, %v517
  %vm519 = vweird.f32 %v355
  %vm520 = vweird.f32 %v513
  %vm521 = vmor %vm519, %vm520
  %v522 = vsel %vm521, %v513, %v518
  %v523 = vrsqrt.pop %v356
  %v524 = vmul.f32 %v523, %v356
  %v525 = vmul.f32 %v524, %v523
  %v526 = vmul.f32 0.5, %v525
  %v527 = vsub.f32 1.5, %v526
  %v528 = vmul.f32 %v523, %v527
  %vm529 = vweird.f32 %v356
  %vm530 = vweird.f32 %v523
  %vm531 = vmor %vm529, %vm530
  %v532 = vsel %vm531, %v523, %v528
  %v533 = vrsqrt.pop %v357
  %v534 = vmul.f32 %v533, %v357
  %v535 = vmul.f32 %v534, %v533
  %v536 = vmul.f32 0.5, %v535
  %v537 = vsub.f32 1.5, %v536
  %v538 = vmul.f32 %v533, %v537
  %vm539 = vweird.f32 %v357
  %vm540 = vweird.f32 %v533
  %vm541 = vmor %vm539, %vm540
  %v542 = vsel %vm541, %v533, %v538
  %v543 = vrsqrt.pop %v358
  %v544 = vmul.f32 %v543, %v358
  %v545 = vmul.f32 %v544, %v543
  %v546 = vmul.f32 0.5, %v545
  %v547 = vsub.f32 1.5, %v546
  %v548 = vmul.f32 %v543, %v547
  %vm549 = vweird.f32 %v358
  %vm550 = vweird.f32 %v543
  %vm551 = vmor %vm549, %vm550
  %v552 = vsel %vm551, %v543, %v548
  %v553 = vrsqrt.pop %v359
  %v554 = vmul.f32 %v553, %v359
  %v555 = vmul.f32 %v554, %v553
  %v556 = vmul.f32 0.5, %v555
  %v557 = vsub.f32 1.5, %v556
  %v558 = vmul.f32 %v553, %v557
  %vm559 = vweird.f32 %v359
  %vm560 = vweird.f32 %v553
  %vm561 = vmor %vm559, %vm560
  %v562 = vsel %vm561, %v553, %v558
  %v563 = vrsqrt.pop %v360
  %v564 = vmul.f32 %v563, %v360
  %v565 = vmul.f32 %v564, %v563
  %v566 = vmul.f32 0.5, %v565
  %v567 = vsub.f32 1.5, %v566
  %v568 = vmul.f32 %v563, %v567
  %vm569 = vweird.f32 %v360
  %vm570 = vweird.f32 %v563
  %vm571 = vmor %vm569, %vm570
  %v572 = vsel %vm571, %v563, %v568
  %v573 = vrsqrt.pop %v361
  %v574 = vmul.f32 %v573, %v361
  %v575 = vmul.f32 %v574, %v573
  %v576 = vmul.f32 0.5, %v575
  %v577 = vsub.f32 1.5, %v576
  %v578 = vmul.f32 %v573, %v577
  %vm579 = vweird.f32 %v361
  %vm580 = vweird.f32 %v573
  %vm581 = vmor %vm579, %vm580
  %v582 = vsel %vm581, %v573, %v578
  %v583 = vrsqrt.pop %v362
  %v584 = vmul.f32 %v583, %v362
  %v585 = vmul.f32 %v584, %v583
  %v586 = vmul.f32 0.5, %v585
  %v587 = vsub.f32 1.5, %v586
  %v588 = vmul.f32 %v583, %v587
  %vm589 = vweird.f32 %v362
  %vm590 = vweird.f32 %v583
  %vm591 = vmor %vm589, %vm590
  %v592 = vsel %vm591, %v583, %v588
  %v593 = vrsqrt.pop %v363
  %v594 = vmul.f32 %v593, %v363
  %v595 = vmul.f32 %v594, %v593
  %v596 = vmul.f32 0.5, %v595
  %v597 = vsub.f32 1.5, %v596
  %v598 = vmul.f32 %v593, %v597
  %vm599 = vweird.f32 %v363
  %vm600 = vweird.f32 %v593
  %vm601 = vmor %vm599, %vm600
  %v602 = vsel %vm601, %v593, %v598
  %v603 = vrsqrt.pop %v364
  %v604 = vmul.f32 %v603, %v364
  %v605 = vmul.f32 %v604, %v603
  %v606 = vmul.f32 0.5, %v605
  %v607 = vsub.f32 1.5, %v606
  %v608 = vmul.f32 %v603, %v607
  %vm609 = vweird.f32 %v364
  %vm610 = vweird.f32 %v603
  %vm611 = vmor %vm609, %vm610
  %v612 = vsel %vm611, %v603, %v608
  %v613 = vrsqrt.pop %v365
  %v614 = vmul.f32 %v613, %v365
  %v615 = vmul.f32 %v614, %v613
  %v616 = vmul.f32 0.5, %v615
  %v617 = vsub.f32 1.5, %v616
  %v618 = vmul.f32 %v613, %v617
  %vm619 = vweird.f32 %v365
  %vm620 = vweird.f32 %v613
  %vm621 = vmor %vm619, %vm620
  %v622 = vsel %vm621, %v613, %v618
  %v623 = vrsqrt.pop %v366
  %v624 = vmul.f32 %v623, %v366
  %v625 = vmul.f32 %v624, %v623
  %v626 = vmul.f32 0.5, %v625
  %v627 = vsub.f32 1.5, %v626
  %v628 = vmul.f32 %v623, %v627
  %vm629 = vweird.f32 %v366
  %vm630 = vweird.f32 %v623
  %vm631 = vmor %vm629, %vm630
  %v632 = vsel %vm631, %v623, %v628
  %v633 = vrsqrt.pop %v367
  %v634 = vmul.f32 %v633, %v367
  %v635 = vmul.f32 %v634, %v633
  %v636 = vmul.f32 0.5, %v635
  %v637 = vsub.f32 1.5, %v636
  %v638 = vmul.f32 %v633, %v637
  %vm639 = vweird.f32 %v367
  %vm640 = vweird.f32 %v633
  %vm641 = vmor %vm639, %vm640
  %v642 = vsel %vm641, %v633, %v638
  %v643 = vrsqrt.pop %v368
  %v644 = vmul.f32 %v643, %v368
  %v645 = vmul.f32 %v644, %v643
  %v646 = vmul.f32 0.5, %v645
  %v647 = vsub.f32 1.5, %v646
  %v648 = vmul.f32 %v643, %v647
  %vm649 = vweird.f32 %v368
  %vm650 = vweird.f32 %v643
  %vm651 = vmor %vm649, %vm650
  %v652 = vsel %vm651, %v643, %v648
  %v653 = vrsqrt.pop %v369
  %v654 = vmul.f32 %v653, %v369
  %v655 = vmul.f32 %v654, %v653
  %v656 = vmul.f32 0.5, %v655
  %v657 = vsub.f32 1.5, %v656
  %v658 = vmul.f32 %v653, %v657
  %vm659 = vweird.f32 %v369
  %vm660 = vweird.f32 %v653
  %vm661 = vmor %vm659, %vm660
  %v662 = vsel %vm661, %v653, %v658
  %v663 = vrsqrt.pop %v370
  %v664 = vmul.f32 %v663, %v370
  %v665 = vmul.f32 %v664, %v663
  %v666 = vmul.f32 0.5, %v665
  %v667 = vsub.f32 1.5, %v666
  %v668 = vmul.f32 %v663, %v667
  %vm669 = vweird.f32 %v370
  %vm670 = vweird.f32 %v663
  %vm671 = vmor %vm669, %vm670
  %v672 = vsel %vm671, %v663, %v668
  %v673 = vrsqrt.pop %v371
  %v674 = vmul.f32 %v673, %v371
  %v675 = vmul.f32 %v674, %v673
  %v676 = vmul.f32 0.5, %v675
  %v677 = vsub.f32 1.5, %v676
  %v678 = vmul.f32 %v673, %v677
  %vm679 = vweird.f32 %v371
  %vm680 = vweird.f32 %v673
  %vm681 = vmor %vm679, %vm680
  %v682 = vsel %vm681, %v673, %v678
  %v683 = vrsqrt.pop %v372
  %v684 = vmul.f32 %v683, %v372
  %v685 = vmul.f32 %v684, %v683
  %v686 = vmul.f32 0.5, %v685
  %v687 = vsub.f32 1.5, %v686
  %v688 = vmul.f32 %v683, %v687
  %vm689 = vweird.f32 %v372
  %vm690 = vweird.f32 %v683
  %vm691 = vmor %vm689, %vm690
  %v692 = vsel %vm691, %v683, %v688
  %v693 = vmul.f32 %v181, %v382
  %v694 = vmul.f32 %v182, %v392
  %v695 = vmul.f32 %v183, %v402
  %v696 = vmul.f32 %v184, %v412
  %v697 = vmul.f32 %v185, %v422
  %v698 = vmul.f32 %v186, %v432
  %v699 = vmul.f32 %v187, %v442
  %v700 = vmul.f32 %v188, %v452
  %v701 = vmul.f32 %v189, %v462
  %v702 = vmul.f32 %v190, %v472
  %v703 = vmul.f32 %v191, %v482
  %v704 = vmul.f32 %v192, %v492
  %v705 = vmul.f32 %v193, %v502
  %v706 = vmul.f32 %v194, %v512
  %v707 = vmul.f32 %v195, %v522
  %v708 = vmul.f32 %v196, %v532
  %v709 = vmul.f32 %v197, %v542
  %v710 = vmul.f32 %v198, %v552
  %v711 = vmul.f32 %v199, %v562
  %v712 = vmul.f32 %v200, %v572
  %v713 = vmul.f32 %v201, %v582
  %v714 = vmul.f32 %v202, %v592
  %v715 = vmul.f32 %v203, %v602
  %v716 = vmul.f32 %v204, %v612
  %v717 = vmul.f32 %v205, %v622
  %v718 = vmul.f32 %v206, %v632
  %v719 = vmul.f32 %v207, %v642
  %v720 = vmul.f32 %v208, %v652
  %v721 = vmul.f32 %v209, %v662
  %v722 = vmul.f32 %v210, %v672
  %v723 = vmul.f32 %v211, %v682
  %v724 = vmul.f32 %v212, %v692
  %v725 = vld [vmem:[%s1] sm:$0x1]
  %v727 = vperm.slane %v725, 0
  %v729 = vmul.f32 %v693, %v727
  %v730 = vmul.f32 %v694, %v727
  %v731 = vmul.f32 %v695, %v727
  %v732 = vmul.f32 %v696, %v727
  %v733 = vmul.f32 %v697, %v727
  %v734 = vmul.f32 %v698, %v727
  %v735 = vmul.f32 %v699, %v727
  %v736 = vmul.f32 %v700, %v727
  %v737 = vmul.f32 %v701, %v727
  %v738 = vmul.f32 %v702, %v727
  %v739 = vmul.f32 %v703, %v727
  %v740 = vmul.f32 %v704, %v727
  %v741 = vmul.f32 %v705, %v727
  %v742 = vmul.f32 %v706, %v727
  %v743 = vmul.f32 %v707, %v727
  %v744 = vmul.f32 %v708, %v727
  %v745 = vmul.f32 %v709, %v727
  %v746 = vmul.f32 %v710, %v727
  %v747 = vmul.f32 %v711, %v727
  %v748 = vmul.f32 %v712, %v727
  %v749 = vmul.f32 %v713, %v727
  %v750 = vmul.f32 %v714, %v727
  %v751 = vmul.f32 %v715, %v727
  %v752 = vmul.f32 %v716, %v727
  %v753 = vmul.f32 %v717, %v727
  %v754 = vmul.f32 %v718, %v727
  %v755 = vmul.f32 %v719, %v727
  %v756 = vmul.f32 %v720, %v727
  %v757 = vmul.f32 %v721, %v727
  %v758 = vmul.f32 %v722, %v727
  %v759 = vmul.f32 %v723, %v727
  %v760 = vmul.f32 %v724, %v727
  %v761 = vld [vmem:[%s2] sm:$0x1]
  %v763 = vperm.slane %v761, 0
  %v765 = vadd.f32 %v729, %v763
  %v766 = vadd.f32 %v730, %v763
  %v767 = vadd.f32 %v731, %v763
  %v768 = vadd.f32 %v732, %v763
  %v769 = vadd.f32 %v733, %v763
  %v770 = vadd.f32 %v734, %v763
  %v771 = vadd.f32 %v735, %v763
  %v772 = vadd.f32 %v736, %v763
  %v773 = vadd.f32 %v737, %v763
  %v774 = vadd.f32 %v738, %v763
  %v775 = vadd.f32 %v739, %v763
  %v776 = vadd.f32 %v740, %v763
  %v777 = vadd.f32 %v741, %v763
  %v778 = vadd.f32 %v742, %v763
  %v779 = vadd.f32 %v743, %v763
  %v780 = vadd.f32 %v744, %v763
  %v781 = vadd.f32 %v745, %v763
  %v782 = vadd.f32 %v746, %v763
  %v783 = vadd.f32 %v747, %v763
  %v784 = vadd.f32 %v748, %v763
  %v785 = vadd.f32 %v749, %v763
  %v786 = vadd.f32 %v750, %v763
  %v787 = vadd.f32 %v751, %v763
  %v788 = vadd.f32 %v752, %v763
  %v789 = vadd.f32 %v753, %v763
  %v790 = vadd.f32 %v754, %v763
  %v791 = vadd.f32 %v755, %v763
  %v792 = vadd.f32 %v756, %v763
  %v793 = vadd.f32 %v757, %v763
  %v794 = vadd.f32 %v758, %v763
  %v795 = vadd.f32 %v759, %v763
  %v796 = vadd.f32 %v760, %v763
  %v797 = vpack.c.bf16 %v765, %v765
  %v798 = vpack.c.bf16 %v766, %v766
  %v799 = vpack.c.bf16 %v767, %v767
  %v800 = vpack.c.bf16 %v768, %v768
  %v801 = vpack.c.bf16 %v769, %v769
  %v802 = vpack.c.bf16 %v770, %v770
  %v803 = vpack.c.bf16 %v771, %v771
  %v804 = vpack.c.bf16 %v772, %v772
  %v805 = vpack.c.bf16 %v773, %v773
  %v806 = vpack.c.bf16 %v774, %v774
  %v807 = vpack.c.bf16 %v775, %v775
  %v808 = vpack.c.bf16 %v776, %v776
  %v809 = vpack.c.bf16 %v777, %v777
  %v810 = vpack.c.bf16 %v778, %v778
  %v811 = vpack.c.bf16 %v779, %v779
  %v812 = vpack.c.bf16 %v780, %v780
  %v813 = vpack.c.bf16 %v781, %v781
  %v814 = vpack.c.bf16 %v782, %v782
  %v815 = vpack.c.bf16 %v783, %v783
  %v816 = vpack.c.bf16 %v784, %v784
  %v817 = vpack.c.bf16 %v785, %v785
  %v818 = vpack.c.bf16 %v786, %v786
  %v819 = vpack.c.bf16 %v787, %v787
  %v820 = vpack.c.bf16 %v788, %v788
  %v821 = vpack.c.bf16 %v789, %v789
  %v822 = vpack.c.bf16 %v790, %v790
  %v823 = vpack.c.bf16 %v791, %v791
  %v824 = vpack.c.bf16 %v792, %v792
  %v825 = vpack.c.bf16 %v793, %v793
  %v826 = vpack.c.bf16 %v794, %v794
  %v827 = vpack.c.bf16 %v795, %v795
  %v828 = vpack.c.bf16 %v796, %v796
  %829 = vst [vmem:[%s3] sm:$0xf] %v797
  %830 = vst [vmem:[%s3 + $0x4] sm:$0xf] %v798
  %831 = vst [vmem:[%s3 + $0x8] sm:$0xf] %v799
  %832 = vst [vmem:[%s3 + $0xc] sm:$0xf] %v800
  %833 = vst [vmem:[%s3 + $0x10] sm:$0xf] %v801
  %834 = vst [vmem:[%s3 + $0x14] sm:$0xf] %v802
  %835 = vst [vmem:[%s3 + $0x18] sm:$0xf] %v803
  %836 = vst [vmem:[%s3 + $0x1c] sm:$0xf] %v804
  %837 = vst [vmem:[%s3 + $0x20] sm:$0xf] %v805
  %838 = vst [vmem:[%s3 + $0x24] sm:$0xf] %v806
  %839 = vst [vmem:[%s3 + $0x28] sm:$0xf] %v807
  %840 = vst [vmem:[%s3 + $0x2c] sm:$0xf] %v808
  %841 = vst [vmem:[%s3 + $0x30] sm:$0xf] %v809
  %842 = vst [vmem:[%s3 + $0x34] sm:$0xf] %v810
  %843 = vst [vmem:[%s3 + $0x38] sm:$0xf] %v811
  %844 = vst [vmem:[%s3 + $0x3c] sm:$0xf] %v812
  %845 = vst [vmem:[%s3 + $0x40] sm:$0xf] %v813
  %846 = vst [vmem:[%s3 + $0x44] sm:$0xf] %v814
  %847 = vst [vmem:[%s3 + $0x48] sm:$0xf] %v815
  %848 = vst [vmem:[%s3 + $0x4c] sm:$0xf] %v816
  %849 = vst [vmem:[%s3 + $0x50] sm:$0xf] %v817
  %850 = vst [vmem:[%s3 + $0x54] sm:$0xf] %v818
  %851 = vst [vmem:[%s3 + $0x58] sm:$0xf] %v819
  %852 = vst [vmem:[%s3 + $0x5c] sm:$0xf] %v820
  %853 = vst [vmem:[%s3 + $0x60] sm:$0xf] %v821
  %854 = vst [vmem:[%s3 + $0x64] sm:$0xf] %v822
  %855 = vst [vmem:[%s3 + $0x68] sm:$0xf] %v823
  %856 = vst [vmem:[%s3 + $0x6c] sm:$0xf] %v824
  %857 = vst [vmem:[%s3 + $0x70] sm:$0xf] %v825
  %858 = vst [vmem:[%s3 + $0x74] sm:$0xf] %v826
  %859 = vst [vmem:[%s3 + $0x78] sm:$0xf] %v827
  %860 = vst [vmem:[%s3 + $0x7c] sm:$0xf] %v828
  // Predicated region
  $region14: #{plm_token_encoder_forward.15} parent=0 // pred_check
    _
  $region15: #{plm_token_encoder_forward.15} parent=0 // pred_check_branch
    %862 = sbr.rel (0) target = $region17
  $region16: #{plm_token_encoder_forward.15} parent=0 // pred_region
    _
  $region17: #{plm_token_encoder_forward.15} parent=0 // pred_fallthru
    _
  // Predicated region
  $region18: #{plm_token_encoder_forward.15} parent=0 // pred_check
    _
  $region19: #{plm_token_encoder_forward.15} parent=0 // pred_check_branch
    %864 = sbr.rel (0) target = $region21
  $region20: #{plm_token_encoder_forward.15} parent=0 // pred_region
    _
  $region21: #{plm_token_encoder_forward.15} parent=0 // pred_fallthru
    _

// kernel: plm_token_encoder_forward.18
$region0: #{plm_token_encoder_forward.18}
  #allocation0 [shape = 'u32[]', space=smem, size = 0x4, offset = 0x4, fixed_abs, tag = 'smem constant byte address 0x4 - core index']
  #allocation1 [shape = 'u32[72,128]{1,0:T(1,128)}', space=vmem, size = 0x9000, scoped, tag = 'internal scratch']
  %s0 = inlined_call_operand.vmem [shape: bf16[256,128], index: 0, kind: input, shape index: {}]
  %s1 = inlined_call_operand.vmem [shape: bf16[128,128], index: 1, kind: input, shape index: {}]
  %s2 = inlined_call_operand.vmem [shape: f32[1,128], index: 2, kind: input, shape index: {}]
  %s3 = inlined_call_operand.vmem [shape: bf16[256,128], index: 3, kind: output, shape index: {}]
  %s4 = sld [smem:[#allocation0]]
  $region22: #{plm_token_encoder_forward.18} parent=0
    _
  %s6 = ssub.s32 1, %s4
  %s7 = scalar_select 0, %s6, %s4
  // Predicated region
  $region2: #{plm_token_encoder_forward.18} parent=0 // pred_check
    _
  $region3: #{plm_token_encoder_forward.18} parent=0 // pred_check_branch
    %9 = sbr.rel (0) target = $region5
  $region4: #{plm_token_encoder_forward.18} parent=0 // pred_region
    _
  $region5: #{plm_token_encoder_forward.18} parent=0 // pred_fallthru
    _
  // Predicated region
  $region6: #{plm_token_encoder_forward.18} parent=0 // pred_check
    _
  $region7: #{plm_token_encoder_forward.18} parent=0 // pred_check_branch
    %11 = sbr.rel (0) target = $region9
  $region8: #{plm_token_encoder_forward.18} parent=0 // pred_region
    _
  $region9: #{plm_token_encoder_forward.18} parent=0 // pred_fallthru
    _
  // Predicated region
  $region10: #{plm_token_encoder_forward.18} parent=0 // pred_check
    _
  $region11: #{plm_token_encoder_forward.18} parent=0 // pred_check_branch
    %13 = sbr.rel (0) target = $region13
  $region12: #{plm_token_encoder_forward.18} parent=0 // pred_region
    _
  $region13: #{plm_token_encoder_forward.18} parent=0 // pred_fallthru
    _
  %v14 = vld [vmem:[%s0] sm:$0xf]
  %v15 = vld [vmem:[%s0 + $0x4] sm:$0xf]
  %v16 = vld [vmem:[%s0 + $0x8] sm:$0xf]
  %v17 = vld [vmem:[%s0 + $0xc] sm:$0xf]
  %v18 = vld [vmem:[%s0 + $0x10] sm:$0xf]
  %v19 = vld [vmem:[%s0 + $0x14] sm:$0xf]
  %v20 = vld [vmem:[%s0 + $0x18] sm:$0xf]
  %v21 = vld [vmem:[%s0 + $0x1c] sm:$0xf]
  %v22 = vld [vmem:[%s0 + $0x20] sm:$0xf]
  %v23 = vld [vmem:[%s0 + $0x24] sm:$0xf]
  %v24 = vld [vmem:[%s0 + $0x28] sm:$0xf]
  %v25 = vld [vmem:[%s0 + $0x2c] sm:$0xf]
  %v26 = vld [vmem:[%s0 + $0x30] sm:$0xf]
  %v27 = vld [vmem:[%s0 + $0x34] sm:$0xf]
  %v28 = vld [vmem:[%s0 + $0x38] sm:$0xf]
  %v29 = vld [vmem:[%s0 + $0x3c] sm:$0xf]
  %v30 = vld [vmem:[%s0 + $0x40] sm:$0xf]
  %v31 = vld [vmem:[%s0 + $0x44] sm:$0xf]
  %v32 = vld [vmem:[%s0 + $0x48] sm:$0xf]
  %v33 = vld [vmem:[%s0 + $0x4c] sm:$0xf]
  %v34 = vld [vmem:[%s0 + $0x50] sm:$0xf]
  %v35 = vld [vmem:[%s0 + $0x54] sm:$0xf]
  %v36 = vld [vmem:[%s0 + $0x58] sm:$0xf]
  %v37 = vld [vmem:[%s0 + $0x5c] sm:$0xf]
  %v38 = vld [vmem:[%s0 + $0x60] sm:$0xf]
  %v39 = vld [vmem:[%s0 + $0x64] sm:$0xf]
  %v40 = vld [vmem:[%s0 + $0x68] sm:$0xf]
  %v41 = vld [vmem:[%s0 + $0x6c] sm:$0xf]
  %v42 = vld [vmem:[%s0 + $0x70] sm:$0xf]
  %v43 = vld [vmem:[%s0 + $0x74] sm:$0xf]
  %v44 = vld [vmem:[%s0 + $0x78] sm:$0xf]
  %v45 = vld [vmem:[%s0 + $0x7c] sm:$0xf]
  %v46 = vld [vmem:[%s1] sm:$0xf]
  %v47 = vld [vmem:[%s1 + $0x4] sm:$0xf]
  %v48 = vld [vmem:[%s1 + $0x8] sm:$0xf]
  %v49 = vld [vmem:[%s1 + $0xc] sm:$0xf]
  %v50 = vld [vmem:[%s1 + $0x10] sm:$0xf]
  %v51 = vld [vmem:[%s1 + $0x14] sm:$0xf]
  %v52 = vld [vmem:[%s1 + $0x18] sm:$0xf]
  %v53 = vld [vmem:[%s1 + $0x1c] sm:$0xf]
  %v54 = vld [vmem:[%s1 + $0x20] sm:$0xf]
  %v55 = vld [vmem:[%s1 + $0x24] sm:$0xf]
  %v56 = vld [vmem:[%s1 + $0x28] sm:$0xf]
  %v57 = vld [vmem:[%s1 + $0x2c] sm:$0xf]
  %v58 = vld [vmem:[%s1 + $0x30] sm:$0xf]
  %v59 = vld [vmem:[%s1 + $0x34] sm:$0xf]
  %v60 = vld [vmem:[%s1 + $0x38] sm:$0xf]
  %v61 = vld [vmem:[%s1 + $0x3c] sm:$0xf]
  %v62 = vld [vmem:[%s2] sm:$0x1]
  %v64 = vperm.slane %v62, 0
  %v98 = vunpack.c.l.b16 %v14
  %v99 = vunpack.c.l.b16 %v15
  %v100 = vunpack.c.l.b16 %v16
  %v101 = vunpack.c.l.b16 %v17
  %v102 = vunpack.c.l.b16 %v18
  %v103 = vunpack.c.l.b16 %v19
  %v104 = vunpack.c.l.b16 %v20
  %v105 = vunpack.c.l.b16 %v21
  %v106 = vunpack.c.l.b16 %v22
  %v107 = vunpack.c.l.b16 %v23
  %v108 = vunpack.c.l.b16 %v24
  %v109 = vunpack.c.l.b16 %v25
  %v110 = vunpack.c.l.b16 %v26
  %v111 = vunpack.c.l.b16 %v27
  %v112 = vunpack.c.l.b16 %v28
  %v113 = vunpack.c.l.b16 %v29
  %v114 = vunpack.c.l.b16 %v30
  %v115 = vunpack.c.l.b16 %v31
  %v116 = vunpack.c.l.b16 %v32
  %v117 = vunpack.c.l.b16 %v33
  %v118 = vunpack.c.l.b16 %v34
  %v119 = vunpack.c.l.b16 %v35
  %v120 = vunpack.c.l.b16 %v36
  %v121 = vunpack.c.l.b16 %v37
  %v122 = vunpack.c.l.b16 %v38
  %v123 = vunpack.c.l.b16 %v39
  %v124 = vunpack.c.l.b16 %v40
  %v125 = vunpack.c.l.b16 %v41
  %v126 = vunpack.c.l.b16 %v42
  %v127 = vunpack.c.l.b16 %v43
  %v128 = vunpack.c.l.b16 %v44
  %v129 = vunpack.c.l.b16 %v45
  %v130 = vpack.c.b16 %v99, %v98
  %v131 = vpack.c.b16 %v101, %v100
  %v132 = vpack.c.b16 %v103, %v102
  %v133 = vpack.c.b16 %v105, %v104
  %v134 = vpack.c.b16 %v107, %v106
  %v135 = vpack.c.b16 %v109, %v108
  %v136 = vpack.c.b16 %v111, %v110
  %v137 = vpack.c.b16 %v113, %v112
  %v138 = vpack.c.b16 %v115, %v114
  %v139 = vpack.c.b16 %v117, %v116
  %v140 = vpack.c.b16 %v119, %v118
  %v141 = vpack.c.b16 %v121, %v120
  %v142 = vpack.c.b16 %v123, %v122
  %v143 = vpack.c.b16 %v125, %v124
  %v144 = vpack.c.b16 %v127, %v126
  %v145 = vpack.c.b16 %v129, %v128
  %v178 = vunpack.c.l.b16 %v46
  %v179 = vunpack.c.l.b16 %v47
  %v180 = vunpack.c.l.b16 %v48
  %v181 = vunpack.c.l.b16 %v49
  %v182 = vunpack.c.l.b16 %v50
  %v183 = vunpack.c.l.b16 %v51
  %v184 = vunpack.c.l.b16 %v52
  %v185 = vunpack.c.l.b16 %v53
  %v186 = vunpack.c.l.b16 %v54
  %v187 = vunpack.c.l.b16 %v55
  %v188 = vunpack.c.l.b16 %v56
  %v189 = vunpack.c.l.b16 %v57
  %v190 = vunpack.c.l.b16 %v58
  %v191 = vunpack.c.l.b16 %v59
  %v192 = vunpack.c.l.b16 %v60
  %v193 = vunpack.c.l.b16 %v61
  %v194 = vpack.c.b16 %v179, %v178
  %v195 = vpack.c.b16 %v181, %v180
  %v196 = vpack.c.b16 %v183, %v182
  %v197 = vpack.c.b16 %v185, %v184
  %v198 = vpack.c.b16 %v187, %v186
  %v199 = vpack.c.b16 %v189, %v188
  %v200 = vpack.c.b16 %v191, %v190
  %v201 = vpack.c.b16 %v193, %v192
  %210 = vmatpush.bf16.msra.mxu0 %v201
  %211 = vmatpush.bf16.msra.mxu0 %v200
  %212 = vmatpush.bf16.msra.mxu0 %v199
  %213 = vmatpush.bf16.msra.mxu0 %v198
  %214 = vmatpush.bf16.msra.mxu0 %v197
  %215 = vmatpush.bf16.msra.mxu0 %v196
  %216 = vmatpush.bf16.msra.mxu0 %v195
  %217 = vmatpush.bf16.msra.mxu0 %v194
  %218 = vmatmul.bf16.gmra.mxu0 %v130
  %v219 = vpop.f32.mrf.mxu0
  %v220 = vadd.f32 %v64, %v219
  %v221 = vpop.f32.mrf.mxu0
  %v222 = vadd.f32 %v64, %v221
  %223 = vmatmul.bf16.gmra.mxu0 %v131
  %v224 = vpop.f32.mrf.mxu0
  %v225 = vadd.f32 %v64, %v224
  %v226 = vpop.f32.mrf.mxu0
  %v227 = vadd.f32 %v64, %v226
  %228 = vmatmul.bf16.gmra.mxu0 %v132
  %v229 = vpop.f32.mrf.mxu0
  %v230 = vadd.f32 %v64, %v229
  %v231 = vpop.f32.mrf.mxu0
  %v232 = vadd.f32 %v64, %v231
  %233 = vmatmul.bf16.gmra.mxu0 %v133
  %v234 = vpop.f32.mrf.mxu0
  %v235 = vadd.f32 %v64, %v234
  %v236 = vpop.f32.mrf.mxu0
  %v237 = vadd.f32 %v64, %v236
  %238 = vmatmul.bf16.gmra.mxu0 %v134
  %v239 = vpop.f32.mrf.mxu0
  %v240 = vadd.f32 %v64, %v239
  %v241 = vpop.f32.mrf.mxu0
  %v242 = vadd.f32 %v64, %v241
  %243 = vmatmul.bf16.gmra.mxu0 %v135
  %v244 = vpop.f32.mrf.mxu0
  %v245 = vadd.f32 %v64, %v244
  %v246 = vpop.f32.mrf.mxu0
  %v247 = vadd.f32 %v64, %v246
  %248 = vmatmul.bf16.gmra.mxu0 %v136
  %v249 = vpop.f32.mrf.mxu0
  %v250 = vadd.f32 %v64, %v249
  %v251 = vpop.f32.mrf.mxu0
  %v252 = vadd.f32 %v64, %v251
  %253 = vmatmul.bf16.gmra.mxu0 %v137
  %v254 = vpop.f32.mrf.mxu0
  %v255 = vadd.f32 %v64, %v254
  %v256 = vpop.f32.mrf.mxu0
  %v257 = vadd.f32 %v64, %v256
  %258 = vmatmul.bf16.gmra.mxu0 %v138
  %v259 = vpop.f32.mrf.mxu0
  %v260 = vadd.f32 %v64, %v259
  %v261 = vpop.f32.mrf.mxu0
  %v262 = vadd.f32 %v64, %v261
  %263 = vmatmul.bf16.gmra.mxu0 %v139
  %v264 = vpop.f32.mrf.mxu0
  %v265 = vadd.f32 %v64, %v264
  %v266 = vpop.f32.mrf.mxu0
  %v267 = vadd.f32 %v64, %v266
  %268 = vmatmul.bf16.gmra.mxu0 %v140
  %v269 = vpop.f32.mrf.mxu0
  %v270 = vadd.f32 %v64, %v269
  %v271 = vpop.f32.mrf.mxu0
  %v272 = vadd.f32 %v64, %v271
  %273 = vmatmul.bf16.gmra.mxu0 %v141
  %v274 = vpop.f32.mrf.mxu0
  %v275 = vadd.f32 %v64, %v274
  %v276 = vpop.f32.mrf.mxu0
  %v277 = vadd.f32 %v64, %v276
  %278 = vmatmul.bf16.gmra.mxu0 %v142
  %v279 = vpop.f32.mrf.mxu0
  %v280 = vadd.f32 %v64, %v279
  %v281 = vpop.f32.mrf.mxu0
  %v282 = vadd.f32 %v64, %v281
  %283 = vmatmul.bf16.gmra.mxu0 %v143
  %v284 = vpop.f32.mrf.mxu0
  %v285 = vadd.f32 %v64, %v284
  %v286 = vpop.f32.mrf.mxu0
  %v287 = vadd.f32 %v64, %v286
  %288 = vmatmul.bf16.gmra.mxu0 %v144
  %v289 = vpop.f32.mrf.mxu0
  %v290 = vadd.f32 %v64, %v289
  %v291 = vpop.f32.mrf.mxu0
  %v292 = vadd.f32 %v64, %v291
  %293 = vmatmul.bf16.gmra.mxu0 %v145
  %v294 = vpop.f32.mrf.mxu0
  %v295 = vadd.f32 %v64, %v294
  %v296 = vpop.f32.mrf.mxu0
  %v297 = vadd.f32 %v64, %v296
  %298 = vdwg.mxu0
  %v299 = vpack.c.bf16 %v220, %v220
  %v300 = vpack.c.bf16 %v222, %v222
  %v301 = vpack.c.bf16 %v225, %v225
  %v302 = vpack.c.bf16 %v227, %v227
  %v303 = vpack.c.bf16 %v230, %v230
  %v304 = vpack.c.bf16 %v232, %v232
  %v305 = vpack.c.bf16 %v235, %v235
  %v306 = vpack.c.bf16 %v237, %v237
  %v307 = vpack.c.bf16 %v240, %v240
  %v308 = vpack.c.bf16 %v242, %v242
  %v309 = vpack.c.bf16 %v245, %v245
  %v310 = vpack.c.bf16 %v247, %v247
  %v311 = vpack.c.bf16 %v250, %v250
  %v312 = vpack.c.bf16 %v252, %v252
  %v313 = vpack.c.bf16 %v255, %v255
  %v314 = vpack.c.bf16 %v257, %v257
  %v315 = vpack.c.bf16 %v260, %v260
  %v316 = vpack.c.bf16 %v262, %v262
  %v317 = vpack.c.bf16 %v265, %v265
  %v318 = vpack.c.bf16 %v267, %v267
  %v319 = vpack.c.bf16 %v270, %v270
  %v320 = vpack.c.bf16 %v272, %v272
  %v321 = vpack.c.bf16 %v275, %v275
  %v322 = vpack.c.bf16 %v277, %v277
  %v323 = vpack.c.bf16 %v280, %v280
  %v324 = vpack.c.bf16 %v282, %v282
  %v325 = vpack.c.bf16 %v285, %v285
  %v326 = vpack.c.bf16 %v287, %v287
  %v327 = vpack.c.bf16 %v290, %v290
  %v328 = vpack.c.bf16 %v292, %v292
  %v329 = vpack.c.bf16 %v295, %v295
  %v330 = vpack.c.bf16 %v297, %v297
  %331 = vst [vmem:[%s3] sm:$0xf] %v299
  %332 = vst [vmem:[%s3 + $0x4] sm:$0xf] %v300
  %333 = vst [vmem:[%s3 + $0x8] sm:$0xf] %v301
  %334 = vst [vmem:[%s3 + $0xc] sm:$0xf] %v302
  %335 = vst [vmem:[%s3 + $0x10] sm:$0xf] %v303
  %336 = vst [vmem:[%s3 + $0x14] sm:$0xf] %v304
  %337 = vst [vmem:[%s3 + $0x18] sm:$0xf] %v305
  %338 = vst [vmem:[%s3 + $0x1c] sm:$0xf] %v306
  %339 = vst [vmem:[%s3 + $0x20] sm:$0xf] %v307
  %340 = vst [vmem:[%s3 + $0x24] sm:$0xf] %v308
  %341 = vst [vmem:[%s3 + $0x28] sm:$0xf] %v309
  %342 = vst [vmem:[%s3 + $0x2c] sm:$0xf] %v310
  %343 = vst [vmem:[%s3 + $0x30] sm:$0xf] %v311
  %344 = vst [vmem:[%s3 + $0x34] sm:$0xf] %v312
  %345 = vst [vmem:[%s3 + $0x38] sm:$0xf] %v313
  %346 = vst [vmem:[%s3 + $0x3c] sm:$0xf] %v314
  %347 = vst [vmem:[%s3 + $0x40] sm:$0xf] %v315
  %348 = vst [vmem:[%s3 + $0x44] sm:$0xf] %v316
  %349 = vst [vmem:[%s3 + $0x48] sm:$0xf] %v317
  %350 = vst [vmem:[%s3 + $0x4c] sm:$0xf] %v318
  %351 = vst [vmem:[%s3 + $0x50] sm:$0xf] %v319
  %352 = vst [vmem:[%s3 + $0x54] sm:$0xf] %v320
  %353 = vst [vmem:[%s3 + $0x58] sm:$0xf] %v321
  %354 = vst [vmem:[%s3 + $0x5c] sm:$0xf] %v322
  %355 = vst [vmem:[%s3 + $0x60] sm:$0xf] %v323
  %356 = vst [vmem:[%s3 + $0x64] sm:$0xf] %v324
  %357 = vst [vmem:[%s3 + $0x68] sm:$0xf] %v325
  %358 = vst [vmem:[%s3 + $0x6c] sm:$0xf] %v326
  %359 = vst [vmem:[%s3 + $0x70] sm:$0xf] %v327
  %360 = vst [vmem:[%s3 + $0x74] sm:$0xf] %v328
  %361 = vst [vmem:[%s3 + $0x78] sm:$0xf] %v329
  %362 = vst [vmem:[%s3 + $0x7c] sm:$0xf] %v330
  // Predicated region
  $region14: #{plm_token_encoder_forward.18} parent=0 // pred_check
    _
  $region15: #{plm_token_encoder_forward.18} parent=0 // pred_check_branch
    %364 = sbr.rel (0) target = $region17
  $region16: #{plm_token_encoder_forward.18} parent=0 // pred_region
    _
  $region17: #{plm_token_encoder_forward.18} parent=0 // pred_fallthru
    _
  // Predicated region
  $region18: #{plm_token_encoder_forward.18} parent=0 // pred_check
    _
  $region19: #{plm_token_encoder_forward.18} parent=0 // pred_check_branch
    %366 = sbr.rel (0) target = $region21
  $region20: #{plm_token_encoder_forward.18} parent=0 // pred_region
    _
  $region21: #{plm_token_encoder_forward.18} parent=0 // pred_fallthru
    _

// kernel: plm_token_encoder_forward.17
$region0: #{plm_token_encoder_forward.17}
  #allocation0 [shape = 'u32[]', space=smem, size = 0x4, offset = 0x4, fixed_abs, tag = 'smem constant byte address 0x4 - core index']
  #allocation1 [shape = 'u32[72,128]{1,0:T(1,128)}', space=vmem, size = 0x9000, scoped, tag = 'internal scratch']
  %s0 = inlined_call_operand.vmem [shape: bf16[2,128,384], index: 0, kind: input, shape index: {}, may-alias: {0,1,2}]
  %s1 = inlined_call_operand.vmem [shape: bf16[2,128,384], index: 1, kind: input, shape index: {}, may-alias: {0,1,2}]
  %s2 = inlined_call_operand.vmem [shape: bf16[2,128,384], index: 2, kind: input, shape index: {}, may-alias: {0,1,2}]
  %s3 = inlined_call_operand.vmem [shape: f32[2,1,128], index: 3, kind: input, shape index: {}]
  %s4 = inlined_call_operand.vmem [shape: bf16[2,128,128], index: 4, kind: output, shape index: {}]
  %s5 = sld [smem:[#allocation0]]
  $region172: #{plm_token_encoder_forward.17} parent=0
    _
  %s7 = ssub.s32 1, %s5
  %s8 = scalar_select 0, %s7, %s5
  $region1: #{plm_token_encoder_forward.17} parent=0
    #allocation2 [shape = 'u8[65536]{0}', space=vmem, size = 0x10000, scoped, tag = 'input window, operand 0']
    #allocation3 [shape = 'u8[65536]{0}', space=vmem, size = 0x10000, scoped, tag = 'input window, operand 1']
    #allocation4 [shape = 'u8[65536]{0}', space=vmem, size = 0x10000, scoped, tag = 'input window, operand 2']
    loop: start=0, step=1, limit=4
    $region2: #{plm_token_encoder_forward.17} parent=1 // loop_pre_header
      _
    $region3: #{plm_token_encoder_forward.17} parent=1 // loop_header
      %s10 = sphi 0, %s14
      %p11 = scmp.ge.s32.totalorder %s10, 4
      %s17 = sphi 0, %s29
      %s18 = sphi 0, %s25
      %s19 = sphi 0, %s17
      %s20 = sphi 0, %s18
      %s21 = sphi 0, %s19
      %s22 = sphi 0, %s20
      %s34 = sphi 0, %s36
      %s37 = sphi 0, %s34
      %s38 = sphi 0, %s37
      %s54 = sphi 0, %s38
      %s64 = sphi 0, %s66
      %s67 = sphi 0, %s64
      %s68 = sphi 0, %s67
      %s84 = sphi 0, %s68
      %s94 = sphi 0, %s96
      %s97 = sphi 0, %s94
      %s98 = sphi 0, %s97
      %s114 = sphi 0, %s98
      %s120 = sphi 0, %s122
      %s123 = sphi 0, %s120
      %s124 = sphi 0, %s123
      %s140 = sphi 0, %s124
      %s148 = sphi 0, %s150
      %s151 = sphi 0, %s148
      %s152 = sphi 0, %s151
      %s168 = sphi 0, %s152
    $region4: #{plm_token_encoder_forward.17} parent=1 // loop_header_branch
      %13 = sbr.rel (%p11) target = $region8
    $region5: #{plm_token_encoder_forward.17} parent=1 // loop_body
      %s15 = ssub.s32 %s10, 1
      %s16 = ssub.s32 %s10, 2
      %s23 = sadd.s32 1, %s18
      %p24 = scmp.ge.s32.totalorder %s23, 1
      %s25 = scalar_select %p24, 0, %s23
      %s26 = sadd.s32 1, %s17
      %s27 = scalar_select %p24, %s26, %s17
      %p28 = scmp.ge.s32.totalorder %s27, 2
      %s29 = scalar_select %p28, 0, %s27
      %s30 = ssub.s32 %s17, %s29
      %s31 = ssub.s32 %s18, %s25
      %s32 = sor.u32 %s30, %s31
      %p33 = scmp.eq.s32.totalorder %s32, 0
      %s35 = sadd.s32 %s34, 1
      %s36 = scalar_select %p33, %s34, %s35
      %p39 = pneg %p33
      %p40 = scmp.eq.s32.totalorder %s10, 1
      %p41 = por %p39, %p40
      %p42 = scmp.ne.s32.totalorder %s34, %s37
      %p43 = scmp.eq.s32.totalorder %s10, 0
      %p44 = por %p42, %p43
      %p45 = scmp.ne.s32.totalorder %s34, %s37
      %p46 = scmp.eq.s32.totalorder %s15, 1
      %p47 = por %p45, %p46
      %p48 = scmp.ne.s32.totalorder %s37, %s38
      %p49 = scmp.eq.s32.totalorder %s15, 0
      %p50 = por %p48, %p49
      %p51 = scmp.ne.s32.totalorder %s37, %s38
      %p52 = scmp.eq.s32.totalorder %s16, 1
      %p53 = por %p51, %p52
      %p55 = scmp.ne.s32.totalorder %s38, %s54
      %p56 = scmp.eq.s32.totalorder %s16, 0
      %p57 = por %p55, %p56
      %s58 = sadd.s32 %s18, 1
      %s59 = sadd.s32 %s25, 1
      %s60 = ssub.s32 %s17, %s29
      %s61 = ssub.s32 %s58, %s59
      %s62 = sor.u32 %s60, %s61
      %p63 = scmp.eq.s32.totalorder %s62, 0
      %s65 = sadd.s32 %s64, 1
      %s66 = scalar_select %p63, %s64, %s65
      %p69 = pneg %p63
      %p70 = scmp.eq.s32.totalorder %s10, 1
      %p71 = por %p69, %p70
      %p72 = scmp.ne.s32.totalorder %s64, %s67
      %p73 = scmp.eq.s32.totalorder %s10, 0
      %p74 = por %p72, %p73
      %p75 = scmp.ne.s32.totalorder %s64, %s67
      %p76 = scmp.eq.s32.totalorder %s15, 1
      %p77 = por %p75, %p76
      %p78 = scmp.ne.s32.totalorder %s67, %s68
      %p79 = scmp.eq.s32.totalorder %s15, 0
      %p80 = por %p78, %p79
      %p81 = scmp.ne.s32.totalorder %s67, %s68
      %p82 = scmp.eq.s32.totalorder %s16, 1
      %p83 = por %p81, %p82
      %p85 = scmp.ne.s32.totalorder %s68, %s84
      %p86 = scmp.eq.s32.totalorder %s16, 0
      %p87 = por %p85, %p86
      %s88 = sadd.s32 %s18, 2
      %s89 = sadd.s32 %s25, 2
      %s90 = ssub.s32 %s17, %s29
      %s91 = ssub.s32 %s88, %s89
      %s92 = sor.u32 %s90, %s91
      %p93 = scmp.eq.s32.totalorder %s92, 0
      %s95 = sadd.s32 %s94, 1
      %s96 = scalar_select %p93, %s94, %s95
      %p99 = pneg %p93
      %p100 = scmp.eq.s32.totalorder %s10, 1
      %p101 = por %p99, %p100
      %p102 = scmp.ne.s32.totalorder %s94, %s97
      %p103 = scmp.eq.s32.totalorder %s10, 0
      %p104 = por %p102, %p103
      %p105 = scmp.ne.s32.totalorder %s94, %s97
      %p106 = scmp.eq.s32.totalorder %s15, 1
      %p107 = por %p105, %p106
      %p108 = scmp.ne.s32.totalorder %s97, %s98
      %p109 = scmp.eq.s32.totalorder %s15, 0
      %p110 = por %p108, %p109
      %p111 = scmp.ne.s32.totalorder %s97, %s98
      %p112 = scmp.eq.s32.totalorder %s16, 1
      %p113 = por %p111, %p112
      %p115 = scmp.ne.s32.totalorder %s98, %s114
      %p116 = scmp.eq.s32.totalorder %s16, 0
      %p117 = por %p115, %p116
      %s118 = ssub.s32 %s17, %s29
      %p119 = scmp.eq.s32.totalorder %s118, 0
      %s121 = sadd.s32 %s120, 1
      %s122 = scalar_select %p119, %s120, %s121
      %p125 = pneg %p119
      %p126 = scmp.eq.s32.totalorder %s10, 1
      %p127 = por %p125, %p126
      %p128 = scmp.ne.s32.totalorder %s120, %s123
      %p129 = scmp.eq.s32.totalorder %s10, 0
      %p130 = por %p128, %p129
      %p131 = scmp.ne.s32.totalorder %s120, %s123
      %p132 = scmp.eq.s32.totalorder %s15, 1
      %p133 = por %p131, %p132
      %p134 = scmp.ne.s32.totalorder %s123, %s124
      %p135 = scmp.eq.s32.totalorder %s15, 0
      %p136 = por %p134, %p135
      %p137 = scmp.ne.s32.totalorder %s123, %s124
      %p138 = scmp.eq.s32.totalorder %s16, 1
      %p139 = por %p137, %p138
      %p141 = scmp.ne.s32.totalorder %s124, %s140
      %p142 = scmp.eq.s32.totalorder %s16, 0
      %p143 = por %p141, %p142
      %s144 = ssub.s32 %s17, %s29
      %s145 = ssub.s32 %s18, %s25
      %s146 = sor.u32 %s144, %s145
      %p147 = scmp.eq.s32.totalorder %s146, 0
      %s149 = sadd.s32 %s148, 1
      %s150 = scalar_select %p147, %s148, %s149
      %p153 = pneg %p147
      %p154 = scmp.eq.s32.totalorder %s10, 1
      %p155 = por %p153, %p154
      %p156 = scmp.ne.s32.totalorder %s148, %s151
      %p157 = scmp.eq.s32.totalorder %s10, 0
      %p158 = por %p156, %p157
      %p159 = scmp.ne.s32.totalorder %s148, %s151
      %p160 = scmp.eq.s32.totalorder %s15, 1
      %p161 = por %p159, %p160
      %p162 = scmp.ne.s32.totalorder %s151, %s152
      %p163 = scmp.eq.s32.totalorder %s15, 0
      %p164 = por %p162, %p163
      %p165 = scmp.ne.s32.totalorder %s151, %s152
      %p166 = scmp.eq.s32.totalorder %s16, 1
      %p167 = por %p165, %p166
      %p169 = scmp.ne.s32.totalorder %s152, %s168
      %p170 = scmp.eq.s32.totalorder %s16, 0
      %p171 = por %p169, %p170
      %p172 = scmp.le.s32.totalorder 1, %s10
      %p173 = scmp.lt.s32.totalorder %s10, 3
      %p174 = pnand %p172, %p173
      %p175 = pneg %p174
      // Predicated region
      $region9: #{plm_token_encoder_forward.17} parent=5 // pred_check
        _
      $region10: #{plm_token_encoder_forward.17} parent=5 // pred_check_branch
        %177 = sbr.rel (%p174) target = $region12
      $region11: #{plm_token_encoder_forward.17} parent=5 // pred_region
        %s178 = ssub.s32 %s10, 1
      $region12: #{plm_token_encoder_forward.17} parent=5 // pred_fallthru
        _
      %p179 = scmp.lt.s32.totalorder %s10, 2
      // Predicated region
      $region13: #{plm_token_encoder_forward.17} parent=5 // pred_check
        %p180 = pneg %p179
      $region14: #{plm_token_encoder_forward.17} parent=5 // pred_check_branch
        %182 = sbr.rel (%p180) target = $region16
      $region15: #{plm_token_encoder_forward.17} parent=5 // pred_region
        // Predicated region
        $region17: #{plm_token_encoder_forward.17} parent=15 // pred_check
          %p183 = pneg %p44
        $region18: #{plm_token_encoder_forward.17} parent=15 // pred_check_branch
          %185 = sbr.rel (%p183) target = $region20
        $region19: #{plm_token_encoder_forward.17} parent=15 // pred_region
          %s186 = sand.u32 %s34, 1
          %s187 = sand.u32 %s34, 1
          %s188 = smul.addr %s187, 64
          %s189 = scalar_lea.vmem [#allocation2], %s188
          %s190 = smul.addr %s17, 48
          %s191 = sadd.s32 %s18, %s190
          %s192 = smul.addr %s191, 4
          %s193 = scalar_lea.vmem %s0, %s192
          // Predicated region
          $region21: #{plm_token_encoder_forward.17} parent=19 // pred_check
            _
          $region22: #{plm_token_encoder_forward.17} parent=19 // pred_check_branch
            %195 = sbr.rel (0) target = $region24
          $region23: #{plm_token_encoder_forward.17} parent=19 // pred_region
            // Predicated region
            $region25: #{plm_token_encoder_forward.17} parent=23 // pred_check
              _
            $region26: #{plm_token_encoder_forward.17} parent=23 // pred_check_branch
              %197 = sbr.rel target = $region28
            $region27: #{plm_token_encoder_forward.17} parent=23 // pred_region
              // Predicated region
              $region40: #{plm_token_encoder_forward.17} parent=27 // pred_check
                _
              $region41: #{plm_token_encoder_forward.17} parent=27 // pred_check_branch
                %243 = sbr.rel (0) target = $region43
              $region42: #{plm_token_encoder_forward.17} parent=27 // pred_region
                loop: start=0, step=1, limit=1
                $region44: #{plm_token_encoder_forward.17} parent=42 // loop_pre_header
                  _
                $region45: #{plm_token_encoder_forward.17} parent=42 // loop_header
                  %s245 = sphi 0, %s249
                  %p246 = scmp.ge.s32.totalorder %s245, 1
                  %s250 = sphi %s193, %s193
                  %s251 = sphi %s189, %s189
                $region46: #{plm_token_encoder_forward.17} parent=42 // loop_header_branch
                  %248 = sbr.rel (%p246) target = $region50
                $region47: #{plm_token_encoder_forward.17} parent=42 // loop_body
                  _
                $region48: #{plm_token_encoder_forward.17} parent=42 // loop_footer
                  %s249 = sadd.s32 1, %s245
                $region49: #{plm_token_encoder_forward.17} parent=42 // loop_footer_branch
                  %244 = sbr.rel target = $region45
                $region50: #{plm_token_encoder_forward.17} parent=42 // loop_exit
                  _
                %s253 = ssub.s32 16, 1
                loop: start=0, step=1, limit=1
                $region51: #{plm_token_encoder_forward.17} parent=42 // loop_pre_header
                  _
                $region52: #{plm_token_encoder_forward.17} parent=42 // loop_header
                  %s255 = sphi 0, %s259
                  %p256 = scmp.ge.s32.totalorder %s255, 1
                  %s260 = sphi %s193, %s193
                  %s261 = sphi %s189, %s189
                $region53: #{plm_token_encoder_forward.17} parent=42 // loop_header_branch
                  %258 = sbr.rel (%p256) target = $region57
                $region54: #{plm_token_encoder_forward.17} parent=42 // loop_body
                  %v262 = vld [vmem:[%s260] sm:%s253]
                  %263 = vst [vmem:[%s261] sm:%s253] %v262
                  %v264 = vld [vmem:[%s260 + $0xc] sm:%s253]
                  %265 = vst [vmem:[%s261 + $0x4] sm:%s253] %v264
                  %v266 = vld [vmem:[%s260 + $0x18] sm:%s253]
                  %267 = vst [vmem:[%s261 + $0x8] sm:%s253] %v266
                  %v268 = vld [vmem:[%s260 + $0x24] sm:%s253]
                  %269 = vst [vmem:[%s261 + $0xc] sm:%s253] %v268
                  %v270 = vld [vmem:[%s260 + $0x30] sm:%s253]
                  %271 = vst [vmem:[%s261 + $0x10] sm:%s253] %v270
                  %v272 = vld [vmem:[%s260 + $0x3c] sm:%s253]
                  %273 = vst [vmem:[%s261 + $0x14] sm:%s253] %v272
                  %v274 = vld [vmem:[%s260 + $0x48] sm:%s253]
                  %275 = vst [vmem:[%s261 + $0x18] sm:%s253] %v274
                  %v276 = vld [vmem:[%s260 + $0x54] sm:%s253]
                  %277 = vst [vmem:[%s261 + $0x1c] sm:%s253] %v276
                  %v278 = vld [vmem:[%s260 + $0x60] sm:%s253]
                  %279 = vst [vmem:[%s261 + $0x20] sm:%s253] %v278
                  %v280 = vld [vmem:[%s260 + $0x6c] sm:%s253]
                  %281 = vst [vmem:[%s261 + $0x24] sm:%s253] %v280
                  %v282 = vld [vmem:[%s260 + $0x78] sm:%s253]
                  %283 = vst [vmem:[%s261 + $0x28] sm:%s253] %v282
                  %v284 = vld [vmem:[%s260 + $0x84] sm:%s253]
                  %285 = vst [vmem:[%s261 + $0x2c] sm:%s253] %v284
                  %v286 = vld [vmem:[%s260 + $0x90] sm:%s253]
                  %287 = vst [vmem:[%s261 + $0x30] sm:%s253] %v286
                  %v288 = vld [vmem:[%s260 + $0x9c] sm:%s253]
                  %289 = vst [vmem:[%s261 + $0x34] sm:%s253] %v288
                  %v290 = vld [vmem:[%s260 + $0xa8] sm:%s253]
                  %291 = vst [vmem:[%s261 + $0x38] sm:%s253] %v290
                  %v292 = vld [vmem:[%s260 + $0xb4] sm:%s253]
                  %293 = vst [vmem:[%s261 + $0x3c] sm:%s253] %v292
                $region55: #{plm_token_encoder_forward.17} parent=42 // loop_footer
                  %s259 = sadd.s32 1, %s255
                $region56: #{plm_token_encoder_forward.17} parent=42 // loop_footer_branch
                  %254 = sbr.rel target = $region52
                $region57: #{plm_token_encoder_forward.17} parent=42 // loop_exit
                  _
              $region43: #{plm_token_encoder_forward.17} parent=27 // pred_fallthru
                _
            $region28: #{plm_token_encoder_forward.17} parent=23 // pred_fallthru
              _
            // Predicated region
            $region29: #{plm_token_encoder_forward.17} parent=23 // pred_check
              _
            $region30: #{plm_token_encoder_forward.17} parent=23 // pred_check_branch
              %199 = sbr.rel (0) target = $region32
            $region31: #{plm_token_encoder_forward.17} parent=23 // pred_region
              %s201 = ssub.s32 16, 1
              loop: start=0, step=1, limit=1
              $region33: #{plm_token_encoder_forward.17} parent=31 // loop_pre_header
                _
              $region34: #{plm_token_encoder_forward.17} parent=31 // loop_header
                %s203 = sphi 0, %s207
                %p204 = scmp.ge.s32.totalorder %s203, 1
                %s208 = sphi %s193, %s193
                %s209 = sphi %s189, %s189
              $region35: #{plm_token_encoder_forward.17} parent=31 // loop_header_branch
                %206 = sbr.rel (%p204) target = $region39
              $region36: #{plm_token_encoder_forward.17} parent=31 // loop_body
                %v210 = vld [vmem:[%s208] sm:%s201]
                %211 = vst [vmem:[%s209] sm:%s201] %v210
                %v212 = vld [vmem:[%s208 + $0xc] sm:%s201]
                %213 = vst [vmem:[%s209 + $0x4] sm:%s201] %v212
                %v214 = vld [vmem:[%s208 + $0x18] sm:%s201]
                %215 = vst [vmem:[%s209 + $0x8] sm:%s201] %v214
                %v216 = vld [vmem:[%s208 + $0x24] sm:%s201]
                %217 = vst [vmem:[%s209 + $0xc] sm:%s201] %v216
                %v218 = vld [vmem:[%s208 + $0x30] sm:%s201]
                %219 = vst [vmem:[%s209 + $0x10] sm:%s201] %v218
                %v220 = vld [vmem:[%s208 + $0x3c] sm:%s201]
                %221 = vst [vmem:[%s209 + $0x14] sm:%s201] %v220
                %v222 = vld [vmem:[%s208 + $0x48] sm:%s201]
                %223 = vst [vmem:[%s209 + $0x18] sm:%s201] %v222
                %v224 = vld [vmem:[%s208 + $0x54] sm:%s201]
                %225 = vst [vmem:[%s209 + $0x1c] sm:%s201] %v224
                %v226 = vld [vmem:[%s208 + $0x60] sm:%s201]
                %227 = vst [vmem:[%s209 + $0x20] sm:%s201] %v226
                %v228 = vld [vmem:[%s208 + $0x6c] sm:%s201]
                %229 = vst [vmem:[%s209 + $0x24] sm:%s201] %v228
                %v230 = vld [vmem:[%s208 + $0x78] sm:%s201]
                %231 = vst [vmem:[%s209 + $0x28] sm:%s201] %v230
                %v232 = vld [vmem:[%s208 + $0x84] sm:%s201]
                %233 = vst [vmem:[%s209 + $0x2c] sm:%s201] %v232
                %v234 = vld [vmem:[%s208 + $0x90] sm:%s201]
                %235 = vst [vmem:[%s209 + $0x30] sm:%s201] %v234
                %v236 = vld [vmem:[%s208 + $0x9c] sm:%s201]
                %237 = vst [vmem:[%s209 + $0x34] sm:%s201] %v236
                %v238 = vld [vmem:[%s208 + $0xa8] sm:%s201]
                %239 = vst [vmem:[%s209 + $0x38] sm:%s201] %v238
                %v240 = vld [vmem:[%s208 + $0xb4] sm:%s201]
                %241 = vst [vmem:[%s209 + $0x3c] sm:%s201] %v240
              $region37: #{plm_token_encoder_forward.17} parent=31 // loop_footer
                %s207 = sadd.s32 1, %s203
              $region38: #{plm_token_encoder_forward.17} parent=31 // loop_footer_branch
                %202 = sbr.rel target = $region34
              $region39: #{plm_token_encoder_forward.17} parent=31 // loop_exit
                _
            $region32: #{plm_token_encoder_forward.17} parent=23 // pred_fallthru
              _
          $region24: #{plm_token_encoder_forward.17} parent=19 // pred_fallthru
            _
          %294 = vnop
        $region20: #{plm_token_encoder_forward.17} parent=15 // pred_fallthru
          _
        // Predicated region
        $region58: #{plm_token_encoder_forward.17} parent=15 // pred_check
          %p295 = pneg %p74
        $region59: #{plm_token_encoder_forward.17} parent=15 // pred_check_branch
          %297 = sbr.rel (%p295) target = $region61
        $region60: #{plm_token_encoder_forward.17} parent=15 // pred_region
          %s298 = sand.u32 %s64, 1
          %s299 = sand.u32 %s64, 1
          %s300 = smul.addr %s299, 64
          %s301 = scalar_lea.vmem [#allocation3], %s300
          %s302 = sadd.s32 %s18, 1
          %s303 = smul.addr %s17, 48
          %s304 = sadd.s32 %s302, %s303
          %s305 = smul.addr %s304, 4
          %s306 = scalar_lea.vmem %s1, %s305
          // Predicated region
          $region62: #{plm_token_encoder_forward.17} parent=60 // pred_check
            _
          $region63: #{plm_token_encoder_forward.17} parent=60 // pred_check_branch
            %308 = sbr.rel (0) target = $region65
          $region64: #{plm_token_encoder_forward.17} parent=60 // pred_region
            // Predicated region
            $region66: #{plm_token_encoder_forward.17} parent=64 // pred_check
              _
            $region67: #{plm_token_encoder_forward.17} parent=64 // pred_check_branch
              %310 = sbr.rel target = $region69
            $region68: #{plm_token_encoder_forward.17} parent=64 // pred_region
              // Predicated region
              $region81: #{plm_token_encoder_forward.17} parent=68 // pred_check
                _
              $region82: #{plm_token_encoder_forward.17} parent=68 // pred_check_branch
                %356 = sbr.rel (0) target = $region84
              $region83: #{plm_token_encoder_forward.17} parent=68 // pred_region
                loop: start=0, step=1, limit=1
                $region85: #{plm_token_encoder_forward.17} parent=83 // loop_pre_header
                  _
                $region86: #{plm_token_encoder_forward.17} parent=83 // loop_header
                  %s358 = sphi 0, %s362
                  %p359 = scmp.ge.s32.totalorder %s358, 1
                  %s363 = sphi %s306, %s306
                  %s364 = sphi %s301, %s301
                $region87: #{plm_token_encoder_forward.17} parent=83 // loop_header_branch
                  %361 = sbr.rel (%p359) target = $region91
                $region88: #{plm_token_encoder_forward.17} parent=83 // loop_body
                  _
                $region89: #{plm_token_encoder_forward.17} parent=83 // loop_footer
                  %s362 = sadd.s32 1, %s358
                $region90: #{plm_token_encoder_forward.17} parent=83 // loop_footer_branch
                  %357 = sbr.rel target = $region86
                $region91: #{plm_token_encoder_forward.17} parent=83 // loop_exit
                  _
                %s366 = ssub.s32 16, 1
                loop: start=0, step=1, limit=1
                $region92: #{plm_token_encoder_forward.17} parent=83 // loop_pre_header
                  _
                $region93: #{plm_token_encoder_forward.17} parent=83 // loop_header
                  %s368 = sphi 0, %s372
                  %p369 = scmp.ge.s32.totalorder %s368, 1
                  %s373 = sphi %s306, %s306
                  %s374 = sphi %s301, %s301
                $region94: #{plm_token_encoder_forward.17} parent=83 // loop_header_branch
                  %371 = sbr.rel (%p369) target = $region98
                $region95: #{plm_token_encoder_forward.17} parent=83 // loop_body
                  %v375 = vld [vmem:[%s373] sm:%s366]
                  %376 = vst [vmem:[%s374] sm:%s366] %v375
                  %v377 = vld [vmem:[%s373 + $0xc] sm:%s366]
                  %378 = vst [vmem:[%s374 + $0x4] sm:%s366] %v377
                  %v379 = vld [vmem:[%s373 + $0x18] sm:%s366]
                  %380 = vst [vmem:[%s374 + $0x8] sm:%s366] %v379
                  %v381 = vld [vmem:[%s373 + $0x24] sm:%s366]
                  %382 = vst [vmem:[%s374 + $0xc] sm:%s366] %v381
                  %v383 = vld [vmem:[%s373 + $0x30] sm:%s366]
                  %384 = vst [vmem:[%s374 + $0x10] sm:%s366] %v383
                  %v385 = vld [vmem:[%s373 + $0x3c] sm:%s366]
                  %386 = vst [vmem:[%s374 + $0x14] sm:%s366] %v385
                  %v387 = vld [vmem:[%s373 + $0x48] sm:%s366]
                  %388 = vst [vmem:[%s374 + $0x18] sm:%s366] %v387
                  %v389 = vld [vmem:[%s373 + $0x54] sm:%s366]
                  %390 = vst [vmem:[%s374 + $0x1c] sm:%s366] %v389
                  %v391 = vld [vmem:[%s373 + $0x60] sm:%s366]
                  %392 = vst [vmem:[%s374 + $0x20] sm:%s366] %v391
                  %v393 = vld [vmem:[%s373 + $0x6c] sm:%s366]
                  %394 = vst [vmem:[%s374 + $0x24] sm:%s366] %v393
                  %v395 = vld [vmem:[%s373 + $0x78] sm:%s366]
                  %396 = vst [vmem:[%s374 + $0x28] sm:%s366] %v395
                  %v397 = vld [vmem:[%s373 + $0x84] sm:%s366]
                  %398 = vst [vmem:[%s374 + $0x2c] sm:%s366] %v397
                  %v399 = vld [vmem:[%s373 + $0x90] sm:%s366]
                  %400 = vst [vmem:[%s374 + $0x30] sm:%s366] %v399
                  %v401 = vld [vmem:[%s373 + $0x9c] sm:%s366]
                  %402 = vst [vmem:[%s374 + $0x34] sm:%s366] %v401
                  %v403 = vld [vmem:[%s373 + $0xa8] sm:%s366]
                  %404 = vst [vmem:[%s374 + $0x38] sm:%s366] %v403
                  %v405 = vld [vmem:[%s373 + $0xb4] sm:%s366]
                  %406 = vst [vmem:[%s374 + $0x3c] sm:%s366] %v405
                $region96: #{plm_token_encoder_forward.17} parent=83 // loop_footer
                  %s372 = sadd.s32 1, %s368
                $region97: #{plm_token_encoder_forward.17} parent=83 // loop_footer_branch
                  %367 = sbr.rel target = $region93
                $region98: #{plm_token_encoder_forward.17} parent=83 // loop_exit
                  _
              $region84: #{plm_token_encoder_forward.17} parent=68 // pred_fallthru
                _
            $region69: #{plm_token_encoder_forward.17} parent=64 // pred_fallthru
              _
            // Predicated region
            $region70: #{plm_token_encoder_forward.17} parent=64 // pred_check
              _
            $region71: #{plm_token_encoder_forward.17} parent=64 // pred_check_branch
              %312 = sbr.rel (0) target = $region73
            $region72: #{plm_token_encoder_forward.17} parent=64 // pred_region
              %s314 = ssub.s32 16, 1
              loop: start=0, step=1, limit=1
              $region74: #{plm_token_encoder_forward.17} parent=72 // loop_pre_header
                _
              $region75: #{plm_token_encoder_forward.17} parent=72 // loop_header
                %s316 = sphi 0, %s320
                %p317 = scmp.ge.s32.totalorder %s316, 1
                %s321 = sphi %s306, %s306
                %s322 = sphi %s301, %s301
              $region76: #{plm_token_encoder_forward.17} parent=72 // loop_header_branch
                %319 = sbr.rel (%p317) target = $region80
              $region77: #{plm_token_encoder_forward.17} parent=72 // loop_body
                %v323 = vld [vmem:[%s321] sm:%s314]
                %324 = vst [vmem:[%s322] sm:%s314] %v323
                %v325 = vld [vmem:[%s321 + $0xc] sm:%s314]
                %326 = vst [vmem:[%s322 + $0x4] sm:%s314] %v325
                %v327 = vld [vmem:[%s321 + $0x18] sm:%s314]
                %328 = vst [vmem:[%s322 + $0x8] sm:%s314] %v327
                %v329 = vld [vmem:[%s321 + $0x24] sm:%s314]
                %330 = vst [vmem:[%s322 + $0xc] sm:%s314] %v329
                %v331 = vld [vmem:[%s321 + $0x30] sm:%s314]
                %332 = vst [vmem:[%s322 + $0x10] sm:%s314] %v331
                %v333 = vld [vmem:[%s321 + $0x3c] sm:%s314]
                %334 = vst [vmem:[%s322 + $0x14] sm:%s314] %v333
                %v335 = vld [vmem:[%s321 + $0x48] sm:%s314]
                %336 = vst [vmem:[%s322 + $0x18] sm:%s314] %v335
                %v337 = vld [vmem:[%s321 + $0x54] sm:%s314]
                %338 = vst [vmem:[%s322 + $0x1c] sm:%s314] %v337
                %v339 = vld [vmem:[%s321 + $0x60] sm:%s314]
                %340 = vst [vmem:[%s322 + $0x20] sm:%s314] %v339
                %v341 = vld [vmem:[%s321 + $0x6c] sm:%s314]
                %342 = vst [vmem:[%s322 + $0x24] sm:%s314] %v341
                %v343 = vld [vmem:[%s321 + $0x78] sm:%s314]
                %344 = vst [vmem:[%s322 + $0x28] sm:%s314] %v343
                %v345 = vld [vmem:[%s321 + $0x84] sm:%s314]
                %346 = vst [vmem:[%s322 + $0x2c] sm:%s314] %v345
                %v347 = vld [vmem:[%s321 + $0x90] sm:%s314]
                %348 = vst [vmem:[%s322 + $0x30] sm:%s314] %v347
                %v349 = vld [vmem:[%s321 + $0x9c] sm:%s314]
                %350 = vst [vmem:[%s322 + $0x34] sm:%s314] %v349
                %v351 = vld [vmem:[%s321 + $0xa8] sm:%s314]
                %352 = vst [vmem:[%s322 + $0x38] sm:%s314] %v351
                %v353 = vld [vmem:[%s321 + $0xb4] sm:%s314]
                %354 = vst [vmem:[%s322 + $0x3c] sm:%s314] %v353
              $region78: #{plm_token_encoder_forward.17} parent=72 // loop_footer
                %s320 = sadd.s32 1, %s316
              $region79: #{plm_token_encoder_forward.17} parent=72 // loop_footer_branch
                %315 = sbr.rel target = $region75
              $region80: #{plm_token_encoder_forward.17} parent=72 // loop_exit
                _
            $region73: #{plm_token_encoder_forward.17} parent=64 // pred_fallthru
              _
          $region65: #{plm_token_encoder_forward.17} parent=60 // pred_fallthru
            _
          %407 = vnop
        $region61: #{plm_token_encoder_forward.17} parent=15 // pred_fallthru
          _
        // Predicated region
        $region99: #{plm_token_encoder_forward.17} parent=15 // pred_check
          %p408 = pneg %p104
        $region100: #{plm_token_encoder_forward.17} parent=15 // pred_check_branch
          %410 = sbr.rel (%p408) target = $region102
        $region101: #{plm_token_encoder_forward.17} parent=15 // pred_region
          %s411 = sand.u32 %s94, 1
          %s412 = sand.u32 %s94, 1
          %s413 = smul.addr %s412, 64
          %s414 = scalar_lea.vmem [#allocation4], %s413
          %s415 = sadd.s32 %s18, 2
          %s416 = smul.addr %s17, 48
          %s417 = sadd.s32 %s415, %s416
          %s418 = smul.addr %s417, 4
          %s419 = scalar_lea.vmem %s2, %s418
          // Predicated region
          $region103: #{plm_token_encoder_forward.17} parent=101 // pred_check
            _
          $region104: #{plm_token_encoder_forward.17} parent=101 // pred_check_branch
            %421 = sbr.rel (0) target = $region106
          $region105: #{plm_token_encoder_forward.17} parent=101 // pred_region
            // Predicated region
            $region107: #{plm_token_encoder_forward.17} parent=105 // pred_check
              _
            $region108: #{plm_token_encoder_forward.17} parent=105 // pred_check_branch
              %423 = sbr.rel target = $region110
            $region109: #{plm_token_encoder_forward.17} parent=105 // pred_region
              // Predicated region
              $region122: #{plm_token_encoder_forward.17} parent=109 // pred_check
                _
              $region123: #{plm_token_encoder_forward.17} parent=109 // pred_check_branch
                %469 = sbr.rel (0) target = $region125
              $region124: #{plm_token_encoder_forward.17} parent=109 // pred_region
                loop: start=0, step=1, limit=1
                $region126: #{plm_token_encoder_forward.17} parent=124 // loop_pre_header
                  _
                $region127: #{plm_token_encoder_forward.17} parent=124 // loop_header
                  %s471 = sphi 0, %s475
                  %p472 = scmp.ge.s32.totalorder %s471, 1
                  %s476 = sphi %s419, %s419
                  %s477 = sphi %s414, %s414
                $region128: #{plm_token_encoder_forward.17} parent=124 // loop_header_branch
                  %474 = sbr.rel (%p472) target = $region132
                $region129: #{plm_token_encoder_forward.17} parent=124 // loop_body
                  _
                $region130: #{plm_token_encoder_forward.17} parent=124 // loop_footer
                  %s475 = sadd.s32 1, %s471
                $region131: #{plm_token_encoder_forward.17} parent=124 // loop_footer_branch
                  %470 = sbr.rel target = $region127
                $region132: #{plm_token_encoder_forward.17} parent=124 // loop_exit
                  _
                %s479 = ssub.s32 16, 1
                loop: start=0, step=1, limit=1
                $region133: #{plm_token_encoder_forward.17} parent=124 // loop_pre_header
                  _
                $region134: #{plm_token_encoder_forward.17} parent=124 // loop_header
                  %s481 = sphi 0, %s485
                  %p482 = scmp.ge.s32.totalorder %s481, 1
                  %s486 = sphi %s419, %s419
                  %s487 = sphi %s414, %s414
                $region135: #{plm_token_encoder_forward.17} parent=124 // loop_header_branch
                  %484 = sbr.rel (%p482) target = $region139
                $region136: #{plm_token_encoder_forward.17} parent=124 // loop_body
                  %v488 = vld [vmem:[%s486] sm:%s479]
                  %489 = vst [vmem:[%s487] sm:%s479] %v488
                  %v490 = vld [vmem:[%s486 + $0xc] sm:%s479]
                  %491 = vst [vmem:[%s487 + $0x4] sm:%s479] %v490
                  %v492 = vld [vmem:[%s486 + $0x18] sm:%s479]
                  %493 = vst [vmem:[%s487 + $0x8] sm:%s479] %v492
                  %v494 = vld [vmem:[%s486 + $0x24] sm:%s479]
                  %495 = vst [vmem:[%s487 + $0xc] sm:%s479] %v494
                  %v496 = vld [vmem:[%s486 + $0x30] sm:%s479]
                  %497 = vst [vmem:[%s487 + $0x10] sm:%s479] %v496
                  %v498 = vld [vmem:[%s486 + $0x3c] sm:%s479]
                  %499 = vst [vmem:[%s487 + $0x14] sm:%s479] %v498
                  %v500 = vld [vmem:[%s486 + $0x48] sm:%s479]
                  %501 = vst [vmem:[%s487 + $0x18] sm:%s479] %v500
                  %v502 = vld [vmem:[%s486 + $0x54] sm:%s479]
                  %503 = vst [vmem:[%s487 + $0x1c] sm:%s479] %v502
                  %v504 = vld [vmem:[%s486 + $0x60] sm:%s479]
                  %505 = vst [vmem:[%s487 + $0x20] sm:%s479] %v504
                  %v506 = vld [vmem:[%s486 + $0x6c] sm:%s479]
                  %507 = vst [vmem:[%s487 + $0x24] sm:%s479] %v506
                  %v508 = vld [vmem:[%s486 + $0x78] sm:%s479]
                  %509 = vst [vmem:[%s487 + $0x28] sm:%s479] %v508
                  %v510 = vld [vmem:[%s486 + $0x84] sm:%s479]
                  %511 = vst [vmem:[%s487 + $0x2c] sm:%s479] %v510
                  %v512 = vld [vmem:[%s486 + $0x90] sm:%s479]
                  %513 = vst [vmem:[%s487 + $0x30] sm:%s479] %v512
                  %v514 = vld [vmem:[%s486 + $0x9c] sm:%s479]
                  %515 = vst [vmem:[%s487 + $0x34] sm:%s479] %v514
                  %v516 = vld [vmem:[%s486 + $0xa8] sm:%s479]
                  %517 = vst [vmem:[%s487 + $0x38] sm:%s479] %v516
                  %v518 = vld [vmem:[%s486 + $0xb4] sm:%s479]
                  %519 = vst [vmem:[%s487 + $0x3c] sm:%s479] %v518
                $region137: #{plm_token_encoder_forward.17} parent=124 // loop_footer
                  %s485 = sadd.s32 1, %s481
                $region138: #{plm_token_encoder_forward.17} parent=124 // loop_footer_branch
                  %480 = sbr.rel target = $region134
                $region139: #{plm_token_encoder_forward.17} parent=124 // loop_exit
                  _
              $region125: #{plm_token_encoder_forward.17} parent=109 // pred_fallthru
                _
            $region110: #{plm_token_encoder_forward.17} parent=105 // pred_fallthru
              _
            // Predicated region
            $region111: #{plm_token_encoder_forward.17} parent=105 // pred_check
              _
            $region112: #{plm_token_encoder_forward.17} parent=105 // pred_check_branch
              %425 = sbr.rel (0) target = $region114
            $region113: #{plm_token_encoder_forward.17} parent=105 // pred_region
              %s427 = ssub.s32 16, 1
              loop: start=0, step=1, limit=1
              $region115: #{plm_token_encoder_forward.17} parent=113 // loop_pre_header
                _
              $region116: #{plm_token_encoder_forward.17} parent=113 // loop_header
                %s429 = sphi 0, %s433
                %p430 = scmp.ge.s32.totalorder %s429, 1
                %s434 = sphi %s419, %s419
                %s435 = sphi %s414, %s414
              $region117: #{plm_token_encoder_forward.17} parent=113 // loop_header_branch
                %432 = sbr.rel (%p430) target = $region121
              $region118: #{plm_token_encoder_forward.17} parent=113 // loop_body
                %v436 = vld [vmem:[%s434] sm:%s427]
                %437 = vst [vmem:[%s435] sm:%s427] %v436
                %v438 = vld [vmem:[%s434 + $0xc] sm:%s427]
                %439 = vst [vmem:[%s435 + $0x4] sm:%s427] %v438
                %v440 = vld [vmem:[%s434 + $0x18] sm:%s427]
                %441 = vst [vmem:[%s435 + $0x8] sm:%s427] %v440
                %v442 = vld [vmem:[%s434 + $0x24] sm:%s427]
                %443 = vst [vmem:[%s435 + $0xc] sm:%s427] %v442
                %v444 = vld [vmem:[%s434 + $0x30] sm:%s427]
                %445 = vst [vmem:[%s435 + $0x10] sm:%s427] %v444
                %v446 = vld [vmem:[%s434 + $0x3c] sm:%s427]
                %447 = vst [vmem:[%s435 + $0x14] sm:%s427] %v446
                %v448 = vld [vmem:[%s434 + $0x48] sm:%s427]
                %449 = vst [vmem:[%s435 + $0x18] sm:%s427] %v448
                %v450 = vld [vmem:[%s434 + $0x54] sm:%s427]
                %451 = vst [vmem:[%s435 + $0x1c] sm:%s427] %v450
                %v452 = vld [vmem:[%s434 + $0x60] sm:%s427]
                %453 = vst [vmem:[%s435 + $0x20] sm:%s427] %v452
                %v454 = vld [vmem:[%s434 + $0x6c] sm:%s427]
                %455 = vst [vmem:[%s435 + $0x24] sm:%s427] %v454
                %v456 = vld [vmem:[%s434 + $0x78] sm:%s427]
                %457 = vst [vmem:[%s435 + $0x28] sm:%s427] %v456
                %v458 = vld [vmem:[%s434 + $0x84] sm:%s427]
                %459 = vst [vmem:[%s435 + $0x2c] sm:%s427] %v458
                %v460 = vld [vmem:[%s434 + $0x90] sm:%s427]
                %461 = vst [vmem:[%s435 + $0x30] sm:%s427] %v460
                %v462 = vld [vmem:[%s434 + $0x9c] sm:%s427]
                %463 = vst [vmem:[%s435 + $0x34] sm:%s427] %v462
                %v464 = vld [vmem:[%s434 + $0xa8] sm:%s427]
                %465 = vst [vmem:[%s435 + $0x38] sm:%s427] %v464
                %v466 = vld [vmem:[%s434 + $0xb4] sm:%s427]
                %467 = vst [vmem:[%s435 + $0x3c] sm:%s427] %v466
              $region119: #{plm_token_encoder_forward.17} parent=113 // loop_footer
                %s433 = sadd.s32 1, %s429
              $region120: #{plm_token_encoder_forward.17} parent=113 // loop_footer_branch
                %428 = sbr.rel target = $region116
              $region121: #{plm_token_encoder_forward.17} parent=113 // loop_exit
                _
            $region114: #{plm_token_encoder_forward.17} parent=105 // pred_fallthru
              _
          $region106: #{plm_token_encoder_forward.17} parent=101 // pred_fallthru
            _
          %520 = vnop
        $region102: #{plm_token_encoder_forward.17} parent=15 // pred_fallthru
          _
        // Predicated region
        $region140: #{plm_token_encoder_forward.17} parent=15 // pred_check
          %p521 = pneg %p130
        $region141: #{plm_token_encoder_forward.17} parent=15 // pred_check_branch
          %523 = sbr.rel (%p521) target = $region143
        $region142: #{plm_token_encoder_forward.17} parent=15 // pred_region
          %p524 = scmp.lt.s32.totalorder %s17, 1
          %s525 = scalar_select %p524, %s17, 1
          %s526 = scalar_lea.vmem %s3, %s525
        $region143: #{plm_token_encoder_forward.17} parent=15 // pred_fallthru
          _
      $region16: #{plm_token_encoder_forward.17} parent=5 // pred_fallthru
        _
      %p527 = scmp.le.s32.totalorder 1, %s10
      %p528 = scmp.lt.s32.totalorder %s10, 3
      %p529 = pnand %p527, %p528
      %p530 = pneg %p529
      // Predicated region
      $region144: #{plm_token_encoder_forward.17} parent=5 // pred_check
        _
      $region145: #{plm_token_encoder_forward.17} parent=5 // pred_check_branch
        %532 = sbr.rel (%p529) target = $region147
      $region146: #{plm_token_encoder_forward.17} parent=5 // pred_region
        %s533 = ssub.s32 %s10, 1
        %s534 = sand.u32 %s37, 1
        %s535 = sand.u32 %s37, 1
        %s536 = smul.addr %s535, 64
        %s537 = scalar_lea.vmem [#allocation2], %s536
        // Predicated region
        $region148: #{plm_token_encoder_forward.17} parent=146 // pred_check
          %p538 = pneg %p50
        $region149: #{plm_token_encoder_forward.17} parent=146 // pred_check_branch
          %540 = sbr.rel (%p538) target = $region151
        $region150: #{plm_token_encoder_forward.17} parent=146 // pred_region
          _
        $region151: #{plm_token_encoder_forward.17} parent=146 // pred_fallthru
          _
        %s541 = sand.u32 %s67, 1
        %s542 = sand.u32 %s67, 1
        %s543 = smul.addr %s542, 64
        %s544 = scalar_lea.vmem [#allocation3], %s543
        // Predicated region
        $region152: #{plm_token_encoder_forward.17} parent=146 // pred_check
          %p545 = pneg %p80
        $region153: #{plm_token_encoder_forward.17} parent=146 // pred_check_branch
          %547 = sbr.rel (%p545) target = $region155
        $region154: #{plm_token_encoder_forward.17} parent=146 // pred_region
          _
        $region155: #{plm_token_encoder_forward.17} parent=146 // pred_fallthru
          _
        %s548 = sand.u32 %s97, 1
        %s549 = sand.u32 %s97, 1
        %s550 = smul.addr %s549, 64
        %s551 = scalar_lea.vmem [#allocation4], %s550
        // Predicated region
        $region156: #{plm_token_encoder_forward.17} parent=146 // pred_check
          %p552 = pneg %p110
        $region157: #{plm_token_encoder_forward.17} parent=146 // pred_check_branch
          %554 = sbr.rel (%p552) target = $region159
        $region158: #{plm_token_encoder_forward.17} parent=146 // pred_region
          _
        $region159: #{plm_token_encoder_forward.17} parent=146 // pred_fallthru
          _
        %s555 = sand.u32 %s37, 1
        %s556 = sand.u32 %s37, 1
        %s557 = smul.addr %s556, 64
        %s558 = scalar_lea.vmem [#allocation2], %s557
        %p559 = pneg %p50
        %p560 = pneg %p47
        %s561 = sand.u32 %s67, 1
        %s562 = sand.u32 %s67, 1
        %s563 = smul.addr %s562, 64
        %s564 = scalar_lea.vmem [#allocation3], %s563
        %p565 = pneg %p80
        %p566 = pneg %p77
        %s567 = sand.u32 %s97, 1
        %s568 = sand.u32 %s97, 1
        %s569 = smul.addr %s568, 64
        %s570 = scalar_lea.vmem [#allocation4], %s569
        %p571 = pneg %p110
        %p572 = pneg %p107
        %p573 = scmp.lt.s32.totalorder %s19, 1
        %s574 = scalar_select %p573, %s19, 1
        %s575 = scalar_lea.vmem %s3, %s574
        %p576 = pneg %p136
        %p577 = pneg %p133
        %p578 = pneg %p164
        %p579 = pneg %p161
        %p580 = scmp.lt.s32.totalorder %s19, 1
        %s581 = scalar_select %p580, %s19, 1
        %p582 = scmp.lt.s32.totalorder %s20, 0
        %s583 = scalar_select %p582, %s20, 0
        %s584 = smul.addr %s581, 16
        %s585 = sadd.s32 %s583, %s584
        %s586 = smul.addr %s585, 4
        %s587 = scalar_lea.vmem %s4, %s586
        %s588 = sadd.s32 %s20, 1
        %s589 = sadd.s32 %s20, 2
        %p590 = scmp.lt.s32.totalorder %s19, 1
        %s591 = scalar_select %p590, %s19, 1
        %s592 = scalar_lea.vmem %s3, %s591
        %p593 = scmp.lt.s32.totalorder %s19, 1
        %s594 = scalar_select %p593, %s19, 1
        %p595 = scmp.lt.s32.totalorder %s20, 0
        %s596 = scalar_select %p595, %s20, 0
        %s597 = smul.addr %s594, 16
        %s598 = sadd.s32 %s596, %s597
        %s599 = smul.addr %s598, 4
        %s600 = scalar_lea.vmem %s4, %s599
        %v601 = vld [vmem:[%s592] sm:$0x1]
        %v602 = vsub.f32 1.0, %v601
        %v603 = vmul.f32 %v602, -1e+09
        %v604 = vld [vmem:[%s537] sm:$0xf]
        %v605 = vld [vmem:[%s537 + $0x4] sm:$0xf]
        %v606 = vld [vmem:[%s537 + $0x8] sm:$0xf]
        %v607 = vld [vmem:[%s537 + $0xc] sm:$0xf]
        %v608 = vld [vmem:[%s537 + $0x10] sm:$0xf]
        %v609 = vld [vmem:[%s537 + $0x14] sm:$0xf]
        %v610 = vld [vmem:[%s537 + $0x18] sm:$0xf]
        %v611 = vld [vmem:[%s537 + $0x1c] sm:$0xf]
        %v612 = vld [vmem:[%s537 + $0x20] sm:$0xf]
        %v613 = vld [vmem:[%s537 + $0x24] sm:$0xf]
        %v614 = vld [vmem:[%s537 + $0x28] sm:$0xf]
        %v615 = vld [vmem:[%s537 + $0x2c] sm:$0xf]
        %v616 = vld [vmem:[%s537 + $0x30] sm:$0xf]
        %v617 = vld [vmem:[%s537 + $0x34] sm:$0xf]
        %v618 = vld [vmem:[%s537 + $0x38] sm:$0xf]
        %v619 = vld [vmem:[%s537 + $0x3c] sm:$0xf]
        %v620 = vld [vmem:[%s544] sm:$0xf]
        %v621 = vld [vmem:[%s544 + $0x4] sm:$0xf]
        %v622 = vld [vmem:[%s544 + $0x8] sm:$0xf]
        %v623 = vld [vmem:[%s544 + $0xc] sm:$0xf]
        %v624 = vld [vmem:[%s544 + $0x10] sm:$0xf]
        %v625 = vld [vmem:[%s544 + $0x14] sm:$0xf]
        %v626 = vld [vmem:[%s544 + $0x18] sm:$0xf]
        %v627 = vld [vmem:[%s544 + $0x1c] sm:$0xf]
        %v628 = vld [vmem:[%s544 + $0x20] sm:$0xf]
        %v629 = vld [vmem:[%s544 + $0x24] sm:$0xf]
        %v630 = vld [vmem:[%s544 + $0x28] sm:$0xf]
        %v631 = vld [vmem:[%s544 + $0x2c] sm:$0xf]
        %v632 = vld [vmem:[%s544 + $0x30] sm:$0xf]
        %v633 = vld [vmem:[%s544 + $0x34] sm:$0xf]
        %v634 = vld [vmem:[%s544 + $0x38] sm:$0xf]
        %v635 = vld [vmem:[%s544 + $0x3c] sm:$0xf]
        %v636 = vld [vmem:[%s551] sm:$0xf]
        %v637 = vld [vmem:[%s551 + $0x4] sm:$0xf]
        %v638 = vld [vmem:[%s551 + $0x8] sm:$0xf]
        %v639 = vld [vmem:[%s551 + $0xc] sm:$0xf]
        %v640 = vld [vmem:[%s551 + $0x10] sm:$0xf]
        %v641 = vld [vmem:[%s551 + $0x14] sm:$0xf]
        %v642 = vld [vmem:[%s551 + $0x18] sm:$0xf]
        %v643 = vld [vmem:[%s551 + $0x1c] sm:$0xf]
        %v644 = vld [vmem:[%s551 + $0x20] sm:$0xf]
        %v645 = vld [vmem:[%s551 + $0x24] sm:$0xf]
        %v646 = vld [vmem:[%s551 + $0x28] sm:$0xf]
        %v647 = vld [vmem:[%s551 + $0x2c] sm:$0xf]
        %v648 = vld [vmem:[%s551 + $0x30] sm:$0xf]
        %v649 = vld [vmem:[%s551 + $0x34] sm:$0xf]
        %v650 = vld [vmem:[%s551 + $0x38] sm:$0xf]
        %v651 = vld [vmem:[%s551 + $0x3c] sm:$0xf]
        %v668 = vunpack.c.l.b16 %v604
        %v669 = vunpack.c.l.b16 %v605
        %v670 = vunpack.c.l.b16 %v606
        %v671 = vunpack.c.l.b16 %v607
        %v672 = vunpack.c.l.b16 %v608
        %v673 = vunpack.c.l.b16 %v609
        %v674 = vunpack.c.l.b16 %v610
        %v675 = vunpack.c.l.b16 %v611
        %v676 = vunpack.c.l.b16 %v612
        %v677 = vunpack.c.l.b16 %v613
        %v678 = vunpack.c.l.b16 %v614
        %v679 = vunpack.c.l.b16 %v615
        %v680 = vunpack.c.l.b16 %v616
        %v681 = vunpack.c.l.b16 %v617
        %v682 = vunpack.c.l.b16 %v618
        %v683 = vunpack.c.l.b16 %v619
        %v684 = vpack.c.b16 %v669, %v668
        %v685 = vpack.c.b16 %v671, %v670
        %v686 = vpack.c.b16 %v673, %v672
        %v687 = vpack.c.b16 %v675, %v674
        %v688 = vpack.c.b16 %v677, %v676
        %v689 = vpack.c.b16 %v679, %v678
        %v690 = vpack.c.b16 %v681, %v680
        %v691 = vpack.c.b16 %v683, %v682
        %v708 = vunpack.c.l.b16 %v620
        %v709 = vunpack.c.l.b16 %v621
        %v710 = vunpack.c.l.b16 %v622
        %v711 = vunpack.c.l.b16 %v623
        %v712 = vunpack.c.l.b16 %v624
        %v713 = vunpack.c.l.b16 %v625
        %v714 = vunpack.c.l.b16 %v626
        %v715 = vunpack.c.l.b16 %v627
        %v716 = vunpack.c.l.b16 %v628
        %v717 = vunpack.c.l.b16 %v629
        %v718 = vunpack.c.l.b16 %v630
        %v719 = vunpack.c.l.b16 %v631
        %v720 = vunpack.c.l.b16 %v632
        %v721 = vunpack.c.l.b16 %v633
        %v722 = vunpack.c.l.b16 %v634
        %v723 = vunpack.c.l.b16 %v635
        %v724 = vpack.c.b16 %v709, %v708
        %v725 = vpack.c.b16 %v711, %v710
        %v726 = vpack.c.b16 %v713, %v712
        %v727 = vpack.c.b16 %v715, %v714
        %v728 = vpack.c.b16 %v717, %v716
        %v729 = vpack.c.b16 %v719, %v718
        %v730 = vpack.c.b16 %v721, %v720
        %v731 = vpack.c.b16 %v723, %v722
        %vm732 = vcmask 523264
        %v734 = vsel %vm732, %v684, 0
        %v737 = vsel %vm732, %v685, 0
        %v740 = vsel %vm732, %v686, 0
        %v743 = vsel %vm732, %v687, 0
        %v746 = vsel %vm732, %v688, 0
        %v749 = vsel %vm732, %v689, 0
        %v752 = vsel %vm732, %v690, 0
        %v755 = vsel %vm732, %v691, 0
        %v758 = vsel %vm732, %v724, 0
        %v761 = vsel %vm732, %v725, 0
        %v764 = vsel %vm732, %v726, 0
        %v767 = vsel %vm732, %v727, 0
        %v770 = vsel %vm732, %v728, 0
        %v773 = vsel %vm732, %v729, 0
        %v776 = vsel %vm732, %v730, 0
        %v779 = vsel %vm732, %v731, 0
        %781 = vmatpush.bf16.xpose.msra.mxu0 %v779
        %782 = vmatpush.bf16.xpose.msra.mxu0 %v776
        %783 = vmatpush.bf16.xpose.msra.mxu0 %v773
        %784 = vmatpush.bf16.xpose.msra.mxu0 %v770
        %785 = vmatpush.bf16.xpose.msra.mxu0 %v767
        %786 = vmatpush.bf16.xpose.msra.mxu0 %v764
        %787 = vmatpush.bf16.xpose.msra.mxu0 %v761
        %788 = vmatpush.bf16.xpose.msra.mxu0 %v758
        %789 = vmatmul.bf16.gmra.mxu0 %v734
        %v790 = vpop.f32.mrf.mxu0
        %v791 = vadd.f32 0.0, %v790
        %v792 = vpop.f32.mrf.mxu0
        %v793 = vadd.f32 0.0, %v792
        %794 = vmatmul.bf16.gmra.mxu0 %v737
        %v795 = vpop.f32.mrf.mxu0
        %v796 = vadd.f32 0.0, %v795
        %v797 = vpop.f32.mrf.mxu0
        %v798 = vadd.f32 0.0, %v797
        %799 = vmatmul.bf16.gmra.mxu0 %v740
        %v800 = vpop.f32.mrf.mxu0
        %v801 = vadd.f32 0.0, %v800
        %v802 = vpop.f32.mrf.mxu0
        %v803 = vadd.f32 0.0, %v802
        %804 = vmatmul.bf16.gmra.mxu0 %v743
        %v805 = vpop.f32.mrf.mxu0
        %v806 = vadd.f32 0.0, %v805
        %v807 = vpop.f32.mrf.mxu0
        %v808 = vadd.f32 0.0, %v807
        %809 = vmatmul.bf16.gmra.mxu0 %v746
        %v810 = vpop.f32.mrf.mxu0
        %v811 = vadd.f32 0.0, %v810
        %v812 = vpop.f32.mrf.mxu0
        %v813 = vadd.f32 0.0, %v812
        %814 = vmatmul.bf16.gmra.mxu0 %v749
        %v815 = vpop.f32.mrf.mxu0
        %v816 = vadd.f32 0.0, %v815
        %v817 = vpop.f32.mrf.mxu0
        %v818 = vadd.f32 0.0, %v817
        %819 = vmatmul.bf16.gmra.mxu0 %v752
        %v820 = vpop.f32.mrf.mxu0
        %v821 = vadd.f32 0.0, %v820
        %v822 = vpop.f32.mrf.mxu0
        %v823 = vadd.f32 0.0, %v822
        %824 = vmatmul.bf16.gmra.mxu0 %v755
        %v825 = vpop.f32.mrf.mxu0
        %v826 = vadd.f32 0.0, %v825
        %v827 = vpop.f32.mrf.mxu0
        %v828 = vadd.f32 0.0, %v827
        %829 = vdwg.mxu0
        %v830 = vmul.f32 %v791, 0.125
        %v831 = vmul.f32 %v793, 0.125
        %v832 = vmul.f32 %v796, 0.125
        %v833 = vmul.f32 %v798, 0.125
        %v834 = vmul.f32 %v801, 0.125
        %v835 = vmul.f32 %v803, 0.125
        %v836 = vmul.f32 %v806, 0.125
        %v837 = vmul.f32 %v808, 0.125
        %v838 = vmul.f32 %v811, 0.125
        %v839 = vmul.f32 %v813, 0.125
        %v840 = vmul.f32 %v816, 0.125
        %v841 = vmul.f32 %v818, 0.125
        %v842 = vmul.f32 %v821, 0.125
        %v843 = vmul.f32 %v823, 0.125
        %v844 = vmul.f32 %v826, 0.125
        %v845 = vmul.f32 %v828, 0.125
        %v847 = vperm.slane %v603, 0
        %v849 = vadd.f32 %v830, %v847
        %v850 = vadd.f32 %v831, %v847
        %v851 = vadd.f32 %v832, %v847
        %v852 = vadd.f32 %v833, %v847
        %v853 = vadd.f32 %v834, %v847
        %v854 = vadd.f32 %v835, %v847
        %v855 = vadd.f32 %v836, %v847
        %v856 = vadd.f32 %v837, %v847
        %v857 = vadd.f32 %v838, %v847
        %v858 = vadd.f32 %v839, %v847
        %v859 = vadd.f32 %v840, %v847
        %v860 = vadd.f32 %v841, %v847
        %v861 = vadd.f32 %v842, %v847
        %v862 = vadd.f32 %v843, %v847
        %v863 = vadd.f32 %v844, %v847
        %v864 = vadd.f32 %v845, %v847
        %865 = vmax.xlane.f32.xlu0 %v849
        %v866 = vpop.xlane.xlu0 %865
        %867 = vmax.xlane.f32.xlu0 %v850
        %v868 = vpop.xlane.xlu0 %867
        %869 = vmax.xlane.f32.xlu0 %v851
        %v870 = vpop.xlane.xlu0 %869
        %871 = vmax.xlane.f32.xlu0 %v852
        %v872 = vpop.xlane.xlu0 %871
        %873 = vmax.xlane.f32.xlu0 %v853
        %v874 = vpop.xlane.xlu0 %873
        %875 = vmax.xlane.f32.xlu0 %v854
        %v876 = vpop.xlane.xlu0 %875
        %877 = vmax.xlane.f32.xlu0 %v855
        %v878 = vpop.xlane.xlu0 %877
        %879 = vmax.xlane.f32.xlu0 %v856
        %v880 = vpop.xlane.xlu0 %879
        %881 = vmax.xlane.f32.xlu0 %v857
        %v882 = vpop.xlane.xlu0 %881
        %883 = vmax.xlane.f32.xlu0 %v858
        %v884 = vpop.xlane.xlu0 %883
        %885 = vmax.xlane.f32.xlu0 %v859
        %v886 = vpop.xlane.xlu0 %885
        %887 = vmax.xlane.f32.xlu0 %v860
        %v888 = vpop.xlane.xlu0 %887
        %889 = vmax.xlane.f32.xlu0 %v861
        %v890 = vpop.xlane.xlu0 %889
        %891 = vmax.xlane.f32.xlu0 %v862
        %v892 = vpop.xlane.xlu0 %891
        %893 = vmax.xlane.f32.xlu0 %v863
        %v894 = vpop.xlane.xlu0 %893
        %895 = vmax.xlane.f32.xlu0 %v864
        %v896 = vpop.xlane.xlu0 %895
        %v897 = vsub.f32 %v849, %v866
        %v898 = vsub.f32 %v850, %v868
        %v899 = vsub.f32 %v851, %v870
        %v900 = vsub.f32 %v852, %v872
        %v901 = vsub.f32 %v853, %v874
        %v902 = vsub.f32 %v854, %v876
        %v903 = vsub.f32 %v855, %v878
        %v904 = vsub.f32 %v856, %v880
        %v905 = vsub.f32 %v857, %v882
        %v906 = vsub.f32 %v858, %v884
        %v907 = vsub.f32 %v859, %v886
        %v908 = vsub.f32 %v860, %v888
        %v909 = vsub.f32 %v861, %v890
        %v910 = vsub.f32 %v862, %v892
        %v911 = vsub.f32 %v863, %v894
        %v912 = vsub.f32 %v864, %v896
        %v913 = vmul.f32 %v897, 1.442695
        %v914 = vpow.pop %v913
        %v915 = vmul.f32 %v898, 1.442695
        %v916 = vpow.pop %v915
        %v917 = vmul.f32 %v899, 1.442695
        %v918 = vpow.pop %v917
        %v919 = vmul.f32 %v900, 1.442695
        %v920 = vpow.pop %v919
        %v921 = vmul.f32 %v901, 1.442695
        %v922 = vpow.pop %v921
        %v923 = vmul.f32 %v902, 1.442695
        %v924 = vpow.pop %v923
        %v925 = vmul.f32 %v903, 1.442695
        %v926 = vpow.pop %v925
        %v927 = vmul.f32 %v904, 1.442695
        %v928 = vpow.pop %v927
        %v929 = vmul.f32 %v905, 1.442695
        %v930 = vpow.pop %v929
        %v931 = vmul.f32 %v906, 1.442695
        %v932 = vpow.pop %v931
        %v933 = vmul.f32 %v907, 1.442695
        %v934 = vpow.pop %v933
        %v935 = vmul.f32 %v908, 1.442695
        %v936 = vpow.pop %v935
        %v937 = vmul.f32 %v909, 1.442695
        %v938 = vpow.pop %v937
        %v939 = vmul.f32 %v910, 1.442695
        %v940 = vpow.pop %v939
        %v941 = vmul.f32 %v911, 1.442695
        %v942 = vpow.pop %v941
        %v943 = vmul.f32 %v912, 1.442695
        %v944 = vpow.pop %v943
        %945 = vadd.xlane.f32.xlu0 %v914
        %v946 = vpop.xlane.xlu0 %945
        %947 = vadd.xlane.f32.xlu0 %v916
        %v948 = vpop.xlane.xlu0 %947
        %949 = vadd.xlane.f32.xlu0 %v918
        %v950 = vpop.xlane.xlu0 %949
        %951 = vadd.xlane.f32.xlu0 %v920
        %v952 = vpop.xlane.xlu0 %951
        %953 = vadd.xlane.f32.xlu0 %v922
        %v954 = vpop.xlane.xlu0 %953
        %955 = vadd.xlane.f32.xlu0 %v924
        %v956 = vpop.xlane.xlu0 %955
        %957 = vadd.xlane.f32.xlu0 %v926
        %v958 = vpop.xlane.xlu0 %957
        %959 = vadd.xlane.f32.xlu0 %v928
        %v960 = vpop.xlane.xlu0 %959
        %961 = vadd.xlane.f32.xlu0 %v930
        %v962 = vpop.xlane.xlu0 %961
        %963 = vadd.xlane.f32.xlu0 %v932
        %v964 = vpop.xlane.xlu0 %963
        %965 = vadd.xlane.f32.xlu0 %v934
        %v966 = vpop.xlane.xlu0 %965
        %967 = vadd.xlane.f32.xlu0 %v936
        %v968 = vpop.xlane.xlu0 %967
        %969 = vadd.xlane.f32.xlu0 %v938
        %v970 = vpop.xlane.xlu0 %969
        %971 = vadd.xlane.f32.xlu0 %v940
        %v972 = vpop.xlane.xlu0 %971
        %973 = vadd.xlane.f32.xlu0 %v942
        %v974 = vpop.xlane.xlu0 %973
        %975 = vadd.xlane.f32.xlu0 %v944
        %v976 = vpop.xlane.xlu0 %975
        %v977 = vrcp.pop %v946
        %v978 = vrcp.pop %v948
        %v979 = vrcp.pop %v950
        %v980 = vrcp.pop %v952
        %v981 = vrcp.pop %v954
        %v982 = vrcp.pop %v956
        %v983 = vrcp.pop %v958
        %v984 = vrcp.pop %v960
        %v985 = vrcp.pop %v962
        %v986 = vrcp.pop %v964
        %v987 = vrcp.pop %v966
        %v988 = vrcp.pop %v968
        %v989 = vrcp.pop %v970
        %v990 = vrcp.pop %v972
        %v991 = vrcp.pop %v974
        %v992 = vrcp.pop %v976
        %v993 = vmul.f32 %v914, %v977
        %v994 = vmul.f32 %v916, %v978
        %v995 = vmul.f32 %v918, %v979
        %v996 = vmul.f32 %v920, %v980
        %v997 = vmul.f32 %v922, %v981
        %v998 = vmul.f32 %v924, %v982
        %v999 = vmul.f32 %v926, %v983
        %v1000 = vmul.f32 %v928, %v984
        %v1001 = vmul.f32 %v930, %v985
        %v1002 = vmul.f32 %v932, %v986
        %v1003 = vmul.f32 %v934, %v987
        %v1004 = vmul.f32 %v936, %v988
        %v1005 = vmul.f32 %v938, %v989
        %v1006 = vmul.f32 %v940, %v990
        %v1007 = vmul.f32 %v942, %v991
        %v1008 = vmul.f32 %v944, %v992
        %v1009 = vpack.c.bf16 %v994, %v993
        %v1010 = vpack.c.bf16 %v996, %v995
        %v1011 = vpack.c.bf16 %v998, %v997
        %v1012 = vpack.c.bf16 %v1000, %v999
        %v1013 = vpack.c.bf16 %v1002, %v1001
        %v1014 = vpack.c.bf16 %v1004, %v1003
        %v1015 = vpack.c.bf16 %v1006, %v1005
        %v1016 = vpack.c.bf16 %v1008, %v1007
        %v1033 = vunpack.c.l.b16 %v636
        %v1034 = vunpack.c.l.b16 %v637
        %v1035 = vunpack.c.l.b16 %v638
        %v1036 = vunpack.c.l.b16 %v639
        %v1037 = vunpack.c.l.b16 %v640
        %v1038 = vunpack.c.l.b16 %v641
        %v1039 = vunpack.c.l.b16 %v642
        %v1040 = vunpack.c.l.b16 %v643
        %v1041 = vunpack.c.l.b16 %v644
        %v1042 = vunpack.c.l.b16 %v645
        %v1043 = vunpack.c.l.b16 %v646
        %v1044 = vunpack.c.l.b16 %v647
        %v1045 = vunpack.c.l.b16 %v648
        %v1046 = vunpack.c.l.b16 %v649
        %v1047 = vunpack.c.l.b16 %v650
        %v1048 = vunpack.c.l.b16 %v651
        %v1049 = vpack.c.b16 %v1034, %v1033
        %v1050 = vpack.c.b16 %v1036, %v1035
        %v1051 = vpack.c.b16 %v1038, %v1037
        %v1052 = vpack.c.b16 %v1040, %v1039
        %v1053 = vpack.c.b16 %v1042, %v1041
        %v1054 = vpack.c.b16 %v1044, %v1043
        %v1055 = vpack.c.b16 %v1046, %v1045
        %v1056 = vpack.c.b16 %v1048, %v1047
        %1065 = vmatpush.bf16.msra.mxu0 %v1056
        %1066 = vmatpush.bf16.msra.mxu0 %v1055
        %1067 = vmatpush.bf16.msra.mxu0 %v1054
        %1068 = vmatpush.bf16.msra.mxu0 %v1053
        %1069 = vmatpush.bf16.msra.mxu0 %v1052
        %1070 = vmatpush.bf16.msra.mxu0 %v1051
        %1071 = vmatpush.bf16.msra.mxu0 %v1050
        %1072 = vmatpush.bf16.msra.mxu0 %v1049
        %1073 = vmatmul.bf16.gmra.mxu0 %v1009
        %v1074 = vpop.f32.mrf.mxu0
        %v1075 = vadd.f32 0.0, %v1074
        %v1076 = vpop.f32.mrf.mxu0
        %v1077 = vadd.f32 0.0, %v1076
        %1078 = vmatmul.bf16.gmra.mxu0 %v1010
        %v1079 = vpop.f32.mrf.mxu0
        %v1080 = vadd.f32 0.0, %v1079
        %v1081 = vpop.f32.mrf.mxu0
        %v1082 = vadd.f32 0.0, %v1081
        %1083 = vmatmul.bf16.gmra.mxu0 %v1011
        %v1084 = vpop.f32.mrf.mxu0
        %v1085 = vadd.f32 0.0, %v1084
        %v1086 = vpop.f32.mrf.mxu0
        %v1087 = vadd.f32 0.0, %v1086
        %1088 = vmatmul.bf16.gmra.mxu0 %v1012
        %v1089 = vpop.f32.mrf.mxu0
        %v1090 = vadd.f32 0.0, %v1089
        %v1091 = vpop.f32.mrf.mxu0
        %v1092 = vadd.f32 0.0, %v1091
        %1093 = vmatmul.bf16.gmra.mxu0 %v1013
        %v1094 = vpop.f32.mrf.mxu0
        %v1095 = vadd.f32 0.0, %v1094
        %v1096 = vpop.f32.mrf.mxu0
        %v1097 = vadd.f32 0.0, %v1096
        %1098 = vmatmul.bf16.gmra.mxu0 %v1014
        %v1099 = vpop.f32.mrf.mxu0
        %v1100 = vadd.f32 0.0, %v1099
        %v1101 = vpop.f32.mrf.mxu0
        %v1102 = vadd.f32 0.0, %v1101
        %1103 = vmatmul.bf16.gmra.mxu0 %v1015
        %v1104 = vpop.f32.mrf.mxu0
        %v1105 = vadd.f32 0.0, %v1104
        %v1106 = vpop.f32.mrf.mxu0
        %v1107 = vadd.f32 0.0, %v1106
        %1108 = vmatmul.bf16.gmra.mxu0 %v1016
        %v1109 = vpop.f32.mrf.mxu0
        %v1110 = vadd.f32 0.0, %v1109
        %v1111 = vpop.f32.mrf.mxu0
        %v1112 = vadd.f32 0.0, %v1111
        %1113 = vdwg.mxu0
        %1114 = vrot.lane.b32.xlu0 %v684, 64
        %v1115 = vpop.permute.xlu0 %1114
        %1116 = vrot.lane.b32.xlu0 %v685, 64
        %v1117 = vpop.permute.xlu0 %1116
        %1118 = vrot.lane.b32.xlu0 %v686, 64
        %v1119 = vpop.permute.xlu0 %1118
        %1120 = vrot.lane.b32.xlu0 %v687, 64
        %v1121 = vpop.permute.xlu0 %1120
        %1122 = vrot.lane.b32.xlu0 %v688, 64
        %v1123 = vpop.permute.xlu0 %1122
        %1124 = vrot.lane.b32.xlu0 %v689, 64
        %v1125 = vpop.permute.xlu0 %1124
        %1126 = vrot.lane.b32.xlu0 %v690, 64
        %v1127 = vpop.permute.xlu0 %1126
        %1128 = vrot.lane.b32.xlu0 %v691, 64
        %v1129 = vpop.permute.xlu0 %1128
        %1130 = vrot.lane.b32.xlu0 %v724, 64
        %v1131 = vpop.permute.xlu0 %1130
        %1132 = vrot.lane.b32.xlu0 %v725, 64
        %v1133 = vpop.permute.xlu0 %1132
        %1134 = vrot.lane.b32.xlu0 %v726, 64
        %v1135 = vpop.permute.xlu0 %1134
        %1136 = vrot.lane.b32.xlu0 %v727, 64
        %v1137 = vpop.permute.xlu0 %1136
        %1138 = vrot.lane.b32.xlu0 %v728, 64
        %v1139 = vpop.permute.xlu0 %1138
        %1140 = vrot.lane.b32.xlu0 %v729, 64
        %v1141 = vpop.permute.xlu0 %1140
        %1142 = vrot.lane.b32.xlu0 %v730, 64
        %v1143 = vpop.permute.xlu0 %1142
        %1144 = vrot.lane.b32.xlu0 %v731, 64
        %v1145 = vpop.permute.xlu0 %1144
        %v1147 = vsel %vm732, %v1115, 0
        %v1150 = vsel %vm732, %v1117, 0
        %v1153 = vsel %vm732, %v1119, 0
        %v1156 = vsel %vm732, %v1121, 0
        %v1159 = vsel %vm732, %v1123, 0
        %v1162 = vsel %vm732, %v1125, 0
        %v1165 = vsel %vm732, %v1127, 0
        %v1168 = vsel %vm732, %v1129, 0
        %v1171 = vsel %vm732, %v1131, 0
        %v1174 = vsel %vm732, %v1133, 0
        %v1177 = vsel %vm732, %v1135, 0
        %v1180 = vsel %vm732, %v1137, 0
        %v1183 = vsel %vm732, %v1139, 0
        %v1186 = vsel %vm732, %v1141, 0
        %v1189 = vsel %vm732, %v1143, 0
        %v1192 = vsel %vm732, %v1145, 0
        %1194 = vmatpush.bf16.xpose.msra.mxu0 %v1192
        %1195 = vmatpush.bf16.xpose.msra.mxu0 %v1189
        %1196 = vmatpush.bf16.xpose.msra.mxu0 %v1186
        %1197 = vmatpush.bf16.xpose.msra.mxu0 %v1183
        %1198 = vmatpush.bf16.xpose.msra.mxu0 %v1180
        %1199 = vmatpush.bf16.xpose.msra.mxu0 %v1177
        %1200 = vmatpush.bf16.xpose.msra.mxu0 %v1174
        %1201 = vmatpush.bf16.xpose.msra.mxu0 %v1171
        %1202 = vmatmul.bf16.gmra.mxu0 %v1147
        %v1203 = vpop.f32.mrf.mxu0
        %v1204 = vadd.f32 0.0, %v1203
        %v1205 = vpop.f32.mrf.mxu0
        %v1206 = vadd.f32 0.0, %v1205
        %1207 = vmatmul.bf16.gmra.mxu0 %v1150
        %v1208 = vpop.f32.mrf.mxu0
        %v1209 = vadd.f32 0.0, %v1208
        %v1210 = vpop.f32.mrf.mxu0
        %v1211 = vadd.f32 0.0, %v1210
        %1212 = vmatmul.bf16.gmra.mxu0 %v1153
        %v1213 = vpop.f32.mrf.mxu0
        %v1214 = vadd.f32 0.0, %v1213
        %v1215 = vpop.f32.mrf.mxu0
        %v1216 = vadd.f32 0.0, %v1215
        %1217 = vmatmul.bf16.gmra.mxu0 %v1156
        %v1218 = vpop.f32.mrf.mxu0
        %v1219 = vadd.f32 0.0, %v1218
        %v1220 = vpop.f32.mrf.mxu0
        %v1221 = vadd.f32 0.0, %v1220
        %1222 = vmatmul.bf16.gmra.mxu0 %v1159
        %v1223 = vpop.f32.mrf.mxu0
        %v1224 = vadd.f32 0.0, %v1223
        %v1225 = vpop.f32.mrf.mxu0
        %v1226 = vadd.f32 0.0, %v1225
        %1227 = vmatmul.bf16.gmra.mxu0 %v1162
        %v1228 = vpop.f32.mrf.mxu0
        %v1229 = vadd.f32 0.0, %v1228
        %v1230 = vpop.f32.mrf.mxu0
        %v1231 = vadd.f32 0.0, %v1230
        %1232 = vmatmul.bf16.gmra.mxu0 %v1165
        %v1233 = vpop.f32.mrf.mxu0
        %v1234 = vadd.f32 0.0, %v1233
        %v1235 = vpop.f32.mrf.mxu0
        %v1236 = vadd.f32 0.0, %v1235
        %1237 = vmatmul.bf16.gmra.mxu0 %v1168
        %v1238 = vpop.f32.mrf.mxu0
        %v1239 = vadd.f32 0.0, %v1238
        %v1240 = vpop.f32.mrf.mxu0
        %v1241 = vadd.f32 0.0, %v1240
        %1242 = vdwg.mxu0
        %v1243 = vmul.f32 %v1204, 0.125
        %v1244 = vmul.f32 %v1206, 0.125
        %v1245 = vmul.f32 %v1209, 0.125
        %v1246 = vmul.f32 %v1211, 0.125
        %v1247 = vmul.f32 %v1214, 0.125
        %v1248 = vmul.f32 %v1216, 0.125
        %v1249 = vmul.f32 %v1219, 0.125
        %v1250 = vmul.f32 %v1221, 0.125
        %v1251 = vmul.f32 %v1224, 0.125
        %v1252 = vmul.f32 %v1226, 0.125
        %v1253 = vmul.f32 %v1229, 0.125
        %v1254 = vmul.f32 %v1231, 0.125
        %v1255 = vmul.f32 %v1234, 0.125
        %v1256 = vmul.f32 %v1236, 0.125
        %v1257 = vmul.f32 %v1239, 0.125
        %v1258 = vmul.f32 %v1241, 0.125
        %v1259 = vadd.f32 %v1243, %v847
        %v1260 = vadd.f32 %v1244, %v847
        %v1261 = vadd.f32 %v1245, %v847
        %v1262 = vadd.f32 %v1246, %v847
        %v1263 = vadd.f32 %v1247, %v847
        %v1264 = vadd.f32 %v1248, %v847
        %v1265 = vadd.f32 %v1249, %v847
        %v1266 = vadd.f32 %v1250, %v847
        %v1267 = vadd.f32 %v1251, %v847
        %v1268 = vadd.f32 %v1252, %v847
        %v1269 = vadd.f32 %v1253, %v847
        %v1270 = vadd.f32 %v1254, %v847
        %v1271 = vadd.f32 %v1255, %v847
        %v1272 = vadd.f32 %v1256, %v847
        %v1273 = vadd.f32 %v1257, %v847
        %v1274 = vadd.f32 %v1258, %v847
        %1275 = vmax.xlane.f32.xlu0 %v1259
        %v1276 = vpop.xlane.xlu0 %1275
        %1277 = vmax.xlane.f32.xlu0 %v1260
        %v1278 = vpop.xlane.xlu0 %1277
        %1279 = vmax.xlane.f32.xlu0 %v1261
        %v1280 = vpop.xlane.xlu0 %1279
        %1281 = vmax.xlane.f32.xlu0 %v1262
        %v1282 = vpop.xlane.xlu0 %1281
        %1283 = vmax.xlane.f32.xlu0 %v1263
        %v1284 = vpop.xlane.xlu0 %1283
        %1285 = vmax.xlane.f32.xlu0 %v1264
        %v1286 = vpop.xlane.xlu0 %1285
        %1287 = vmax.xlane.f32.xlu0 %v1265
        %v1288 = vpop.xlane.xlu0 %1287
        %1289 = vmax.xlane.f32.xlu0 %v1266
        %v1290 = vpop.xlane.xlu0 %1289
        %1291 = vmax.xlane.f32.xlu0 %v1267
        %v1292 = vpop.xlane.xlu0 %1291
        %1293 = vmax.xlane.f32.xlu0 %v1268
        %v1294 = vpop.xlane.xlu0 %1293
        %1295 = vmax.xlane.f32.xlu0 %v1269
        %v1296 = vpop.xlane.xlu0 %1295
        %1297 = vmax.xlane.f32.xlu0 %v1270
        %v1298 = vpop.xlane.xlu0 %1297
        %1299 = vmax.xlane.f32.xlu0 %v1271
        %v1300 = vpop.xlane.xlu0 %1299
        %1301 = vmax.xlane.f32.xlu0 %v1272
        %v1302 = vpop.xlane.xlu0 %1301
        %1303 = vmax.xlane.f32.xlu0 %v1273
        %v1304 = vpop.xlane.xlu0 %1303
        %1305 = vmax.xlane.f32.xlu0 %v1274
        %v1306 = vpop.xlane.xlu0 %1305
        %v1307 = vsub.f32 %v1259, %v1276
        %v1308 = vsub.f32 %v1260, %v1278
        %v1309 = vsub.f32 %v1261, %v1280
        %v1310 = vsub.f32 %v1262, %v1282
        %v1311 = vsub.f32 %v1263, %v1284
        %v1312 = vsub.f32 %v1264, %v1286
        %v1313 = vsub.f32 %v1265, %v1288
        %v1314 = vsub.f32 %v1266, %v1290
        %v1315 = vsub.f32 %v1267, %v1292
        %v1316 = vsub.f32 %v1268, %v1294
        %v1317 = vsub.f32 %v1269, %v1296
        %v1318 = vsub.f32 %v1270, %v1298
        %v1319 = vsub.f32 %v1271, %v1300
        %v1320 = vsub.f32 %v1272, %v1302
        %v1321 = vsub.f32 %v1273, %v1304
        %v1322 = vsub.f32 %v1274, %v1306
        %v1323 = vmul.f32 %v1307, 1.442695
        %v1324 = vpow.pop %v1323
        %v1325 = vmul.f32 %v1308, 1.442695
        %v1326 = vpow.pop %v1325
        %v1327 = vmul.f32 %v1309, 1.442695
        %v1328 = vpow.pop %v1327
        %v1329 = vmul.f32 %v1310, 1.442695
        %v1330 = vpow.pop %v1329
        %v1331 = vmul.f32 %v1311, 1.442695
        %v1332 = vpow.pop %v1331
        %v1333 = vmul.f32 %v1312, 1.442695
        %v1334 = vpow.pop %v1333
        %v1335 = vmul.f32 %v1313, 1.442695
        %v1336 = vpow.pop %v1335
        %v1337 = vmul.f32 %v1314, 1.442695
        %v1338 = vpow.pop %v1337
        %v1339 = vmul.f32 %v1315, 1.442695
        %v1340 = vpow.pop %v1339
        %v1341 = vmul.f32 %v1316, 1.442695
        %v1342 = vpow.pop %v1341
        %v1343 = vmul.f32 %v1317, 1.442695
        %v1344 = vpow.pop %v1343
        %v1345 = vmul.f32 %v1318, 1.442695
        %v1346 = vpow.pop %v1345
        %v1347 = vmul.f32 %v1319, 1.442695
        %v1348 = vpow.pop %v1347
        %v1349 = vmul.f32 %v1320, 1.442695
        %v1350 = vpow.pop %v1349
        %v1351 = vmul.f32 %v1321, 1.442695
        %v1352 = vpow.pop %v1351
        %v1353 = vmul.f32 %v1322, 1.442695
        %v1354 = vpow.pop %v1353
        %1355 = vadd.xlane.f32.xlu0 %v1324
        %v1356 = vpop.xlane.xlu0 %1355
        %1357 = vadd.xlane.f32.xlu0 %v1326
        %v1358 = vpop.xlane.xlu0 %1357
        %1359 = vadd.xlane.f32.xlu0 %v1328
        %v1360 = vpop.xlane.xlu0 %1359
        %1361 = vadd.xlane.f32.xlu0 %v1330
        %v1362 = vpop.xlane.xlu0 %1361
        %1363 = vadd.xlane.f32.xlu0 %v1332
        %v1364 = vpop.xlane.xlu0 %1363
        %1365 = vadd.xlane.f32.xlu0 %v1334
        %v1366 = vpop.xlane.xlu0 %1365
        %1367 = vadd.xlane.f32.xlu0 %v1336
        %v1368 = vpop.xlane.xlu0 %1367
        %1369 = vadd.xlane.f32.xlu0 %v1338
        %v1370 = vpop.xlane.xlu0 %1369
        %1371 = vadd.xlane.f32.xlu0 %v1340
        %v1372 = vpop.xlane.xlu0 %1371
        %1373 = vadd.xlane.f32.xlu0 %v1342
        %v1374 = vpop.xlane.xlu0 %1373
        %1375 = vadd.xlane.f32.xlu0 %v1344
        %v1376 = vpop.xlane.xlu0 %1375
        %1377 = vadd.xlane.f32.xlu0 %v1346
        %v1378 = vpop.xlane.xlu0 %1377
        %1379 = vadd.xlane.f32.xlu0 %v1348
        %v1380 = vpop.xlane.xlu0 %1379
        %1381 = vadd.xlane.f32.xlu0 %v1350
        %v1382 = vpop.xlane.xlu0 %1381
        %1383 = vadd.xlane.f32.xlu0 %v1352
        %v1384 = vpop.xlane.xlu0 %1383
        %1385 = vadd.xlane.f32.xlu0 %v1354
        %v1386 = vpop.xlane.xlu0 %1385
        %v1387 = vrcp.pop %v1356
        %v1388 = vrcp.pop %v1358
        %v1389 = vrcp.pop %v1360
        %v1390 = vrcp.pop %v1362
        %v1391 = vrcp.pop %v1364
        %v1392 = vrcp.pop %v1366
        %v1393 = vrcp.pop %v1368
        %v1394 = vrcp.pop %v1370
        %v1395 = vrcp.pop %v1372
        %v1396 = vrcp.pop %v1374
        %v1397 = vrcp.pop %v1376
        %v1398 = vrcp.pop %v1378
        %v1399 = vrcp.pop %v1380
        %v1400 = vrcp.pop %v1382
        %v1401 = vrcp.pop %v1384
        %v1402 = vrcp.pop %v1386
        %v1403 = vmul.f32 %v1324, %v1387
        %v1404 = vmul.f32 %v1326, %v1388
        %v1405 = vmul.f32 %v1328, %v1389
        %v1406 = vmul.f32 %v1330, %v1390
        %v1407 = vmul.f32 %v1332, %v1391
        %v1408 = vmul.f32 %v1334, %v1392
        %v1409 = vmul.f32 %v1336, %v1393
        %v1410 = vmul.f32 %v1338, %v1394
        %v1411 = vmul.f32 %v1340, %v1395
        %v1412 = vmul.f32 %v1342, %v1396
        %v1413 = vmul.f32 %v1344, %v1397
        %v1414 = vmul.f32 %v1346, %v1398
        %v1415 = vmul.f32 %v1348, %v1399
        %v1416 = vmul.f32 %v1350, %v1400
        %v1417 = vmul.f32 %v1352, %v1401
        %v1418 = vmul.f32 %v1354, %v1402
        %v1419 = vpack.c.bf16 %v1404, %v1403
        %v1420 = vpack.c.bf16 %v1406, %v1405
        %v1421 = vpack.c.bf16 %v1408, %v1407
        %v1422 = vpack.c.bf16 %v1410, %v1409
        %v1423 = vpack.c.bf16 %v1412, %v1411
        %v1424 = vpack.c.bf16 %v1414, %v1413
        %v1425 = vpack.c.bf16 %v1416, %v1415
        %v1426 = vpack.c.bf16 %v1418, %v1417
        %1427 = vrot.lane.b32.xlu0 %v1049, 64
        %v1428 = vpop.permute.xlu0 %1427
        %1429 = vrot.lane.b32.xlu0 %v1050, 64
        %v1430 = vpop.permute.xlu0 %1429
        %1431 = vrot.lane.b32.xlu0 %v1051, 64
        %v1432 = vpop.permute.xlu0 %1431
        %1433 = vrot.lane.b32.xlu0 %v1052, 64
        %v1434 = vpop.permute.xlu0 %1433
        %1435 = vrot.lane.b32.xlu0 %v1053, 64
        %v1436 = vpop.permute.xlu0 %1435
        %1437 = vrot.lane.b32.xlu0 %v1054, 64
        %v1438 = vpop.permute.xlu0 %1437
        %1439 = vrot.lane.b32.xlu0 %v1055, 64
        %v1440 = vpop.permute.xlu0 %1439
        %1441 = vrot.lane.b32.xlu0 %v1056, 64
        %v1442 = vpop.permute.xlu0 %1441
        %1451 = vmatpush.bf16.msra.mxu0 %v1442
        %1452 = vmatpush.bf16.msra.mxu0 %v1440
        %1453 = vmatpush.bf16.msra.mxu0 %v1438
        %1454 = vmatpush.bf16.msra.mxu0 %v1436
        %1455 = vmatpush.bf16.msra.mxu0 %v1434
        %1456 = vmatpush.bf16.msra.mxu0 %v1432
        %1457 = vmatpush.bf16.msra.mxu0 %v1430
        %1458 = vmatpush.bf16.msra.mxu0 %v1428
        %1459 = vmatmul.bf16.gmra.mxu0 %v1419
        %v1460 = vpop.f32.mrf.mxu0
        %v1461 = vadd.f32 0.0, %v1460
        %v1462 = vpop.f32.mrf.mxu0
        %v1463 = vadd.f32 0.0, %v1462
        %1464 = vmatmul.bf16.gmra.mxu0 %v1420
        %v1465 = vpop.f32.mrf.mxu0
        %v1466 = vadd.f32 0.0, %v1465
        %v1467 = vpop.f32.mrf.mxu0
        %v1468 = vadd.f32 0.0, %v1467
        %1469 = vmatmul.bf16.gmra.mxu0 %v1421
        %v1470 = vpop.f32.mrf.mxu0
        %v1471 = vadd.f32 0.0, %v1470
        %v1472 = vpop.f32.mrf.mxu0
        %v1473 = vadd.f32 0.0, %v1472
        %1474 = vmatmul.bf16.gmra.mxu0 %v1422
        %v1475 = vpop.f32.mrf.mxu0
        %v1476 = vadd.f32 0.0, %v1475
        %v1477 = vpop.f32.mrf.mxu0
        %v1478 = vadd.f32 0.0, %v1477
        %1479 = vmatmul.bf16.gmra.mxu0 %v1423
        %v1480 = vpop.f32.mrf.mxu0
        %v1481 = vadd.f32 0.0, %v1480
        %v1482 = vpop.f32.mrf.mxu0
        %v1483 = vadd.f32 0.0, %v1482
        %1484 = vmatmul.bf16.gmra.mxu0 %v1424
        %v1485 = vpop.f32.mrf.mxu0
        %v1486 = vadd.f32 0.0, %v1485
        %v1487 = vpop.f32.mrf.mxu0
        %v1488 = vadd.f32 0.0, %v1487
        %1489 = vmatmul.bf16.gmra.mxu0 %v1425
        %v1490 = vpop.f32.mrf.mxu0
        %v1491 = vadd.f32 0.0, %v1490
        %v1492 = vpop.f32.mrf.mxu0
        %v1493 = vadd.f32 0.0, %v1492
        %1494 = vmatmul.bf16.gmra.mxu0 %v1426
        %v1495 = vpop.f32.mrf.mxu0
        %v1496 = vadd.f32 0.0, %v1495
        %v1497 = vpop.f32.mrf.mxu0
        %v1498 = vadd.f32 0.0, %v1497
        %1499 = vdwg.mxu0
        %1516 = vrot.lane.b32.xlu0 %v1461, 64
        %v1517 = vpop.permute.xlu0 %1516
        %1518 = vrot.lane.b32.xlu0 %v1463, 64
        %v1519 = vpop.permute.xlu0 %1518
        %1520 = vrot.lane.b32.xlu0 %v1466, 64
        %v1521 = vpop.permute.xlu0 %1520
        %1522 = vrot.lane.b32.xlu0 %v1468, 64
        %v1523 = vpop.permute.xlu0 %1522
        %1524 = vrot.lane.b32.xlu0 %v1471, 64
        %v1525 = vpop.permute.xlu0 %1524
        %1526 = vrot.lane.b32.xlu0 %v1473, 64
        %v1527 = vpop.permute.xlu0 %1526
        %1528 = vrot.lane.b32.xlu0 %v1476, 64
        %v1529 = vpop.permute.xlu0 %1528
        %1530 = vrot.lane.b32.xlu0 %v1478, 64
        %v1531 = vpop.permute.xlu0 %1530
        %1532 = vrot.lane.b32.xlu0 %v1481, 64
        %v1533 = vpop.permute.xlu0 %1532
        %1534 = vrot.lane.b32.xlu0 %v1483, 64
        %v1535 = vpop.permute.xlu0 %1534
        %1536 = vrot.lane.b32.xlu0 %v1486, 64
        %v1537 = vpop.permute.xlu0 %1536
        %1538 = vrot.lane.b32.xlu0 %v1488, 64
        %v1539 = vpop.permute.xlu0 %1538
        %1540 = vrot.lane.b32.xlu0 %v1491, 64
        %v1541 = vpop.permute.xlu0 %1540
        %1542 = vrot.lane.b32.xlu0 %v1493, 64
        %v1543 = vpop.permute.xlu0 %1542
        %1544 = vrot.lane.b32.xlu0 %v1496, 64
        %v1545 = vpop.permute.xlu0 %1544
        %1546 = vrot.lane.b32.xlu0 %v1498, 64
        %v1547 = vpop.permute.xlu0 %1546
        %v1564 = vsel %vm732, %v1075, %v1517
        %v1565 = vsel %vm732, %v1077, %v1519
        %v1566 = vsel %vm732, %v1080, %v1521
        %v1567 = vsel %vm732, %v1082, %v1523
        %v1568 = vsel %vm732, %v1085, %v1525
        %v1569 = vsel %vm732, %v1087, %v1527
        %v1570 = vsel %vm732, %v1090, %v1529
        %v1571 = vsel %vm732, %v1092, %v1531
        %v1572 = vsel %vm732, %v1095, %v1533
        %v1573 = vsel %vm732, %v1097, %v1535
        %v1574 = vsel %vm732, %v1100, %v1537
        %v1575 = vsel %vm732, %v1102, %v1539
        %v1576 = vsel %vm732, %v1105, %v1541
        %v1577 = vsel %vm732, %v1107, %v1543
        %v1578 = vsel %vm732, %v1110, %v1545
        %v1579 = vsel %vm732, %v1112, %v1547
        %v1580 = vpack.c.bf16 %v1564, %v1564
        %v1581 = vpack.c.bf16 %v1565, %v1565
        %v1582 = vpack.c.bf16 %v1566, %v1566
        %v1583 = vpack.c.bf16 %v1567, %v1567
        %v1584 = vpack.c.bf16 %v1568, %v1568
        %v1585 = vpack.c.bf16 %v1569, %v1569
        %v1586 = vpack.c.bf16 %v1570, %v1570
        %v1587 = vpack.c.bf16 %v1571, %v1571
        %v1588 = vpack.c.bf16 %v1572, %v1572
        %v1589 = vpack.c.bf16 %v1573, %v1573
        %v1590 = vpack.c.bf16 %v1574, %v1574
        %v1591 = vpack.c.bf16 %v1575, %v1575
        %v1592 = vpack.c.bf16 %v1576, %v1576
        %v1593 = vpack.c.bf16 %v1577, %v1577
        %v1594 = vpack.c.bf16 %v1578, %v1578
        %v1595 = vpack.c.bf16 %v1579, %v1579
        %1596 = vst [vmem:[%s600] sm:$0xf] %v1580
        %1597 = vst [vmem:[%s600 + $0x4] sm:$0xf] %v1581
        %1598 = vst [vmem:[%s600 + $0x8] sm:$0xf] %v1582
        %1599 = vst [vmem:[%s600 + $0xc] sm:$0xf] %v1583
        %1600 = vst [vmem:[%s600 + $0x10] sm:$0xf] %v1584
        %1601 = vst [vmem:[%s600 + $0x14] sm:$0xf] %v1585
        %1602 = vst [vmem:[%s600 + $0x18] sm:$0xf] %v1586
        %1603 = vst [vmem:[%s600 + $0x1c] sm:$0xf] %v1587
        %1604 = vst [vmem:[%s600 + $0x20] sm:$0xf] %v1588
        %1605 = vst [vmem:[%s600 + $0x24] sm:$0xf] %v1589
        %1606 = vst [vmem:[%s600 + $0x28] sm:$0xf] %v1590
        %1607 = vst [vmem:[%s600 + $0x2c] sm:$0xf] %v1591
        %1608 = vst [vmem:[%s600 + $0x30] sm:$0xf] %v1592
        %1609 = vst [vmem:[%s600 + $0x34] sm:$0xf] %v1593
        %1610 = vst [vmem:[%s600 + $0x38] sm:$0xf] %v1594
        %1611 = vst [vmem:[%s600 + $0x3c] sm:$0xf] %v1595
        %p1612 = scmp.lt.s32.totalorder %s19, 1
        %s1613 = scalar_select %p1612, %s19, 1
        %p1614 = scmp.lt.s32.totalorder %s20, 0
        %s1615 = scalar_select %p1614, %s20, 0
        %s1616 = smul.addr %s1613, 16
        %s1617 = sadd.s32 %s1615, %s1616
        %s1618 = smul.addr %s1617, 4
        %s1619 = scalar_lea.vmem %s4, %s1618
        // Predicated region
        $region160: #{plm_token_encoder_forward.17} parent=146 // pred_check
          %p1620 = pneg %p161
        $region161: #{plm_token_encoder_forward.17} parent=146 // pred_check_branch
          %1622 = sbr.rel (%p1620) target = $region163
        $region162: #{plm_token_encoder_forward.17} parent=146 // pred_region
          _
        $region163: #{plm_token_encoder_forward.17} parent=146 // pred_fallthru
          _
      $region147: #{plm_token_encoder_forward.17} parent=5 // pred_fallthru
        _
      %p1623 = scmp.le.s32.totalorder 2, %s10
      // Predicated region
      $region164: #{plm_token_encoder_forward.17} parent=5 // pred_check
        %p1624 = pneg %p1623
      $region165: #{plm_token_encoder_forward.17} parent=5 // pred_check_branch
        %1626 = sbr.rel (%p1624) target = $region167
      $region166: #{plm_token_encoder_forward.17} parent=5 // pred_region
        %s1627 = ssub.s32 %s10, 2
        // Predicated region
        $region168: #{plm_token_encoder_forward.17} parent=166 // pred_check
          %p1628 = pneg %p167
        $region169: #{plm_token_encoder_forward.17} parent=166 // pred_check_branch
          %1630 = sbr.rel (%p1628) target = $region171
        $region170: #{plm_token_encoder_forward.17} parent=166 // pred_region
          %p1631 = scmp.lt.s32.totalorder %s21, 1
          %s1632 = scalar_select %p1631, %s21, 1
          %p1633 = scmp.lt.s32.totalorder %s22, 0
          %s1634 = scalar_select %p1633, %s22, 0
          %s1635 = smul.addr %s1632, 16
          %s1636 = sadd.s32 %s1634, %s1635
          %s1637 = smul.addr %s1636, 4
          %s1638 = scalar_lea.vmem %s4, %s1637
        $region171: #{plm_token_encoder_forward.17} parent=166 // pred_fallthru
          _
      $region167: #{plm_token_encoder_forward.17} parent=5 // pred_fallthru
        _
    $region6: #{plm_token_encoder_forward.17} parent=1 // loop_footer
      %s14 = sadd.s32 1, %s10
    $region7: #{plm_token_encoder_forward.17} parent=1 // loop_footer_branch
      %9 = sbr.rel target = $region3
    $region8: #{plm_token_encoder_forward.17} parent=1 // loop_exit
      _

// kernel: plm_token_encoder_forward.19
$region0: #{plm_token_encoder_forward.19}
  #allocation0 [shape = 'u32[]', space=smem, size = 0x4, offset = 0x4, fixed_abs, tag = 'smem constant byte address 0x4 - core index']
  #allocation1 [shape = 'u32[72,128]{1,0:T(1,128)}', space=vmem, size = 0x9000, scoped, tag = 'internal scratch']
  %s0 = inlined_call_operand.vmem [shape: bf16[256,128], index: 0, kind: input, shape index: {}]
  %s1 = inlined_call_operand.vmem [shape: bf16[256,128], index: 1, kind: input, shape index: {}]
  %s2 = inlined_call_operand.vmem [shape: f32[1,128], index: 2, kind: input, shape index: {}]
  %s3 = inlined_call_operand.vmem [shape: f32[1,128], index: 3, kind: input, shape index: {}]
  %s4 = inlined_call_operand.vmem [shape: bf16[256,128], index: 4, kind: output, shape index: {}]
  %s5 = sld [smem:[#allocation0]]
  $region26: #{plm_token_encoder_forward.19} parent=0
    _
  %s7 = ssub.s32 1, %s5
  %s8 = scalar_select 0, %s7, %s5
  // Predicated region
  $region2: #{plm_token_encoder_forward.19} parent=0 // pred_check
    _
  $region3: #{plm_token_encoder_forward.19} parent=0 // pred_check_branch
    %10 = sbr.rel (0) target = $region5
  $region4: #{plm_token_encoder_forward.19} parent=0 // pred_region
    _
  $region5: #{plm_token_encoder_forward.19} parent=0 // pred_fallthru
    _
  // Predicated region
  $region6: #{plm_token_encoder_forward.19} parent=0 // pred_check
    _
  $region7: #{plm_token_encoder_forward.19} parent=0 // pred_check_branch
    %12 = sbr.rel (0) target = $region9
  $region8: #{plm_token_encoder_forward.19} parent=0 // pred_region
    _
  $region9: #{plm_token_encoder_forward.19} parent=0 // pred_fallthru
    _
  // Predicated region
  $region10: #{plm_token_encoder_forward.19} parent=0 // pred_check
    _
  $region11: #{plm_token_encoder_forward.19} parent=0 // pred_check_branch
    %14 = sbr.rel (0) target = $region13
  $region12: #{plm_token_encoder_forward.19} parent=0 // pred_region
    _
  $region13: #{plm_token_encoder_forward.19} parent=0 // pred_fallthru
    _
  // Predicated region
  $region14: #{plm_token_encoder_forward.19} parent=0 // pred_check
    _
  $region15: #{plm_token_encoder_forward.19} parent=0 // pred_check_branch
    %16 = sbr.rel (0) target = $region17
  $region16: #{plm_token_encoder_forward.19} parent=0 // pred_region
    _
  $region17: #{plm_token_encoder_forward.19} parent=0 // pred_fallthru
    _
  %v17 = vld [vmem:[%s0] sm:$0xf]
  %v18 = vld [vmem:[%s0 + $0x4] sm:$0xf]
  %v19 = vld [vmem:[%s0 + $0x8] sm:$0xf]
  %v20 = vld [vmem:[%s0 + $0xc] sm:$0xf]
  %v21 = vld [vmem:[%s0 + $0x10] sm:$0xf]
  %v22 = vld [vmem:[%s0 + $0x14] sm:$0xf]
  %v23 = vld [vmem:[%s0 + $0x18] sm:$0xf]
  %v24 = vld [vmem:[%s0 + $0x1c] sm:$0xf]
  %v25 = vld [vmem:[%s0 + $0x20] sm:$0xf]
  %v26 = vld [vmem:[%s0 + $0x24] sm:$0xf]
  %v27 = vld [vmem:[%s0 + $0x28] sm:$0xf]
  %v28 = vld [vmem:[%s0 + $0x2c] sm:$0xf]
  %v29 = vld [vmem:[%s0 + $0x30] sm:$0xf]
  %v30 = vld [vmem:[%s0 + $0x34] sm:$0xf]
  %v31 = vld [vmem:[%s0 + $0x38] sm:$0xf]
  %v32 = vld [vmem:[%s0 + $0x3c] sm:$0xf]
  %v33 = vld [vmem:[%s0 + $0x40] sm:$0xf]
  %v34 = vld [vmem:[%s0 + $0x44] sm:$0xf]
  %v35 = vld [vmem:[%s0 + $0x48] sm:$0xf]
  %v36 = vld [vmem:[%s0 + $0x4c] sm:$0xf]
  %v37 = vld [vmem:[%s0 + $0x50] sm:$0xf]
  %v38 = vld [vmem:[%s0 + $0x54] sm:$0xf]
  %v39 = vld [vmem:[%s0 + $0x58] sm:$0xf]
  %v40 = vld [vmem:[%s0 + $0x5c] sm:$0xf]
  %v41 = vld [vmem:[%s0 + $0x60] sm:$0xf]
  %v42 = vld [vmem:[%s0 + $0x64] sm:$0xf]
  %v43 = vld [vmem:[%s0 + $0x68] sm:$0xf]
  %v44 = vld [vmem:[%s0 + $0x6c] sm:$0xf]
  %v45 = vld [vmem:[%s0 + $0x70] sm:$0xf]
  %v46 = vld [vmem:[%s0 + $0x74] sm:$0xf]
  %v47 = vld [vmem:[%s0 + $0x78] sm:$0xf]
  %v48 = vld [vmem:[%s0 + $0x7c] sm:$0xf]
  %v49 = vunpack.c.l.bf16 %v17
  %v50 = vunpack.c.l.bf16 %v18
  %v51 = vunpack.c.l.bf16 %v19
  %v52 = vunpack.c.l.bf16 %v20
  %v53 = vunpack.c.l.bf16 %v21
  %v54 = vunpack.c.l.bf16 %v22
  %v55 = vunpack.c.l.bf16 %v23
  %v56 = vunpack.c.l.bf16 %v24
  %v57 = vunpack.c.l.bf16 %v25
  %v58 = vunpack.c.l.bf16 %v26
  %v59 = vunpack.c.l.bf16 %v27
  %v60 = vunpack.c.l.bf16 %v28
  %v61 = vunpack.c.l.bf16 %v29
  %v62 = vunpack.c.l.bf16 %v30
  %v63 = vunpack.c.l.bf16 %v31
  %v64 = vunpack.c.l.bf16 %v32
  %v65 = vunpack.c.l.bf16 %v33
  %v66 = vunpack.c.l.bf16 %v34
  %v67 = vunpack.c.l.bf16 %v35
  %v68 = vunpack.c.l.bf16 %v36
  %v69 = vunpack.c.l.bf16 %v37
  %v70 = vunpack.c.l.bf16 %v38
  %v71 = vunpack.c.l.bf16 %v39
  %v72 = vunpack.c.l.bf16 %v40
  %v73 = vunpack.c.l.bf16 %v41
  %v74 = vunpack.c.l.bf16 %v42
  %v75 = vunpack.c.l.bf16 %v43
  %v76 = vunpack.c.l.bf16 %v44
  %v77 = vunpack.c.l.bf16 %v45
  %v78 = vunpack.c.l.bf16 %v46
  %v79 = vunpack.c.l.bf16 %v47
  %v80 = vunpack.c.l.bf16 %v48
  %v81 = vld [vmem:[%s1] sm:$0xf]
  %v82 = vld [vmem:[%s1 + $0x4] sm:$0xf]
  %v83 = vld [vmem:[%s1 + $0x8] sm:$0xf]
  %v84 = vld [vmem:[%s1 + $0xc] sm:$0xf]
  %v85 = vld [vmem:[%s1 + $0x10] sm:$0xf]
  %v86 = vld [vmem:[%s1 + $0x14] sm:$0xf]
  %v87 = vld [vmem:[%s1 + $0x18] sm:$0xf]
  %v88 = vld [vmem:[%s1 + $0x1c] sm:$0xf]
  %v89 = vld [vmem:[%s1 + $0x20] sm:$0xf]
  %v90 = vld [vmem:[%s1 + $0x24] sm:$0xf]
  %v91 = vld [vmem:[%s1 + $0x28] sm:$0xf]
  %v92 = vld [vmem:[%s1 + $0x2c] sm:$0xf]
  %v93 = vld [vmem:[%s1 + $0x30] sm:$0xf]
  %v94 = vld [vmem:[%s1 + $0x34] sm:$0xf]
  %v95 = vld [vmem:[%s1 + $0x38] sm:$0xf]
  %v96 = vld [vmem:[%s1 + $0x3c] sm:$0xf]
  %v97 = vld [vmem:[%s1 + $0x40] sm:$0xf]
  %v98 = vld [vmem:[%s1 + $0x44] sm:$0xf]
  %v99 = vld [vmem:[%s1 + $0x48] sm:$0xf]
  %v100 = vld [vmem:[%s1 + $0x4c] sm:$0xf]
  %v101 = vld [vmem:[%s1 + $0x50] sm:$0xf]
  %v102 = vld [vmem:[%s1 + $0x54] sm:$0xf]
  %v103 = vld [vmem:[%s1 + $0x58] sm:$0xf]
  %v104 = vld [vmem:[%s1 + $0x5c] sm:$0xf]
  %v105 = vld [vmem:[%s1 + $0x60] sm:$0xf]
  %v106 = vld [vmem:[%s1 + $0x64] sm:$0xf]
  %v107 = vld [vmem:[%s1 + $0x68] sm:$0xf]
  %v108 = vld [vmem:[%s1 + $0x6c] sm:$0xf]
  %v109 = vld [vmem:[%s1 + $0x70] sm:$0xf]
  %v110 = vld [vmem:[%s1 + $0x74] sm:$0xf]
  %v111 = vld [vmem:[%s1 + $0x78] sm:$0xf]
  %v112 = vld [vmem:[%s1 + $0x7c] sm:$0xf]
  %v113 = vunpack.c.l.bf16 %v81
  %v114 = vunpack.c.l.bf16 %v82
  %v115 = vunpack.c.l.bf16 %v83
  %v116 = vunpack.c.l.bf16 %v84
  %v117 = vunpack.c.l.bf16 %v85
  %v118 = vunpack.c.l.bf16 %v86
  %v119 = vunpack.c.l.bf16 %v87
  %v120 = vunpack.c.l.bf16 %v88
  %v121 = vunpack.c.l.bf16 %v89
  %v122 = vunpack.c.l.bf16 %v90
  %v123 = vunpack.c.l.bf16 %v91
  %v124 = vunpack.c.l.bf16 %v92
  %v125 = vunpack.c.l.bf16 %v93
  %v126 = vunpack.c.l.bf16 %v94
  %v127 = vunpack.c.l.bf16 %v95
  %v128 = vunpack.c.l.bf16 %v96
  %v129 = vunpack.c.l.bf16 %v97
  %v130 = vunpack.c.l.bf16 %v98
  %v131 = vunpack.c.l.bf16 %v99
  %v132 = vunpack.c.l.bf16 %v100
  %v133 = vunpack.c.l.bf16 %v101
  %v134 = vunpack.c.l.bf16 %v102
  %v135 = vunpack.c.l.bf16 %v103
  %v136 = vunpack.c.l.bf16 %v104
  %v137 = vunpack.c.l.bf16 %v105
  %v138 = vunpack.c.l.bf16 %v106
  %v139 = vunpack.c.l.bf16 %v107
  %v140 = vunpack.c.l.bf16 %v108
  %v141 = vunpack.c.l.bf16 %v109
  %v142 = vunpack.c.l.bf16 %v110
  %v143 = vunpack.c.l.bf16 %v111
  %v144 = vunpack.c.l.bf16 %v112
  %v145 = vadd.f32 %v49, %v113
  %v146 = vadd.f32 %v50, %v114
  %v147 = vadd.f32 %v51, %v115
  %v148 = vadd.f32 %v52, %v116
  %v149 = vadd.f32 %v53, %v117
  %v150 = vadd.f32 %v54, %v118
  %v151 = vadd.f32 %v55, %v119
  %v152 = vadd.f32 %v56, %v120
  %v153 = vadd.f32 %v57, %v121
  %v154 = vadd.f32 %v58, %v122
  %v155 = vadd.f32 %v59, %v123
  %v156 = vadd.f32 %v60, %v124
  %v157 = vadd.f32 %v61, %v125
  %v158 = vadd.f32 %v62, %v126
  %v159 = vadd.f32 %v63, %v127
  %v160 = vadd.f32 %v64, %v128
  %v161 = vadd.f32 %v65, %v129
  %v162 = vadd.f32 %v66, %v130
  %v163 = vadd.f32 %v67, %v131
  %v164 = vadd.f32 %v68, %v132
  %v165 = vadd.f32 %v69, %v133
  %v166 = vadd.f32 %v70, %v134
  %v167 = vadd.f32 %v71, %v135
  %v168 = vadd.f32 %v72, %v136
  %v169 = vadd.f32 %v73, %v137
  %v170 = vadd.f32 %v74, %v138
  %v171 = vadd.f32 %v75, %v139
  %v172 = vadd.f32 %v76, %v140
  %v173 = vadd.f32 %v77, %v141
  %v174 = vadd.f32 %v78, %v142
  %v175 = vadd.f32 %v79, %v143
  %v176 = vadd.f32 %v80, %v144
  %177 = vadd.xlane.f32.xlu0 %v145
  %v178 = vpop.xlane.xlu0 %177
  %179 = vadd.xlane.f32.xlu0 %v146
  %v180 = vpop.xlane.xlu0 %179
  %181 = vadd.xlane.f32.xlu0 %v147
  %v182 = vpop.xlane.xlu0 %181
  %183 = vadd.xlane.f32.xlu0 %v148
  %v184 = vpop.xlane.xlu0 %183
  %185 = vadd.xlane.f32.xlu0 %v149
  %v186 = vpop.xlane.xlu0 %185
  %187 = vadd.xlane.f32.xlu0 %v150
  %v188 = vpop.xlane.xlu0 %187
  %189 = vadd.xlane.f32.xlu0 %v151
  %v190 = vpop.xlane.xlu0 %189
  %191 = vadd.xlane.f32.xlu0 %v152
  %v192 = vpop.xlane.xlu0 %191
  %193 = vadd.xlane.f32.xlu0 %v153
  %v194 = vpop.xlane.xlu0 %193
  %195 = vadd.xlane.f32.xlu0 %v154
  %v196 = vpop.xlane.xlu0 %195
  %197 = vadd.xlane.f32.xlu0 %v155
  %v198 = vpop.xlane.xlu0 %197
  %199 = vadd.xlane.f32.xlu0 %v156
  %v200 = vpop.xlane.xlu0 %199
  %201 = vadd.xlane.f32.xlu0 %v157
  %v202 = vpop.xlane.xlu0 %201
  %203 = vadd.xlane.f32.xlu0 %v158
  %v204 = vpop.xlane.xlu0 %203
  %205 = vadd.xlane.f32.xlu0 %v159
  %v206 = vpop.xlane.xlu0 %205
  %207 = vadd.xlane.f32.xlu0 %v160
  %v208 = vpop.xlane.xlu0 %207
  %209 = vadd.xlane.f32.xlu0 %v161
  %v210 = vpop.xlane.xlu0 %209
  %211 = vadd.xlane.f32.xlu0 %v162
  %v212 = vpop.xlane.xlu0 %211
  %213 = vadd.xlane.f32.xlu0 %v163
  %v214 = vpop.xlane.xlu0 %213
  %215 = vadd.xlane.f32.xlu0 %v164
  %v216 = vpop.xlane.xlu0 %215
  %217 = vadd.xlane.f32.xlu0 %v165
  %v218 = vpop.xlane.xlu0 %217
  %219 = vadd.xlane.f32.xlu0 %v166
  %v220 = vpop.xlane.xlu0 %219
  %221 = vadd.xlane.f32.xlu0 %v167
  %v222 = vpop.xlane.xlu0 %221
  %223 = vadd.xlane.f32.xlu0 %v168
  %v224 = vpop.xlane.xlu0 %223
  %225 = vadd.xlane.f32.xlu0 %v169
  %v226 = vpop.xlane.xlu0 %225
  %227 = vadd.xlane.f32.xlu0 %v170
  %v228 = vpop.xlane.xlu0 %227
  %229 = vadd.xlane.f32.xlu0 %v171
  %v230 = vpop.xlane.xlu0 %229
  %231 = vadd.xlane.f32.xlu0 %v172
  %v232 = vpop.xlane.xlu0 %231
  %233 = vadd.xlane.f32.xlu0 %v173
  %v234 = vpop.xlane.xlu0 %233
  %235 = vadd.xlane.f32.xlu0 %v174
  %v236 = vpop.xlane.xlu0 %235
  %237 = vadd.xlane.f32.xlu0 %v175
  %v238 = vpop.xlane.xlu0 %237
  %239 = vadd.xlane.f32.xlu0 %v176
  %v240 = vpop.xlane.xlu0 %239
  %v241 = vrcp.pop 128.0
  %v242 = vmul.f32 128.0, %v241
  %v243 = vsub.f32 1.0, %v242
  %v244 = vmul.f32 %v241, %v243
  %v245 = vadd.f32 %v241, %v244
  %vm246 = vweird.f32 %v241
  %v247 = vsel %vm246, %v241, %v245
  %v248 = vmul.f32 %v178, %v247
  %v249 = vmul.f32 %v180, %v247
  %v250 = vmul.f32 %v182, %v247
  %v251 = vmul.f32 %v184, %v247
  %v252 = vmul.f32 %v186, %v247
  %v253 = vmul.f32 %v188, %v247
  %v254 = vmul.f32 %v190, %v247
  %v255 = vmul.f32 %v192, %v247
  %v256 = vmul.f32 %v194, %v247
  %v257 = vmul.f32 %v196, %v247
  %v258 = vmul.f32 %v198, %v247
  %v259 = vmul.f32 %v200, %v247
  %v260 = vmul.f32 %v202, %v247
  %v261 = vmul.f32 %v204, %v247
  %v262 = vmul.f32 %v206, %v247
  %v263 = vmul.f32 %v208, %v247
  %v264 = vmul.f32 %v210, %v247
  %v265 = vmul.f32 %v212, %v247
  %v266 = vmul.f32 %v214, %v247
  %v267 = vmul.f32 %v216, %v247
  %v268 = vmul.f32 %v218, %v247
  %v269 = vmul.f32 %v220, %v247
  %v270 = vmul.f32 %v222, %v247
  %v271 = vmul.f32 %v224, %v247
  %v272 = vmul.f32 %v226, %v247
  %v273 = vmul.f32 %v228, %v247
  %v274 = vmul.f32 %v230, %v247
  %v275 = vmul.f32 %v232, %v247
  %v276 = vmul.f32 %v234, %v247
  %v277 = vmul.f32 %v236, %v247
  %v278 = vmul.f32 %v238, %v247
  %v279 = vmul.f32 %v240, %v247
  %v280 = vsub.f32 %v145, %v248
  %v281 = vsub.f32 %v146, %v249
  %v282 = vsub.f32 %v147, %v250
  %v283 = vsub.f32 %v148, %v251
  %v284 = vsub.f32 %v149, %v252
  %v285 = vsub.f32 %v150, %v253
  %v286 = vsub.f32 %v151, %v254
  %v287 = vsub.f32 %v152, %v255
  %v288 = vsub.f32 %v153, %v256
  %v289 = vsub.f32 %v154, %v257
  %v290 = vsub.f32 %v155, %v258
  %v291 = vsub.f32 %v156, %v259
  %v292 = vsub.f32 %v157, %v260
  %v293 = vsub.f32 %v158, %v261
  %v294 = vsub.f32 %v159, %v262
  %v295 = vsub.f32 %v160, %v263
  %v296 = vsub.f32 %v161, %v264
  %v297 = vsub.f32 %v162, %v265
  %v298 = vsub.f32 %v163, %v266
  %v299 = vsub.f32 %v164, %v267
  %v300 = vsub.f32 %v165, %v268
  %v301 = vsub.f32 %v166, %v269
  %v302 = vsub.f32 %v167, %v270
  %v303 = vsub.f32 %v168, %v271
  %v304 = vsub.f32 %v169, %v272
  %v305 = vsub.f32 %v170, %v273
  %v306 = vsub.f32 %v171, %v274
  %v307 = vsub.f32 %v172, %v275
  %v308 = vsub.f32 %v173, %v276
  %v309 = vsub.f32 %v174, %v277
  %v310 = vsub.f32 %v175, %v278
  %v311 = vsub.f32 %v176, %v279
  %v312 = vmul.f32 %v280, %v280
  %v313 = vmul.f32 %v281, %v281
  %v314 = vmul.f32 %v282, %v282
  %v315 = vmul.f32 %v283, %v283
  %v316 = vmul.f32 %v284, %v284
  %v317 = vmul.f32 %v285, %v285
  %v318 = vmul.f32 %v286, %v286
  %v319 = vmul.f32 %v287, %v287
  %v320 = vmul.f32 %v288, %v288
  %v321 = vmul.f32 %v289, %v289
  %v322 = vmul.f32 %v290, %v290
  %v323 = vmul.f32 %v291, %v291
  %v324 = vmul.f32 %v292, %v292
  %v325 = vmul.f32 %v293, %v293
  %v326 = vmul.f32 %v294, %v294
  %v327 = vmul.f32 %v295, %v295
  %v328 = vmul.f32 %v296, %v296
  %v329 = vmul.f32 %v297, %v297
  %v330 = vmul.f32 %v298, %v298
  %v331 = vmul.f32 %v299, %v299
  %v332 = vmul.f32 %v300, %v300
  %v333 = vmul.f32 %v301, %v301
  %v334 = vmul.f32 %v302, %v302
  %v335 = vmul.f32 %v303, %v303
  %v336 = vmul.f32 %v304, %v304
  %v337 = vmul.f32 %v305, %v305
  %v338 = vmul.f32 %v306, %v306
  %v339 = vmul.f32 %v307, %v307
  %v340 = vmul.f32 %v308, %v308
  %v341 = vmul.f32 %v309, %v309
  %v342 = vmul.f32 %v310, %v310
  %v343 = vmul.f32 %v311, %v311
  %344 = vadd.xlane.f32.xlu0 %v312
  %v345 = vpop.xlane.xlu0 %344
  %346 = vadd.xlane.f32.xlu0 %v313
  %v347 = vpop.xlane.xlu0 %346
  %348 = vadd.xlane.f32.xlu0 %v314
  %v349 = vpop.xlane.xlu0 %348
  %350 = vadd.xlane.f32.xlu0 %v315
  %v351 = vpop.xlane.xlu0 %350
  %352 = vadd.xlane.f32.xlu0 %v316
  %v353 = vpop.xlane.xlu0 %352
  %354 = vadd.xlane.f32.xlu0 %v317
  %v355 = vpop.xlane.xlu0 %354
  %356 = vadd.xlane.f32.xlu0 %v318
  %v357 = vpop.xlane.xlu0 %356
  %358 = vadd.xlane.f32.xlu0 %v319
  %v359 = vpop.xlane.xlu0 %358
  %360 = vadd.xlane.f32.xlu0 %v320
  %v361 = vpop.xlane.xlu0 %360
  %362 = vadd.xlane.f32.xlu0 %v321
  %v363 = vpop.xlane.xlu0 %362
  %364 = vadd.xlane.f32.xlu0 %v322
  %v365 = vpop.xlane.xlu0 %364
  %366 = vadd.xlane.f32.xlu0 %v323
  %v367 = vpop.xlane.xlu0 %366
  %368 = vadd.xlane.f32.xlu0 %v324
  %v369 = vpop.xlane.xlu0 %368
  %370 = vadd.xlane.f32.xlu0 %v325
  %v371 = vpop.xlane.xlu0 %370
  %372 = vadd.xlane.f32.xlu0 %v326
  %v373 = vpop.xlane.xlu0 %372
  %374 = vadd.xlane.f32.xlu0 %v327
  %v375 = vpop.xlane.xlu0 %374
  %376 = vadd.xlane.f32.xlu0 %v328
  %v377 = vpop.xlane.xlu0 %376
  %378 = vadd.xlane.f32.xlu0 %v329
  %v379 = vpop.xlane.xlu0 %378
  %380 = vadd.xlane.f32.xlu0 %v330
  %v381 = vpop.xlane.xlu0 %380
  %382 = vadd.xlane.f32.xlu0 %v331
  %v383 = vpop.xlane.xlu0 %382
  %384 = vadd.xlane.f32.xlu0 %v332
  %v385 = vpop.xlane.xlu0 %384
  %386 = vadd.xlane.f32.xlu0 %v333
  %v387 = vpop.xlane.xlu0 %386
  %388 = vadd.xlane.f32.xlu0 %v334
  %v389 = vpop.xlane.xlu0 %388
  %390 = vadd.xlane.f32.xlu0 %v335
  %v391 = vpop.xlane.xlu0 %390
  %392 = vadd.xlane.f32.xlu0 %v336
  %v393 = vpop.xlane.xlu0 %392
  %394 = vadd.xlane.f32.xlu0 %v337
  %v395 = vpop.xlane.xlu0 %394
  %396 = vadd.xlane.f32.xlu0 %v338
  %v397 = vpop.xlane.xlu0 %396
  %398 = vadd.xlane.f32.xlu0 %v339
  %v399 = vpop.xlane.xlu0 %398
  %400 = vadd.xlane.f32.xlu0 %v340
  %v401 = vpop.xlane.xlu0 %400
  %402 = vadd.xlane.f32.xlu0 %v341
  %v403 = vpop.xlane.xlu0 %402
  %404 = vadd.xlane.f32.xlu0 %v342
  %v405 = vpop.xlane.xlu0 %404
  %406 = vadd.xlane.f32.xlu0 %v343
  %v407 = vpop.xlane.xlu0 %406
  %v408 = vmul.f32 %v345, %v247
  %v409 = vmul.f32 %v347, %v247
  %v410 = vmul.f32 %v349, %v247
  %v411 = vmul.f32 %v351, %v247
  %v412 = vmul.f32 %v353, %v247
  %v413 = vmul.f32 %v355, %v247
  %v414 = vmul.f32 %v357, %v247
  %v415 = vmul.f32 %v359, %v247
  %v416 = vmul.f32 %v361, %v247
  %v417 = vmul.f32 %v363, %v247
  %v418 = vmul.f32 %v365, %v247
  %v419 = vmul.f32 %v367, %v247
  %v420 = vmul.f32 %v369, %v247
  %v421 = vmul.f32 %v371, %v247
  %v422 = vmul.f32 %v373, %v247
  %v423 = vmul.f32 %v375, %v247
  %v424 = vmul.f32 %v377, %v247
  %v425 = vmul.f32 %v379, %v247
  %v426 = vmul.f32 %v381, %v247
  %v427 = vmul.f32 %v383, %v247
  %v428 = vmul.f32 %v385, %v247
  %v429 = vmul.f32 %v387, %v247
  %v430 = vmul.f32 %v389, %v247
  %v431 = vmul.f32 %v391, %v247
  %v432 = vmul.f32 %v393, %v247
  %v433 = vmul.f32 %v395, %v247
  %v434 = vmul.f32 %v397, %v247
  %v435 = vmul.f32 %v399, %v247
  %v436 = vmul.f32 %v401, %v247
  %v437 = vmul.f32 %v403, %v247
  %v438 = vmul.f32 %v405, %v247
  %v439 = vmul.f32 %v407, %v247
  %v440 = vadd.f32 %v408, 1e-12
  %v441 = vadd.f32 %v409, 1e-12
  %v442 = vadd.f32 %v410, 1e-12
  %v443 = vadd.f32 %v411, 1e-12
  %v444 = vadd.f32 %v412, 1e-12
  %v445 = vadd.f32 %v413, 1e-12
  %v446 = vadd.f32 %v414, 1e-12
  %v447 = vadd.f32 %v415, 1e-12
  %v448 = vadd.f32 %v416, 1e-12
  %v449 = vadd.f32 %v417, 1e-12
  %v450 = vadd.f32 %v418, 1e-12
  %v451 = vadd.f32 %v419, 1e-12
  %v452 = vadd.f32 %v420, 1e-12
  %v453 = vadd.f32 %v421, 1e-12
  %v454 = vadd.f32 %v422, 1e-12
  %v455 = vadd.f32 %v423, 1e-12
  %v456 = vadd.f32 %v424, 1e-12
  %v457 = vadd.f32 %v425, 1e-12
  %v458 = vadd.f32 %v426, 1e-12
  %v459 = vadd.f32 %v427, 1e-12
  %v460 = vadd.f32 %v428, 1e-12
  %v461 = vadd.f32 %v429, 1e-12
  %v462 = vadd.f32 %v430, 1e-12
  %v463 = vadd.f32 %v431, 1e-12
  %v464 = vadd.f32 %v432, 1e-12
  %v465 = vadd.f32 %v433, 1e-12
  %v466 = vadd.f32 %v434, 1e-12
  %v467 = vadd.f32 %v435, 1e-12
  %v468 = vadd.f32 %v436, 1e-12
  %v469 = vadd.f32 %v437, 1e-12
  %v470 = vadd.f32 %v438, 1e-12
  %v471 = vadd.f32 %v439, 1e-12
  %v472 = vrsqrt.pop %v440
  %v473 = vmul.f32 %v472, %v440
  %v474 = vmul.f32 %v473, %v472
  %v475 = vmul.f32 0.5, %v474
  %v476 = vsub.f32 1.5, %v475
  %v477 = vmul.f32 %v472, %v476
  %vm478 = vweird.f32 %v440
  %vm479 = vweird.f32 %v472
  %vm480 = vmor %vm478, %vm479
  %v481 = vsel %vm480, %v472, %v477
  %v482 = vrsqrt.pop %v441
  %v483 = vmul.f32 %v482, %v441
  %v484 = vmul.f32 %v483, %v482
  %v485 = vmul.f32 0.5, %v484
  %v486 = vsub.f32 1.5, %v485
  %v487 = vmul.f32 %v482, %v486
  %vm488 = vweird.f32 %v441
  %vm489 = vweird.f32 %v482
  %vm490 = vmor %vm488, %vm489
  %v491 = vsel %vm490, %v482, %v487
  %v492 = vrsqrt.pop %v442
  %v493 = vmul.f32 %v492, %v442
  %v494 = vmul.f32 %v493, %v492
  %v495 = vmul.f32 0.5, %v494
  %v496 = vsub.f32 1.5, %v495
  %v497 = vmul.f32 %v492, %v496
  %vm498 = vweird.f32 %v442
  %vm499 = vweird.f32 %v492
  %vm500 = vmor %vm498, %vm499
  %v501 = vsel %vm500, %v492, %v497
  %v502 = vrsqrt.pop %v443
  %v503 = vmul.f32 %v502, %v443
  %v504 = vmul.f32 %v503, %v502
  %v505 = vmul.f32 0.5, %v504
  %v506 = vsub.f32 1.5, %v505
  %v507 = vmul.f32 %v502, %v506
  %vm508 = vweird.f32 %v443
  %vm509 = vweird.f32 %v502
  %vm510 = vmor %vm508, %vm509
  %v511 = vsel %vm510, %v502, %v507
  %v512 = vrsqrt.pop %v444
  %v513 = vmul.f32 %v512, %v444
  %v514 = vmul.f32 %v513, %v512
  %v515 = vmul.f32 0.5, %v514
  %v516 = vsub.f32 1.5, %v515
  %v517 = vmul.f32 %v512, %v516
  %vm518 = vweird.f32 %v444
  %vm519 = vweird.f32 %v512
  %vm520 = vmor %vm518, %vm519
  %v521 = vsel %vm520, %v512, %v517
  %v522 = vrsqrt.pop %v445
  %v523 = vmul.f32 %v522, %v445
  %v524 = vmul.f32 %v523, %v522
  %v525 = vmul.f32 0.5, %v524
  %v526 = vsub.f32 1.5, %v525
  %v527 = vmul.f32 %v522, %v526
  %vm528 = vweird.f32 %v445
  %vm529 = vweird.f32 %v522
  %vm530 = vmor %vm528, %vm529
  %v531 = vsel %vm530, %v522, %v527
  %v532 = vrsqrt.pop %v446
  %v533 = vmul.f32 %v532, %v446
  %v534 = vmul.f32 %v533, %v532
  %v535 = vmul.f32 0.5, %v534
  %v536 = vsub.f32 1.5, %v535
  %v537 = vmul.f32 %v532, %v536
  %vm538 = vweird.f32 %v446
  %vm539 = vweird.f32 %v532
  %vm540 = vmor %vm538, %vm539
  %v541 = vsel %vm540, %v532, %v537
  %v542 = vrsqrt.pop %v447
  %v543 = vmul.f32 %v542, %v447
  %v544 = vmul.f32 %v543, %v542
  %v545 = vmul.f32 0.5, %v544
  %v546 = vsub.f32 1.5, %v545
  %v547 = vmul.f32 %v542, %v546
  %vm548 = vweird.f32 %v447
  %vm549 = vweird.f32 %v542
  %vm550 = vmor %vm548, %vm549
  %v551 = vsel %vm550, %v542, %v547
  %v552 = vrsqrt.pop %v448
  %v553 = vmul.f32 %v552, %v448
  %v554 = vmul.f32 %v553, %v552
  %v555 = vmul.f32 0.5, %v554
  %v556 = vsub.f32 1.5, %v555
  %v557 = vmul.f32 %v552, %v556
  %vm558 = vweird.f32 %v448
  %vm559 = vweird.f32 %v552
  %vm560 = vmor %vm558, %vm559
  %v561 = vsel %vm560, %v552, %v557
  %v562 = vrsqrt.pop %v449
  %v563 = vmul.f32 %v562, %v449
  %v564 = vmul.f32 %v563, %v562
  %v565 = vmul.f32 0.5, %v564
  %v566 = vsub.f32 1.5, %v565
  %v567 = vmul.f32 %v562, %v566
  %vm568 = vweird.f32 %v449
  %vm569 = vweird.f32 %v562
  %vm570 = vmor %vm568, %vm569
  %v571 = vsel %vm570, %v562, %v567
  %v572 = vrsqrt.pop %v450
  %v573 = vmul.f32 %v572, %v450
  %v574 = vmul.f32 %v573, %v572
  %v575 = vmul.f32 0.5, %v574
  %v576 = vsub.f32 1.5, %v575
  %v577 = vmul.f32 %v572, %v576
  %vm578 = vweird.f32 %v450
  %vm579 = vweird.f32 %v572
  %vm580 = vmor %vm578, %vm579
  %v581 = vsel %vm580, %v572, %v577
  %v582 = vrsqrt.pop %v451
  %v583 = vmul.f32 %v582, %v451
  %v584 = vmul.f32 %v583, %v582
  %v585 = vmul.f32 0.5, %v584
  %v586 = vsub.f32 1.5, %v585
  %v587 = vmul.f32 %v582, %v586
  %vm588 = vweird.f32 %v451
  %vm589 = vweird.f32 %v582
  %vm590 = vmor %vm588, %vm589
  %v591 = vsel %vm590, %v582, %v587
  %v592 = vrsqrt.pop %v452
  %v593 = vmul.f32 %v592, %v452
  %v594 = vmul.f32 %v593, %v592
  %v595 = vmul.f32 0.5, %v594
  %v596 = vsub.f32 1.5, %v595
  %v597 = vmul.f32 %v592, %v596
  %vm598 = vweird.f32 %v452
  %vm599 = vweird.f32 %v592
  %vm600 = vmor %vm598, %vm599
  %v601 = vsel %vm600, %v592, %v597
  %v602 = vrsqrt.pop %v453
  %v603 = vmul.f32 %v602, %v453
  %v604 = vmul.f32 %v603, %v602
  %v605 = vmul.f32 0.5, %v604
  %v606 = vsub.f32 1.5, %v605
  %v607 = vmul.f32 %v602, %v606
  %vm608 = vweird.f32 %v453
  %vm609 = vweird.f32 %v602
  %vm610 = vmor %vm608, %vm609
  %v611 = vsel %vm610, %v602, %v607
  %v612 = vrsqrt.pop %v454
  %v613 = vmul.f32 %v612, %v454
  %v614 = vmul.f32 %v613, %v612
  %v615 = vmul.f32 0.5, %v614
  %v616 = vsub.f32 1.5, %v615
  %v617 = vmul.f32 %v612, %v616
  %vm618 = vweird.f32 %v454
  %vm619 = vweird.f32 %v612
  %vm620 = vmor %vm618, %vm619
  %v621 = vsel %vm620, %v612, %v617
  %v622 = vrsqrt.pop %v455
  %v623 = vmul.f32 %v622, %v455
  %v624 = vmul.f32 %v623, %v622
  %v625 = vmul.f32 0.5, %v624
  %v626 = vsub.f32 1.5, %v625
  %v627 = vmul.f32 %v622, %v626
  %vm628 = vweird.f32 %v455
  %vm629 = vweird.f32 %v622
  %vm630 = vmor %vm628, %vm629
  %v631 = vsel %vm630, %v622, %v627
  %v632 = vrsqrt.pop %v456
  %v633 = vmul.f32 %v632, %v456
  %v634 = vmul.f32 %v633, %v632
  %v635 = vmul.f32 0.5, %v634
  %v636 = vsub.f32 1.5, %v635
  %v637 = vmul.f32 %v632, %v636
  %vm638 = vweird.f32 %v456
  %vm639 = vweird.f32 %v632
  %vm640 = vmor %vm638, %vm639
  %v641 = vsel %vm640, %v632, %v637
  %v642 = vrsqrt.pop %v457
  %v643 = vmul.f32 %v642, %v457
  %v644 = vmul.f32 %v643, %v642
  %v645 = vmul.f32 0.5, %v644
  %v646 = vsub.f32 1.5, %v645
  %v647 = vmul.f32 %v642, %v646
  %vm648 = vweird.f32 %v457
  %vm649 = vweird.f32 %v642
  %vm650 = vmor %vm648, %vm649
  %v651 = vsel %vm650, %v642, %v647
  %v652 = vrsqrt.pop %v458
  %v653 = vmul.f32 %v652, %v458
  %v654 = vmul.f32 %v653, %v652
  %v655 = vmul.f32 0.5, %v654
  %v656 = vsub.f32 1.5, %v655
  %v657 = vmul.f32 %v652, %v656
  %vm658 = vweird.f32 %v458
  %vm659 = vweird.f32 %v652
  %vm660 = vmor %vm658, %vm659
  %v661 = vsel %vm660, %v652, %v657
  %v662 = vrsqrt.pop %v459
  %v663 = vmul.f32 %v662, %v459
  %v664 = vmul.f32 %v663, %v662
  %v665 = vmul.f32 0.5, %v664
  %v666 = vsub.f32 1.5, %v665
  %v667 = vmul.f32 %v662, %v666
  %vm668 = vweird.f32 %v459
  %vm669 = vweird.f32 %v662
  %vm670 = vmor %vm668, %vm669
  %v671 = vsel %vm670, %v662, %v667
  %v672 = vrsqrt.pop %v460
  %v673 = vmul.f32 %v672, %v460
  %v674 = vmul.f32 %v673, %v672
  %v675 = vmul.f32 0.5, %v674
  %v676 = vsub.f32 1.5, %v675
  %v677 = vmul.f32 %v672, %v676
  %vm678 = vweird.f32 %v460
  %vm679 = vweird.f32 %v672
  %vm680 = vmor %vm678, %vm679
  %v681 = vsel %vm680, %v672, %v677
  %v682 = vrsqrt.pop %v461
  %v683 = vmul.f32 %v682, %v461
  %v684 = vmul.f32 %v683, %v682
  %v685 = vmul.f32 0.5, %v684
  %v686 = vsub.f32 1.5, %v685
  %v687 = vmul.f32 %v682, %v686
  %vm688 = vweird.f32 %v461
  %vm689 = vweird.f32 %v682
  %vm690 = vmor %vm688, %vm689
  %v691 = vsel %vm690, %v682, %v687
  %v692 = vrsqrt.pop %v462
  %v693 = vmul.f32 %v692, %v462
  %v694 = vmul.f32 %v693, %v692
  %v695 = vmul.f32 0.5, %v694
  %v696 = vsub.f32 1.5, %v695
  %v697 = vmul.f32 %v692, %v696
  %vm698 = vweird.f32 %v462
  %vm699 = vweird.f32 %v692
  %vm700 = vmor %vm698, %vm699
  %v701 = vsel %vm700, %v692, %v697
  %v702 = vrsqrt.pop %v463
  %v703 = vmul.f32 %v702, %v463
  %v704 = vmul.f32 %v703, %v702
  %v705 = vmul.f32 0.5, %v704
  %v706 = vsub.f32 1.5, %v705
  %v707 = vmul.f32 %v702, %v706
  %vm708 = vweird.f32 %v463
  %vm709 = vweird.f32 %v702
  %vm710 = vmor %vm708, %vm709
  %v711 = vsel %vm710, %v702, %v707
  %v712 = vrsqrt.pop %v464
  %v713 = vmul.f32 %v712, %v464
  %v714 = vmul.f32 %v713, %v712
  %v715 = vmul.f32 0.5, %v714
  %v716 = vsub.f32 1.5, %v715
  %v717 = vmul.f32 %v712, %v716
  %vm718 = vweird.f32 %v464
  %vm719 = vweird.f32 %v712
  %vm720 = vmor %vm718, %vm719
  %v721 = vsel %vm720, %v712, %v717
  %v722 = vrsqrt.pop %v465
  %v723 = vmul.f32 %v722, %v465
  %v724 = vmul.f32 %v723, %v722
  %v725 = vmul.f32 0.5, %v724
  %v726 = vsub.f32 1.5, %v725
  %v727 = vmul.f32 %v722, %v726
  %vm728 = vweird.f32 %v465
  %vm729 = vweird.f32 %v722
  %vm730 = vmor %vm728, %vm729
  %v731 = vsel %vm730, %v722, %v727
  %v732 = vrsqrt.pop %v466
  %v733 = vmul.f32 %v732, %v466
  %v734 = vmul.f32 %v733, %v732
  %v735 = vmul.f32 0.5, %v734
  %v736 = vsub.f32 1.5, %v735
  %v737 = vmul.f32 %v732, %v736
  %vm738 = vweird.f32 %v466
  %vm739 = vweird.f32 %v732
  %vm740 = vmor %vm738, %vm739
  %v741 = vsel %vm740, %v732, %v737
  %v742 = vrsqrt.pop %v467
  %v743 = vmul.f32 %v742, %v467
  %v744 = vmul.f32 %v743, %v742
  %v745 = vmul.f32 0.5, %v744
  %v746 = vsub.f32 1.5, %v745
  %v747 = vmul.f32 %v742, %v746
  %vm748 = vweird.f32 %v467
  %vm749 = vweird.f32 %v742
  %vm750 = vmor %vm748, %vm749
  %v751 = vsel %vm750, %v742, %v747
  %v752 = vrsqrt.pop %v468
  %v753 = vmul.f32 %v752, %v468
  %v754 = vmul.f32 %v753, %v752
  %v755 = vmul.f32 0.5, %v754
  %v756 = vsub.f32 1.5, %v755
  %v757 = vmul.f32 %v752, %v756
  %vm758 = vweird.f32 %v468
  %vm759 = vweird.f32 %v752
  %vm760 = vmor %vm758, %vm759
  %v761 = vsel %vm760, %v752, %v757
  %v762 = vrsqrt.pop %v469
  %v763 = vmul.f32 %v762, %v469
  %v764 = vmul.f32 %v763, %v762
  %v765 = vmul.f32 0.5, %v764
  %v766 = vsub.f32 1.5, %v765
  %v767 = vmul.f32 %v762, %v766
  %vm768 = vweird.f32 %v469
  %vm769 = vweird.f32 %v762
  %vm770 = vmor %vm768, %vm769
  %v771 = vsel %vm770, %v762, %v767
  %v772 = vrsqrt.pop %v470
  %v773 = vmul.f32 %v772, %v470
  %v774 = vmul.f32 %v773, %v772
  %v775 = vmul.f32 0.5, %v774
  %v776 = vsub.f32 1.5, %v775
  %v777 = vmul.f32 %v772, %v776
  %vm778 = vweird.f32 %v470
  %vm779 = vweird.f32 %v772
  %vm780 = vmor %vm778, %vm779
  %v781 = vsel %vm780, %v772, %v777
  %v782 = vrsqrt.pop %v471
  %v783 = vmul.f32 %v782, %v471
  %v784 = vmul.f32 %v783, %v782
  %v785 = vmul.f32 0.5, %v784
  %v786 = vsub.f32 1.5, %v785
  %v787 = vmul.f32 %v782, %v786
  %vm788 = vweird.f32 %v471
  %vm789 = vweird.f32 %v782
  %vm790 = vmor %vm788, %vm789
  %v791 = vsel %vm790, %v782, %v787
  %v792 = vmul.f32 %v280, %v481
  %v793 = vmul.f32 %v281, %v491
  %v794 = vmul.f32 %v282, %v501
  %v795 = vmul.f32 %v283, %v511
  %v796 = vmul.f32 %v284, %v521
  %v797 = vmul.f32 %v285, %v531
  %v798 = vmul.f32 %v286, %v541
  %v799 = vmul.f32 %v287, %v551
  %v800 = vmul.f32 %v288, %v561
  %v801 = vmul.f32 %v289, %v571
  %v802 = vmul.f32 %v290, %v581
  %v803 = vmul.f32 %v291, %v591
  %v804 = vmul.f32 %v292, %v601
  %v805 = vmul.f32 %v293, %v611
  %v806 = vmul.f32 %v294, %v621
  %v807 = vmul.f32 %v295, %v631
  %v808 = vmul.f32 %v296, %v641
  %v809 = vmul.f32 %v297, %v651
  %v810 = vmul.f32 %v298, %v661
  %v811 = vmul.f32 %v299, %v671
  %v812 = vmul.f32 %v300, %v681
  %v813 = vmul.f32 %v301, %v691
  %v814 = vmul.f32 %v302, %v701
  %v815 = vmul.f32 %v303, %v711
  %v816 = vmul.f32 %v304, %v721
  %v817 = vmul.f32 %v305, %v731
  %v818 = vmul.f32 %v306, %v741
  %v819 = vmul.f32 %v307, %v751
  %v820 = vmul.f32 %v308, %v761
  %v821 = vmul.f32 %v309, %v771
  %v822 = vmul.f32 %v310, %v781
  %v823 = vmul.f32 %v311, %v791
  %v824 = vld [vmem:[%s2] sm:$0x1]
  %v826 = vperm.slane %v824, 0
  %v828 = vmul.f32 %v792, %v826
  %v829 = vmul.f32 %v793, %v826
  %v830 = vmul.f32 %v794, %v826
  %v831 = vmul.f32 %v795, %v826
  %v832 = vmul.f32 %v796, %v826
  %v833 = vmul.f32 %v797, %v826
  %v834 = vmul.f32 %v798, %v826
  %v835 = vmul.f32 %v799, %v826
  %v836 = vmul.f32 %v800, %v826
  %v837 = vmul.f32 %v801, %v826
  %v838 = vmul.f32 %v802, %v826
  %v839 = vmul.f32 %v803, %v826
  %v840 = vmul.f32 %v804, %v826
  %v841 = vmul.f32 %v805, %v826
  %v842 = vmul.f32 %v806, %v826
  %v843 = vmul.f32 %v807, %v826
  %v844 = vmul.f32 %v808, %v826
  %v845 = vmul.f32 %v809, %v826
  %v846 = vmul.f32 %v810, %v826
  %v847 = vmul.f32 %v811, %v826
  %v848 = vmul.f32 %v812, %v826
  %v849 = vmul.f32 %v813, %v826
  %v850 = vmul.f32 %v814, %v826
  %v851 = vmul.f32 %v815, %v826
  %v852 = vmul.f32 %v816, %v826
  %v853 = vmul.f32 %v817, %v826
  %v854 = vmul.f32 %v818, %v826
  %v855 = vmul.f32 %v819, %v826
  %v856 = vmul.f32 %v820, %v826
  %v857 = vmul.f32 %v821, %v826
  %v858 = vmul.f32 %v822, %v826
  %v859 = vmul.f32 %v823, %v826
  %v860 = vld [vmem:[%s3] sm:$0x1]
  %v862 = vperm.slane %v860, 0
  %v864 = vadd.f32 %v828, %v862
  %v865 = vadd.f32 %v829, %v862
  %v866 = vadd.f32 %v830, %v862
  %v867 = vadd.f32 %v831, %v862
  %v868 = vadd.f32 %v832, %v862
  %v869 = vadd.f32 %v833, %v862
  %v870 = vadd.f32 %v834, %v862
  %v871 = vadd.f32 %v835, %v862
  %v872 = vadd.f32 %v836, %v862
  %v873 = vadd.f32 %v837, %v862
  %v874 = vadd.f32 %v838, %v862
  %v875 = vadd.f32 %v839, %v862
  %v876 = vadd.f32 %v840, %v862
  %v877 = vadd.f32 %v841, %v862
  %v878 = vadd.f32 %v842, %v862
  %v879 = vadd.f32 %v843, %v862
  %v880 = vadd.f32 %v844, %v862
  %v881 = vadd.f32 %v845, %v862
  %v882 = vadd.f32 %v846, %v862
  %v883 = vadd.f32 %v847, %v862
  %v884 = vadd.f32 %v848, %v862
  %v885 = vadd.f32 %v849, %v862
  %v886 = vadd.f32 %v850, %v862
  %v887 = vadd.f32 %v851, %v862
  %v888 = vadd.f32 %v852, %v862
  %v889 = vadd.f32 %v853, %v862
  %v890 = vadd.f32 %v854, %v862
  %v891 = vadd.f32 %v855, %v862
  %v892 = vadd.f32 %v856, %v862
  %v893 = vadd.f32 %v857, %v862
  %v894 = vadd.f32 %v858, %v862
  %v895 = vadd.f32 %v859, %v862
  %v896 = vpack.c.bf16 %v864, %v864
  %v897 = vpack.c.bf16 %v865, %v865
  %v898 = vpack.c.bf16 %v866, %v866
  %v899 = vpack.c.bf16 %v867, %v867
  %v900 = vpack.c.bf16 %v868, %v868
  %v901 = vpack.c.bf16 %v869, %v869
  %v902 = vpack.c.bf16 %v870, %v870
  %v903 = vpack.c.bf16 %v871, %v871
  %v904 = vpack.c.bf16 %v872, %v872
  %v905 = vpack.c.bf16 %v873, %v873
  %v906 = vpack.c.bf16 %v874, %v874
  %v907 = vpack.c.bf16 %v875, %v875
  %v908 = vpack.c.bf16 %v876, %v876
  %v909 = vpack.c.bf16 %v877, %v877
  %v910 = vpack.c.bf16 %v878, %v878
  %v911 = vpack.c.bf16 %v879, %v879
  %v912 = vpack.c.bf16 %v880, %v880
  %v913 = vpack.c.bf16 %v881, %v881
  %v914 = vpack.c.bf16 %v882, %v882
  %v915 = vpack.c.bf16 %v883, %v883
  %v916 = vpack.c.bf16 %v884, %v884
  %v917 = vpack.c.bf16 %v885, %v885
  %v918 = vpack.c.bf16 %v886, %v886
  %v919 = vpack.c.bf16 %v887, %v887
  %v920 = vpack.c.bf16 %v888, %v888
  %v921 = vpack.c.bf16 %v889, %v889
  %v922 = vpack.c.bf16 %v890, %v890
  %v923 = vpack.c.bf16 %v891, %v891
  %v924 = vpack.c.bf16 %v892, %v892
  %v925 = vpack.c.bf16 %v893, %v893
  %v926 = vpack.c.bf16 %v894, %v894
  %v927 = vpack.c.bf16 %v895, %v895
  %928 = vst [vmem:[%s4] sm:$0xf] %v896
  %929 = vst [vmem:[%s4 + $0x4] sm:$0xf] %v897
  %930 = vst [vmem:[%s4 + $0x8] sm:$0xf] %v898
  %931 = vst [vmem:[%s4 + $0xc] sm:$0xf] %v899
  %932 = vst [vmem:[%s4 + $0x10] sm:$0xf] %v900
  %933 = vst [vmem:[%s4 + $0x14] sm:$0xf] %v901
  %934 = vst [vmem:[%s4 + $0x18] sm:$0xf] %v902
  %935 = vst [vmem:[%s4 + $0x1c] sm:$0xf] %v903
  %936 = vst [vmem:[%s4 + $0x20] sm:$0xf] %v904
  %937 = vst [vmem:[%s4 + $0x24] sm:$0xf] %v905
  %938 = vst [vmem:[%s4 + $0x28] sm:$0xf] %v906
  %939 = vst [vmem:[%s4 + $0x2c] sm:$0xf] %v907
  %940 = vst [vmem:[%s4 + $0x30] sm:$0xf] %v908
  %941 = vst [vmem:[%s4 + $0x34] sm:$0xf] %v909
  %942 = vst [vmem:[%s4 + $0x38] sm:$0xf] %v910
  %943 = vst [vmem:[%s4 + $0x3c] sm:$0xf] %v911
  %944 = vst [vmem:[%s4 + $0x40] sm:$0xf] %v912
  %945 = vst [vmem:[%s4 + $0x44] sm:$0xf] %v913
  %946 = vst [vmem:[%s4 + $0x48] sm:$0xf] %v914
  %947 = vst [vmem:[%s4 + $0x4c] sm:$0xf] %v915
  %948 = vst [vmem:[%s4 + $0x50] sm:$0xf] %v916
  %949 = vst [vmem:[%s4 + $0x54] sm:$0xf] %v917
  %950 = vst [vmem:[%s4 + $0x58] sm:$0xf] %v918
  %951 = vst [vmem:[%s4 + $0x5c] sm:$0xf] %v919
  %952 = vst [vmem:[%s4 + $0x60] sm:$0xf] %v920
  %953 = vst [vmem:[%s4 + $0x64] sm:$0xf] %v921
  %954 = vst [vmem:[%s4 + $0x68] sm:$0xf] %v922
  %955 = vst [vmem:[%s4 + $0x6c] sm:$0xf] %v923
  %956 = vst [vmem:[%s4 + $0x70] sm:$0xf] %v924
  %957 = vst [vmem:[%s4 + $0x74] sm:$0xf] %v925
  %958 = vst [vmem:[%s4 + $0x78] sm:$0xf] %v926
  %959 = vst [vmem:[%s4 + $0x7c] sm:$0xf] %v927
  // Predicated region
  $region18: #{plm_token_encoder_forward.19} parent=0 // pred_check
    _
  $region19: #{plm_token_encoder_forward.19} parent=0 // pred_check_branch
    %961 = sbr.rel (0) target = $region21
  $region20: #{plm_token_encoder_forward.19} parent=0 // pred_region
    _
  $region21: #{plm_token_encoder_forward.19} parent=0 // pred_fallthru
    _
  // Predicated region
  $region22: #{plm_token_encoder_forward.19} parent=0 // pred_check
    _
  $region23: #{plm_token_encoder_forward.19} parent=0 // pred_check_branch
    %963 = sbr.rel (0) target = $region25
  $region24: #{plm_token_encoder_forward.19} parent=0 // pred_region
    _
  $region25: #{plm_token_encoder_forward.19} parent=0 // pred_fallthru
    _

// kernel: plm_token_encoder_forward.21
$region0: #{plm_token_encoder_forward.21}
  #allocation0 [shape = 'u32[]', space=smem, size = 0x4, offset = 0x4, fixed_abs, tag = 'smem constant byte address 0x4 - core index']
  #allocation1 [shape = 'u32[72,128]{1,0:T(1,128)}', space=vmem, size = 0x9000, scoped, tag = 'internal scratch']
  %s0 = inlined_call_operand.vmem [shape: bf16[256,256], index: 0, kind: input, shape index: {}]
  %s1 = inlined_call_operand.vmem [shape: bf16[256,128], index: 1, kind: input, shape index: {}]
  %s2 = inlined_call_operand.vmem [shape: f32[1,128], index: 2, kind: input, shape index: {}]
  %s3 = inlined_call_operand.vmem [shape: bf16[256,128], index: 3, kind: output, shape index: {}]
  %s4 = sld [smem:[#allocation0]]
  $region22: #{plm_token_encoder_forward.21} parent=0
    _
  %s6 = ssub.s32 1, %s4
  %s7 = scalar_select 0, %s6, %s4
  // Predicated region
  $region2: #{plm_token_encoder_forward.21} parent=0 // pred_check
    _
  $region3: #{plm_token_encoder_forward.21} parent=0 // pred_check_branch
    %9 = sbr.rel (0) target = $region5
  $region4: #{plm_token_encoder_forward.21} parent=0 // pred_region
    _
  $region5: #{plm_token_encoder_forward.21} parent=0 // pred_fallthru
    _
  // Predicated region
  $region6: #{plm_token_encoder_forward.21} parent=0 // pred_check
    _
  $region7: #{plm_token_encoder_forward.21} parent=0 // pred_check_branch
    %11 = sbr.rel (0) target = $region9
  $region8: #{plm_token_encoder_forward.21} parent=0 // pred_region
    _
  $region9: #{plm_token_encoder_forward.21} parent=0 // pred_fallthru
    _
  // Predicated region
  $region10: #{plm_token_encoder_forward.21} parent=0 // pred_check
    _
  $region11: #{plm_token_encoder_forward.21} parent=0 // pred_check_branch
    %13 = sbr.rel (0) target = $region13
  $region12: #{plm_token_encoder_forward.21} parent=0 // pred_region
    _
  $region13: #{plm_token_encoder_forward.21} parent=0 // pred_fallthru
    _
  %v14 = vld [vmem:[%s0] sm:$0xff]
  %v15 = vld [vmem:[%s0 + $0x8] sm:$0xff]
  %v16 = vld [vmem:[%s0 + $0x10] sm:$0xff]
  %v17 = vld [vmem:[%s0 + $0x18] sm:$0xff]
  %v18 = vld [vmem:[%s0 + $0x20] sm:$0xff]
  %v19 = vld [vmem:[%s0 + $0x28] sm:$0xff]
  %v20 = vld [vmem:[%s0 + $0x30] sm:$0xff]
  %v21 = vld [vmem:[%s0 + $0x38] sm:$0xff]
  %v22 = vld [vmem:[%s0 + $0x40] sm:$0xff]
  %v23 = vld [vmem:[%s0 + $0x48] sm:$0xff]
  %v24 = vld [vmem:[%s0 + $0x50] sm:$0xff]
  %v25 = vld [vmem:[%s0 + $0x58] sm:$0xff]
  %v26 = vld [vmem:[%s0 + $0x60] sm:$0xff]
  %v27 = vld [vmem:[%s0 + $0x68] sm:$0xff]
  %v28 = vld [vmem:[%s0 + $0x70] sm:$0xff]
  %v29 = vld [vmem:[%s0 + $0x78] sm:$0xff]
  %v30 = vld [vmem:[%s0 + $0x80] sm:$0xff]
  %v31 = vld [vmem:[%s0 + $0x88] sm:$0xff]
  %v32 = vld [vmem:[%s0 + $0x90] sm:$0xff]
  %v33 = vld [vmem:[%s0 + $0x98] sm:$0xff]
  %v34 = vld [vmem:[%s0 + $0xa0] sm:$0xff]
  %v35 = vld [vmem:[%s0 + $0xa8] sm:$0xff]
  %v36 = vld [vmem:[%s0 + $0xb0] sm:$0xff]
  %v37 = vld [vmem:[%s0 + $0xb8] sm:$0xff]
  %v38 = vld [vmem:[%s0 + $0xc0] sm:$0xff]
  %v39 = vld [vmem:[%s0 + $0xc8] sm:$0xff]
  %v40 = vld [vmem:[%s0 + $0xd0] sm:$0xff]
  %v41 = vld [vmem:[%s0 + $0xd8] sm:$0xff]
  %v42 = vld [vmem:[%s0 + $0xe0] sm:$0xff]
  %v43 = vld [vmem:[%s0 + $0xe8] sm:$0xff]
  %v44 = vld [vmem:[%s0 + $0xf0] sm:$0xff]
  %v45 = vld [vmem:[%s0 + $0xf8] sm:$0xff]
  %v46 = vld [vmem:[%s1] sm:$0xf]
  %v47 = vld [vmem:[%s1 + $0x4] sm:$0xf]
  %v48 = vld [vmem:[%s1 + $0x8] sm:$0xf]
  %v49 = vld [vmem:[%s1 + $0xc] sm:$0xf]
  %v50 = vld [vmem:[%s1 + $0x10] sm:$0xf]
  %v51 = vld [vmem:[%s1 + $0x14] sm:$0xf]
  %v52 = vld [vmem:[%s1 + $0x18] sm:$0xf]
  %v53 = vld [vmem:[%s1 + $0x1c] sm:$0xf]
  %v54 = vld [vmem:[%s1 + $0x20] sm:$0xf]
  %v55 = vld [vmem:[%s1 + $0x24] sm:$0xf]
  %v56 = vld [vmem:[%s1 + $0x28] sm:$0xf]
  %v57 = vld [vmem:[%s1 + $0x2c] sm:$0xf]
  %v58 = vld [vmem:[%s1 + $0x30] sm:$0xf]
  %v59 = vld [vmem:[%s1 + $0x34] sm:$0xf]
  %v60 = vld [vmem:[%s1 + $0x38] sm:$0xf]
  %v61 = vld [vmem:[%s1 + $0x3c] sm:$0xf]
  %v62 = vld [vmem:[%s1 + $0x40] sm:$0xf]
  %v63 = vld [vmem:[%s1 + $0x44] sm:$0xf]
  %v64 = vld [vmem:[%s1 + $0x48] sm:$0xf]
  %v65 = vld [vmem:[%s1 + $0x4c] sm:$0xf]
  %v66 = vld [vmem:[%s1 + $0x50] sm:$0xf]
  %v67 = vld [vmem:[%s1 + $0x54] sm:$0xf]
  %v68 = vld [vmem:[%s1 + $0x58] sm:$0xf]
  %v69 = vld [vmem:[%s1 + $0x5c] sm:$0xf]
  %v70 = vld [vmem:[%s1 + $0x60] sm:$0xf]
  %v71 = vld [vmem:[%s1 + $0x64] sm:$0xf]
  %v72 = vld [vmem:[%s1 + $0x68] sm:$0xf]
  %v73 = vld [vmem:[%s1 + $0x6c] sm:$0xf]
  %v74 = vld [vmem:[%s1 + $0x70] sm:$0xf]
  %v75 = vld [vmem:[%s1 + $0x74] sm:$0xf]
  %v76 = vld [vmem:[%s1 + $0x78] sm:$0xf]
  %v77 = vld [vmem:[%s1 + $0x7c] sm:$0xf]
  %v78 = vld [vmem:[%s2] sm:$0x1]
  %v80 = vperm.slane %v78, 0
  %v114 = vunpack.c.l.b16 %v14
  %v115 = vunpack.c.h.b16 %v14
  %v116 = vunpack.c.l.b16 %v15
  %v117 = vunpack.c.h.b16 %v15
  %v118 = vunpack.c.l.b16 %v16
  %v119 = vunpack.c.h.b16 %v16
  %v120 = vunpack.c.l.b16 %v17
  %v121 = vunpack.c.h.b16 %v17
  %v122 = vunpack.c.l.b16 %v18
  %v123 = vunpack.c.h.b16 %v18
  %v124 = vunpack.c.l.b16 %v19
  %v125 = vunpack.c.h.b16 %v19
  %v126 = vunpack.c.l.b16 %v20
  %v127 = vunpack.c.h.b16 %v20
  %v128 = vunpack.c.l.b16 %v21
  %v129 = vunpack.c.h.b16 %v21
  %v130 = vunpack.c.l.b16 %v22
  %v131 = vunpack.c.h.b16 %v22
  %v132 = vunpack.c.l.b16 %v23
  %v133 = vunpack.c.h.b16 %v23
  %v134 = vunpack.c.l.b16 %v24
  %v135 = vunpack.c.h.b16 %v24
  %v136 = vunpack.c.l.b16 %v25
  %v137 = vunpack.c.h.b16 %v25
  %v138 = vunpack.c.l.b16 %v26
  %v139 = vunpack.c.h.b16 %v26
  %v140 = vunpack.c.l.b16 %v27
  %v141 = vunpack.c.h.b16 %v27
  %v142 = vunpack.c.l.b16 %v28
  %v143 = vunpack.c.h.b16 %v28
  %v144 = vunpack.c.l.b16 %v29
  %v145 = vunpack.c.h.b16 %v29
  %v146 = vunpack.c.l.b16 %v30
  %v147 = vunpack.c.h.b16 %v30
  %v148 = vunpack.c.l.b16 %v31
  %v149 = vunpack.c.h.b16 %v31
  %v150 = vunpack.c.l.b16 %v32
  %v151 = vunpack.c.h.b16 %v32
  %v152 = vunpack.c.l.b16 %v33
  %v153 = vunpack.c.h.b16 %v33
  %v154 = vunpack.c.l.b16 %v34
  %v155 = vunpack.c.h.b16 %v34
  %v156 = vunpack.c.l.b16 %v35
  %v157 = vunpack.c.h.b16 %v35
  %v158 = vunpack.c.l.b16 %v36
  %v159 = vunpack.c.h.b16 %v36
  %v160 = vunpack.c.l.b16 %v37
  %v161 = vunpack.c.h.b16 %v37
  %v162 = vunpack.c.l.b16 %v38
  %v163 = vunpack.c.h.b16 %v38
  %v164 = vunpack.c.l.b16 %v39
  %v165 = vunpack.c.h.b16 %v39
  %v166 = vunpack.c.l.b16 %v40
  %v167 = vunpack.c.h.b16 %v40
  %v168 = vunpack.c.l.b16 %v41
  %v169 = vunpack.c.h.b16 %v41
  %v170 = vunpack.c.l.b16 %v42
  %v171 = vunpack.c.h.b16 %v42
  %v172 = vunpack.c.l.b16 %v43
  %v173 = vunpack.c.h.b16 %v43
  %v174 = vunpack.c.l.b16 %v44
  %v175 = vunpack.c.h.b16 %v44
  %v176 = vunpack.c.l.b16 %v45
  %v177 = vunpack.c.h.b16 %v45
  %v178 = vpack.c.b16 %v116, %v114
  %v179 = vpack.c.b16 %v117, %v115
  %v180 = vpack.c.b16 %v120, %v118
  %v181 = vpack.c.b16 %v121, %v119
  %v182 = vpack.c.b16 %v124, %v122
  %v183 = vpack.c.b16 %v125, %v123
  %v184 = vpack.c.b16 %v128, %v126
  %v185 = vpack.c.b16 %v129, %v127
  %v186 = vpack.c.b16 %v132, %v130
  %v187 = vpack.c.b16 %v133, %v131
  %v188 = vpack.c.b16 %v136, %v134
  %v189 = vpack.c.b16 %v137, %v135
  %v190 = vpack.c.b16 %v140, %v138
  %v191 = vpack.c.b16 %v141, %v139
  %v192 = vpack.c.b16 %v144, %v142
  %v193 = vpack.c.b16 %v145, %v143
  %v194 = vpack.c.b16 %v148, %v146
  %v195 = vpack.c.b16 %v149, %v147
  %v196 = vpack.c.b16 %v152, %v150
  %v197 = vpack.c.b16 %v153, %v151
  %v198 = vpack.c.b16 %v156, %v154
  %v199 = vpack.c.b16 %v157, %v155
  %v200 = vpack.c.b16 %v160, %v158
  %v201 = vpack.c.b16 %v161, %v159
  %v202 = vpack.c.b16 %v164, %v162
  %v203 = vpack.c.b16 %v165, %v163
  %v204 = vpack.c.b16 %v168, %v166
  %v205 = vpack.c.b16 %v169, %v167
  %v206 = vpack.c.b16 %v172, %v170
  %v207 = vpack.c.b16 %v173, %v171
  %v208 = vpack.c.b16 %v176, %v174
  %v209 = vpack.c.b16 %v177, %v175
  %v274 = vunpack.c.l.b16 %v46
  %v275 = vunpack.c.l.b16 %v47
  %v276 = vunpack.c.l.b16 %v48
  %v277 = vunpack.c.l.b16 %v49
  %v278 = vunpack.c.l.b16 %v50
  %v279 = vunpack.c.l.b16 %v51
  %v280 = vunpack.c.l.b16 %v52
  %v281 = vunpack.c.l.b16 %v53
  %v282 = vunpack.c.l.b16 %v54
  %v283 = vunpack.c.l.b16 %v55
  %v284 = vunpack.c.l.b16 %v56
  %v285 = vunpack.c.l.b16 %v57
  %v286 = vunpack.c.l.b16 %v58
  %v287 = vunpack.c.l.b16 %v59
  %v288 = vunpack.c.l.b16 %v60
  %v289 = vunpack.c.l.b16 %v61
  %v290 = vunpack.c.l.b16 %v62
  %v291 = vunpack.c.l.b16 %v63
  %v292 = vunpack.c.l.b16 %v64
  %v293 = vunpack.c.l.b16 %v65
  %v294 = vunpack.c.l.b16 %v66
  %v295 = vunpack.c.l.b16 %v67
  %v296 = vunpack.c.l.b16 %v68
  %v297 = vunpack.c.l.b16 %v69
  %v298 = vunpack.c.l.b16 %v70
  %v299 = vunpack.c.l.b16 %v71
  %v300 = vunpack.c.l.b16 %v72
  %v301 = vunpack.c.l.b16 %v73
  %v302 = vunpack.c.l.b16 %v74
  %v303 = vunpack.c.l.b16 %v75
  %v304 = vunpack.c.l.b16 %v76
  %v305 = vunpack.c.l.b16 %v77
  %v306 = vpack.c.b16 %v275, %v274
  %v307 = vpack.c.b16 %v277, %v276
  %v308 = vpack.c.b16 %v279, %v278
  %v309 = vpack.c.b16 %v281, %v280
  %v310 = vpack.c.b16 %v283, %v282
  %v311 = vpack.c.b16 %v285, %v284
  %v312 = vpack.c.b16 %v287, %v286
  %v313 = vpack.c.b16 %v289, %v288
  %v314 = vpack.c.b16 %v291, %v290
  %v315 = vpack.c.b16 %v293, %v292
  %v316 = vpack.c.b16 %v295, %v294
  %v317 = vpack.c.b16 %v297, %v296
  %v318 = vpack.c.b16 %v299, %v298
  %v319 = vpack.c.b16 %v301, %v300
  %v320 = vpack.c.b16 %v303, %v302
  %v321 = vpack.c.b16 %v305, %v304
  %338 = vmatpush.bf16.msra.mxu0 %v313
  %339 = vmatpush.bf16.msra.mxu0 %v312
  %340 = vmatpush.bf16.msra.mxu0 %v311
  %341 = vmatpush.bf16.msra.mxu0 %v310
  %342 = vmatpush.bf16.msra.mxu0 %v309
  %343 = vmatpush.bf16.msra.mxu0 %v308
  %344 = vmatpush.bf16.msra.mxu0 %v307
  %345 = vmatpush.bf16.msra.mxu0 %v306
  %346 = vmatmul.bf16.gmra.mxu0 %v178
  %v347 = vpop.f32.mrf.mxu0
  %v348 = vadd.f32 %v80, %v347
  %v349 = vpop.f32.mrf.mxu0
  %v350 = vadd.f32 %v80, %v349
  %351 = vmatmul.bf16.gmra.mxu0 %v180
  %v352 = vpop.f32.mrf.mxu0
  %v353 = vadd.f32 %v80, %v352
  %v354 = vpop.f32.mrf.mxu0
  %v355 = vadd.f32 %v80, %v354
  %356 = vmatmul.bf16.gmra.mxu0 %v182
  %v357 = vpop.f32.mrf.mxu0
  %v358 = vadd.f32 %v80, %v357
  %v359 = vpop.f32.mrf.mxu0
  %v360 = vadd.f32 %v80, %v359
  %361 = vmatmul.bf16.gmra.mxu0 %v184
  %v362 = vpop.f32.mrf.mxu0
  %v363 = vadd.f32 %v80, %v362
  %v364 = vpop.f32.mrf.mxu0
  %v365 = vadd.f32 %v80, %v364
  %366 = vmatmul.bf16.gmra.mxu0 %v186
  %v367 = vpop.f32.mrf.mxu0
  %v368 = vadd.f32 %v80, %v367
  %v369 = vpop.f32.mrf.mxu0
  %v370 = vadd.f32 %v80, %v369
  %371 = vmatmul.bf16.gmra.mxu0 %v188
  %v372 = vpop.f32.mrf.mxu0
  %v373 = vadd.f32 %v80, %v372
  %v374 = vpop.f32.mrf.mxu0
  %v375 = vadd.f32 %v80, %v374
  %376 = vmatmul.bf16.gmra.mxu0 %v190
  %v377 = vpop.f32.mrf.mxu0
  %v378 = vadd.f32 %v80, %v377
  %v379 = vpop.f32.mrf.mxu0
  %v380 = vadd.f32 %v80, %v379
  %381 = vmatmul.bf16.gmra.mxu0 %v192
  %v382 = vpop.f32.mrf.mxu0
  %v383 = vadd.f32 %v80, %v382
  %v384 = vpop.f32.mrf.mxu0
  %v385 = vadd.f32 %v80, %v384
  %386 = vmatmul.bf16.gmra.mxu0 %v194
  %v387 = vpop.f32.mrf.mxu0
  %v388 = vadd.f32 %v80, %v387
  %v389 = vpop.f32.mrf.mxu0
  %v390 = vadd.f32 %v80, %v389
  %391 = vmatmul.bf16.gmra.mxu0 %v196
  %v392 = vpop.f32.mrf.mxu0
  %v393 = vadd.f32 %v80, %v392
  %v394 = vpop.f32.mrf.mxu0
  %v395 = vadd.f32 %v80, %v394
  %396 = vmatmul.bf16.gmra.mxu0 %v198
  %v397 = vpop.f32.mrf.mxu0
  %v398 = vadd.f32 %v80, %v397
  %v399 = vpop.f32.mrf.mxu0
  %v400 = vadd.f32 %v80, %v399
  %401 = vmatmul.bf16.gmra.mxu0 %v200
  %v402 = vpop.f32.mrf.mxu0
  %v403 = vadd.f32 %v80, %v402
  %v404 = vpop.f32.mrf.mxu0
  %v405 = vadd.f32 %v80, %v404
  %406 = vmatmul.bf16.gmra.mxu0 %v202
  %v407 = vpop.f32.mrf.mxu0
  %v408 = vadd.f32 %v80, %v407
  %v409 = vpop.f32.mrf.mxu0
  %v410 = vadd.f32 %v80, %v409
  %411 = vmatmul.bf16.gmra.mxu0 %v204
  %v412 = vpop.f32.mrf.mxu0
  %v413 = vadd.f32 %v80, %v412
  %v414 = vpop.f32.mrf.mxu0
  %v415 = vadd.f32 %v80, %v414
  %416 = vmatmul.bf16.gmra.mxu0 %v206
  %v417 = vpop.f32.mrf.mxu0
  %v418 = vadd.f32 %v80, %v417
  %v419 = vpop.f32.mrf.mxu0
  %v420 = vadd.f32 %v80, %v419
  %421 = vmatmul.bf16.gmra.mxu0 %v208
  %v422 = vpop.f32.mrf.mxu0
  %v423 = vadd.f32 %v80, %v422
  %v424 = vpop.f32.mrf.mxu0
  %v425 = vadd.f32 %v80, %v424
  %426 = vdwg.mxu0
  %427 = vmatpush.bf16.msra.mxu0 %v321
  %428 = vmatpush.bf16.msra.mxu0 %v320
  %429 = vmatpush.bf16.msra.mxu0 %v319
  %430 = vmatpush.bf16.msra.mxu0 %v318
  %431 = vmatpush.bf16.msra.mxu0 %v317
  %432 = vmatpush.bf16.msra.mxu0 %v316
  %433 = vmatpush.bf16.msra.mxu0 %v315
  %434 = vmatpush.bf16.msra.mxu0 %v314
  %435 = vmatmul.bf16.gmra.mxu0 %v179
  %v436 = vpop.f32.mrf.mxu0
  %v437 = vadd.f32 %v348, %v436
  %v438 = vpop.f32.mrf.mxu0
  %v439 = vadd.f32 %v350, %v438
  %440 = vmatmul.bf16.gmra.mxu0 %v181
  %v441 = vpop.f32.mrf.mxu0
  %v442 = vadd.f32 %v353, %v441
  %v443 = vpop.f32.mrf.mxu0
  %v444 = vadd.f32 %v355, %v443
  %445 = vmatmul.bf16.gmra.mxu0 %v183
  %v446 = vpop.f32.mrf.mxu0
  %v447 = vadd.f32 %v358, %v446
  %v448 = vpop.f32.mrf.mxu0
  %v449 = vadd.f32 %v360, %v448
  %450 = vmatmul.bf16.gmra.mxu0 %v185
  %v451 = vpop.f32.mrf.mxu0
  %v452 = vadd.f32 %v363, %v451
  %v453 = vpop.f32.mrf.mxu0
  %v454 = vadd.f32 %v365, %v453
  %455 = vmatmul.bf16.gmra.mxu0 %v187
  %v456 = vpop.f32.mrf.mxu0
  %v457 = vadd.f32 %v368, %v456
  %v458 = vpop.f32.mrf.mxu0
  %v459 = vadd.f32 %v370, %v458
  %460 = vmatmul.bf16.gmra.mxu0 %v189
  %v461 = vpop.f32.mrf.mxu0
  %v462 = vadd.f32 %v373, %v461
  %v463 = vpop.f32.mrf.mxu0
  %v464 = vadd.f32 %v375, %v463
  %465 = vmatmul.bf16.gmra.mxu0 %v191
  %v466 = vpop.f32.mrf.mxu0
  %v467 = vadd.f32 %v378, %v466
  %v468 = vpop.f32.mrf.mxu0
  %v469 = vadd.f32 %v380, %v468
  %470 = vmatmul.bf16.gmra.mxu0 %v193
  %v471 = vpop.f32.mrf.mxu0
  %v472 = vadd.f32 %v383, %v471
  %v473 = vpop.f32.mrf.mxu0
  %v474 = vadd.f32 %v385, %v473
  %475 = vmatmul.bf16.gmra.mxu0 %v195
  %v476 = vpop.f32.mrf.mxu0
  %v477 = vadd.f32 %v388, %v476
  %v478 = vpop.f32.mrf.mxu0
  %v479 = vadd.f32 %v390, %v478
  %480 = vmatmul.bf16.gmra.mxu0 %v197
  %v481 = vpop.f32.mrf.mxu0
  %v482 = vadd.f32 %v393, %v481
  %v483 = vpop.f32.mrf.mxu0
  %v484 = vadd.f32 %v395, %v483
  %485 = vmatmul.bf16.gmra.mxu0 %v199
  %v486 = vpop.f32.mrf.mxu0
  %v487 = vadd.f32 %v398, %v486
  %v488 = vpop.f32.mrf.mxu0
  %v489 = vadd.f32 %v400, %v488
  %490 = vmatmul.bf16.gmra.mxu0 %v201
  %v491 = vpop.f32.mrf.mxu0
  %v492 = vadd.f32 %v403, %v491
  %v493 = vpop.f32.mrf.mxu0
  %v494 = vadd.f32 %v405, %v493
  %495 = vmatmul.bf16.gmra.mxu0 %v203
  %v496 = vpop.f32.mrf.mxu0
  %v497 = vadd.f32 %v408, %v496
  %v498 = vpop.f32.mrf.mxu0
  %v499 = vadd.f32 %v410, %v498
  %500 = vmatmul.bf16.gmra.mxu0 %v205
  %v501 = vpop.f32.mrf.mxu0
  %v502 = vadd.f32 %v413, %v501
  %v503 = vpop.f32.mrf.mxu0
  %v504 = vadd.f32 %v415, %v503
  %505 = vmatmul.bf16.gmra.mxu0 %v207
  %v506 = vpop.f32.mrf.mxu0
  %v507 = vadd.f32 %v418, %v506
  %v508 = vpop.f32.mrf.mxu0
  %v509 = vadd.f32 %v420, %v508
  %510 = vmatmul.bf16.gmra.mxu0 %v209
  %v511 = vpop.f32.mrf.mxu0
  %v512 = vadd.f32 %v423, %v511
  %v513 = vpop.f32.mrf.mxu0
  %v514 = vadd.f32 %v425, %v513
  %515 = vdwg.mxu0
  %v516 = vpack.c.bf16 %v437, %v437
  %v517 = vpack.c.bf16 %v439, %v439
  %v518 = vpack.c.bf16 %v442, %v442
  %v519 = vpack.c.bf16 %v444, %v444
  %v520 = vpack.c.bf16 %v447, %v447
  %v521 = vpack.c.bf16 %v449, %v449
  %v522 = vpack.c.bf16 %v452, %v452
  %v523 = vpack.c.bf16 %v454, %v454
  %v524 = vpack.c.bf16 %v457, %v457
  %v525 = vpack.c.bf16 %v459, %v459
  %v526 = vpack.c.bf16 %v462, %v462
  %v527 = vpack.c.bf16 %v464, %v464
  %v528 = vpack.c.bf16 %v467, %v467
  %v529 = vpack.c.bf16 %v469, %v469
  %v530 = vpack.c.bf16 %v472, %v472
  %v531 = vpack.c.bf16 %v474, %v474
  %v532 = vpack.c.bf16 %v477, %v477
  %v533 = vpack.c.bf16 %v479, %v479
  %v534 = vpack.c.bf16 %v482, %v482
  %v535 = vpack.c.bf16 %v484, %v484
  %v536 = vpack.c.bf16 %v487, %v487
  %v537 = vpack.c.bf16 %v489, %v489
  %v538 = vpack.c.bf16 %v492, %v492
  %v539 = vpack.c.bf16 %v494, %v494
  %v540 = vpack.c.bf16 %v497, %v497
  %v541 = vpack.c.bf16 %v499, %v499
  %v542 = vpack.c.bf16 %v502, %v502
  %v543 = vpack.c.bf16 %v504, %v504
  %v544 = vpack.c.bf16 %v507, %v507
  %v545 = vpack.c.bf16 %v509, %v509
  %v546 = vpack.c.bf16 %v512, %v512
  %v547 = vpack.c.bf16 %v514, %v514
  %548 = vst [vmem:[%s3] sm:$0xf] %v516
  %549 = vst [vmem:[%s3 + $0x4] sm:$0xf] %v517
  %550 = vst [vmem:[%s3 + $0x8] sm:$0xf] %v518
  %551 = vst [vmem:[%s3 + $0xc] sm:$0xf] %v519
  %552 = vst [vmem:[%s3 + $0x10] sm:$0xf] %v520
  %553 = vst [vmem:[%s3 + $0x14] sm:$0xf] %v521
  %554 = vst [vmem:[%s3 + $0x18] sm:$0xf] %v522
  %555 = vst [vmem:[%s3 + $0x1c] sm:$0xf] %v523
  %556 = vst [vmem:[%s3 + $0x20] sm:$0xf] %v524
  %557 = vst [vmem:[%s3 + $0x24] sm:$0xf] %v525
  %558 = vst [vmem:[%s3 + $0x28] sm:$0xf] %v526
  %559 = vst [vmem:[%s3 + $0x2c] sm:$0xf] %v527
  %560 = vst [vmem:[%s3 + $0x30] sm:$0xf] %v528
  %561 = vst [vmem:[%s3 + $0x34] sm:$0xf] %v529
  %562 = vst [vmem:[%s3 + $0x38] sm:$0xf] %v530
  %563 = vst [vmem:[%s3 + $0x3c] sm:$0xf] %v531
  %564 = vst [vmem:[%s3 + $0x40] sm:$0xf] %v532
  %565 = vst [vmem:[%s3 + $0x44] sm:$0xf] %v533
  %566 = vst [vmem:[%s3 + $0x48] sm:$0xf] %v534
  %567 = vst [vmem:[%s3 + $0x4c] sm:$0xf] %v535
  %568 = vst [vmem:[%s3 + $0x50] sm:$0xf] %v536
  %569 = vst [vmem:[%s3 + $0x54] sm:$0xf] %v537
  %570 = vst [vmem:[%s3 + $0x58] sm:$0xf] %v538
  %571 = vst [vmem:[%s3 + $0x5c] sm:$0xf] %v539
  %572 = vst [vmem:[%s3 + $0x60] sm:$0xf] %v540
  %573 = vst [vmem:[%s3 + $0x64] sm:$0xf] %v541
  %574 = vst [vmem:[%s3 + $0x68] sm:$0xf] %v542
  %575 = vst [vmem:[%s3 + $0x6c] sm:$0xf] %v543
  %576 = vst [vmem:[%s3 + $0x70] sm:$0xf] %v544
  %577 = vst [vmem:[%s3 + $0x74] sm:$0xf] %v545
  %578 = vst [vmem:[%s3 + $0x78] sm:$0xf] %v546
  %579 = vst [vmem:[%s3 + $0x7c] sm:$0xf] %v547
  // Predicated region
  $region14: #{plm_token_encoder_forward.21} parent=0 // pred_check
    _
  $region15: #{plm_token_encoder_forward.21} parent=0 // pred_check_branch
    %581 = sbr.rel (0) target = $region17
  $region16: #{plm_token_encoder_forward.21} parent=0 // pred_region
    _
  $region17: #{plm_token_encoder_forward.21} parent=0 // pred_fallthru
    _
  // Predicated region
  $region18: #{plm_token_encoder_forward.21} parent=0 // pred_check
    _
  $region19: #{plm_token_encoder_forward.21} parent=0 // pred_check_branch
    %583 = sbr.rel (0) target = $region21
  $region20: #{plm_token_encoder_forward.21} parent=0 // pred_region
    _
  $region21: #{plm_token_encoder_forward.21} parent=0 // pred_fallthru
    _

// kernel: plm_token_encoder_forward.20
$region0: #{plm_token_encoder_forward.20}
  #allocation0 [shape = 'u32[]', space=smem, size = 0x4, offset = 0x4, fixed_abs, tag = 'smem constant byte address 0x4 - core index']
  #allocation1 [shape = 'u32[72,128]{1,0:T(1,128)}', space=vmem, size = 0x9000, scoped, tag = 'internal scratch']
  %s0 = inlined_call_operand.vmem [shape: bf16[256,128], index: 0, kind: input, shape index: {}]
  %s1 = inlined_call_operand.vmem [shape: bf16[128,256], index: 1, kind: input, shape index: {}]
  %s2 = inlined_call_operand.vmem [shape: f32[1,256], index: 2, kind: input, shape index: {}]
  %s3 = inlined_call_operand.vmem [shape: bf16[256,256], index: 3, kind: output, shape index: {}]
  %s4 = sld [smem:[#allocation0]]
  $region22: #{plm_token_encoder_forward.20} parent=0
    _
  %s6 = ssub.s32 1, %s4
  %s7 = scalar_select 0, %s6, %s4
  // Predicated region
  $region2: #{plm_token_encoder_forward.20} parent=0 // pred_check
    _
  $region3: #{plm_token_encoder_forward.20} parent=0 // pred_check_branch
    %9 = sbr.rel (0) target = $region5
  $region4: #{plm_token_encoder_forward.20} parent=0 // pred_region
    _
  $region5: #{plm_token_encoder_forward.20} parent=0 // pred_fallthru
    _
  // Predicated region
  $region6: #{plm_token_encoder_forward.20} parent=0 // pred_check
    _
  $region7: #{plm_token_encoder_forward.20} parent=0 // pred_check_branch
    %11 = sbr.rel (0) target = $region9
  $region8: #{plm_token_encoder_forward.20} parent=0 // pred_region
    _
  $region9: #{plm_token_encoder_forward.20} parent=0 // pred_fallthru
    _
  // Predicated region
  $region10: #{plm_token_encoder_forward.20} parent=0 // pred_check
    _
  $region11: #{plm_token_encoder_forward.20} parent=0 // pred_check_branch
    %13 = sbr.rel (0) target = $region13
  $region12: #{plm_token_encoder_forward.20} parent=0 // pred_region
    _
  $region13: #{plm_token_encoder_forward.20} parent=0 // pred_fallthru
    _
  %v14 = vld [vmem:[%s0] sm:$0xf]
  %v15 = vld [vmem:[%s0 + $0x4] sm:$0xf]
  %v16 = vld [vmem:[%s0 + $0x8] sm:$0xf]
  %v17 = vld [vmem:[%s0 + $0xc] sm:$0xf]
  %v18 = vld [vmem:[%s0 + $0x10] sm:$0xf]
  %v19 = vld [vmem:[%s0 + $0x14] sm:$0xf]
  %v20 = vld [vmem:[%s0 + $0x18] sm:$0xf]
  %v21 = vld [vmem:[%s0 + $0x1c] sm:$0xf]
  %v22 = vld [vmem:[%s0 + $0x20] sm:$0xf]
  %v23 = vld [vmem:[%s0 + $0x24] sm:$0xf]
  %v24 = vld [vmem:[%s0 + $0x28] sm:$0xf]
  %v25 = vld [vmem:[%s0 + $0x2c] sm:$0xf]
  %v26 = vld [vmem:[%s0 + $0x30] sm:$0xf]
  %v27 = vld [vmem:[%s0 + $0x34] sm:$0xf]
  %v28 = vld [vmem:[%s0 + $0x38] sm:$0xf]
  %v29 = vld [vmem:[%s0 + $0x3c] sm:$0xf]
  %v30 = vld [vmem:[%s0 + $0x40] sm:$0xf]
  %v31 = vld [vmem:[%s0 + $0x44] sm:$0xf]
  %v32 = vld [vmem:[%s0 + $0x48] sm:$0xf]
  %v33 = vld [vmem:[%s0 + $0x4c] sm:$0xf]
  %v34 = vld [vmem:[%s0 + $0x50] sm:$0xf]
  %v35 = vld [vmem:[%s0 + $0x54] sm:$0xf]
  %v36 = vld [vmem:[%s0 + $0x58] sm:$0xf]
  %v37 = vld [vmem:[%s0 + $0x5c] sm:$0xf]
  %v38 = vld [vmem:[%s0 + $0x60] sm:$0xf]
  %v39 = vld [vmem:[%s0 + $0x64] sm:$0xf]
  %v40 = vld [vmem:[%s0 + $0x68] sm:$0xf]
  %v41 = vld [vmem:[%s0 + $0x6c] sm:$0xf]
  %v42 = vld [vmem:[%s0 + $0x70] sm:$0xf]
  %v43 = vld [vmem:[%s0 + $0x74] sm:$0xf]
  %v44 = vld [vmem:[%s0 + $0x78] sm:$0xf]
  %v45 = vld [vmem:[%s0 + $0x7c] sm:$0xf]
  %v46 = vld [vmem:[%s1] sm:$0xff]
  %v47 = vld [vmem:[%s1 + $0x8] sm:$0xff]
  %v48 = vld [vmem:[%s1 + $0x10] sm:$0xff]
  %v49 = vld [vmem:[%s1 + $0x18] sm:$0xff]
  %v50 = vld [vmem:[%s1 + $0x20] sm:$0xff]
  %v51 = vld [vmem:[%s1 + $0x28] sm:$0xff]
  %v52 = vld [vmem:[%s1 + $0x30] sm:$0xff]
  %v53 = vld [vmem:[%s1 + $0x38] sm:$0xff]
  %v54 = vld [vmem:[%s1 + $0x40] sm:$0xff]
  %v55 = vld [vmem:[%s1 + $0x48] sm:$0xff]
  %v56 = vld [vmem:[%s1 + $0x50] sm:$0xff]
  %v57 = vld [vmem:[%s1 + $0x58] sm:$0xff]
  %v58 = vld [vmem:[%s1 + $0x60] sm:$0xff]
  %v59 = vld [vmem:[%s1 + $0x68] sm:$0xff]
  %v60 = vld [vmem:[%s1 + $0x70] sm:$0xff]
  %v61 = vld [vmem:[%s1 + $0x78] sm:$0xff]
  %v62 = vld [vmem:[%s2] sm:$0x3]
  %v64 = vperm.slane %v62, 0
  %v65 = vperm.slane %v62, 1
  %v100 = vunpack.c.l.b16 %v14
  %v101 = vunpack.c.l.b16 %v15
  %v102 = vunpack.c.l.b16 %v16
  %v103 = vunpack.c.l.b16 %v17
  %v104 = vunpack.c.l.b16 %v18
  %v105 = vunpack.c.l.b16 %v19
  %v106 = vunpack.c.l.b16 %v20
  %v107 = vunpack.c.l.b16 %v21
  %v108 = vunpack.c.l.b16 %v22
  %v109 = vunpack.c.l.b16 %v23
  %v110 = vunpack.c.l.b16 %v24
  %v111 = vunpack.c.l.b16 %v25
  %v112 = vunpack.c.l.b16 %v26
  %v113 = vunpack.c.l.b16 %v27
  %v114 = vunpack.c.l.b16 %v28
  %v115 = vunpack.c.l.b16 %v29
  %v116 = vunpack.c.l.b16 %v30
  %v117 = vunpack.c.l.b16 %v31
  %v118 = vunpack.c.l.b16 %v32
  %v119 = vunpack.c.l.b16 %v33
  %v120 = vunpack.c.l.b16 %v34
  %v121 = vunpack.c.l.b16 %v35
  %v122 = vunpack.c.l.b16 %v36
  %v123 = vunpack.c.l.b16 %v37
  %v124 = vunpack.c.l.b16 %v38
  %v125 = vunpack.c.l.b16 %v39
  %v126 = vunpack.c.l.b16 %v40
  %v127 = vunpack.c.l.b16 %v41
  %v128 = vunpack.c.l.b16 %v42
  %v129 = vunpack.c.l.b16 %v43
  %v130 = vunpack.c.l.b16 %v44
  %v131 = vunpack.c.l.b16 %v45
  %v132 = vpack.c.b16 %v101, %v100
  %v133 = vpack.c.b16 %v103, %v102
  %v134 = vpack.c.b16 %v105, %v104
  %v135 = vpack.c.b16 %v107, %v106
  %v136 = vpack.c.b16 %v109, %v108
  %v137 = vpack.c.b16 %v111, %v110
  %v138 = vpack.c.b16 %v113, %v112
  %v139 = vpack.c.b16 %v115, %v114
  %v140 = vpack.c.b16 %v117, %v116
  %v141 = vpack.c.b16 %v119, %v118
  %v142 = vpack.c.b16 %v121, %v120
  %v143 = vpack.c.b16 %v123, %v122
  %v144 = vpack.c.b16 %v125, %v124
  %v145 = vpack.c.b16 %v127, %v126
  %v146 = vpack.c.b16 %v129, %v128
  %v147 = vpack.c.b16 %v131, %v130
  %v180 = vunpack.c.l.b16 %v46
  %v181 = vunpack.c.h.b16 %v46
  %v182 = vunpack.c.l.b16 %v47
  %v183 = vunpack.c.h.b16 %v47
  %v184 = vunpack.c.l.b16 %v48
  %v185 = vunpack.c.h.b16 %v48
  %v186 = vunpack.c.l.b16 %v49
  %v187 = vunpack.c.h.b16 %v49
  %v188 = vunpack.c.l.b16 %v50
  %v189 = vunpack.c.h.b16 %v50
  %v190 = vunpack.c.l.b16 %v51
  %v191 = vunpack.c.h.b16 %v51
  %v192 = vunpack.c.l.b16 %v52
  %v193 = vunpack.c.h.b16 %v52
  %v194 = vunpack.c.l.b16 %v53
  %v195 = vunpack.c.h.b16 %v53
  %v196 = vunpack.c.l.b16 %v54
  %v197 = vunpack.c.h.b16 %v54
  %v198 = vunpack.c.l.b16 %v55
  %v199 = vunpack.c.h.b16 %v55
  %v200 = vunpack.c.l.b16 %v56
  %v201 = vunpack.c.h.b16 %v56
  %v202 = vunpack.c.l.b16 %v57
  %v203 = vunpack.c.h.b16 %v57
  %v204 = vunpack.c.l.b16 %v58
  %v205 = vunpack.c.h.b16 %v58
  %v206 = vunpack.c.l.b16 %v59
  %v207 = vunpack.c.h.b16 %v59
  %v208 = vunpack.c.l.b16 %v60
  %v209 = vunpack.c.h.b16 %v60
  %v210 = vunpack.c.l.b16 %v61
  %v211 = vunpack.c.h.b16 %v61
  %v212 = vpack.c.b16 %v182, %v180
  %v213 = vpack.c.b16 %v183, %v181
  %v214 = vpack.c.b16 %v186, %v184
  %v215 = vpack.c.b16 %v187, %v185
  %v216 = vpack.c.b16 %v190, %v188
  %v217 = vpack.c.b16 %v191, %v189
  %v218 = vpack.c.b16 %v194, %v192
  %v219 = vpack.c.b16 %v195, %v193
  %v220 = vpack.c.b16 %v198, %v196
  %v221 = vpack.c.b16 %v199, %v197
  %v222 = vpack.c.b16 %v202, %v200
  %v223 = vpack.c.b16 %v203, %v201
  %v224 = vpack.c.b16 %v206, %v204
  %v225 = vpack.c.b16 %v207, %v205
  %v226 = vpack.c.b16 %v210, %v208
  %v227 = vpack.c.b16 %v211, %v209
  %244 = vmatpush.bf16.msra.mxu0 %v226
  %245 = vmatpush.bf16.msra.mxu0 %v224
  %246 = vmatpush.bf16.msra.mxu0 %v222
  %247 = vmatpush.bf16.msra.mxu0 %v220
  %248 = vmatpush.bf16.msra.mxu0 %v218
  %249 = vmatpush.bf16.msra.mxu0 %v216
  %250 = vmatpush.bf16.msra.mxu0 %v214
  %251 = vmatpush.bf16.msra.mxu0 %v212
  %252 = vmatmul.bf16.gmra.mxu0 %v132
  %v253 = vpop.f32.mrf.mxu0
  %v254 = vadd.f32 %v64, %v253
  %v255 = vpop.f32.mrf.mxu0
  %v256 = vadd.f32 %v64, %v255
  %257 = vmatmul.bf16.gmra.mxu0 %v133
  %v258 = vpop.f32.mrf.mxu0
  %v259 = vadd.f32 %v64, %v258
  %v260 = vpop.f32.mrf.mxu0
  %v261 = vadd.f32 %v64, %v260
  %262 = vmatmul.bf16.gmra.mxu0 %v134
  %v263 = vpop.f32.mrf.mxu0
  %v264 = vadd.f32 %v64, %v263
  %v265 = vpop.f32.mrf.mxu0
  %v266 = vadd.f32 %v64, %v265
  %267 = vmatmul.bf16.gmra.mxu0 %v135
  %v268 = vpop.f32.mrf.mxu0
  %v269 = vadd.f32 %v64, %v268
  %v270 = vpop.f32.mrf.mxu0
  %v271 = vadd.f32 %v64, %v270
  %272 = vmatmul.bf16.gmra.mxu0 %v136
  %v273 = vpop.f32.mrf.mxu0
  %v274 = vadd.f32 %v64, %v273
  %v275 = vpop.f32.mrf.mxu0
  %v276 = vadd.f32 %v64, %v275
  %277 = vmatmul.bf16.gmra.mxu0 %v137
  %v278 = vpop.f32.mrf.mxu0
  %v279 = vadd.f32 %v64, %v278
  %v280 = vpop.f32.mrf.mxu0
  %v281 = vadd.f32 %v64, %v280
  %282 = vmatmul.bf16.gmra.mxu0 %v138
  %v283 = vpop.f32.mrf.mxu0
  %v284 = vadd.f32 %v64, %v283
  %v285 = vpop.f32.mrf.mxu0
  %v286 = vadd.f32 %v64, %v285
  %287 = vmatmul.bf16.gmra.mxu0 %v139
  %v288 = vpop.f32.mrf.mxu0
  %v289 = vadd.f32 %v64, %v288
  %v290 = vpop.f32.mrf.mxu0
  %v291 = vadd.f32 %v64, %v290
  %292 = vmatmul.bf16.gmra.mxu0 %v140
  %v293 = vpop.f32.mrf.mxu0
  %v294 = vadd.f32 %v64, %v293
  %v295 = vpop.f32.mrf.mxu0
  %v296 = vadd.f32 %v64, %v295
  %297 = vmatmul.bf16.gmra.mxu0 %v141
  %v298 = vpop.f32.mrf.mxu0
  %v299 = vadd.f32 %v64, %v298
  %v300 = vpop.f32.mrf.mxu0
  %v301 = vadd.f32 %v64, %v300
  %302 = vmatmul.bf16.gmra.mxu0 %v142
  %v303 = vpop.f32.mrf.mxu0
  %v304 = vadd.f32 %v64, %v303
  %v305 = vpop.f32.mrf.mxu0
  %v306 = vadd.f32 %v64, %v305
  %307 = vmatmul.bf16.gmra.mxu0 %v143
  %v308 = vpop.f32.mrf.mxu0
  %v309 = vadd.f32 %v64, %v308
  %v310 = vpop.f32.mrf.mxu0
  %v311 = vadd.f32 %v64, %v310
  %312 = vmatmul.bf16.gmra.mxu0 %v144
  %v313 = vpop.f32.mrf.mxu0
  %v314 = vadd.f32 %v64, %v313
  %v315 = vpop.f32.mrf.mxu0
  %v316 = vadd.f32 %v64, %v315
  %317 = vmatmul.bf16.gmra.mxu0 %v145
  %v318 = vpop.f32.mrf.mxu0
  %v319 = vadd.f32 %v64, %v318
  %v320 = vpop.f32.mrf.mxu0
  %v321 = vadd.f32 %v64, %v320
  %322 = vmatmul.bf16.gmra.mxu0 %v146
  %v323 = vpop.f32.mrf.mxu0
  %v324 = vadd.f32 %v64, %v323
  %v325 = vpop.f32.mrf.mxu0
  %v326 = vadd.f32 %v64, %v325
  %327 = vmatmul.bf16.gmra.mxu0 %v147
  %v328 = vpop.f32.mrf.mxu0
  %v329 = vadd.f32 %v64, %v328
  %v330 = vpop.f32.mrf.mxu0
  %v331 = vadd.f32 %v64, %v330
  %332 = vdwg.mxu0
  %333 = vmatpush.bf16.msra.mxu0 %v227
  %334 = vmatpush.bf16.msra.mxu0 %v225
  %335 = vmatpush.bf16.msra.mxu0 %v223
  %336 = vmatpush.bf16.msra.mxu0 %v221
  %337 = vmatpush.bf16.msra.mxu0 %v219
  %338 = vmatpush.bf16.msra.mxu0 %v217
  %339 = vmatpush.bf16.msra.mxu0 %v215
  %340 = vmatpush.bf16.msra.mxu0 %v213
  %341 = vmatmul.bf16.gmra.mxu0 %v132
  %v342 = vpop.f32.mrf.mxu0
  %v343 = vadd.f32 %v65, %v342
  %v344 = vpop.f32.mrf.mxu0
  %v345 = vadd.f32 %v65, %v344
  %346 = vmatmul.bf16.gmra.mxu0 %v133
  %v347 = vpop.f32.mrf.mxu0
  %v348 = vadd.f32 %v65, %v347
  %v349 = vpop.f32.mrf.mxu0
  %v350 = vadd.f32 %v65, %v349
  %351 = vmatmul.bf16.gmra.mxu0 %v134
  %v352 = vpop.f32.mrf.mxu0
  %v353 = vadd.f32 %v65, %v352
  %v354 = vpop.f32.mrf.mxu0
  %v355 = vadd.f32 %v65, %v354
  %356 = vmatmul.bf16.gmra.mxu0 %v135
  %v357 = vpop.f32.mrf.mxu0
  %v358 = vadd.f32 %v65, %v357
  %v359 = vpop.f32.mrf.mxu0
  %v360 = vadd.f32 %v65, %v359
  %361 = vmatmul.bf16.gmra.mxu0 %v136
  %v362 = vpop.f32.mrf.mxu0
  %v363 = vadd.f32 %v65, %v362
  %v364 = vpop.f32.mrf.mxu0
  %v365 = vadd.f32 %v65, %v364
  %366 = vmatmul.bf16.gmra.mxu0 %v137
  %v367 = vpop.f32.mrf.mxu0
  %v368 = vadd.f32 %v65, %v367
  %v369 = vpop.f32.mrf.mxu0
  %v370 = vadd.f32 %v65, %v369
  %371 = vmatmul.bf16.gmra.mxu0 %v138
  %v372 = vpop.f32.mrf.mxu0
  %v373 = vadd.f32 %v65, %v372
  %v374 = vpop.f32.mrf.mxu0
  %v375 = vadd.f32 %v65, %v374
  %376 = vmatmul.bf16.gmra.mxu0 %v139
  %v377 = vpop.f32.mrf.mxu0
  %v378 = vadd.f32 %v65, %v377
  %v379 = vpop.f32.mrf.mxu0
  %v380 = vadd.f32 %v65, %v379
  %381 = vmatmul.bf16.gmra.mxu0 %v140
  %v382 = vpop.f32.mrf.mxu0
  %v383 = vadd.f32 %v65, %v382
  %v384 = vpop.f32.mrf.mxu0
  %v385 = vadd.f32 %v65, %v384
  %386 = vmatmul.bf16.gmra.mxu0 %v141
  %v387 = vpop.f32.mrf.mxu0
  %v388 = vadd.f32 %v65, %v387
  %v389 = vpop.f32.mrf.mxu0
  %v390 = vadd.f32 %v65, %v389
  %391 = vmatmul.bf16.gmra.mxu0 %v142
  %v392 = vpop.f32.mrf.mxu0
  %v393 = vadd.f32 %v65, %v392
  %v394 = vpop.f32.mrf.mxu0
  %v395 = vadd.f32 %v65, %v394
  %396 = vmatmul.bf16.gmra.mxu0 %v143
  %v397 = vpop.f32.mrf.mxu0
  %v398 = vadd.f32 %v65, %v397
  %v399 = vpop.f32.mrf.mxu0
  %v400 = vadd.f32 %v65, %v399
  %401 = vmatmul.bf16.gmra.mxu0 %v144
  %v402 = vpop.f32.mrf.mxu0
  %v403 = vadd.f32 %v65, %v402
  %v404 = vpop.f32.mrf.mxu0
  %v405 = vadd.f32 %v65, %v404
  %406 = vmatmul.bf16.gmra.mxu0 %v145
  %v407 = vpop.f32.mrf.mxu0
  %v408 = vadd.f32 %v65, %v407
  %v409 = vpop.f32.mrf.mxu0
  %v410 = vadd.f32 %v65, %v409
  %411 = vmatmul.bf16.gmra.mxu0 %v146
  %v412 = vpop.f32.mrf.mxu0
  %v413 = vadd.f32 %v65, %v412
  %v414 = vpop.f32.mrf.mxu0
  %v415 = vadd.f32 %v65, %v414
  %416 = vmatmul.bf16.gmra.mxu0 %v147
  %v417 = vpop.f32.mrf.mxu0
  %v418 = vadd.f32 %v65, %v417
  %v419 = vpop.f32.mrf.mxu0
  %v420 = vadd.f32 %v65, %v419
  %421 = vdwg.mxu0
  %v422 = vmul.f32 %v254, 0.5
  %v423 = vmul.f32 %v343, 0.5
  %v424 = vmul.f32 %v256, 0.5
  %v425 = vmul.f32 %v345, 0.5
  %v426 = vmul.f32 %v259, 0.5
  %v427 = vmul.f32 %v348, 0.5
  %v428 = vmul.f32 %v261, 0.5
  %v429 = vmul.f32 %v350, 0.5
  %v430 = vmul.f32 %v264, 0.5
  %v431 = vmul.f32 %v353, 0.5
  %v432 = vmul.f32 %v266, 0.5
  %v433 = vmul.f32 %v355, 0.5
  %v434 = vmul.f32 %v269, 0.5
  %v435 = vmul.f32 %v358, 0.5
  %v436 = vmul.f32 %v271, 0.5
  %v437 = vmul.f32 %v360, 0.5
  %v438 = vmul.f32 %v274, 0.5
  %v439 = vmul.f32 %v363, 0.5
  %v440 = vmul.f32 %v276, 0.5
  %v441 = vmul.f32 %v365, 0.5
  %v442 = vmul.f32 %v279, 0.5
  %v443 = vmul.f32 %v368, 0.5
  %v444 = vmul.f32 %v281, 0.5
  %v445 = vmul.f32 %v370, 0.5
  %v446 = vmul.f32 %v284, 0.5
  %v447 = vmul.f32 %v373, 0.5
  %v448 = vmul.f32 %v286, 0.5
  %v449 = vmul.f32 %v375, 0.5
  %v450 = vmul.f32 %v289, 0.5
  %v451 = vmul.f32 %v378, 0.5
  %v452 = vmul.f32 %v291, 0.5
  %v453 = vmul.f32 %v380, 0.5
  %v454 = vmul.f32 %v294, 0.5
  %v455 = vmul.f32 %v383, 0.5
  %v456 = vmul.f32 %v296, 0.5
  %v457 = vmul.f32 %v385, 0.5
  %v458 = vmul.f32 %v299, 0.5
  %v459 = vmul.f32 %v388, 0.5
  %v460 = vmul.f32 %v301, 0.5
  %v461 = vmul.f32 %v390, 0.5
  %v462 = vmul.f32 %v304, 0.5
  %v463 = vmul.f32 %v393, 0.5
  %v464 = vmul.f32 %v306, 0.5
  %v465 = vmul.f32 %v395, 0.5
  %v466 = vmul.f32 %v309, 0.5
  %v467 = vmul.f32 %v398, 0.5
  %v468 = vmul.f32 %v311, 0.5
  %v469 = vmul.f32 %v400, 0.5
  %v470 = vmul.f32 %v314, 0.5
  %v471 = vmul.f32 %v403, 0.5
  %v472 = vmul.f32 %v316, 0.5
  %v473 = vmul.f32 %v405, 0.5
  %v474 = vmul.f32 %v319, 0.5
  %v475 = vmul.f32 %v408, 0.5
  %v476 = vmul.f32 %v321, 0.5
  %v477 = vmul.f32 %v410, 0.5
  %v478 = vmul.f32 %v324, 0.5
  %v479 = vmul.f32 %v413, 0.5
  %v480 = vmul.f32 %v326, 0.5
  %v481 = vmul.f32 %v415, 0.5
  %v482 = vmul.f32 %v329, 0.5
  %v483 = vmul.f32 %v418, 0.5
  %v484 = vmul.f32 %v331, 0.5
  %v485 = vmul.f32 %v420, 0.5
  %v486 = vmul.f32 %v254, 0.044715
  %v487 = vmul.f32 %v343, 0.044715
  %v488 = vmul.f32 %v256, 0.044715
  %v489 = vmul.f32 %v345, 0.044715
  %v490 = vmul.f32 %v259, 0.044715
  %v491 = vmul.f32 %v348, 0.044715
  %v492 = vmul.f32 %v261, 0.044715
  %v493 = vmul.f32 %v350, 0.044715
  %v494 = vmul.f32 %v264, 0.044715
  %v495 = vmul.f32 %v353, 0.044715
  %v496 = vmul.f32 %v266, 0.044715
  %v497 = vmul.f32 %v355, 0.044715
  %v498 = vmul.f32 %v269, 0.044715
  %v499 = vmul.f32 %v358, 0.044715
  %v500 = vmul.f32 %v271, 0.044715
  %v501 = vmul.f32 %v360, 0.044715
  %v502 = vmul.f32 %v274, 0.044715
  %v503 = vmul.f32 %v363, 0.044715
  %v504 = vmul.f32 %v276, 0.044715
  %v505 = vmul.f32 %v365, 0.044715
  %v506 = vmul.f32 %v279, 0.044715
  %v507 = vmul.f32 %v368, 0.044715
  %v508 = vmul.f32 %v281, 0.044715
  %v509 = vmul.f32 %v370, 0.044715
  %v510 = vmul.f32 %v284, 0.044715
  %v511 = vmul.f32 %v373, 0.044715
  %v512 = vmul.f32 %v286, 0.044715
  %v513 = vmul.f32 %v375, 0.044715
  %v514 = vmul.f32 %v289, 0.044715
  %v515 = vmul.f32 %v378, 0.044715
  %v516 = vmul.f32 %v291, 0.044715
  %v517 = vmul.f32 %v380, 0.044715
  %v518 = vmul.f32 %v294, 0.044715
  %v519 = vmul.f32 %v383, 0.044715
  %v520 = vmul.f32 %v296, 0.044715
  %v521 = vmul.f32 %v385, 0.044715
  %v522 = vmul.f32 %v299, 0.044715
  %v523 = vmul.f32 %v388, 0.044715
  %v524 = vmul.f32 %v301, 0.044715
  %v525 = vmul.f32 %v390, 0.044715
  %v526 = vmul.f32 %v304, 0.044715
  %v527 = vmul.f32 %v393, 0.044715
  %v528 = vmul.f32 %v306, 0.044715
  %v529 = vmul.f32 %v395, 0.044715
  %v530 = vmul.f32 %v309, 0.044715
  %v531 = vmul.f32 %v398, 0.044715
  %v532 = vmul.f32 %v311, 0.044715
  %v533 = vmul.f32 %v400, 0.044715
  %v534 = vmul.f32 %v314, 0.044715
  %v535 = vmul.f32 %v403, 0.044715
  %v536 = vmul.f32 %v316, 0.044715
  %v537 = vmul.f32 %v405, 0.044715
  %v538 = vmul.f32 %v319, 0.044715
  %v539 = vmul.f32 %v408, 0.044715
  %v540 = vmul.f32 %v321, 0.044715
  %v541 = vmul.f32 %v410, 0.044715
  %v542 = vmul.f32 %v324, 0.044715
  %v543 = vmul.f32 %v413, 0.044715
  %v544 = vmul.f32 %v326, 0.044715
  %v545 = vmul.f32 %v415, 0.044715
  %v546 = vmul.f32 %v329, 0.044715
  %v547 = vmul.f32 %v418, 0.044715
  %v548 = vmul.f32 %v331, 0.044715
  %v549 = vmul.f32 %v420, 0.044715
  %v550 = vmul.f32 %v486, %v254
  %v551 = vmul.f32 %v487, %v343
  %v552 = vmul.f32 %v488, %v256
  %v553 = vmul.f32 %v489, %v345
  %v554 = vmul.f32 %v490, %v259
  %v555 = vmul.f32 %v491, %v348
  %v556 = vmul.f32 %v492, %v261
  %v557 = vmul.f32 %v493, %v350
  %v558 = vmul.f32 %v494, %v264
  %v559 = vmul.f32 %v495, %v353
  %v560 = vmul.f32 %v496, %v266
  %v561 = vmul.f32 %v497, %v355
  %v562 = vmul.f32 %v498, %v269
  %v563 = vmul.f32 %v499, %v358
  %v564 = vmul.f32 %v500, %v271
  %v565 = vmul.f32 %v501, %v360
  %v566 = vmul.f32 %v502, %v274
  %v567 = vmul.f32 %v503, %v363
  %v568 = vmul.f32 %v504, %v276
  %v569 = vmul.f32 %v505, %v365
  %v570 = vmul.f32 %v506, %v279
  %v571 = vmul.f32 %v507, %v368
  %v572 = vmul.f32 %v508, %v281
  %v573 = vmul.f32 %v509, %v370
  %v574 = vmul.f32 %v510, %v284
  %v575 = vmul.f32 %v511, %v373
  %v576 = vmul.f32 %v512, %v286
  %v577 = vmul.f32 %v513, %v375
  %v578 = vmul.f32 %v514, %v289
  %v579 = vmul.f32 %v515, %v378
  %v580 = vmul.f32 %v516, %v291
  %v581 = vmul.f32 %v517, %v380
  %v582 = vmul.f32 %v518, %v294
  %v583 = vmul.f32 %v519, %v383
  %v584 = vmul.f32 %v520, %v296
  %v585 = vmul.f32 %v521, %v385
  %v586 = vmul.f32 %v522, %v299
  %v587 = vmul.f32 %v523, %v388
  %v588 = vmul.f32 %v524, %v301
  %v589 = vmul.f32 %v525, %v390
  %v590 = vmul.f32 %v526, %v304
  %v591 = vmul.f32 %v527, %v393
  %v592 = vmul.f32 %v528, %v306
  %v593 = vmul.f32 %v529, %v395
  %v594 = vmul.f32 %v530, %v309
  %v595 = vmul.f32 %v531, %v398
  %v596 = vmul.f32 %v532, %v311
  %v597 = vmul.f32 %v533, %v400
  %v598 = vmul.f32 %v534, %v314
  %v599 = vmul.f32 %v535, %v403
  %v600 = vmul.f32 %v536, %v316
  %v601 = vmul.f32 %v537, %v405
  %v602 = vmul.f32 %v538, %v319
  %v603 = vmul.f32 %v539, %v408
  %v604 = vmul.f32 %v540, %v321
  %v605 = vmul.f32 %v541, %v410
  %v606 = vmul.f32 %v542, %v324
  %v607 = vmul.f32 %v543, %v413
  %v608 = vmul.f32 %v544, %v326
  %v609 = vmul.f32 %v545, %v415
  %v610 = vmul.f32 %v546, %v329
  %v611 = vmul.f32 %v547, %v418
  %v612 = vmul.f32 %v548, %v331
  %v613 = vmul.f32 %v549, %v420
  %v614 = vmul.f32 %v550, %v254
  %v615 = vmul.f32 %v551, %v343
  %v616 = vmul.f32 %v552, %v256
  %v617 = vmul.f32 %v553, %v345
  %v618 = vmul.f32 %v554, %v259
  %v619 = vmul.f32 %v555, %v348
  %v620 = vmul.f32 %v556, %v261
  %v621 = vmul.f32 %v557, %v350
  %v622 = vmul.f32 %v558, %v264
  %v623 = vmul.f32 %v559, %v353
  %v624 = vmul.f32 %v560, %v266
  %v625 = vmul.f32 %v561, %v355
  %v626 = vmul.f32 %v562, %v269
  %v627 = vmul.f32 %v563, %v358
  %v628 = vmul.f32 %v564, %v271
  %v629 = vmul.f32 %v565, %v360
  %v630 = vmul.f32 %v566, %v274
  %v631 = vmul.f32 %v567, %v363
  %v632 = vmul.f32 %v568, %v276
  %v633 = vmul.f32 %v569, %v365
  %v634 = vmul.f32 %v570, %v279
  %v635 = vmul.f32 %v571, %v368
  %v636 = vmul.f32 %v572, %v281
  %v637 = vmul.f32 %v573, %v370
  %v638 = vmul.f32 %v574, %v284
  %v639 = vmul.f32 %v575, %v373
  %v640 = vmul.f32 %v576, %v286
  %v641 = vmul.f32 %v577, %v375
  %v642 = vmul.f32 %v578, %v289
  %v643 = vmul.f32 %v579, %v378
  %v644 = vmul.f32 %v580, %v291
  %v645 = vmul.f32 %v581, %v380
  %v646 = vmul.f32 %v582, %v294
  %v647 = vmul.f32 %v583, %v383
  %v648 = vmul.f32 %v584, %v296
  %v649 = vmul.f32 %v585, %v385
  %v650 = vmul.f32 %v586, %v299
  %v651 = vmul.f32 %v587, %v388
  %v652 = vmul.f32 %v588, %v301
  %v653 = vmul.f32 %v589, %v390
  %v654 = vmul.f32 %v590, %v304
  %v655 = vmul.f32 %v591, %v393
  %v656 = vmul.f32 %v592, %v306
  %v657 = vmul.f32 %v593, %v395
  %v658 = vmul.f32 %v594, %v309
  %v659 = vmul.f32 %v595, %v398
  %v660 = vmul.f32 %v596, %v311
  %v661 = vmul.f32 %v597, %v400
  %v662 = vmul.f32 %v598, %v314
  %v663 = vmul.f32 %v599, %v403
  %v664 = vmul.f32 %v600, %v316
  %v665 = vmul.f32 %v601, %v405
  %v666 = vmul.f32 %v602, %v319
  %v667 = vmul.f32 %v603, %v408
  %v668 = vmul.f32 %v604, %v321
  %v669 = vmul.f32 %v605, %v410
  %v670 = vmul.f32 %v606, %v324
  %v671 = vmul.f32 %v607, %v413
  %v672 = vmul.f32 %v608, %v326
  %v673 = vmul.f32 %v609, %v415
  %v674 = vmul.f32 %v610, %v329
  %v675 = vmul.f32 %v611, %v418
  %v676 = vmul.f32 %v612, %v331
  %v677 = vmul.f32 %v613, %v420
  %v678 = vadd.f32 %v254, %v614
  %v679 = vadd.f32 %v343, %v615
  %v680 = vadd.f32 %v256, %v616
  %v681 = vadd.f32 %v345, %v617
  %v682 = vadd.f32 %v259, %v618
  %v683 = vadd.f32 %v348, %v619
  %v684 = vadd.f32 %v261, %v620
  %v685 = vadd.f32 %v350, %v621
  %v686 = vadd.f32 %v264, %v622
  %v687 = vadd.f32 %v353, %v623
  %v688 = vadd.f32 %v266, %v624
  %v689 = vadd.f32 %v355, %v625
  %v690 = vadd.f32 %v269, %v626
  %v691 = vadd.f32 %v358, %v627
  %v692 = vadd.f32 %v271, %v628
  %v693 = vadd.f32 %v360, %v629
  %v694 = vadd.f32 %v274, %v630
  %v695 = vadd.f32 %v363, %v631
  %v696 = vadd.f32 %v276, %v632
  %v697 = vadd.f32 %v365, %v633
  %v698 = vadd.f32 %v279, %v634
  %v699 = vadd.f32 %v368, %v635
  %v700 = vadd.f32 %v281, %v636
  %v701 = vadd.f32 %v370, %v637
  %v702 = vadd.f32 %v284, %v638
  %v703 = vadd.f32 %v373, %v639
  %v704 = vadd.f32 %v286, %v640
  %v705 = vadd.f32 %v375, %v641
  %v706 = vadd.f32 %v289, %v642
  %v707 = vadd.f32 %v378, %v643
  %v708 = vadd.f32 %v291, %v644
  %v709 = vadd.f32 %v380, %v645
  %v710 = vadd.f32 %v294, %v646
  %v711 = vadd.f32 %v383, %v647
  %v712 = vadd.f32 %v296, %v648
  %v713 = vadd.f32 %v385, %v649
  %v714 = vadd.f32 %v299, %v650
  %v715 = vadd.f32 %v388, %v651
  %v716 = vadd.f32 %v301, %v652
  %v717 = vadd.f32 %v390, %v653
  %v718 = vadd.f32 %v304, %v654
  %v719 = vadd.f32 %v393, %v655
  %v720 = vadd.f32 %v306, %v656
  %v721 = vadd.f32 %v395, %v657
  %v722 = vadd.f32 %v309, %v658
  %v723 = vadd.f32 %v398, %v659
  %v724 = vadd.f32 %v311, %v660
  %v725 = vadd.f32 %v400, %v661
  %v726 = vadd.f32 %v314, %v662
  %v727 = vadd.f32 %v403, %v663
  %v728 = vadd.f32 %v316, %v664
  %v729 = vadd.f32 %v405, %v665
  %v730 = vadd.f32 %v319, %v666
  %v731 = vadd.f32 %v408, %v667
  %v732 = vadd.f32 %v321, %v668
  %v733 = vadd.f32 %v410, %v669
  %v734 = vadd.f32 %v324, %v670
  %v735 = vadd.f32 %v413, %v671
  %v736 = vadd.f32 %v326, %v672
  %v737 = vadd.f32 %v415, %v673
  %v738 = vadd.f32 %v329, %v674
  %v739 = vadd.f32 %v418, %v675
  %v740 = vadd.f32 %v331, %v676
  %v741 = vadd.f32 %v420, %v677
  %v742 = vmul.f32 %v678, 0.7978846
  %v743 = vmul.f32 %v679, 0.7978846
  %v744 = vmul.f32 %v680, 0.7978846
  %v745 = vmul.f32 %v681, 0.7978846
  %v746 = vmul.f32 %v682, 0.7978846
  %v747 = vmul.f32 %v683, 0.7978846
  %v748 = vmul.f32 %v684, 0.7978846
  %v749 = vmul.f32 %v685, 0.7978846
  %v750 = vmul.f32 %v686, 0.7978846
  %v751 = vmul.f32 %v687, 0.7978846
  %v752 = vmul.f32 %v688, 0.7978846
  %v753 = vmul.f32 %v689, 0.7978846
  %v754 = vmul.f32 %v690, 0.7978846
  %v755 = vmul.f32 %v691, 0.7978846
  %v756 = vmul.f32 %v692, 0.7978846
  %v757 = vmul.f32 %v693, 0.7978846
  %v758 = vmul.f32 %v694, 0.7978846
  %v759 = vmul.f32 %v695, 0.7978846
  %v760 = vmul.f32 %v696, 0.7978846
  %v761 = vmul.f32 %v697, 0.7978846
  %v762 = vmul.f32 %v698, 0.7978846
  %v763 = vmul.f32 %v699, 0.7978846
  %v764 = vmul.f32 %v700, 0.7978846
  %v765 = vmul.f32 %v701, 0.7978846
  %v766 = vmul.f32 %v702, 0.7978846
  %v767 = vmul.f32 %v703, 0.7978846
  %v768 = vmul.f32 %v704, 0.7978846
  %v769 = vmul.f32 %v705, 0.7978846
  %v770 = vmul.f32 %v706, 0.7978846
  %v771 = vmul.f32 %v707, 0.7978846
  %v772 = vmul.f32 %v708, 0.7978846
  %v773 = vmul.f32 %v709, 0.7978846
  %v774 = vmul.f32 %v710, 0.7978846
  %v775 = vmul.f32 %v711, 0.7978846
  %v776 = vmul.f32 %v712, 0.7978846
  %v777 = vmul.f32 %v713, 0.7978846
  %v778 = vmul.f32 %v714, 0.7978846
  %v779 = vmul.f32 %v715, 0.7978846
  %v780 = vmul.f32 %v716, 0.7978846
  %v781 = vmul.f32 %v717, 0.7978846
  %v782 = vmul.f32 %v718, 0.7978846
  %v783 = vmul.f32 %v719, 0.7978846
  %v784 = vmul.f32 %v720, 0.7978846
  %v785 = vmul.f32 %v721, 0.7978846
  %v786 = vmul.f32 %v722, 0.7978846
  %v787 = vmul.f32 %v723, 0.7978846
  %v788 = vmul.f32 %v724, 0.7978846
  %v789 = vmul.f32 %v725, 0.7978846
  %v790 = vmul.f32 %v726, 0.7978846
  %v791 = vmul.f32 %v727, 0.7978846
  %v792 = vmul.f32 %v728, 0.7978846
  %v793 = vmul.f32 %v729, 0.7978846
  %v794 = vmul.f32 %v730, 0.7978846
  %v795 = vmul.f32 %v731, 0.7978846
  %v796 = vmul.f32 %v732, 0.7978846
  %v797 = vmul.f32 %v733, 0.7978846
  %v798 = vmul.f32 %v734, 0.7978846
  %v799 = vmul.f32 %v735, 0.7978846
  %v800 = vmul.f32 %v736, 0.7978846
  %v801 = vmul.f32 %v737, 0.7978846
  %v802 = vmul.f32 %v738, 0.7978846
  %v803 = vmul.f32 %v739, 0.7978846
  %v804 = vmul.f32 %v740, 0.7978846
  %v805 = vmul.f32 %v741, 0.7978846
  %v806 = vtanh.pop %v742
  %v807 = vtanh.pop %v743
  %v808 = vtanh.pop %v744
  %v809 = vtanh.pop %v745
  %v810 = vtanh.pop %v746
  %v811 = vtanh.pop %v747
  %v812 = vtanh.pop %v748
  %v813 = vtanh.pop %v749
  %v814 = vtanh.pop %v750
  %v815 = vtanh.pop %v751
  %v816 = vtanh.pop %v752
  %v817 = vtanh.pop %v753
  %v818 = vtanh.pop %v754
  %v819 = vtanh.pop %v755
  %v820 = vtanh.pop %v756
  %v821 = vtanh.pop %v757
  %v822 = vtanh.pop %v758
  %v823 = vtanh.pop %v759
  %v824 = vtanh.pop %v760
  %v825 = vtanh.pop %v761
  %v826 = vtanh.pop %v762
  %v827 = vtanh.pop %v763
  %v828 = vtanh.pop %v764
  %v829 = vtanh.pop %v765
  %v830 = vtanh.pop %v766
  %v831 = vtanh.pop %v767
  %v832 = vtanh.pop %v768
  %v833 = vtanh.pop %v769
  %v834 = vtanh.pop %v770
  %v835 = vtanh.pop %v771
  %v836 = vtanh.pop %v772
  %v837 = vtanh.pop %v773
  %v838 = vtanh.pop %v774
  %v839 = vtanh.pop %v775
  %v840 = vtanh.pop %v776
  %v841 = vtanh.pop %v777
  %v842 = vtanh.pop %v778
  %v843 = vtanh.pop %v779
  %v844 = vtanh.pop %v780
  %v845 = vtanh.pop %v781
  %v846 = vtanh.pop %v782
  %v847 = vtanh.pop %v783
  %v848 = vtanh.pop %v784
  %v849 = vtanh.pop %v785
  %v850 = vtanh.pop %v786
  %v851 = vtanh.pop %v787
  %v852 = vtanh.pop %v788
  %v853 = vtanh.pop %v789
  %v854 = vtanh.pop %v790
  %v855 = vtanh.pop %v791
  %v856 = vtanh.pop %v792
  %v857 = vtanh.pop %v793
  %v858 = vtanh.pop %v794
  %v859 = vtanh.pop %v795
  %v860 = vtanh.pop %v796
  %v861 = vtanh.pop %v797
  %v862 = vtanh.pop %v798
  %v863 = vtanh.pop %v799
  %v864 = vtanh.pop %v800
  %v865 = vtanh.pop %v801
  %v866 = vtanh.pop %v802
  %v867 = vtanh.pop %v803
  %v868 = vtanh.pop %v804
  %v869 = vtanh.pop %v805
  %v870 = vadd.f32 %v806, 1.0
  %v871 = vadd.f32 %v807, 1.0
  %v872 = vadd.f32 %v808, 1.0
  %v873 = vadd.f32 %v809, 1.0
  %v874 = vadd.f32 %v810, 1.0
  %v875 = vadd.f32 %v811, 1.0
  %v876 = vadd.f32 %v812, 1.0
  %v877 = vadd.f32 %v813, 1.0
  %v878 = vadd.f32 %v814, 1.0
  %v879 = vadd.f32 %v815, 1.0
  %v880 = vadd.f32 %v816, 1.0
  %v881 = vadd.f32 %v817, 1.0
  %v882 = vadd.f32 %v818, 1.0
  %v883 = vadd.f32 %v819, 1.0
  %v884 = vadd.f32 %v820, 1.0
  %v885 = vadd.f32 %v821, 1.0
  %v886 = vadd.f32 %v822, 1.0
  %v887 = vadd.f32 %v823, 1.0
  %v888 = vadd.f32 %v824, 1.0
  %v889 = vadd.f32 %v825, 1.0
  %v890 = vadd.f32 %v826, 1.0
  %v891 = vadd.f32 %v827, 1.0
  %v892 = vadd.f32 %v828, 1.0
  %v893 = vadd.f32 %v829, 1.0
  %v894 = vadd.f32 %v830, 1.0
  %v895 = vadd.f32 %v831, 1.0
  %v896 = vadd.f32 %v832, 1.0
  %v897 = vadd.f32 %v833, 1.0
  %v898 = vadd.f32 %v834, 1.0
  %v899 = vadd.f32 %v835, 1.0
  %v900 = vadd.f32 %v836, 1.0
  %v901 = vadd.f32 %v837, 1.0
  %v902 = vadd.f32 %v838, 1.0
  %v903 = vadd.f32 %v839, 1.0
  %v904 = vadd.f32 %v840, 1.0
  %v905 = vadd.f32 %v841, 1.0
  %v906 = vadd.f32 %v842, 1.0
  %v907 = vadd.f32 %v843, 1.0
  %v908 = vadd.f32 %v844, 1.0
  %v909 = vadd.f32 %v845, 1.0
  %v910 = vadd.f32 %v846, 1.0
  %v911 = vadd.f32 %v847, 1.0
  %v912 = vadd.f32 %v848, 1.0
  %v913 = vadd.f32 %v849, 1.0
  %v914 = vadd.f32 %v850, 1.0
  %v915 = vadd.f32 %v851, 1.0
  %v916 = vadd.f32 %v852, 1.0
  %v917 = vadd.f32 %v853, 1.0
  %v918 = vadd.f32 %v854, 1.0
  %v919 = vadd.f32 %v855, 1.0
  %v920 = vadd.f32 %v856, 1.0
  %v921 = vadd.f32 %v857, 1.0
  %v922 = vadd.f32 %v858, 1.0
  %v923 = vadd.f32 %v859, 1.0
  %v924 = vadd.f32 %v860, 1.0
  %v925 = vadd.f32 %v861, 1.0
  %v926 = vadd.f32 %v862, 1.0
  %v927 = vadd.f32 %v863, 1.0
  %v928 = vadd.f32 %v864, 1.0
  %v929 = vadd.f32 %v865, 1.0
  %v930 = vadd.f32 %v866, 1.0
  %v931 = vadd.f32 %v867, 1.0
  %v932 = vadd.f32 %v868, 1.0
  %v933 = vadd.f32 %v869, 1.0
  %v934 = vmul.f32 %v422, %v870
  %v935 = vmul.f32 %v423, %v871
  %v936 = vmul.f32 %v424, %v872
  %v937 = vmul.f32 %v425, %v873
  %v938 = vmul.f32 %v426, %v874
  %v939 = vmul.f32 %v427, %v875
  %v940 = vmul.f32 %v428, %v876
  %v941 = vmul.f32 %v429, %v877
  %v942 = vmul.f32 %v430, %v878
  %v943 = vmul.f32 %v431, %v879
  %v944 = vmul.f32 %v432, %v880
  %v945 = vmul.f32 %v433, %v881
  %v946 = vmul.f32 %v434, %v882
  %v947 = vmul.f32 %v435, %v883
  %v948 = vmul.f32 %v436, %v884
  %v949 = vmul.f32 %v437, %v885
  %v950 = vmul.f32 %v438, %v886
  %v951 = vmul.f32 %v439, %v887
  %v952 = vmul.f32 %v440, %v888
  %v953 = vmul.f32 %v441, %v889
  %v954 = vmul.f32 %v442, %v890
  %v955 = vmul.f32 %v443, %v891
  %v956 = vmul.f32 %v444, %v892
  %v957 = vmul.f32 %v445, %v893
  %v958 = vmul.f32 %v446, %v894
  %v959 = vmul.f32 %v447, %v895
  %v960 = vmul.f32 %v448, %v896
  %v961 = vmul.f32 %v449, %v897
  %v962 = vmul.f32 %v450, %v898
  %v963 = vmul.f32 %v451, %v899
  %v964 = vmul.f32 %v452, %v900
  %v965 = vmul.f32 %v453, %v901
  %v966 = vmul.f32 %v454, %v902
  %v967 = vmul.f32 %v455, %v903
  %v968 = vmul.f32 %v456, %v904
  %v969 = vmul.f32 %v457, %v905
  %v970 = vmul.f32 %v458, %v906
  %v971 = vmul.f32 %v459, %v907
  %v972 = vmul.f32 %v460, %v908
  %v973 = vmul.f32 %v461, %v909
  %v974 = vmul.f32 %v462, %v910
  %v975 = vmul.f32 %v463, %v911
  %v976 = vmul.f32 %v464, %v912
  %v977 = vmul.f32 %v465, %v913
  %v978 = vmul.f32 %v466, %v914
  %v979 = vmul.f32 %v467, %v915
  %v980 = vmul.f32 %v468, %v916
  %v981 = vmul.f32 %v469, %v917
  %v982 = vmul.f32 %v470, %v918
  %v983 = vmul.f32 %v471, %v919
  %v984 = vmul.f32 %v472, %v920
  %v985 = vmul.f32 %v473, %v921
  %v986 = vmul.f32 %v474, %v922
  %v987 = vmul.f32 %v475, %v923
  %v988 = vmul.f32 %v476, %v924
  %v989 = vmul.f32 %v477, %v925
  %v990 = vmul.f32 %v478, %v926
  %v991 = vmul.f32 %v479, %v927
  %v992 = vmul.f32 %v480, %v928
  %v993 = vmul.f32 %v481, %v929
  %v994 = vmul.f32 %v482, %v930
  %v995 = vmul.f32 %v483, %v931
  %v996 = vmul.f32 %v484, %v932
  %v997 = vmul.f32 %v485, %v933
  %v998 = vpack.c.bf16 %v935, %v934
  %v999 = vpack.c.bf16 %v937, %v936
  %v1000 = vpack.c.bf16 %v939, %v938
  %v1001 = vpack.c.bf16 %v941, %v940
  %v1002 = vpack.c.bf16 %v943, %v942
  %v1003 = vpack.c.bf16 %v945, %v944
  %v1004 = vpack.c.bf16 %v947, %v946
  %v1005 = vpack.c.bf16 %v949, %v948
  %v1006 = vpack.c.bf16 %v951, %v950
  %v1007 = vpack.c.bf16 %v953, %v952
  %v1008 = vpack.c.bf16 %v955, %v954
  %v1009 = vpack.c.bf16 %v957, %v956
  %v1010 = vpack.c.bf16 %v959, %v958
  %v1011 = vpack.c.bf16 %v961, %v960
  %v1012 = vpack.c.bf16 %v963, %v962
  %v1013 = vpack.c.bf16 %v965, %v964
  %v1014 = vpack.c.bf16 %v967, %v966
  %v1015 = vpack.c.bf16 %v969, %v968
  %v1016 = vpack.c.bf16 %v971, %v970
  %v1017 = vpack.c.bf16 %v973, %v972
  %v1018 = vpack.c.bf16 %v975, %v974
  %v1019 = vpack.c.bf16 %v977, %v976
  %v1020 = vpack.c.bf16 %v979, %v978
  %v1021 = vpack.c.bf16 %v981, %v980
  %v1022 = vpack.c.bf16 %v983, %v982
  %v1023 = vpack.c.bf16 %v985, %v984
  %v1024 = vpack.c.bf16 %v987, %v986
  %v1025 = vpack.c.bf16 %v989, %v988
  %v1026 = vpack.c.bf16 %v991, %v990
  %v1027 = vpack.c.bf16 %v993, %v992
  %v1028 = vpack.c.bf16 %v995, %v994
  %v1029 = vpack.c.bf16 %v997, %v996
  %1030 = vst [vmem:[%s3] sm:$0xff] %v998
  %1031 = vst [vmem:[%s3 + $0x8] sm:$0xff] %v999
  %1032 = vst [vmem:[%s3 + $0x10] sm:$0xff] %v1000
  %1033 = vst [vmem:[%s3 + $0x18] sm:$0xff] %v1001
  %1034 = vst [vmem:[%s3 + $0x20] sm:$0xff] %v1002
  %1035 = vst [vmem:[%s3 + $0x28] sm:$0xff] %v1003
  %1036 = vst [vmem:[%s3 + $0x30] sm:$0xff] %v1004
  %1037 = vst [vmem:[%s3 + $0x38] sm:$0xff] %v1005
  %1038 = vst [vmem:[%s3 + $0x40] sm:$0xff] %v1006
  %1039 = vst [vmem:[%s3 + $0x48] sm:$0xff] %v1007
  %1040 = vst [vmem:[%s3 + $0x50] sm:$0xff] %v1008
  %1041 = vst [vmem:[%s3 + $0x58] sm:$0xff] %v1009
  %1042 = vst [vmem:[%s3 + $0x60] sm:$0xff] %v1010
  %1043 = vst [vmem:[%s3 + $0x68] sm:$0xff] %v1011
  %1044 = vst [vmem:[%s3 + $0x70] sm:$0xff] %v1012
  %1045 = vst [vmem:[%s3 + $0x78] sm:$0xff] %v1013
  %1046 = vst [vmem:[%s3 + $0x80] sm:$0xff] %v1014
  %1047 = vst [vmem:[%s3 + $0x88] sm:$0xff] %v1015
  %1048 = vst [vmem:[%s3 + $0x90] sm:$0xff] %v1016
  %1049 = vst [vmem:[%s3 + $0x98] sm:$0xff] %v1017
  %1050 = vst [vmem:[%s3 + $0xa0] sm:$0xff] %v1018
  %1051 = vst [vmem:[%s3 + $0xa8] sm:$0xff] %v1019
  %1052 = vst [vmem:[%s3 + $0xb0] sm:$0xff] %v1020
  %1053 = vst [vmem:[%s3 + $0xb8] sm:$0xff] %v1021
  %1054 = vst [vmem:[%s3 + $0xc0] sm:$0xff] %v1022
  %1055 = vst [vmem:[%s3 + $0xc8] sm:$0xff] %v1023
  %1056 = vst [vmem:[%s3 + $0xd0] sm:$0xff] %v1024
  %1057 = vst [vmem:[%s3 + $0xd8] sm:$0xff] %v1025
  %1058 = vst [vmem:[%s3 + $0xe0] sm:$0xff] %v1026
  %1059 = vst [vmem:[%s3 + $0xe8] sm:$0xff] %v1027
  %1060 = vst [vmem:[%s3 + $0xf0] sm:$0xff] %v1028
  %1061 = vst [vmem:[%s3 + $0xf8] sm:$0xff] %v1029
  // Predicated region
  $region14: #{plm_token_encoder_forward.20} parent=0 // pred_check
    _
  $region15: #{plm_token_encoder_forward.20} parent=0 // pred_check_branch
    %1063 = sbr.rel (0) target = $region17
  $region16: #{plm_token_encoder_forward.20} parent=0 // pred_region
    _
  $region17: #{plm_token_encoder_forward.20} parent=0 // pred_fallthru
    _
  // Predicated region
  $region18: #{plm_token_encoder_forward.20} parent=0 // pred_check
    _
  $region19: #{plm_token_encoder_forward.20} parent=0 // pred_check_branch
    %1065 = sbr.rel (0) target = $region21
  $region20: #{plm_token_encoder_forward.20} parent=0 // pred_region
    _
  $region21: #{plm_token_encoder_forward.20} parent=0 // pred_fallthru
    _

</llo_original>
